<compile_context>
chip_gen: v7x
topology: tpu7x:2x2x1
jax: 0.10.0
libtpu: 0.0.40
codegen_flags: <defaults>
</compile_context>

<pallas_src>
import math
import functools

import jax
import jax.numpy as jnp
from jax.experimental import pallas as pl
from jax.experimental.pallas import tpu as pltpu

# ----------------------------- config (small, consistent with module) ---------
INPUT_DIM = 10
HIDDEN_DIM = 32
NUM_LAYERS = 2
NUM_HEADS = 4
HEAD_DIM = HIDDEN_DIM // NUM_HEADS
SEQ_LENGTH = 8
OUTPUT_DIM = 1
WEATHER_FEATURES = 7
LN_EPS = 1e-5

VMEM = pl.BlockSpec(memory_space=pltpu.MemorySpace.VMEM)

# bias-slab row layout (each row is one bias / LN vector, lane-padded to 128)
ROW_B_LOAD = 0
ROW_B_WEA = 1
ROW_B_CONV = 2
LAYER_BASE = 3
LAYER_ROWS = 8        # [qkv_b, attn_out_b, ln1_g, ln1_b, ffn_b1, ffn_b2, ln2_g, ln2_b]
FUSION_BASE = LAYER_BASE + NUM_LAYERS * LAYER_ROWS     # 19: [f_qkv_b, f_out_b]
ROW_BP1 = FUSION_BASE + 2                              # 21
ROW_BP2 = FUSION_BASE + 3                              # 22
BIAS_ROWS = 24


# ----------------------------- the fused kernel --------------------------------
def _fused_forward_kernel(
        # activations & tables
        load_ref, wea_ref, pe_ref,
        # embedding / conv weights
        w_load_ref, w_wea_ref, conv_w_ref,
        # shared transformer encoder layers (stacked over L)
        l_wqkv_ref, l_wo_ref, l_w1_ref, l_w2_ref,
        # fusion cross-attention
        f_wqkv_ref, f_wo_ref,
        # output projection head
        wp1_ref, wp2_ref,
        # packed biases / LN params
        bias_ref,
        # output
        out_ref,
        *, batch, seq):
    f32 = jnp.float32
    B, S, H = batch, seq, HIDDEN_DIM
    NH, HD = NUM_HEADS, HEAD_DIM
    BS = B * S
    scale = 1.0 / math.sqrt(HD)

    def brow(row, width):
        return bias_ref[row:row + 1, 0:width]                     # (1, width)

    def layernorm(z, g_row, b_row):
        g = brow(g_row, H)
        b = brow(b_row, H)
        mu = jnp.mean(z, axis=-1, keepdims=True)
        zc = z - mu
        var = jnp.mean(zc * zc, axis=-1, keepdims=True)
        return zc * jax.lax.rsqrt(var + LN_EPS) * g + b

    def attention(xq, xkv, nb, wqkv, wo, bqkv_row, bo_row, is_self):
        # xq / xkv: (nb*S, H).  One fused QKV matmul (self) or Q + KV matmuls
        # (cross); heads stacked on the leading axis so scores / softmax /
        # context run once over all heads; single full-width W_o matmul.
        bqkv = brow(bqkv_row, 3 * H)                              # (1, 3H)
        if is_self:
            qkv = jnp.dot(xq, wqkv, preferred_element_type=f32) + bqkv
            q2 = qkv[:, 0:H]
            k2 = qkv[:, H:2 * H]
            v2 = qkv[:, 2 * H:3 * H]
        else:
            q2 = jnp.dot(xq, wqkv[:, 0:H], preferred_element_type=f32) + bqkv[:, 0:H]
            kv = jnp.dot(xkv, wqkv[:, H:3 * H], preferred_element_type=f32) \
                + bqkv[:, H:3 * H]
            k2 = kv[:, 0:H]
            v2 = kv[:, H:2 * H]

        q3 = q2.reshape(nb, S, H)
        k3 = k2.reshape(nb, S, H)
        v3 = v2.reshape(nb, S, H)
        # stack heads along the leading (batch) axis -> (NH*nb, S, HD)
        qh = jnp.concatenate([q3[:, :, i * HD:(i + 1) * HD] for i in range(NH)], axis=0)
        kh = jnp.concatenate([k3[:, :, i * HD:(i + 1) * HD] for i in range(NH)], axis=0)
        vh = jnp.concatenate([v3[:, :, i * HD:(i + 1) * HD] for i in range(NH)], axis=0)

        s = jnp.einsum('bqd,bkd->bqk', qh, kh,
                       preferred_element_type=f32) * scale        # (NH*nb, S, S)
        m = jnp.max(s, axis=-1, keepdims=True)
        p = jnp.exp(s - m)
        denom = jnp.sum(p, axis=-1, keepdims=True)
        p = p * pl.reciprocal(denom, approx=True)
        o = jnp.einsum('bqk,bkd->bqd', p, vh,
                       preferred_element_type=f32)                # (NH*nb, S, HD)
        # heads back along lanes -> (nb*S, H), then ONE output projection
        oc = jnp.concatenate(
            [o[i * nb:(i + 1) * nb].reshape(nb * S, HD) for i in range(NH)], axis=-1)
        return jnp.dot(oc, wo, preferred_element_type=f32) + brow(bo_row, H)

    # ---- embeddings + positional encoding -------------------------------------
    pe_bs = jnp.concatenate([pe_ref[...]] * B, axis=0)            # (BS, H)
    load_emb = (jnp.dot(load_ref[...], w_load_ref[...], preferred_element_type=f32)
                + brow(ROW_B_LOAD, H) + pe_bs)
    wea_emb = (jnp.dot(wea_ref[...], w_wea_ref[...], preferred_element_type=f32)
               + brow(ROW_B_WEA, H) + pe_bs)

    # ---- Conv1d(k=3, padding=1) along seq: rolls (XLU) + batch-boundary masks ---
    t_prev = jnp.dot(load_emb, conv_w_ref[0], preferred_element_type=f32)
    t_curr = jnp.dot(load_emb, conv_w_ref[1], preferred_element_type=f32)
    t_next = jnp.dot(load_emb, conv_w_ref[2], preferred_element_type=f32)
    row_idx = jax.lax.broadcasted_iota(jnp.int32, (BS, H), 0)
    tpos = row_idx % S
    from_prev = jnp.where(tpos != 0, pltpu.roll(t_prev, 1, 0), 0.0)       # x[t-1]
    from_next = jnp.where(tpos != S - 1, pltpu.roll(t_next, BS - 1, 0), 0.0)  # x[t+1]
    load_conv = from_prev + t_curr + from_next + brow(ROW_B_CONV, H)

    # ---- batch the two encoder paths: rows [0:BS]=load, [BS:2BS]=weather -------
    h = jnp.concatenate([load_conv, wea_emb], axis=0)             # (2*BS, H)

    # ---- shared transformer encoder (post-norm, ReLU FFN, dropout=identity) ----
    for l in range(NUM_LAYERS):
        base = LAYER_BASE + l * LAYER_ROWS
        a = attention(h, h, 2 * B, l_wqkv_ref[l], l_wo_ref[l],
                      bqkv_row=base + 0, bo_row=base + 1, is_self=True)
        h = layernorm(h + a, base + 2, base + 3)
        ff = jnp.maximum(
            jnp.dot(h, l_w1_ref[l], preferred_element_type=f32) + brow(base + 4, 4 * H),
            0.0)
        ff = jnp.dot(ff, l_w2_ref[l], preferred_element_type=f32) + brow(base + 5, H)
        h = layernorm(h + ff, base + 6, base + 7)

    load_enc = h[0:BS, :]
    wea_enc = h[BS:2 * BS, :]

    # ---- fusion cross-attention (q=load, k=v=weather), no residual/norm --------
    fused = attention(load_enc, wea_enc, B, f_wqkv_ref[...], f_wo_ref[...],
                      bqkv_row=FUSION_BASE + 0, bo_row=FUSION_BASE + 1,
                      is_self=False)                              # (BS, H)

    # ---- last timestep of each batch (static sublane gather), then the head ----
    final = fused.reshape(B, S, H)[:, S - 1, :]                   # (B, H)
    hid = jnp.maximum(
        jnp.dot(final, wp1_ref[...], preferred_element_type=f32)
        + brow(ROW_BP1, H // 2), 0.0)
    out_ref[...] = (jnp.dot(hid, wp2_ref[...], preferred_element_type=f32)
                    + brow(ROW_BP2, OUTPUT_DIM))


# ----------------------------- wrapper ------------------------------------------
def forward(x, params):
    """x: (B, S, INPUT_DIM) -> (B, OUTPUT_DIM).  weather_features > 0 branch."""
    B, S, D = x.shape
    wf = WEATHER_FEATURES

    # TODO(synk): the weather_features == 0 fallback branch of the PyTorch
    # forward is not implemented (this config always takes the weather branch).
    load2d = x[:, :, :D - wf].reshape(B * S, D - wf)
    wea2d = x[:, :, D - wf:].reshape(B * S, wf)

    kern = functools.partial(_fused_forward_kernel, batch=B, seq=S)
    n_inputs = 15
    return pl.pallas_call(
        kern,
        out_shape=jax.ShapeDtypeStruct((B, OUTPUT_DIM), jnp.float32),
        in_specs=[VMEM] * n_inputs,
        out_specs=VMEM,
    )(load2d, wea2d, params['pos_enc'],
      params['w_load'], params['w_wea'], params['conv_w'],
      params['L_wqkv'], params['L_wo'], params['L_w1'], params['L_w2'],
      params['f_wqkv'], params['f_wo'],
      params['wp1'], params['wp2'],
      params['bias_slab'])


# ----------------------------- parameter init -----------------------------------
def positional_encoding(seq_len, d_model):
    pos = jnp.arange(seq_len, dtype=jnp.float32)[:, None]
    div = jnp.exp(jnp.arange(0, d_model, 2, dtype=jnp.float32)
                  * (-math.log(10000.0) / d_model))
    pe = jnp.zeros((seq_len, d_model), jnp.float32)
    pe = pe.at[:, 0::2].set(jnp.sin(pos * div))
    pe = pe.at[:, 1::2].set(jnp.cos(pos * div))
    return pe                                                     # (S, H)


def _xavier(key, fan_in, fan_out):
    lim = math.sqrt(6.0 / (fan_in + fan_out))
    return jax.random.uniform(key, (fan_in, fan_out), jnp.float32, -lim, lim)


def init_params(key):
    h = HIDDEN_DIM
    keys = jax.random.split(key, 8)
    p = {}
    p['w_load'] = _xavier(keys[0], INPUT_DIM - WEATHER_FEATURES, h)
    p['w_wea'] = _xavier(keys[1], WEATHER_FEATURES, h)
    # Conv1d kaiming-normal (fan_out = out_channels * kernel); stored (tap, in, out)
    std = math.sqrt(2.0 / (h * 3))
    p['conv_w'] = std * jax.random.normal(keys[2], (3, h, h), jnp.float32)

    lk = jax.random.split(keys[3], NUM_LAYERS)
    wqkv_l, wo_l, w1_l, w2_l = [], [], [], []
    for i in range(NUM_LAYERS):
        sk = jax.random.split(lk[i], 6)
        wqkv_l.append(jnp.concatenate(
            [_xavier(sk[0], h, h), _xavier(sk[1], h, h), _xavier(sk[2], h, h)], axis=1))
        wo_l.append(_xavier(sk[3], h, h))
        w1_l.append(_xavier(sk[4], h, 4 * h))
        w2_l.append(_xavier(sk[5], 4 * h, h))
    p['L_wqkv'] = jnp.stack(wqkv_l, 0)     # (L, H, 3H)
    p['L_wo'] = jnp.stack(wo_l, 0)         # (L, H, H)
    p['L_w1'] = jnp.stack(w1_l, 0)         # (L, H, 4H)
    p['L_w2'] = jnp.stack(w2_l, 0)         # (L, 4H, H)

    fk = jax.random.split(keys[4], 4)
    p['f_wqkv'] = jnp.concatenate(
        [_xavier(fk[0], h, h), _xavier(fk[1], h, h), _xavier(fk[2], h, h)], axis=1)
    p['f_wo'] = _xavier(fk[3], h, h)

    p['wp1'] = _xavier(keys[5], h, h // 2)
    p['wp2'] = _xavier(keys[6], h // 2, OUTPUT_DIM)
    p['pos_enc'] = positional_encoding(SEQ_LENGTH, h)

    # ---- bias slab: every bias / LN param as one lane-padded row ------------
    def row(vec):
        vec = jnp.asarray(vec, jnp.float32).reshape(-1)
        return jnp.pad(vec, (0, 128 - vec.shape[0]))

    zeros_h = jnp.zeros((h,), jnp.float32)
    ones_h = jnp.ones((h,), jnp.float32)
    rows = [row(zeros_h),                                # b_load
            row(zeros_h),                                # b_wea
            row(zeros_h)]                                # conv_b
    for _ in range(NUM_LAYERS):
        rows += [row(jnp.zeros((3 * h,), jnp.float32)),  # qkv bias
                 row(zeros_h),                           # attn out-proj bias
                 row(ones_h), row(zeros_h),              # ln1 gamma / beta
                 row(jnp.zeros((4 * h,), jnp.float32)),  # ffn b1
                 row(zeros_h),                           # ffn b2
                 row(ones_h), row(zeros_h)]              # ln2 gamma / beta
    rows += [row(jnp.zeros((3 * h,), jnp.float32)),      # fusion qkv bias
             row(zeros_h),                               # fusion out-proj bias
             row(jnp.zeros((h // 2,), jnp.float32)),     # bp1
             row(jnp.zeros((OUTPUT_DIM,), jnp.float32))]  # bp2
    slab = jnp.stack(rows, 0)
    p['bias_slab'] = jnp.pad(slab, ((0, BIAS_ROWS - slab.shape[0]), (0, 0)))
    return p


# ----------------------------- main ----------------------------------------------
if __name__ == "__main__":
    key = jax.random.PRNGKey(0)
    x = jax.random.normal(key, (2, SEQ_LENGTH, INPUT_DIM), dtype=jnp.float32)
    params = init_params(jax.random.PRNGKey(1))

    out = jax.jit(forward)(x, params)
    out = jax.block_until_ready(out)

    assert out.shape == (2, OUTPUT_DIM), out.shape
    assert bool(jnp.all(jnp.isfinite(out)))
    print("KERNEL_OK")
</pallas_src>

<mosaic_0001>
module attributes {stable_mosaic.version = 11 : i64} {
  func.func @_fused_forward_kernel(%arg0: memref<16x3xf32, #tpu.memory_space<vmem>>, %arg1: memref<16x7xf32, #tpu.memory_space<vmem>>, %arg2: memref<8x32xf32, #tpu.memory_space<vmem>>, %arg3: memref<3x32xf32, #tpu.memory_space<vmem>>, %arg4: memref<7x32xf32, #tpu.memory_space<vmem>>, %arg5: memref<3x32x32xf32, #tpu.memory_space<vmem>>, %arg6: memref<2x32x96xf32, #tpu.memory_space<vmem>>, %arg7: memref<2x32x32xf32, #tpu.memory_space<vmem>>, %arg8: memref<2x32x128xf32, #tpu.memory_space<vmem>>, %arg9: memref<2x128x32xf32, #tpu.memory_space<vmem>>, %arg10: memref<32x96xf32, #tpu.memory_space<vmem>>, %arg11: memref<32x32xf32, #tpu.memory_space<vmem>>, %arg12: memref<32x16xf32, #tpu.memory_space<vmem>>, %arg13: memref<16x1xf32, #tpu.memory_space<vmem>>, %arg14: memref<24x128xf32, #tpu.memory_space<vmem>>, %arg15: memref<2x1xf32, #tpu.memory_space<vmem>>) attributes {dimension_semantics = [], scalar_prefetch = 0 : i64, scratch_operands = 0 : i64, tpu.core_type = #tpu.core_type<tc>} {
    %c0 = arith.constant 0 : index
    %c0_0 = arith.constant 0 : index
    %0 = vector.load %arg2[%c0, %c0_0] : memref<8x32xf32, #tpu.memory_space<vmem>>, vector<8x32xf32>
    %1 = tpu.concatenate %0, %0 in 0 : vector<8x32xf32>, vector<8x32xf32> -> vector<16x32xf32>
    %c0_1 = arith.constant 0 : index
    %c0_2 = arith.constant 0 : index
    %2 = vector.load %arg0[%c0_1, %c0_2] : memref<16x3xf32, #tpu.memory_space<vmem>>, vector<16x3xf32>
    %c0_3 = arith.constant 0 : index
    %c0_4 = arith.constant 0 : index
    %3 = vector.load %arg3[%c0_3, %c0_4] : memref<3x32xf32, #tpu.memory_space<vmem>>, vector<3x32xf32>
    %cst = arith.constant dense<0.000000e+00> : vector<16x32xf32>
    %4 = tpu.matmul %2, %3, %cst {dimension_numbers = #tpu.dot_dimension_numbers<[1], [0], [0], [1], [0, 0, 1, 1], [], []>} : vector<16x3xf32>, vector<3x32xf32>, vector<16x32xf32> -> vector<16x32xf32>
    %c0_5 = arith.constant 0 : index
    %c0_6 = arith.constant 0 : index
    %5 = vector.load %arg14[%c0_5, %c0_6] : memref<24x128xf32, #tpu.memory_space<vmem>>, vector<1x32xf32>
    %6 = vector.broadcast %5 : vector<1x32xf32> to vector<16x32xf32>
    %7 = arith.addf %4, %6 : vector<16x32xf32>
    %8 = arith.addf %7, %1 : vector<16x32xf32>
    %c0_7 = arith.constant 0 : index
    %c0_8 = arith.constant 0 : index
    %9 = vector.load %arg1[%c0_7, %c0_8] : memref<16x7xf32, #tpu.memory_space<vmem>>, vector<16x7xf32>
    %c0_9 = arith.constant 0 : index
    %c0_10 = arith.constant 0 : index
    %10 = vector.load %arg4[%c0_9, %c0_10] : memref<7x32xf32, #tpu.memory_space<vmem>>, vector<7x32xf32>
    %cst_11 = arith.constant dense<0.000000e+00> : vector<16x32xf32>
    %11 = tpu.matmul %9, %10, %cst_11 {dimension_numbers = #tpu.dot_dimension_numbers<[1], [0], [0], [1], [0, 0, 1, 1], [], []>} : vector<16x7xf32>, vector<7x32xf32>, vector<16x32xf32> -> vector<16x32xf32>
    %c1 = arith.constant 1 : index
    %c0_12 = arith.constant 0 : index
    %12 = vector.load %arg14[%c1, %c0_12] : memref<24x128xf32, #tpu.memory_space<vmem>>, vector<1x32xf32>
    %13 = vector.broadcast %12 : vector<1x32xf32> to vector<16x32xf32>
    %14 = arith.addf %11, %13 : vector<16x32xf32>
    %15 = arith.addf %14, %1 : vector<16x32xf32>
    %c0_13 = arith.constant 0 : index
    %c0_14 = arith.constant 0 : index
    %c0_15 = arith.constant 0 : index
    %16 = vector.load %arg5[%c0_13, %c0_14, %c0_15] : memref<3x32x32xf32, #tpu.memory_space<vmem>>, vector<1x32x32xf32>
    %17 = vector.shape_cast %16 : vector<1x32x32xf32> to vector<32x32xf32>
    %cst_16 = arith.constant dense<0.000000e+00> : vector<16x32xf32>
    %18 = tpu.matmul %8, %17, %cst_16 {dimension_numbers = #tpu.dot_dimension_numbers<[1], [0], [0], [1], [0, 0, 1, 1], [], []>} : vector<16x32xf32>, vector<32x32xf32>, vector<16x32xf32> -> vector<16x32xf32>
    %c1_17 = arith.constant 1 : index
    %c0_18 = arith.constant 0 : index
    %c0_19 = arith.constant 0 : index
    %19 = vector.load %arg5[%c1_17, %c0_18, %c0_19] : memref<3x32x32xf32, #tpu.memory_space<vmem>>, vector<1x32x32xf32>
    %20 = vector.shape_cast %19 : vector<1x32x32xf32> to vector<32x32xf32>
    %cst_20 = arith.constant dense<0.000000e+00> : vector<16x32xf32>
    %21 = tpu.matmul %8, %20, %cst_20 {dimension_numbers = #tpu.dot_dimension_numbers<[1], [0], [0], [1], [0, 0, 1, 1], [], []>} : vector<16x32xf32>, vector<32x32xf32>, vector<16x32xf32> -> vector<16x32xf32>
    %c2 = arith.constant 2 : index
    %c0_21 = arith.constant 0 : index
    %c0_22 = arith.constant 0 : index
    %22 = vector.load %arg5[%c2, %c0_21, %c0_22] : memref<3x32x32xf32, #tpu.memory_space<vmem>>, vector<1x32x32xf32>
    %23 = vector.shape_cast %22 : vector<1x32x32xf32> to vector<32x32xf32>
    %cst_23 = arith.constant dense<0.000000e+00> : vector<16x32xf32>
    %24 = tpu.matmul %8, %23, %cst_23 {dimension_numbers = #tpu.dot_dimension_numbers<[1], [0], [0], [1], [0, 0, 1, 1], [], []>} : vector<16x32xf32>, vector<32x32xf32>, vector<16x32xf32> -> vector<16x32xf32>
    %25 = tpu.iota {dimensions = array<i32: 0>} : vector<16x32xi32>
    %c8_i32 = arith.constant 8 : i32
    %c0_i32 = arith.constant 0 : i32
    %26 = arith.cmpi eq, %c8_i32, %c0_i32 : i32
    %c1_i32 = arith.constant 1 : i32
    %27 = arith.select %26, %c1_i32, %c8_i32 : i32
    %28 = vector.broadcast %27 : i32 to vector<16x32xi32>
    %29 = arith.remsi %25, %28 : vector<16x32xi32>
    %c0_i32_24 = arith.constant 0 : i32
    %30 = vector.broadcast %c0_i32_24 : i32 to vector<16x32xi32>
    %31 = arith.cmpi ne, %29, %30 : vector<16x32xi32>
    %c0_i32_25 = arith.constant 0 : i32
    %32 = vector.broadcast %c0_i32_25 : i32 to vector<16x32xi32>
    %33 = arith.cmpi slt, %29, %32 : vector<16x32xi32>
    %c0_i32_26 = arith.constant 0 : i32
    %34 = arith.cmpi slt, %27, %c0_i32_26 : i32
    %35 = vector.broadcast %34 : i1 to vector<16x32xi1>
    %36 = vector.broadcast %35 : vector<16x32xi1> to vector<16x32xi1>
    %37 = arith.xori %33, %36 : vector<16x32xi1>
    %38 = arith.andi %37, %31 : vector<16x32xi1>
    %39 = vector.broadcast %27 : i32 to vector<16x32xi32>
    %40 = arith.addi %29, %39 : vector<16x32xi32>
    %41 = arith.select %38, %40, %29 : vector<16x32xi1>, vector<16x32xi32>
    %c0_i32_27 = arith.constant 0 : i32
    %42 = vector.broadcast %c0_i32_27 : i32 to vector<16x32xi32>
    %43 = arith.cmpi ne, %41, %42 : vector<16x32xi32>
    %c1_i32_28 = arith.constant 1 : i32
    %44 = tpu.dynamic_rotate %18 by %c1_i32_28 dim 0 : vector<16x32xf32>, i32 -> vector<16x32xf32>
    %cst_29 = arith.constant 0.000000e+00 : f32
    %45 = vector.broadcast %cst_29 : f32 to vector<16x32xf32>
    %46 = arith.select %43, %44, %45 : vector<16x32xi1>, vector<16x32xf32>
    %c7_i32 = arith.constant 7 : i32
    %47 = vector.broadcast %c7_i32 : i32 to vector<16x32xi32>
    %48 = arith.cmpi ne, %41, %47 : vector<16x32xi32>
    %c15_i32 = arith.constant 15 : i32
    %49 = tpu.dynamic_rotate %24 by %c15_i32 dim 0 : vector<16x32xf32>, i32 -> vector<16x32xf32>
    %cst_30 = arith.constant 0.000000e+00 : f32
    %50 = vector.broadcast %cst_30 : f32 to vector<16x32xf32>
    %51 = arith.select %48, %49, %50 : vector<16x32xi1>, vector<16x32xf32>
    %52 = arith.addf %46, %21 : vector<16x32xf32>
    %53 = arith.addf %52, %51 : vector<16x32xf32>
    %c2_31 = arith.constant 2 : index
    %c0_32 = arith.constant 0 : index
    %54 = vector.load %arg14[%c2_31, %c0_32] : memref<24x128xf32, #tpu.memory_space<vmem>>, vector<1x32xf32>
    %55 = vector.broadcast %54 : vector<1x32xf32> to vector<16x32xf32>
    %56 = arith.addf %53, %55 : vector<16x32xf32>
    %57 = tpu.concatenate %56, %15 in 0 : vector<16x32xf32>, vector<16x32xf32> -> vector<32x32xf32>
    %c0_33 = arith.constant 0 : index
    %c0_34 = arith.constant 0 : index
    %c0_35 = arith.constant 0 : index
    %58 = vector.load %arg6[%c0_33, %c0_34, %c0_35] : memref<2x32x96xf32, #tpu.memory_space<vmem>>, vector<1x32x96xf32>
    %59 = vector.shape_cast %58 : vector<1x32x96xf32> to vector<32x96xf32>
    %c0_36 = arith.constant 0 : index
    %c0_37 = arith.constant 0 : index
    %c0_38 = arith.constant 0 : index
    %60 = vector.load %arg7[%c0_36, %c0_37, %c0_38] : memref<2x32x32xf32, #tpu.memory_space<vmem>>, vector<1x32x32xf32>
    %61 = vector.shape_cast %60 : vector<1x32x32xf32> to vector<32x32xf32>
    %c3 = arith.constant 3 : index
    %c0_39 = arith.constant 0 : index
    %62 = vector.load %arg14[%c3, %c0_39] : memref<24x128xf32, #tpu.memory_space<vmem>>, vector<1x96xf32>
    %cst_40 = arith.constant dense<0.000000e+00> : vector<32x96xf32>
    %63 = tpu.matmul %57, %59, %cst_40 {dimension_numbers = #tpu.dot_dimension_numbers<[1], [0], [0], [1], [0, 0, 1, 1], [], []>} : vector<32x32xf32>, vector<32x96xf32>, vector<32x96xf32> -> vector<32x96xf32>
    %64 = vector.broadcast %62 : vector<1x96xf32> to vector<32x96xf32>
    %65 = arith.addf %63, %64 : vector<32x96xf32>
    %66 = vector.extract_strided_slice %65 {offsets = [0, 0], sizes = [32, 32], strides = [1, 1]} : vector<32x96xf32> to vector<32x32xf32>
    %67 = vector.extract_strided_slice %65 {offsets = [0, 32], sizes = [32, 32], strides = [1, 1]} : vector<32x96xf32> to vector<32x32xf32>
    %68 = vector.extract_strided_slice %65 {offsets = [0, 64], sizes = [32, 32], strides = [1, 1]} : vector<32x96xf32> to vector<32x32xf32>
    %69 = vector.shape_cast %66 : vector<32x32xf32> to vector<4x8x32xf32>
    %70 = vector.shape_cast %67 : vector<32x32xf32> to vector<4x8x32xf32>
    %71 = vector.shape_cast %68 : vector<32x32xf32> to vector<4x8x32xf32>
    %72 = vector.extract_strided_slice %69 {offsets = [0, 0, 0], sizes = [4, 8, 8], strides = [1, 1, 1]} : vector<4x8x32xf32> to vector<4x8x8xf32>
    %73 = vector.extract_strided_slice %69 {offsets = [0, 0, 8], sizes = [4, 8, 8], strides = [1, 1, 1]} : vector<4x8x32xf32> to vector<4x8x8xf32>
    %74 = vector.extract_strided_slice %69 {offsets = [0, 0, 16], sizes = [4, 8, 8], strides = [1, 1, 1]} : vector<4x8x32xf32> to vector<4x8x8xf32>
    %75 = vector.extract_strided_slice %69 {offsets = [0, 0, 24], sizes = [4, 8, 8], strides = [1, 1, 1]} : vector<4x8x32xf32> to vector<4x8x8xf32>
    %76 = tpu.concatenate %72, %73, %74, %75 in 0 : vector<4x8x8xf32>, vector<4x8x8xf32>, vector<4x8x8xf32>, vector<4x8x8xf32> -> vector<16x8x8xf32>
    %77 = vector.extract_strided_slice %70 {offsets = [0, 0, 0], sizes = [4, 8, 8], strides = [1, 1, 1]} : vector<4x8x32xf32> to vector<4x8x8xf32>
    %78 = vector.extract_strided_slice %70 {offsets = [0, 0, 8], sizes = [4, 8, 8], strides = [1, 1, 1]} : vector<4x8x32xf32> to vector<4x8x8xf32>
    %79 = vector.extract_strided_slice %70 {offsets = [0, 0, 16], sizes = [4, 8, 8], strides = [1, 1, 1]} : vector<4x8x32xf32> to vector<4x8x8xf32>
    %80 = vector.extract_strided_slice %70 {offsets = [0, 0, 24], sizes = [4, 8, 8], strides = [1, 1, 1]} : vector<4x8x32xf32> to vector<4x8x8xf32>
    %81 = tpu.concatenate %77, %78, %79, %80 in 0 : vector<4x8x8xf32>, vector<4x8x8xf32>, vector<4x8x8xf32>, vector<4x8x8xf32> -> vector<16x8x8xf32>
    %82 = vector.extract_strided_slice %71 {offsets = [0, 0, 0], sizes = [4, 8, 8], strides = [1, 1, 1]} : vector<4x8x32xf32> to vector<4x8x8xf32>
    %83 = vector.extract_strided_slice %71 {offsets = [0, 0, 8], sizes = [4, 8, 8], strides = [1, 1, 1]} : vector<4x8x32xf32> to vector<4x8x8xf32>
    %84 = vector.extract_strided_slice %71 {offsets = [0, 0, 16], sizes = [4, 8, 8], strides = [1, 1, 1]} : vector<4x8x32xf32> to vector<4x8x8xf32>
    %85 = vector.extract_strided_slice %71 {offsets = [0, 0, 24], sizes = [4, 8, 8], strides = [1, 1, 1]} : vector<4x8x32xf32> to vector<4x8x8xf32>
    %86 = tpu.concatenate %82, %83, %84, %85 in 0 : vector<4x8x8xf32>, vector<4x8x8xf32>, vector<4x8x8xf32>, vector<4x8x8xf32> -> vector<16x8x8xf32>
    "tpu.trace_start"() <{level = 10 : i32, message = "bqd,bkd->bqk"}> : () -> ()
    %cst_41 = arith.constant dense<0.000000e+00> : vector<16x8x8xf32>
    %87 = tpu.matmul %76, %81, %cst_41 {dimension_numbers = #tpu.dot_dimension_numbers<[2], [2], [1], [1], [0, 0, 0, 1, 1, 1], [0], [0]>} : vector<16x8x8xf32>, vector<16x8x8xf32>, vector<16x8x8xf32> -> vector<16x8x8xf32>
    "tpu.trace_stop"() : () -> ()
    %cst_42 = arith.constant 0.353553385 : f32
    %88 = vector.broadcast %cst_42 : f32 to vector<16x8x8xf32>
    %89 = arith.mulf %87, %88 : vector<16x8x8xf32>
    %cst_43 = arith.constant dense<0xFF800000> : vector<16x8xf32>
    %90 = vector.multi_reduction <maximumf>, %89, %cst_43 [2] : vector<16x8x8xf32> to vector<16x8xf32>
    %91 = vector.shape_cast %90 : vector<16x8xf32> to vector<16x8x1xf32>
    %92 = vector.broadcast %91 : vector<16x8x1xf32> to vector<16x8x8xf32>
    %93 = arith.subf %89, %92 : vector<16x8x8xf32>
    %94 = math.exp %93 : vector<16x8x8xf32>
    %cst_44 = arith.constant dense<0.000000e+00> : vector<16x8xf32>
    %95 = vector.multi_reduction <add>, %94, %cst_44 [2] : vector<16x8x8xf32> to vector<16x8xf32>
    %96 = vector.shape_cast %95 : vector<16x8xf32> to vector<16x8x1xf32>
    %97 = tpu.reciprocal %96 {approx = true} : vector<16x8x1xf32> -> vector<16x8x1xf32>
    %98 = vector.broadcast %97 : vector<16x8x1xf32> to vector<16x8x8xf32>
    %99 = arith.mulf %94, %98 : vector<16x8x8xf32>
    "tpu.trace_start"() <{level = 10 : i32, message = "bqk,bkd->bqd"}> : () -> ()
    %cst_45 = arith.constant dense<0.000000e+00> : vector<16x8x8xf32>
    %100 = tpu.matmul %99, %86, %cst_45 {dimension_numbers = #tpu.dot_dimension_numbers<[2], [1], [1], [2], [0, 0, 0, 1, 1, 2], [0], [0]>} : vector<16x8x8xf32>, vector<16x8x8xf32>, vector<16x8x8xf32> -> vector<16x8x8xf32>
    "tpu.trace_stop"() : () -> ()
    %101 = vector.extract_strided_slice %100 {offsets = [0, 0, 0], sizes = [4, 8, 8], strides = [1, 1, 1]} : vector<16x8x8xf32> to vector<4x8x8xf32>
    %102 = vector.shape_cast %101 : vector<4x8x8xf32> to vector<32x8xf32>
    %103 = vector.extract_strided_slice %100 {offsets = [4, 0, 0], sizes = [4, 8, 8], strides = [1, 1, 1]} : vector<16x8x8xf32> to vector<4x8x8xf32>
    %104 = vector.shape_cast %103 : vector<4x8x8xf32> to vector<32x8xf32>
    %105 = vector.extract_strided_slice %100 {offsets = [8, 0, 0], sizes = [4, 8, 8], strides = [1, 1, 1]} : vector<16x8x8xf32> to vector<4x8x8xf32>
    %106 = vector.shape_cast %105 : vector<4x8x8xf32> to vector<32x8xf32>
    %107 = vector.extract_strided_slice %100 {offsets = [12, 0, 0], sizes = [4, 8, 8], strides = [1, 1, 1]} : vector<16x8x8xf32> to vector<4x8x8xf32>
    %108 = vector.shape_cast %107 : vector<4x8x8xf32> to vector<32x8xf32>
    %109 = tpu.concatenate %102, %104, %106, %108 in 1 : vector<32x8xf32>, vector<32x8xf32>, vector<32x8xf32>, vector<32x8xf32> -> vector<32x32xf32>
    %cst_46 = arith.constant dense<0.000000e+00> : vector<32x32xf32>
    %110 = tpu.matmul %109, %61, %cst_46 {dimension_numbers = #tpu.dot_dimension_numbers<[1], [0], [0], [1], [0, 0, 1, 1], [], []>} : vector<32x32xf32>, vector<32x32xf32>, vector<32x32xf32> -> vector<32x32xf32>
    %c4 = arith.constant 4 : index
    %c0_47 = arith.constant 0 : index
    %111 = vector.load %arg14[%c4, %c0_47] : memref<24x128xf32, #tpu.memory_space<vmem>>, vector<1x32xf32>
    %112 = vector.broadcast %111 : vector<1x32xf32> to vector<32x32xf32>
    %113 = arith.addf %110, %112 : vector<32x32xf32>
    %114 = arith.addf %57, %113 : vector<32x32xf32>
    %c5 = arith.constant 5 : index
    %c0_48 = arith.constant 0 : index
    %115 = vector.load %arg14[%c5, %c0_48] : memref<24x128xf32, #tpu.memory_space<vmem>>, vector<1x32xf32>
    %c6 = arith.constant 6 : index
    %c0_49 = arith.constant 0 : index
    %116 = vector.load %arg14[%c6, %c0_49] : memref<24x128xf32, #tpu.memory_space<vmem>>, vector<1x32xf32>
    %cst_50 = arith.constant dense<0.000000e+00> : vector<32xf32>
    %117 = vector.multi_reduction <add>, %114, %cst_50 [1] : vector<32x32xf32> to vector<32xf32>
    %118 = vector.shape_cast %117 : vector<32xf32> to vector<32x1xf32>
    %cst_51 = arith.constant 3.200000e+01 : f32
    %119 = vector.broadcast %cst_51 : f32 to vector<32x1xf32>
    %120 = arith.divf %118, %119 : vector<32x1xf32>
    %121 = vector.broadcast %120 : vector<32x1xf32> to vector<32x32xf32>
    %122 = arith.subf %114, %121 : vector<32x32xf32>
    %123 = arith.mulf %122, %122 : vector<32x32xf32>
    %cst_52 = arith.constant dense<0.000000e+00> : vector<32xf32>
    %124 = vector.multi_reduction <add>, %123, %cst_52 [1] : vector<32x32xf32> to vector<32xf32>
    %125 = vector.shape_cast %124 : vector<32xf32> to vector<32x1xf32>
    %cst_53 = arith.constant 3.200000e+01 : f32
    %126 = vector.broadcast %cst_53 : f32 to vector<32x1xf32>
    %127 = arith.divf %125, %126 : vector<32x1xf32>
    %cst_54 = arith.constant 9.99999974E-6 : f32
    %128 = vector.broadcast %cst_54 : f32 to vector<32x1xf32>
    %129 = arith.addf %127, %128 : vector<32x1xf32>
    %130 = math.rsqrt %129 : vector<32x1xf32>
    %131 = vector.broadcast %130 : vector<32x1xf32> to vector<32x32xf32>
    %132 = arith.mulf %122, %131 : vector<32x32xf32>
    %133 = vector.broadcast %115 : vector<1x32xf32> to vector<32x32xf32>
    %134 = arith.mulf %132, %133 : vector<32x32xf32>
    %135 = vector.broadcast %116 : vector<1x32xf32> to vector<32x32xf32>
    %136 = arith.addf %134, %135 : vector<32x32xf32>
    %c0_55 = arith.constant 0 : index
    %c0_56 = arith.constant 0 : index
    %c0_57 = arith.constant 0 : index
    %137 = vector.load %arg8[%c0_55, %c0_56, %c0_57] : memref<2x32x128xf32, #tpu.memory_space<vmem>>, vector<1x32x128xf32>
    %138 = vector.shape_cast %137 : vector<1x32x128xf32> to vector<32x128xf32>
    %cst_58 = arith.constant dense<0.000000e+00> : vector<32x128xf32>
    %139 = tpu.matmul %136, %138, %cst_58 {dimension_numbers = #tpu.dot_dimension_numbers<[1], [0], [0], [1], [0, 0, 1, 1], [], []>} : vector<32x32xf32>, vector<32x128xf32>, vector<32x128xf32> -> vector<32x128xf32>
    %c7 = arith.constant 7 : index
    %c0_59 = arith.constant 0 : index
    %140 = vector.load %arg14[%c7, %c0_59] : memref<24x128xf32, #tpu.memory_space<vmem>>, vector<1x128xf32>
    %141 = vector.broadcast %140 : vector<1x128xf32> to vector<32x128xf32>
    %142 = arith.addf %139, %141 : vector<32x128xf32>
    %cst_60 = arith.constant 0.000000e+00 : f32
    %143 = vector.broadcast %cst_60 : f32 to vector<32x128xf32>
    %144 = arith.maximumf %142, %143 : vector<32x128xf32>
    %c0_61 = arith.constant 0 : index
    %c0_62 = arith.constant 0 : index
    %c0_63 = arith.constant 0 : index
    %145 = vector.load %arg9[%c0_61, %c0_62, %c0_63] : memref<2x128x32xf32, #tpu.memory_space<vmem>>, vector<1x128x32xf32>
    %146 = vector.shape_cast %145 : vector<1x128x32xf32> to vector<128x32xf32>
    %cst_64 = arith.constant dense<0.000000e+00> : vector<32x32xf32>
    %147 = tpu.matmul %144, %146, %cst_64 {dimension_numbers = #tpu.dot_dimension_numbers<[1], [0], [0], [1], [0, 0, 1, 1], [], []>} : vector<32x128xf32>, vector<128x32xf32>, vector<32x32xf32> -> vector<32x32xf32>
    %c8 = arith.constant 8 : index
    %c0_65 = arith.constant 0 : index
    %148 = vector.load %arg14[%c8, %c0_65] : memref<24x128xf32, #tpu.memory_space<vmem>>, vector<1x32xf32>
    %149 = vector.broadcast %148 : vector<1x32xf32> to vector<32x32xf32>
    %150 = arith.addf %147, %149 : vector<32x32xf32>
    %151 = arith.addf %136, %150 : vector<32x32xf32>
    %c9 = arith.constant 9 : index
    %c0_66 = arith.constant 0 : index
    %152 = vector.load %arg14[%c9, %c0_66] : memref<24x128xf32, #tpu.memory_space<vmem>>, vector<1x32xf32>
    %c10 = arith.constant 10 : index
    %c0_67 = arith.constant 0 : index
    %153 = vector.load %arg14[%c10, %c0_67] : memref<24x128xf32, #tpu.memory_space<vmem>>, vector<1x32xf32>
    %cst_68 = arith.constant dense<0.000000e+00> : vector<32xf32>
    %154 = vector.multi_reduction <add>, %151, %cst_68 [1] : vector<32x32xf32> to vector<32xf32>
    %155 = vector.shape_cast %154 : vector<32xf32> to vector<32x1xf32>
    %cst_69 = arith.constant 3.200000e+01 : f32
    %156 = vector.broadcast %cst_69 : f32 to vector<32x1xf32>
    %157 = arith.divf %155, %156 : vector<32x1xf32>
    %158 = vector.broadcast %157 : vector<32x1xf32> to vector<32x32xf32>
    %159 = arith.subf %151, %158 : vector<32x32xf32>
    %160 = arith.mulf %159, %159 : vector<32x32xf32>
    %cst_70 = arith.constant dense<0.000000e+00> : vector<32xf32>
    %161 = vector.multi_reduction <add>, %160, %cst_70 [1] : vector<32x32xf32> to vector<32xf32>
    %162 = vector.shape_cast %161 : vector<32xf32> to vector<32x1xf32>
    %cst_71 = arith.constant 3.200000e+01 : f32
    %163 = vector.broadcast %cst_71 : f32 to vector<32x1xf32>
    %164 = arith.divf %162, %163 : vector<32x1xf32>
    %cst_72 = arith.constant 9.99999974E-6 : f32
    %165 = vector.broadcast %cst_72 : f32 to vector<32x1xf32>
    %166 = arith.addf %164, %165 : vector<32x1xf32>
    %167 = math.rsqrt %166 : vector<32x1xf32>
    %168 = vector.broadcast %167 : vector<32x1xf32> to vector<32x32xf32>
    %169 = arith.mulf %159, %168 : vector<32x32xf32>
    %170 = vector.broadcast %152 : vector<1x32xf32> to vector<32x32xf32>
    %171 = arith.mulf %169, %170 : vector<32x32xf32>
    %172 = vector.broadcast %153 : vector<1x32xf32> to vector<32x32xf32>
    %173 = arith.addf %171, %172 : vector<32x32xf32>
    %c1_73 = arith.constant 1 : index
    %c0_74 = arith.constant 0 : index
    %c0_75 = arith.constant 0 : index
    %174 = vector.load %arg6[%c1_73, %c0_74, %c0_75] : memref<2x32x96xf32, #tpu.memory_space<vmem>>, vector<1x32x96xf32>
    %175 = vector.shape_cast %174 : vector<1x32x96xf32> to vector<32x96xf32>
    %c1_76 = arith.constant 1 : index
    %c0_77 = arith.constant 0 : index
    %c0_78 = arith.constant 0 : index
    %176 = vector.load %arg7[%c1_76, %c0_77, %c0_78] : memref<2x32x32xf32, #tpu.memory_space<vmem>>, vector<1x32x32xf32>
    %177 = vector.shape_cast %176 : vector<1x32x32xf32> to vector<32x32xf32>
    %c11 = arith.constant 11 : index
    %c0_79 = arith.constant 0 : index
    %178 = vector.load %arg14[%c11, %c0_79] : memref<24x128xf32, #tpu.memory_space<vmem>>, vector<1x96xf32>
    %cst_80 = arith.constant dense<0.000000e+00> : vector<32x96xf32>
    %179 = tpu.matmul %173, %175, %cst_80 {dimension_numbers = #tpu.dot_dimension_numbers<[1], [0], [0], [1], [0, 0, 1, 1], [], []>} : vector<32x32xf32>, vector<32x96xf32>, vector<32x96xf32> -> vector<32x96xf32>
    %180 = vector.broadcast %178 : vector<1x96xf32> to vector<32x96xf32>
    %181 = arith.addf %179, %180 : vector<32x96xf32>
    %182 = vector.extract_strided_slice %181 {offsets = [0, 0], sizes = [32, 32], strides = [1, 1]} : vector<32x96xf32> to vector<32x32xf32>
    %183 = vector.extract_strided_slice %181 {offsets = [0, 32], sizes = [32, 32], strides = [1, 1]} : vector<32x96xf32> to vector<32x32xf32>
    %184 = vector.extract_strided_slice %181 {offsets = [0, 64], sizes = [32, 32], strides = [1, 1]} : vector<32x96xf32> to vector<32x32xf32>
    %185 = vector.shape_cast %182 : vector<32x32xf32> to vector<4x8x32xf32>
    %186 = vector.shape_cast %183 : vector<32x32xf32> to vector<4x8x32xf32>
    %187 = vector.shape_cast %184 : vector<32x32xf32> to vector<4x8x32xf32>
    %188 = vector.extract_strided_slice %185 {offsets = [0, 0, 0], sizes = [4, 8, 8], strides = [1, 1, 1]} : vector<4x8x32xf32> to vector<4x8x8xf32>
    %189 = vector.extract_strided_slice %185 {offsets = [0, 0, 8], sizes = [4, 8, 8], strides = [1, 1, 1]} : vector<4x8x32xf32> to vector<4x8x8xf32>
    %190 = vector.extract_strided_slice %185 {offsets = [0, 0, 16], sizes = [4, 8, 8], strides = [1, 1, 1]} : vector<4x8x32xf32> to vector<4x8x8xf32>
    %191 = vector.extract_strided_slice %185 {offsets = [0, 0, 24], sizes = [4, 8, 8], strides = [1, 1, 1]} : vector<4x8x32xf32> to vector<4x8x8xf32>
    %192 = tpu.concatenate %188, %189, %190, %191 in 0 : vector<4x8x8xf32>, vector<4x8x8xf32>, vector<4x8x8xf32>, vector<4x8x8xf32> -> vector<16x8x8xf32>
    %193 = vector.extract_strided_slice %186 {offsets = [0, 0, 0], sizes = [4, 8, 8], strides = [1, 1, 1]} : vector<4x8x32xf32> to vector<4x8x8xf32>
    %194 = vector.extract_strided_slice %186 {offsets = [0, 0, 8], sizes = [4, 8, 8], strides = [1, 1, 1]} : vector<4x8x32xf32> to vector<4x8x8xf32>
    %195 = vector.extract_strided_slice %186 {offsets = [0, 0, 16], sizes = [4, 8, 8], strides = [1, 1, 1]} : vector<4x8x32xf32> to vector<4x8x8xf32>
    %196 = vector.extract_strided_slice %186 {offsets = [0, 0, 24], sizes = [4, 8, 8], strides = [1, 1, 1]} : vector<4x8x32xf32> to vector<4x8x8xf32>
    %197 = tpu.concatenate %193, %194, %195, %196 in 0 : vector<4x8x8xf32>, vector<4x8x8xf32>, vector<4x8x8xf32>, vector<4x8x8xf32> -> vector<16x8x8xf32>
    %198 = vector.extract_strided_slice %187 {offsets = [0, 0, 0], sizes = [4, 8, 8], strides = [1, 1, 1]} : vector<4x8x32xf32> to vector<4x8x8xf32>
    %199 = vector.extract_strided_slice %187 {offsets = [0, 0, 8], sizes = [4, 8, 8], strides = [1, 1, 1]} : vector<4x8x32xf32> to vector<4x8x8xf32>
    %200 = vector.extract_strided_slice %187 {offsets = [0, 0, 16], sizes = [4, 8, 8], strides = [1, 1, 1]} : vector<4x8x32xf32> to vector<4x8x8xf32>
    %201 = vector.extract_strided_slice %187 {offsets = [0, 0, 24], sizes = [4, 8, 8], strides = [1, 1, 1]} : vector<4x8x32xf32> to vector<4x8x8xf32>
    %202 = tpu.concatenate %198, %199, %200, %201 in 0 : vector<4x8x8xf32>, vector<4x8x8xf32>, vector<4x8x8xf32>, vector<4x8x8xf32> -> vector<16x8x8xf32>
    "tpu.trace_start"() <{level = 10 : i32, message = "bqd,bkd->bqk"}> : () -> ()
    %cst_81 = arith.constant dense<0.000000e+00> : vector<16x8x8xf32>
    %203 = tpu.matmul %192, %197, %cst_81 {dimension_numbers = #tpu.dot_dimension_numbers<[2], [2], [1], [1], [0, 0, 0, 1, 1, 1], [0], [0]>} : vector<16x8x8xf32>, vector<16x8x8xf32>, vector<16x8x8xf32> -> vector<16x8x8xf32>
    "tpu.trace_stop"() : () -> ()
    %cst_82 = arith.constant 0.353553385 : f32
    %204 = vector.broadcast %cst_82 : f32 to vector<16x8x8xf32>
    %205 = arith.mulf %203, %204 : vector<16x8x8xf32>
    %cst_83 = arith.constant dense<0xFF800000> : vector<16x8xf32>
    %206 = vector.multi_reduction <maximumf>, %205, %cst_83 [2] : vector<16x8x8xf32> to vector<16x8xf32>
    %207 = vector.shape_cast %206 : vector<16x8xf32> to vector<16x8x1xf32>
    %208 = vector.broadcast %207 : vector<16x8x1xf32> to vector<16x8x8xf32>
    %209 = arith.subf %205, %208 : vector<16x8x8xf32>
    %210 = math.exp %209 : vector<16x8x8xf32>
    %cst_84 = arith.constant dense<0.000000e+00> : vector<16x8xf32>
    %211 = vector.multi_reduction <add>, %210, %cst_84 [2] : vector<16x8x8xf32> to vector<16x8xf32>
    %212 = vector.shape_cast %211 : vector<16x8xf32> to vector<16x8x1xf32>
    %213 = tpu.reciprocal %212 {approx = true} : vector<16x8x1xf32> -> vector<16x8x1xf32>
    %214 = vector.broadcast %213 : vector<16x8x1xf32> to vector<16x8x8xf32>
    %215 = arith.mulf %210, %214 : vector<16x8x8xf32>
    "tpu.trace_start"() <{level = 10 : i32, message = "bqk,bkd->bqd"}> : () -> ()
    %cst_85 = arith.constant dense<0.000000e+00> : vector<16x8x8xf32>
    %216 = tpu.matmul %215, %202, %cst_85 {dimension_numbers = #tpu.dot_dimension_numbers<[2], [1], [1], [2], [0, 0, 0, 1, 1, 2], [0], [0]>} : vector<16x8x8xf32>, vector<16x8x8xf32>, vector<16x8x8xf32> -> vector<16x8x8xf32>
    "tpu.trace_stop"() : () -> ()
    %217 = vector.extract_strided_slice %216 {offsets = [0, 0, 0], sizes = [4, 8, 8], strides = [1, 1, 1]} : vector<16x8x8xf32> to vector<4x8x8xf32>
    %218 = vector.shape_cast %217 : vector<4x8x8xf32> to vector<32x8xf32>
    %219 = vector.extract_strided_slice %216 {offsets = [4, 0, 0], sizes = [4, 8, 8], strides = [1, 1, 1]} : vector<16x8x8xf32> to vector<4x8x8xf32>
    %220 = vector.shape_cast %219 : vector<4x8x8xf32> to vector<32x8xf32>
    %221 = vector.extract_strided_slice %216 {offsets = [8, 0, 0], sizes = [4, 8, 8], strides = [1, 1, 1]} : vector<16x8x8xf32> to vector<4x8x8xf32>
    %222 = vector.shape_cast %221 : vector<4x8x8xf32> to vector<32x8xf32>
    %223 = vector.extract_strided_slice %216 {offsets = [12, 0, 0], sizes = [4, 8, 8], strides = [1, 1, 1]} : vector<16x8x8xf32> to vector<4x8x8xf32>
    %224 = vector.shape_cast %223 : vector<4x8x8xf32> to vector<32x8xf32>
    %225 = tpu.concatenate %218, %220, %222, %224 in 1 : vector<32x8xf32>, vector<32x8xf32>, vector<32x8xf32>, vector<32x8xf32> -> vector<32x32xf32>
    %cst_86 = arith.constant dense<0.000000e+00> : vector<32x32xf32>
    %226 = tpu.matmul %225, %177, %cst_86 {dimension_numbers = #tpu.dot_dimension_numbers<[1], [0], [0], [1], [0, 0, 1, 1], [], []>} : vector<32x32xf32>, vector<32x32xf32>, vector<32x32xf32> -> vector<32x32xf32>
    %c12 = arith.constant 12 : index
    %c0_87 = arith.constant 0 : index
    %227 = vector.load %arg14[%c12, %c0_87] : memref<24x128xf32, #tpu.memory_space<vmem>>, vector<1x32xf32>
    %228 = vector.broadcast %227 : vector<1x32xf32> to vector<32x32xf32>
    %229 = arith.addf %226, %228 : vector<32x32xf32>
    %230 = arith.addf %173, %229 : vector<32x32xf32>
    %c13 = arith.constant 13 : index
    %c0_88 = arith.constant 0 : index
    %231 = vector.load %arg14[%c13, %c0_88] : memref<24x128xf32, #tpu.memory_space<vmem>>, vector<1x32xf32>
    %c14 = arith.constant 14 : index
    %c0_89 = arith.constant 0 : index
    %232 = vector.load %arg14[%c14, %c0_89] : memref<24x128xf32, #tpu.memory_space<vmem>>, vector<1x32xf32>
    %cst_90 = arith.constant dense<0.000000e+00> : vector<32xf32>
    %233 = vector.multi_reduction <add>, %230, %cst_90 [1] : vector<32x32xf32> to vector<32xf32>
    %234 = vector.shape_cast %233 : vector<32xf32> to vector<32x1xf32>
    %cst_91 = arith.constant 3.200000e+01 : f32
    %235 = vector.broadcast %cst_91 : f32 to vector<32x1xf32>
    %236 = arith.divf %234, %235 : vector<32x1xf32>
    %237 = vector.broadcast %236 : vector<32x1xf32> to vector<32x32xf32>
    %238 = arith.subf %230, %237 : vector<32x32xf32>
    %239 = arith.mulf %238, %238 : vector<32x32xf32>
    %cst_92 = arith.constant dense<0.000000e+00> : vector<32xf32>
    %240 = vector.multi_reduction <add>, %239, %cst_92 [1] : vector<32x32xf32> to vector<32xf32>
    %241 = vector.shape_cast %240 : vector<32xf32> to vector<32x1xf32>
    %cst_93 = arith.constant 3.200000e+01 : f32
    %242 = vector.broadcast %cst_93 : f32 to vector<32x1xf32>
    %243 = arith.divf %241, %242 : vector<32x1xf32>
    %cst_94 = arith.constant 9.99999974E-6 : f32
    %244 = vector.broadcast %cst_94 : f32 to vector<32x1xf32>
    %245 = arith.addf %243, %244 : vector<32x1xf32>
    %246 = math.rsqrt %245 : vector<32x1xf32>
    %247 = vector.broadcast %246 : vector<32x1xf32> to vector<32x32xf32>
    %248 = arith.mulf %238, %247 : vector<32x32xf32>
    %249 = vector.broadcast %231 : vector<1x32xf32> to vector<32x32xf32>
    %250 = arith.mulf %248, %249 : vector<32x32xf32>
    %251 = vector.broadcast %232 : vector<1x32xf32> to vector<32x32xf32>
    %252 = arith.addf %250, %251 : vector<32x32xf32>
    %c1_95 = arith.constant 1 : index
    %c0_96 = arith.constant 0 : index
    %c0_97 = arith.constant 0 : index
    %253 = vector.load %arg8[%c1_95, %c0_96, %c0_97] : memref<2x32x128xf32, #tpu.memory_space<vmem>>, vector<1x32x128xf32>
    %254 = vector.shape_cast %253 : vector<1x32x128xf32> to vector<32x128xf32>
    %cst_98 = arith.constant dense<0.000000e+00> : vector<32x128xf32>
    %255 = tpu.matmul %252, %254, %cst_98 {dimension_numbers = #tpu.dot_dimension_numbers<[1], [0], [0], [1], [0, 0, 1, 1], [], []>} : vector<32x32xf32>, vector<32x128xf32>, vector<32x128xf32> -> vector<32x128xf32>
    %c15 = arith.constant 15 : index
    %c0_99 = arith.constant 0 : index
    %256 = vector.load %arg14[%c15, %c0_99] : memref<24x128xf32, #tpu.memory_space<vmem>>, vector<1x128xf32>
    %257 = vector.broadcast %256 : vector<1x128xf32> to vector<32x128xf32>
    %258 = arith.addf %255, %257 : vector<32x128xf32>
    %cst_100 = arith.constant 0.000000e+00 : f32
    %259 = vector.broadcast %cst_100 : f32 to vector<32x128xf32>
    %260 = arith.maximumf %258, %259 : vector<32x128xf32>
    %c1_101 = arith.constant 1 : index
    %c0_102 = arith.constant 0 : index
    %c0_103 = arith.constant 0 : index
    %261 = vector.load %arg9[%c1_101, %c0_102, %c0_103] : memref<2x128x32xf32, #tpu.memory_space<vmem>>, vector<1x128x32xf32>
    %262 = vector.shape_cast %261 : vector<1x128x32xf32> to vector<128x32xf32>
    %cst_104 = arith.constant dense<0.000000e+00> : vector<32x32xf32>
    %263 = tpu.matmul %260, %262, %cst_104 {dimension_numbers = #tpu.dot_dimension_numbers<[1], [0], [0], [1], [0, 0, 1, 1], [], []>} : vector<32x128xf32>, vector<128x32xf32>, vector<32x32xf32> -> vector<32x32xf32>
    %c16 = arith.constant 16 : index
    %c0_105 = arith.constant 0 : index
    %264 = vector.load %arg14[%c16, %c0_105] : memref<24x128xf32, #tpu.memory_space<vmem>>, vector<1x32xf32>
    %265 = vector.broadcast %264 : vector<1x32xf32> to vector<32x32xf32>
    %266 = arith.addf %263, %265 : vector<32x32xf32>
    %267 = arith.addf %252, %266 : vector<32x32xf32>
    %c17 = arith.constant 17 : index
    %c0_106 = arith.constant 0 : index
    %268 = vector.load %arg14[%c17, %c0_106] : memref<24x128xf32, #tpu.memory_space<vmem>>, vector<1x32xf32>
    %c18 = arith.constant 18 : index
    %c0_107 = arith.constant 0 : index
    %269 = vector.load %arg14[%c18, %c0_107] : memref<24x128xf32, #tpu.memory_space<vmem>>, vector<1x32xf32>
    %cst_108 = arith.constant dense<0.000000e+00> : vector<32xf32>
    %270 = vector.multi_reduction <add>, %267, %cst_108 [1] : vector<32x32xf32> to vector<32xf32>
    %271 = vector.shape_cast %270 : vector<32xf32> to vector<32x1xf32>
    %cst_109 = arith.constant 3.200000e+01 : f32
    %272 = vector.broadcast %cst_109 : f32 to vector<32x1xf32>
    %273 = arith.divf %271, %272 : vector<32x1xf32>
    %274 = vector.broadcast %273 : vector<32x1xf32> to vector<32x32xf32>
    %275 = arith.subf %267, %274 : vector<32x32xf32>
    %276 = arith.mulf %275, %275 : vector<32x32xf32>
    %cst_110 = arith.constant dense<0.000000e+00> : vector<32xf32>
    %277 = vector.multi_reduction <add>, %276, %cst_110 [1] : vector<32x32xf32> to vector<32xf32>
    %278 = vector.shape_cast %277 : vector<32xf32> to vector<32x1xf32>
    %cst_111 = arith.constant 3.200000e+01 : f32
    %279 = vector.broadcast %cst_111 : f32 to vector<32x1xf32>
    %280 = arith.divf %278, %279 : vector<32x1xf32>
    %cst_112 = arith.constant 9.99999974E-6 : f32
    %281 = vector.broadcast %cst_112 : f32 to vector<32x1xf32>
    %282 = arith.addf %280, %281 : vector<32x1xf32>
    %283 = math.rsqrt %282 : vector<32x1xf32>
    %284 = vector.broadcast %283 : vector<32x1xf32> to vector<32x32xf32>
    %285 = arith.mulf %275, %284 : vector<32x32xf32>
    %286 = vector.broadcast %268 : vector<1x32xf32> to vector<32x32xf32>
    %287 = arith.mulf %285, %286 : vector<32x32xf32>
    %288 = vector.broadcast %269 : vector<1x32xf32> to vector<32x32xf32>
    %289 = arith.addf %287, %288 : vector<32x32xf32>
    %290 = vector.extract_strided_slice %289 {offsets = [0, 0], sizes = [16, 32], strides = [1, 1]} : vector<32x32xf32> to vector<16x32xf32>
    %291 = vector.extract_strided_slice %289 {offsets = [16, 0], sizes = [16, 32], strides = [1, 1]} : vector<32x32xf32> to vector<16x32xf32>
    %c0_113 = arith.constant 0 : index
    %c0_114 = arith.constant 0 : index
    %292 = vector.load %arg10[%c0_113, %c0_114] : memref<32x96xf32, #tpu.memory_space<vmem>>, vector<32x96xf32>
    %c0_115 = arith.constant 0 : index
    %c0_116 = arith.constant 0 : index
    %293 = vector.load %arg11[%c0_115, %c0_116] : memref<32x32xf32, #tpu.memory_space<vmem>>, vector<32x32xf32>
    %c19 = arith.constant 19 : index
    %c0_117 = arith.constant 0 : index
    %294 = vector.load %arg14[%c19, %c0_117] : memref<24x128xf32, #tpu.memory_space<vmem>>, vector<1x96xf32>
    %295 = vector.extract_strided_slice %292 {offsets = [0, 0], sizes = [32, 32], strides = [1, 1]} : vector<32x96xf32> to vector<32x32xf32>
    %cst_118 = arith.constant dense<0.000000e+00> : vector<16x32xf32>
    %296 = tpu.matmul %290, %295, %cst_118 {dimension_numbers = #tpu.dot_dimension_numbers<[1], [0], [0], [1], [0, 0, 1, 1], [], []>} : vector<16x32xf32>, vector<32x32xf32>, vector<16x32xf32> -> vector<16x32xf32>
    %297 = vector.extract_strided_slice %294 {offsets = [0, 0], sizes = [1, 32], strides = [1, 1]} : vector<1x96xf32> to vector<1x32xf32>
    %298 = vector.broadcast %297 : vector<1x32xf32> to vector<16x32xf32>
    %299 = arith.addf %296, %298 : vector<16x32xf32>
    %300 = vector.extract_strided_slice %292 {offsets = [0, 32], sizes = [32, 64], strides = [1, 1]} : vector<32x96xf32> to vector<32x64xf32>
    %cst_119 = arith.constant dense<0.000000e+00> : vector<16x64xf32>
    %301 = tpu.matmul %291, %300, %cst_119 {dimension_numbers = #tpu.dot_dimension_numbers<[1], [0], [0], [1], [0, 0, 1, 1], [], []>} : vector<16x32xf32>, vector<32x64xf32>, vector<16x64xf32> -> vector<16x64xf32>
    %302 = vector.extract_strided_slice %294 {offsets = [0, 32], sizes = [1, 64], strides = [1, 1]} : vector<1x96xf32> to vector<1x64xf32>
    %303 = vector.broadcast %302 : vector<1x64xf32> to vector<16x64xf32>
    %304 = arith.addf %301, %303 : vector<16x64xf32>
    %305 = vector.extract_strided_slice %304 {offsets = [0, 0], sizes = [16, 32], strides = [1, 1]} : vector<16x64xf32> to vector<16x32xf32>
    %306 = vector.extract_strided_slice %304 {offsets = [0, 32], sizes = [16, 32], strides = [1, 1]} : vector<16x64xf32> to vector<16x32xf32>
    %307 = vector.shape_cast %299 : vector<16x32xf32> to vector<2x8x32xf32>
    %308 = vector.shape_cast %305 : vector<16x32xf32> to vector<2x8x32xf32>
    %309 = vector.shape_cast %306 : vector<16x32xf32> to vector<2x8x32xf32>
    %310 = vector.extract_strided_slice %307 {offsets = [0, 0, 0], sizes = [2, 8, 8], strides = [1, 1, 1]} : vector<2x8x32xf32> to vector<2x8x8xf32>
    %311 = vector.extract_strided_slice %307 {offsets = [0, 0, 8], sizes = [2, 8, 8], strides = [1, 1, 1]} : vector<2x8x32xf32> to vector<2x8x8xf32>
    %312 = vector.extract_strided_slice %307 {offsets = [0, 0, 16], sizes = [2, 8, 8], strides = [1, 1, 1]} : vector<2x8x32xf32> to vector<2x8x8xf32>
    %313 = vector.extract_strided_slice %307 {offsets = [0, 0, 24], sizes = [2, 8, 8], strides = [1, 1, 1]} : vector<2x8x32xf32> to vector<2x8x8xf32>
    %314 = tpu.concatenate %310, %311, %312, %313 in 0 : vector<2x8x8xf32>, vector<2x8x8xf32>, vector<2x8x8xf32>, vector<2x8x8xf32> -> vector<8x8x8xf32>
    %315 = vector.extract_strided_slice %308 {offsets = [0, 0, 0], sizes = [2, 8, 8], strides = [1, 1, 1]} : vector<2x8x32xf32> to vector<2x8x8xf32>
    %316 = vector.extract_strided_slice %308 {offsets = [0, 0, 8], sizes = [2, 8, 8], strides = [1, 1, 1]} : vector<2x8x32xf32> to vector<2x8x8xf32>
    %317 = vector.extract_strided_slice %308 {offsets = [0, 0, 16], sizes = [2, 8, 8], strides = [1, 1, 1]} : vector<2x8x32xf32> to vector<2x8x8xf32>
    %318 = vector.extract_strided_slice %308 {offsets = [0, 0, 24], sizes = [2, 8, 8], strides = [1, 1, 1]} : vector<2x8x32xf32> to vector<2x8x8xf32>
    %319 = tpu.concatenate %315, %316, %317, %318 in 0 : vector<2x8x8xf32>, vector<2x8x8xf32>, vector<2x8x8xf32>, vector<2x8x8xf32> -> vector<8x8x8xf32>
    %320 = vector.extract_strided_slice %309 {offsets = [0, 0, 0], sizes = [2, 8, 8], strides = [1, 1, 1]} : vector<2x8x32xf32> to vector<2x8x8xf32>
    %321 = vector.extract_strided_slice %309 {offsets = [0, 0, 8], sizes = [2, 8, 8], strides = [1, 1, 1]} : vector<2x8x32xf32> to vector<2x8x8xf32>
    %322 = vector.extract_strided_slice %309 {offsets = [0, 0, 16], sizes = [2, 8, 8], strides = [1, 1, 1]} : vector<2x8x32xf32> to vector<2x8x8xf32>
    %323 = vector.extract_strided_slice %309 {offsets = [0, 0, 24], sizes = [2, 8, 8], strides = [1, 1, 1]} : vector<2x8x32xf32> to vector<2x8x8xf32>
    %324 = tpu.concatenate %320, %321, %322, %323 in 0 : vector<2x8x8xf32>, vector<2x8x8xf32>, vector<2x8x8xf32>, vector<2x8x8xf32> -> vector<8x8x8xf32>
    "tpu.trace_start"() <{level = 10 : i32, message = "bqd,bkd->bqk"}> : () -> ()
    %cst_120 = arith.constant dense<0.000000e+00> : vector<8x8x8xf32>
    %325 = tpu.matmul %314, %319, %cst_120 {dimension_numbers = #tpu.dot_dimension_numbers<[2], [2], [1], [1], [0, 0, 0, 1, 1, 1], [0], [0]>} : vector<8x8x8xf32>, vector<8x8x8xf32>, vector<8x8x8xf32> -> vector<8x8x8xf32>
    "tpu.trace_stop"() : () -> ()
    %cst_121 = arith.constant 0.353553385 : f32
    %326 = vector.broadcast %cst_121 : f32 to vector<8x8x8xf32>
    %327 = arith.mulf %325, %326 : vector<8x8x8xf32>
    %cst_122 = arith.constant dense<0xFF800000> : vector<8x8xf32>
    %328 = vector.multi_reduction <maximumf>, %327, %cst_122 [2] : vector<8x8x8xf32> to vector<8x8xf32>
    %329 = vector.shape_cast %328 : vector<8x8xf32> to vector<8x8x1xf32>
    %330 = vector.broadcast %329 : vector<8x8x1xf32> to vector<8x8x8xf32>
    %331 = arith.subf %327, %330 : vector<8x8x8xf32>
    %332 = math.exp %331 : vector<8x8x8xf32>
    %cst_123 = arith.constant dense<0.000000e+00> : vector<8x8xf32>
    %333 = vector.multi_reduction <add>, %332, %cst_123 [2] : vector<8x8x8xf32> to vector<8x8xf32>
    %334 = vector.shape_cast %333 : vector<8x8xf32> to vector<8x8x1xf32>
    %335 = tpu.reciprocal %334 {approx = true} : vector<8x8x1xf32> -> vector<8x8x1xf32>
    %336 = vector.broadcast %335 : vector<8x8x1xf32> to vector<8x8x8xf32>
    %337 = arith.mulf %332, %336 : vector<8x8x8xf32>
    "tpu.trace_start"() <{level = 10 : i32, message = "bqk,bkd->bqd"}> : () -> ()
    %cst_124 = arith.constant dense<0.000000e+00> : vector<8x8x8xf32>
    %338 = tpu.matmul %337, %324, %cst_124 {dimension_numbers = #tpu.dot_dimension_numbers<[2], [1], [1], [2], [0, 0, 0, 1, 1, 2], [0], [0]>} : vector<8x8x8xf32>, vector<8x8x8xf32>, vector<8x8x8xf32> -> vector<8x8x8xf32>
    "tpu.trace_stop"() : () -> ()
    %339 = vector.extract_strided_slice %338 {offsets = [0, 0, 0], sizes = [2, 8, 8], strides = [1, 1, 1]} : vector<8x8x8xf32> to vector<2x8x8xf32>
    %340 = vector.shape_cast %339 : vector<2x8x8xf32> to vector<16x8xf32>
    %341 = vector.extract_strided_slice %338 {offsets = [2, 0, 0], sizes = [2, 8, 8], strides = [1, 1, 1]} : vector<8x8x8xf32> to vector<2x8x8xf32>
    %342 = vector.shape_cast %341 : vector<2x8x8xf32> to vector<16x8xf32>
    %343 = vector.extract_strided_slice %338 {offsets = [4, 0, 0], sizes = [2, 8, 8], strides = [1, 1, 1]} : vector<8x8x8xf32> to vector<2x8x8xf32>
    %344 = vector.shape_cast %343 : vector<2x8x8xf32> to vector<16x8xf32>
    %345 = vector.extract_strided_slice %338 {offsets = [6, 0, 0], sizes = [2, 8, 8], strides = [1, 1, 1]} : vector<8x8x8xf32> to vector<2x8x8xf32>
    %346 = vector.shape_cast %345 : vector<2x8x8xf32> to vector<16x8xf32>
    %347 = tpu.concatenate %340, %342, %344, %346 in 1 : vector<16x8xf32>, vector<16x8xf32>, vector<16x8xf32>, vector<16x8xf32> -> vector<16x32xf32>
    %cst_125 = arith.constant dense<0.000000e+00> : vector<16x32xf32>
    %348 = tpu.matmul %347, %293, %cst_125 {dimension_numbers = #tpu.dot_dimension_numbers<[1], [0], [0], [1], [0, 0, 1, 1], [], []>} : vector<16x32xf32>, vector<32x32xf32>, vector<16x32xf32> -> vector<16x32xf32>
    %c20 = arith.constant 20 : index
    %c0_126 = arith.constant 0 : index
    %349 = vector.load %arg14[%c20, %c0_126] : memref<24x128xf32, #tpu.memory_space<vmem>>, vector<1x32xf32>
    %350 = vector.broadcast %349 : vector<1x32xf32> to vector<16x32xf32>
    %351 = arith.addf %348, %350 : vector<16x32xf32>
    %352 = vector.shape_cast %351 : vector<16x32xf32> to vector<2x8x32xf32>
    %353 = vector.extract_strided_slice %352 {offsets = [0, 7, 0], sizes = [2, 1, 32], strides = [1, 1, 1]} : vector<2x8x32xf32> to vector<2x1x32xf32>
    %354 = vector.shape_cast %353 : vector<2x1x32xf32> to vector<2x32xf32>
    %c0_127 = arith.constant 0 : index
    %c0_128 = arith.constant 0 : index
    %355 = vector.load %arg12[%c0_127, %c0_128] : memref<32x16xf32, #tpu.memory_space<vmem>>, vector<32x16xf32>
    %cst_129 = arith.constant dense<0.000000e+00> : vector<2x16xf32>
    %356 = tpu.matmul %354, %355, %cst_129 {dimension_numbers = #tpu.dot_dimension_numbers<[1], [0], [0], [1], [0, 0, 1, 1], [], []>} : vector<2x32xf32>, vector<32x16xf32>, vector<2x16xf32> -> vector<2x16xf32>
    %c21 = arith.constant 21 : index
    %c0_130 = arith.constant 0 : index
    %357 = vector.load %arg14[%c21, %c0_130] : memref<24x128xf32, #tpu.memory_space<vmem>>, vector<1x16xf32>
    %358 = vector.broadcast %357 : vector<1x16xf32> to vector<2x16xf32>
    %359 = arith.addf %356, %358 : vector<2x16xf32>
    %cst_131 = arith.constant 0.000000e+00 : f32
    %360 = vector.broadcast %cst_131 : f32 to vector<2x16xf32>
    %361 = arith.maximumf %359, %360 : vector<2x16xf32>
    %c0_132 = arith.constant 0 : index
    %c0_133 = arith.constant 0 : index
    %362 = vector.load %arg13[%c0_132, %c0_133] : memref<16x1xf32, #tpu.memory_space<vmem>>, vector<16x1xf32>
    %cst_134 = arith.constant dense<0.000000e+00> : vector<2x1xf32>
    %363 = tpu.matmul %361, %362, %cst_134 {dimension_numbers = #tpu.dot_dimension_numbers<[1], [0], [0], [1], [0, 0, 1, 1], [], []>} : vector<2x16xf32>, vector<16x1xf32>, vector<2x1xf32> -> vector<2x1xf32>
    %c22 = arith.constant 22 : index
    %c0_135 = arith.constant 0 : index
    %364 = vector.load %arg14[%c22, %c0_135] : memref<24x128xf32, #tpu.memory_space<vmem>>, vector<1x1xf32>
    %365 = vector.broadcast %364 : vector<1x1xf32> to vector<2x1xf32>
    %366 = arith.addf %363, %365 : vector<2x1xf32>
    %c0_136 = arith.constant 0 : index
    %c0_137 = arith.constant 0 : index
    %367 = vector.load %arg15[%c0_136, %c0_137] : memref<2x1xf32, #tpu.memory_space<vmem>>, vector<2x1xf32>
    tpu.vector_store %arg15[%c0_136, %c0_137], %366 {strides = array<i32>} : memref<2x1xf32, #tpu.memory_space<vmem>>, vector<2x1xf32>,
    return
  }
}

</mosaic_0001>

<llo_original>
// kernel: forward.1
$region0: #{forward.1}
  #allocation0 [shape = 'u32[]', space=smem, size = 0x4, offset = 0x4, fixed_abs, tag = 'smem constant byte address 0x4 - core index']
  #allocation1 [shape = 'u32[144,128]{1,0:T(1,128)}', space=vmem, size = 0x12000, scoped, tag = 'internal scratch']
  %s0 = inlined_call_operand.vmem [shape: f32[16,3], index: 0, kind: input, shape index: {}]
  %s1 = inlined_call_operand.vmem [shape: f32[16,7], index: 1, kind: input, shape index: {}]
  %s2 = inlined_call_operand.hbm [shape: f32[8,32], index: 2, kind: input, shape index: {}]
  %s3 = inlined_call_operand.vmem [shape: f32[3,32], index: 3, kind: input, shape index: {}]
  %s4 = inlined_call_operand.vmem [shape: f32[7,32], index: 4, kind: input, shape index: {}]
  %s5 = inlined_call_operand.vmem [shape: f32[3,32,32], index: 5, kind: input, shape index: {}]
  %s6 = inlined_call_operand.vmem [shape: f32[2,32,96], index: 6, kind: input, shape index: {}]
  %s7 = inlined_call_operand.vmem [shape: f32[2,32,32], index: 7, kind: input, shape index: {}]
  %s8 = inlined_call_operand.vmem [shape: f32[2,32,128], index: 8, kind: input, shape index: {}]
  %s9 = inlined_call_operand.vmem [shape: f32[2,128,32], index: 9, kind: input, shape index: {}]
  %s10 = inlined_call_operand.vmem [shape: f32[32,96], index: 10, kind: input, shape index: {}]
  %s11 = inlined_call_operand.vmem [shape: f32[32,32], index: 11, kind: input, shape index: {}]
  %s12 = inlined_call_operand.vmem [shape: f32[32,16], index: 12, kind: input, shape index: {}]
  %s13 = inlined_call_operand.vmem [shape: f32[16,1], index: 13, kind: input, shape index: {}]
  %s14 = inlined_call_operand.vmem [shape: f32[24,128], index: 14, kind: input, shape index: {}]
  %s15 = inlined_call_operand.vmem [shape: f32[2,1], index: 15, kind: output, shape index: {}]
  %s16 = sld [smem:[#allocation0]]
  $region74: #{forward.1} parent=0
    _
  %s18 = ssub.s32 1, %s16
  %s19 = scalar_select 0, %s18, %s16
  $region1: #{forward.1} parent=0
    #allocation2 [shape = 'u8[4096]{0}', space=vmem, size = 0x1000, scoped, tag = 'input window, operand 2, single buffered']
    #allocation3 [shape = 's32[1]{0}', space=sflag, size = 0x4, scoped, tag = 'scoped memory for forward.1']
    %20 = vsyncpa [#allocation3], 0
    // Predicated region
    $region2: #{forward.1} parent=1 // pred_check
      _
    $region3: #{forward.1} parent=1 // pred_check_branch
      %22 = sbr.rel (0) target = $region5
    $region4: #{forward.1} parent=1 // pred_region
      _
    $region5: #{forward.1} parent=1 // pred_fallthru
      _
    // Predicated region
    $region6: #{forward.1} parent=1 // pred_check
      _
    $region7: #{forward.1} parent=1 // pred_check_branch
      %24 = sbr.rel (0) target = $region9
    $region8: #{forward.1} parent=1 // pred_region
      _
    $region9: #{forward.1} parent=1 // pred_fallthru
      _
    // Predicated region
    $region10: #{forward.1} parent=1 // pred_check
      _
    $region11: #{forward.1} parent=1 // pred_check_branch
      %26 = sbr.rel (0) target = $region13
    $region12: #{forward.1} parent=1 // pred_region
      %s28 = ssub.s32 128, 128
      %29 = vsyncadd [#allocation3], %s28
      %s31 = sshll.u32 [#allocation2], 4
      %s32 = int_to_ptr.vmem [resolvable:$true] %s31
      %34 = dma.hbm_to_vmem [thread:$0]  %s2, 128, %s32, [#allocation3]
    $region13: #{forward.1} parent=1 // pred_fallthru
      _
    // Predicated region
    $region14: #{forward.1} parent=1 // pred_check
      _
    $region15: #{forward.1} parent=1 // pred_check_branch
      %36 = sbr.rel (0) target = $region17
    $region16: #{forward.1} parent=1 // pred_region
      _
    $region17: #{forward.1} parent=1 // pred_fallthru
      _
    // Predicated region
    $region18: #{forward.1} parent=1 // pred_check
      _
    $region19: #{forward.1} parent=1 // pred_check_branch
      %38 = sbr.rel (0) target = $region21
    $region20: #{forward.1} parent=1 // pred_region
      _
    $region21: #{forward.1} parent=1 // pred_fallthru
      _
    // Predicated region
    $region22: #{forward.1} parent=1 // pred_check
      _
    $region23: #{forward.1} parent=1 // pred_check_branch
      %40 = sbr.rel (0) target = $region25
    $region24: #{forward.1} parent=1 // pred_region
      _
    $region25: #{forward.1} parent=1 // pred_fallthru
      _
    // Predicated region
    $region26: #{forward.1} parent=1 // pred_check
      _
    $region27: #{forward.1} parent=1 // pred_check_branch
      %42 = sbr.rel (0) target = $region29
    $region28: #{forward.1} parent=1 // pred_region
      _
    $region29: #{forward.1} parent=1 // pred_fallthru
      _
    // Predicated region
    $region30: #{forward.1} parent=1 // pred_check
      _
    $region31: #{forward.1} parent=1 // pred_check_branch
      %44 = sbr.rel (0) target = $region33
    $region32: #{forward.1} parent=1 // pred_region
      _
    $region33: #{forward.1} parent=1 // pred_fallthru
      _
    // Predicated region
    $region34: #{forward.1} parent=1 // pred_check
      _
    $region35: #{forward.1} parent=1 // pred_check_branch
      %46 = sbr.rel (0) target = $region37
    $region36: #{forward.1} parent=1 // pred_region
      _
    $region37: #{forward.1} parent=1 // pred_fallthru
      _
    // Predicated region
    $region38: #{forward.1} parent=1 // pred_check
      _
    $region39: #{forward.1} parent=1 // pred_check_branch
      %48 = sbr.rel (0) target = $region41
    $region40: #{forward.1} parent=1 // pred_region
      _
    $region41: #{forward.1} parent=1 // pred_fallthru
      _
    // Predicated region
    $region42: #{forward.1} parent=1 // pred_check
      _
    $region43: #{forward.1} parent=1 // pred_check_branch
      %50 = sbr.rel (0) target = $region45
    $region44: #{forward.1} parent=1 // pred_region
      _
    $region45: #{forward.1} parent=1 // pred_fallthru
      _
    // Predicated region
    $region46: #{forward.1} parent=1 // pred_check
      _
    $region47: #{forward.1} parent=1 // pred_check_branch
      %52 = sbr.rel (0) target = $region49
    $region48: #{forward.1} parent=1 // pred_region
      _
    $region49: #{forward.1} parent=1 // pred_fallthru
      _
    // Predicated region
    $region50: #{forward.1} parent=1 // pred_check
      _
    $region51: #{forward.1} parent=1 // pred_check_branch
      %54 = sbr.rel (0) target = $region53
    $region52: #{forward.1} parent=1 // pred_region
      _
    $region53: #{forward.1} parent=1 // pred_fallthru
      _
    // Predicated region
    $region54: #{forward.1} parent=1 // pred_check
      _
    $region55: #{forward.1} parent=1 // pred_check_branch
      %56 = sbr.rel (0) target = $region57
    $region56: #{forward.1} parent=1 // pred_region
      _
    $region57: #{forward.1} parent=1 // pred_fallthru
      _
    // Predicated region
    $region58: #{forward.1} parent=1 // pred_check
      _
    $region59: #{forward.1} parent=1 // pred_check_branch
      %58 = sbr.rel (0) target = $region61
    $region60: #{forward.1} parent=1 // pred_region
      _
    $region61: #{forward.1} parent=1 // pred_fallthru
      _
    // Predicated region
    $region62: #{forward.1} parent=1 // pred_check
      _
    $region63: #{forward.1} parent=1 // pred_check_branch
      %60 = sbr.rel (0) target = $region65
    $region64: #{forward.1} parent=1 // pred_region
      %61 = dma.done [#allocation3], 128
    $region65: #{forward.1} parent=1 // pred_fallthru
      _
    %v62 = vld [vmem:[#allocation2] sm:$0xff]
    %v63 = vld [vmem:[%s0] sm:$0xff]
    %v64 = vld [vmem:[%s0 + $0x8] sm:$0xff]
    %v65 = vld [vmem:[%s3] sm:$0x7]
    %v66 = vld [vmem:[%s14] sm:$0x1]
    %v67 = vlaneseq
    %v68 = vshrl.u32 %v67, 7
    %v69 = vsub.s32 0, %v68
    %v70 = vrot.slane %v66, %v69
    %vm71 = vcmask 23552
    %v73 = vsel %vm71, %v63, 0
    %v76 = vsel %vm71, %v64, 0
    %vm78 = vcmask 1042432
    %v80 = vsel %vm78, %v65, 0
    %82 = vmatprep.subr.mxu0 0.0
    %83 = vmatpush1.msra.mxu0 %v80
    %84 = vmatprep.subr.mxu0 0.0
    %85 = vmatpush1.msra.mxu0 0.0
    %86 = vmatprep.subr.mxu0 0.0
    %87 = vmatpush1.msra.mxu0 0.0
    %88 = vmatprep.subr.mxu0 0.0
    %89 = vmatpush1.msra.mxu0 0.0
    %90 = vmatprep.subr.mxu0 0.0
    %91 = vmatpush1.msra.mxu0 0.0
    %92 = vmatprep.subr.mxu0 0.0
    %93 = vmatpush1.msra.mxu0 0.0
    %94 = vmatprep.subr.mxu0 0.0
    %95 = vmatpush1.msra.mxu0 0.0
    %96 = vmatprep.subr.mxu0 0.0
    %97 = vmatpush1.msra.mxu0 0.0
    %98 = vmatprep.subr.mxu0 0.0
    %99 = vmatpush1.msra.mxu0 0.0
    %100 = vmatprep.subr.mxu0 0.0
    %101 = vmatpush1.msra.mxu0 0.0
    %102 = vmatprep.subr.mxu0 0.0
    %103 = vmatpush1.msra.mxu0 0.0
    %104 = vmatprep.subr.mxu0 0.0
    %105 = vmatpush1.msra.mxu0 0.0
    %106 = vmatprep.subr.mxu0 0.0
    %107 = vmatpush1.msra.mxu0 0.0
    %108 = vmatprep.subr.mxu0 0.0
    %109 = vmatpush1.msra.mxu0 0.0
    %110 = vmatprep.subr.mxu0 0.0
    %111 = vmatpush1.msra.mxu0 0.0
    %112 = vmatprep.subr.mxu0 0.0
    %113 = vmatpush1.msra.mxu0 0.0
    %114 = vmatprep.subr.mxu0 0.0
    %115 = vmatpush1.msra.mxu0 0.0
    %116 = vmatprep.subr.mxu0 0.0
    %117 = vmatpush1.msra.mxu0 0.0
    %118 = vmatprep.subr.mxu0 0.0
    %119 = vmatpush1.msra.mxu0 0.0
    %120 = vmatprep.subr.mxu0 0.0
    %121 = vmatpush1.msra.mxu0 0.0
    %122 = vmatprep.subr.mxu0 0.0
    %123 = vmatpush1.msra.mxu0 0.0
    %124 = vmatprep.subr.mxu0 0.0
    %125 = vmatpush1.msra.mxu0 0.0
    %126 = vmatprep.subr.mxu0 0.0
    %127 = vmatpush1.msra.mxu0 0.0
    %128 = vmatprep.subr.mxu0 0.0
    %129 = vmatpush1.msra.mxu0 0.0
    %130 = vmatprep.subr.mxu0 0.0
    %131 = vmatpush1.msra.mxu0 0.0
    %132 = vmatprep.subr.mxu0 0.0
    %133 = vmatpush1.msra.mxu0 0.0
    %134 = vmatprep.subr.mxu0 0.0
    %135 = vmatpush1.msra.mxu0 0.0
    %136 = vmatprep.subr.mxu0 0.0
    %137 = vmatpush1.msra.mxu0 0.0
    %138 = vmatprep.subr.mxu0 0.0
    %139 = vmatpush1.msra.mxu0 0.0
    %140 = vmatprep.subr.mxu0 0.0
    %141 = vmatpush1.msra.mxu0 0.0
    %142 = vmatprep.subr.mxu0 0.0
    %143 = vmatpush1.msra.mxu0 0.0
    %144 = vmatprep.subr.mxu0 0.0
    %145 = vmatpush1.msra.mxu0 0.0
    %146 = vmatprep.mubr.f32.mxu0 0.0
    %147 = vmatmul.mubr.f32.gmra.mrb[0].mxu0 %v73
    %v148 = vpop.f32.mrb[0].mxu0
    %v149 = vadd.f32 %v70, %v148
    %v150 = vpop.f32.mrb[0].mxu0
    %151 = vmatprep.mubr.f32.mxu0 0.0
    %152 = vmatmul.mubr.f32.gmra.mrb[0].mxu0 %v76
    %v153 = vpop.f32.mrb[0].mxu0
    %v154 = vadd.f32 %v70, %v153
    %v155 = vpop.f32.mrb[0].mxu0
    %156 = vdwg.mxu0
    %v157 = vadd.f32 %v149, %v62
    %v158 = vadd.f32 %v154, %v62
    %v159 = vld [vmem:[%s1] sm:$0xff]
    %v160 = vld [vmem:[%s1 + $0x8] sm:$0xff]
    %v161 = vld [vmem:[%s4] sm:$0x7f]
    %v162 = vld [vmem:[%s14 + $0x1] sm:$0x1]
    %v163 = vlaneseq
    %v164 = vshrl.u32 %v163, 7
    %v165 = vsub.s32 0, %v164
    %v166 = vrot.slane %v162, %v165
    %vm167 = vcmask 56320
    %v169 = vsel %vm167, %v159, 0
    %v172 = vsel %vm167, %v160, 0
    %vm174 = vcmask 1046528
    %v176 = vsel %vm174, %v161, 0
    %178 = vmatprep.subr.mxu0 0.0
    %179 = vmatpush1.msra.mxu0 %v176
    %180 = vmatprep.subr.mxu0 0.0
    %181 = vmatpush1.msra.mxu0 0.0
    %182 = vmatprep.subr.mxu0 0.0
    %183 = vmatpush1.msra.mxu0 0.0
    %184 = vmatprep.subr.mxu0 0.0
    %185 = vmatpush1.msra.mxu0 0.0
    %186 = vmatprep.subr.mxu0 0.0
    %187 = vmatpush1.msra.mxu0 0.0
    %188 = vmatprep.subr.mxu0 0.0
    %189 = vmatpush1.msra.mxu0 0.0
    %190 = vmatprep.subr.mxu0 0.0
    %191 = vmatpush1.msra.mxu0 0.0
    %192 = vmatprep.subr.mxu0 0.0
    %193 = vmatpush1.msra.mxu0 0.0
    %194 = vmatprep.subr.mxu0 0.0
    %195 = vmatpush1.msra.mxu0 0.0
    %196 = vmatprep.subr.mxu0 0.0
    %197 = vmatpush1.msra.mxu0 0.0
    %198 = vmatprep.subr.mxu0 0.0
    %199 = vmatpush1.msra.mxu0 0.0
    %200 = vmatprep.subr.mxu0 0.0
    %201 = vmatpush1.msra.mxu0 0.0
    %202 = vmatprep.subr.mxu0 0.0
    %203 = vmatpush1.msra.mxu0 0.0
    %204 = vmatprep.subr.mxu0 0.0
    %205 = vmatpush1.msra.mxu0 0.0
    %206 = vmatprep.subr.mxu0 0.0
    %207 = vmatpush1.msra.mxu0 0.0
    %208 = vmatprep.subr.mxu0 0.0
    %209 = vmatpush1.msra.mxu0 0.0
    %210 = vmatprep.subr.mxu0 0.0
    %211 = vmatpush1.msra.mxu0 0.0
    %212 = vmatprep.subr.mxu0 0.0
    %213 = vmatpush1.msra.mxu0 0.0
    %214 = vmatprep.subr.mxu0 0.0
    %215 = vmatpush1.msra.mxu0 0.0
    %216 = vmatprep.subr.mxu0 0.0
    %217 = vmatpush1.msra.mxu0 0.0
    %218 = vmatprep.subr.mxu0 0.0
    %219 = vmatpush1.msra.mxu0 0.0
    %220 = vmatprep.subr.mxu0 0.0
    %221 = vmatpush1.msra.mxu0 0.0
    %222 = vmatprep.subr.mxu0 0.0
    %223 = vmatpush1.msra.mxu0 0.0
    %224 = vmatprep.subr.mxu0 0.0
    %225 = vmatpush1.msra.mxu0 0.0
    %226 = vmatprep.subr.mxu0 0.0
    %227 = vmatpush1.msra.mxu0 0.0
    %228 = vmatprep.subr.mxu0 0.0
    %229 = vmatpush1.msra.mxu0 0.0
    %230 = vmatprep.subr.mxu0 0.0
    %231 = vmatpush1.msra.mxu0 0.0
    %232 = vmatprep.subr.mxu0 0.0
    %233 = vmatpush1.msra.mxu0 0.0
    %234 = vmatprep.subr.mxu0 0.0
    %235 = vmatpush1.msra.mxu0 0.0
    %236 = vmatprep.subr.mxu0 0.0
    %237 = vmatpush1.msra.mxu0 0.0
    %238 = vmatprep.subr.mxu0 0.0
    %239 = vmatpush1.msra.mxu0 0.0
    %240 = vmatprep.subr.mxu0 0.0
    %241 = vmatpush1.msra.mxu0 0.0
    %242 = vmatprep.mubr.f32.mxu0 0.0
    %243 = vmatmul.mubr.f32.gmra.mrb[0].mxu0 %v169
    %v244 = vpop.f32.mrb[0].mxu0
    %v245 = vadd.f32 %v166, %v244
    %v246 = vpop.f32.mrb[0].mxu0
    %247 = vmatprep.mubr.f32.mxu0 0.0
    %248 = vmatmul.mubr.f32.gmra.mrb[0].mxu0 %v172
    %v249 = vpop.f32.mrb[0].mxu0
    %v250 = vadd.f32 %v166, %v249
    %v251 = vpop.f32.mrb[0].mxu0
    %252 = vdwg.mxu0
    %v253 = vadd.f32 %v245, %v62
    %v254 = vadd.f32 %v250, %v62
    %v255 = vld [vmem:[%s5] sm:$0xff]
    %v256 = vld [vmem:[%s5 + $0x8] sm:$0xff]
    %v257 = vld [vmem:[%s5 + $0x10] sm:$0xff]
    %v258 = vld [vmem:[%s5 + $0x18] sm:$0xff]
    %vm259 = vcmask 261120
    %v261 = vsel %vm259, %v157, 0
    %v264 = vsel %vm259, %v158, 0
    %266 = vmatprep.subr.mxu0 0.0
    %267 = vmatpush1.msra.mxu0 %v255
    %268 = vmatprep.subr.mxu0 0.0
    %269 = vmatpush1.msra.mxu0 %v256
    %270 = vmatprep.subr.mxu0 0.0
    %271 = vmatpush1.msra.mxu0 %v257
    %272 = vmatprep.subr.mxu0 0.0
    %273 = vmatpush1.msra.mxu0 %v258
    %274 = vmatprep.subr.mxu0 0.0
    %275 = vmatpush1.msra.mxu0 0.0
    %276 = vmatprep.subr.mxu0 0.0
    %277 = vmatpush1.msra.mxu0 0.0
    %278 = vmatprep.subr.mxu0 0.0
    %279 = vmatpush1.msra.mxu0 0.0
    %280 = vmatprep.subr.mxu0 0.0
    %281 = vmatpush1.msra.mxu0 0.0
    %282 = vmatprep.subr.mxu0 0.0
    %283 = vmatpush1.msra.mxu0 0.0
    %284 = vmatprep.subr.mxu0 0.0
    %285 = vmatpush1.msra.mxu0 0.0
    %286 = vmatprep.subr.mxu0 0.0
    %287 = vmatpush1.msra.mxu0 0.0
    %288 = vmatprep.subr.mxu0 0.0
    %289 = vmatpush1.msra.mxu0 0.0
    %290 = vmatprep.subr.mxu0 0.0
    %291 = vmatpush1.msra.mxu0 0.0
    %292 = vmatprep.subr.mxu0 0.0
    %293 = vmatpush1.msra.mxu0 0.0
    %294 = vmatprep.subr.mxu0 0.0
    %295 = vmatpush1.msra.mxu0 0.0
    %296 = vmatprep.subr.mxu0 0.0
    %297 = vmatpush1.msra.mxu0 0.0
    %298 = vmatprep.subr.mxu0 0.0
    %299 = vmatpush1.msra.mxu0 0.0
    %300 = vmatprep.subr.mxu0 0.0
    %301 = vmatpush1.msra.mxu0 0.0
    %302 = vmatprep.subr.mxu0 0.0
    %303 = vmatpush1.msra.mxu0 0.0
    %304 = vmatprep.subr.mxu0 0.0
    %305 = vmatpush1.msra.mxu0 0.0
    %306 = vmatprep.subr.mxu0 0.0
    %307 = vmatpush1.msra.mxu0 0.0
    %308 = vmatprep.subr.mxu0 0.0
    %309 = vmatpush1.msra.mxu0 0.0
    %310 = vmatprep.subr.mxu0 0.0
    %311 = vmatpush1.msra.mxu0 0.0
    %312 = vmatprep.subr.mxu0 0.0
    %313 = vmatpush1.msra.mxu0 0.0
    %314 = vmatprep.subr.mxu0 0.0
    %315 = vmatpush1.msra.mxu0 0.0
    %316 = vmatprep.subr.mxu0 0.0
    %317 = vmatpush1.msra.mxu0 0.0
    %318 = vmatprep.subr.mxu0 0.0
    %319 = vmatpush1.msra.mxu0 0.0
    %320 = vmatprep.subr.mxu0 0.0
    %321 = vmatpush1.msra.mxu0 0.0
    %322 = vmatprep.subr.mxu0 0.0
    %323 = vmatpush1.msra.mxu0 0.0
    %324 = vmatprep.subr.mxu0 0.0
    %325 = vmatpush1.msra.mxu0 0.0
    %326 = vmatprep.subr.mxu0 0.0
    %327 = vmatpush1.msra.mxu0 0.0
    %328 = vmatprep.subr.mxu0 0.0
    %329 = vmatpush1.msra.mxu0 0.0
    %330 = vmatprep.mubr.f32.mxu0 0.0
    %331 = vmatmul.mubr.f32.gmra.mrb[0].mxu0 %v261
    %v332 = vpop.f32.mrb[0].mxu0
    %v333 = vadd.f32 0.0, %v332
    %v334 = vpop.f32.mrb[0].mxu0
    %335 = vmatprep.mubr.f32.mxu0 0.0
    %336 = vmatmul.mubr.f32.gmra.mrb[0].mxu0 %v264
    %v337 = vpop.f32.mrb[0].mxu0
    %v338 = vadd.f32 0.0, %v337
    %v339 = vpop.f32.mrb[0].mxu0
    %340 = vdwg.mxu0
    %s341 = scalar_lea.vmem %s5, 32
    %v342 = vld [vmem:[%s341] sm:$0xff]
    %v343 = vld [vmem:[%s341 + $0x8] sm:$0xff]
    %v344 = vld [vmem:[%s341 + $0x10] sm:$0xff]
    %v345 = vld [vmem:[%s341 + $0x18] sm:$0xff]
    %346 = vmatprep.subr.mxu0 0.0
    %347 = vmatpush1.msra.mxu0 %v342
    %348 = vmatprep.subr.mxu0 0.0
    %349 = vmatpush1.msra.mxu0 %v343
    %350 = vmatprep.subr.mxu0 0.0
    %351 = vmatpush1.msra.mxu0 %v344
    %352 = vmatprep.subr.mxu0 0.0
    %353 = vmatpush1.msra.mxu0 %v345
    %354 = vmatprep.subr.mxu0 0.0
    %355 = vmatpush1.msra.mxu0 0.0
    %356 = vmatprep.subr.mxu0 0.0
    %357 = vmatpush1.msra.mxu0 0.0
    %358 = vmatprep.subr.mxu0 0.0
    %359 = vmatpush1.msra.mxu0 0.0
    %360 = vmatprep.subr.mxu0 0.0
    %361 = vmatpush1.msra.mxu0 0.0
    %362 = vmatprep.subr.mxu0 0.0
    %363 = vmatpush1.msra.mxu0 0.0
    %364 = vmatprep.subr.mxu0 0.0
    %365 = vmatpush1.msra.mxu0 0.0
    %366 = vmatprep.subr.mxu0 0.0
    %367 = vmatpush1.msra.mxu0 0.0
    %368 = vmatprep.subr.mxu0 0.0
    %369 = vmatpush1.msra.mxu0 0.0
    %370 = vmatprep.subr.mxu0 0.0
    %371 = vmatpush1.msra.mxu0 0.0
    %372 = vmatprep.subr.mxu0 0.0
    %373 = vmatpush1.msra.mxu0 0.0
    %374 = vmatprep.subr.mxu0 0.0
    %375 = vmatpush1.msra.mxu0 0.0
    %376 = vmatprep.subr.mxu0 0.0
    %377 = vmatpush1.msra.mxu0 0.0
    %378 = vmatprep.subr.mxu0 0.0
    %379 = vmatpush1.msra.mxu0 0.0
    %380 = vmatprep.subr.mxu0 0.0
    %381 = vmatpush1.msra.mxu0 0.0
    %382 = vmatprep.subr.mxu0 0.0
    %383 = vmatpush1.msra.mxu0 0.0
    %384 = vmatprep.subr.mxu0 0.0
    %385 = vmatpush1.msra.mxu0 0.0
    %386 = vmatprep.subr.mxu0 0.0
    %387 = vmatpush1.msra.mxu0 0.0
    %388 = vmatprep.subr.mxu0 0.0
    %389 = vmatpush1.msra.mxu0 0.0
    %390 = vmatprep.subr.mxu0 0.0
    %391 = vmatpush1.msra.mxu0 0.0
    %392 = vmatprep.subr.mxu0 0.0
    %393 = vmatpush1.msra.mxu0 0.0
    %394 = vmatprep.subr.mxu0 0.0
    %395 = vmatpush1.msra.mxu0 0.0
    %396 = vmatprep.subr.mxu0 0.0
    %397 = vmatpush1.msra.mxu0 0.0
    %398 = vmatprep.subr.mxu0 0.0
    %399 = vmatpush1.msra.mxu0 0.0
    %400 = vmatprep.subr.mxu0 0.0
    %401 = vmatpush1.msra.mxu0 0.0
    %402 = vmatprep.subr.mxu0 0.0
    %403 = vmatpush1.msra.mxu0 0.0
    %404 = vmatprep.subr.mxu0 0.0
    %405 = vmatpush1.msra.mxu0 0.0
    %406 = vmatprep.subr.mxu0 0.0
    %407 = vmatpush1.msra.mxu0 0.0
    %408 = vmatprep.subr.mxu0 0.0
    %409 = vmatpush1.msra.mxu0 0.0
    %410 = vmatprep.mubr.f32.mxu0 0.0
    %411 = vmatmul.mubr.f32.gmra.mrb[0].mxu0 %v261
    %v412 = vpop.f32.mrb[0].mxu0
    %v413 = vadd.f32 0.0, %v412
    %v414 = vpop.f32.mrb[0].mxu0
    %415 = vmatprep.mubr.f32.mxu0 0.0
    %416 = vmatmul.mubr.f32.gmra.mrb[0].mxu0 %v264
    %v417 = vpop.f32.mrb[0].mxu0
    %v418 = vadd.f32 0.0, %v417
    %v419 = vpop.f32.mrb[0].mxu0
    %420 = vdwg.mxu0
    %s421 = scalar_lea.vmem %s5, 64
    %v422 = vld [vmem:[%s421] sm:$0xff]
    %v423 = vld [vmem:[%s421 + $0x8] sm:$0xff]
    %v424 = vld [vmem:[%s421 + $0x10] sm:$0xff]
    %v425 = vld [vmem:[%s421 + $0x18] sm:$0xff]
    %426 = vmatprep.subr.mxu0 0.0
    %427 = vmatpush1.msra.mxu0 %v422
    %428 = vmatprep.subr.mxu0 0.0
    %429 = vmatpush1.msra.mxu0 %v423
    %430 = vmatprep.subr.mxu0 0.0
    %431 = vmatpush1.msra.mxu0 %v424
    %432 = vmatprep.subr.mxu0 0.0
    %433 = vmatpush1.msra.mxu0 %v425
    %434 = vmatprep.subr.mxu0 0.0
    %435 = vmatpush1.msra.mxu0 0.0
    %436 = vmatprep.subr.mxu0 0.0
    %437 = vmatpush1.msra.mxu0 0.0
    %438 = vmatprep.subr.mxu0 0.0
    %439 = vmatpush1.msra.mxu0 0.0
    %440 = vmatprep.subr.mxu0 0.0
    %441 = vmatpush1.msra.mxu0 0.0
    %442 = vmatprep.subr.mxu0 0.0
    %443 = vmatpush1.msra.mxu0 0.0
    %444 = vmatprep.subr.mxu0 0.0
    %445 = vmatpush1.msra.mxu0 0.0
    %446 = vmatprep.subr.mxu0 0.0
    %447 = vmatpush1.msra.mxu0 0.0
    %448 = vmatprep.subr.mxu0 0.0
    %449 = vmatpush1.msra.mxu0 0.0
    %450 = vmatprep.subr.mxu0 0.0
    %451 = vmatpush1.msra.mxu0 0.0
    %452 = vmatprep.subr.mxu0 0.0
    %453 = vmatpush1.msra.mxu0 0.0
    %454 = vmatprep.subr.mxu0 0.0
    %455 = vmatpush1.msra.mxu0 0.0
    %456 = vmatprep.subr.mxu0 0.0
    %457 = vmatpush1.msra.mxu0 0.0
    %458 = vmatprep.subr.mxu0 0.0
    %459 = vmatpush1.msra.mxu0 0.0
    %460 = vmatprep.subr.mxu0 0.0
    %461 = vmatpush1.msra.mxu0 0.0
    %462 = vmatprep.subr.mxu0 0.0
    %463 = vmatpush1.msra.mxu0 0.0
    %464 = vmatprep.subr.mxu0 0.0
    %465 = vmatpush1.msra.mxu0 0.0
    %466 = vmatprep.subr.mxu0 0.0
    %467 = vmatpush1.msra.mxu0 0.0
    %468 = vmatprep.subr.mxu0 0.0
    %469 = vmatpush1.msra.mxu0 0.0
    %470 = vmatprep.subr.mxu0 0.0
    %471 = vmatpush1.msra.mxu0 0.0
    %472 = vmatprep.subr.mxu0 0.0
    %473 = vmatpush1.msra.mxu0 0.0
    %474 = vmatprep.subr.mxu0 0.0
    %475 = vmatpush1.msra.mxu0 0.0
    %476 = vmatprep.subr.mxu0 0.0
    %477 = vmatpush1.msra.mxu0 0.0
    %478 = vmatprep.subr.mxu0 0.0
    %479 = vmatpush1.msra.mxu0 0.0
    %480 = vmatprep.subr.mxu0 0.0
    %481 = vmatpush1.msra.mxu0 0.0
    %482 = vmatprep.subr.mxu0 0.0
    %483 = vmatpush1.msra.mxu0 0.0
    %484 = vmatprep.subr.mxu0 0.0
    %485 = vmatpush1.msra.mxu0 0.0
    %486 = vmatprep.subr.mxu0 0.0
    %487 = vmatpush1.msra.mxu0 0.0
    %488 = vmatprep.subr.mxu0 0.0
    %489 = vmatpush1.msra.mxu0 0.0
    %490 = vmatprep.mubr.f32.mxu0 0.0
    %491 = vmatmul.mubr.f32.gmra.mrb[0].mxu0 %v261
    %v492 = vpop.f32.mrb[0].mxu0
    %v493 = vadd.f32 0.0, %v492
    %v494 = vpop.f32.mrb[0].mxu0
    %495 = vmatprep.mubr.f32.mxu0 0.0
    %496 = vmatmul.mubr.f32.gmra.mrb[0].mxu0 %v264
    %v497 = vpop.f32.mrb[0].mxu0
    %v498 = vadd.f32 0.0, %v497
    %v499 = vpop.f32.mrb[0].mxu0
    %500 = vdwg.mxu0
    %v501 = vlaneseq
    %v502 = vshrl.u32 %v501, 7
    %v503 = vadd.s32 %v502, 8
    %vm504 = vcmp.lt.s32.totalorder %v502, 0
    %v505 = vsub.s32 0, %v502
    %v506 = vsel %vm504, %v505, %v502
    %v507 = vshrl.u32 %v506, 3
    %v508 = vand.u32 %v506, 7
    %v509 = vsub.s32 0, %v508
    %v510 = vsel %vm504, %v509, %v508
    %vm511 = vcmp.lt.s32.totalorder %v503, 0
    %v512 = vsub.s32 0, %v503
    %v513 = vsel %vm511, %v512, %v503
    %v514 = vshrl.u32 %v513, 3
    %v515 = vand.u32 %v513, 7
    %v516 = vsub.s32 0, %v515
    %v517 = vsel %vm511, %v516, %v515
    %vm518 = vcmp.ne.s32.totalorder %v510, 0
    %vm519 = vcmp.ne.s32.totalorder %v517, 0
    %vm520 = vcmp.lt.s32.totalorder %v510, 0
    %vm521 = vcmp.lt.s32.totalorder %v517, 0
    %vm522 = vmand %vm520, %vm518
    %vm523 = vmand %vm521, %vm519
    %v524 = vadd.s32 %v510, 8
    %v525 = vadd.s32 %v517, 8
    %v526 = vsel %vm522, %v524, %v510
    %v527 = vsel %vm523, %v525, %v517
    %vm528 = vcmp.ne.s32.totalorder %v526, 0
    %vm529 = vcmp.ne.s32.totalorder %v527, 0
    %v530 = vrot.slane %v333, 7
    %v531 = vrot.slane %v338, 7
    %vm532 = vcmp.lt.s32.totalorder %v502, 1
    %v533 = vsel %vm532, %v530, %v531
    %v534 = vsel %vm532, %v531, %v530
    %v535 = vsel %vm528, %v534, 0.0
    %v536 = vsel %vm529, %v533, 0.0
    %vm537 = vcmp.ne.s32.totalorder %v526, 7
    %vm538 = vcmp.ne.s32.totalorder %v527, 7
    %v539 = vrot.slane %v493, 1
    %v540 = vrot.slane %v498, 1
    %vm541 = vcmp.lt.s32.totalorder %v502, 7
    %v542 = vsel %vm541, %v539, %v540
    %v543 = vsel %vm541, %v540, %v539
    %v544 = vsel %vm537, %v542, 0.0
    %v545 = vsel %vm538, %v543, 0.0
    %v546 = vadd.f32 %v535, %v413
    %v547 = vadd.f32 %v536, %v418
    %v548 = vadd.f32 %v546, %v544
    %v549 = vadd.f32 %v547, %v545
    %v550 = vld [vmem:[%s14 + $0x2] sm:$0x1]
    %v551 = vlaneseq
    %v552 = vshrl.u32 %v551, 7
    %v553 = vsub.s32 0, %v552
    %v554 = vrot.slane %v550, %v553
    %v555 = vadd.f32 %v548, %v554
    %v556 = vadd.f32 %v549, %v554
    %v557 = vld [vmem:[%s6] sm:$0xff]
    %v558 = vld [vmem:[%s6 + $0x8] sm:$0xff]
    %v559 = vld [vmem:[%s6 + $0x10] sm:$0xff]
    %v560 = vld [vmem:[%s6 + $0x18] sm:$0xff]
    %v561 = vld [vmem:[%s7] sm:$0xff]
    %v562 = vld [vmem:[%s7 + $0x8] sm:$0xff]
    %v563 = vld [vmem:[%s7 + $0x10] sm:$0xff]
    %v564 = vld [vmem:[%s7 + $0x18] sm:$0xff]
    %v565 = vld [vmem:[%s14 + $0x3] sm:$0x1]
    %v566 = vlaneseq
    %v567 = vshrl.u32 %v566, 7
    %v568 = vsub.s32 0, %v567
    %v569 = vrot.slane %v565, %v568
    %v571 = vsel %vm259, %v555, 0
    %v574 = vsel %vm259, %v556, 0
    %v577 = vsel %vm259, %v253, 0
    %v580 = vsel %vm259, %v254, 0
    %582 = vmatprep.subr.mxu0 0.0
    %583 = vmatpush1.msra.mxu0 %v557
    %584 = vmatprep.subr.mxu0 0.0
    %585 = vmatpush1.msra.mxu0 %v558
    %586 = vmatprep.subr.mxu0 0.0
    %587 = vmatpush1.msra.mxu0 %v559
    %588 = vmatprep.subr.mxu0 0.0
    %589 = vmatpush1.msra.mxu0 %v560
    %590 = vmatprep.subr.mxu0 0.0
    %591 = vmatpush1.msra.mxu0 0.0
    %592 = vmatprep.subr.mxu0 0.0
    %593 = vmatpush1.msra.mxu0 0.0
    %594 = vmatprep.subr.mxu0 0.0
    %595 = vmatpush1.msra.mxu0 0.0
    %596 = vmatprep.subr.mxu0 0.0
    %597 = vmatpush1.msra.mxu0 0.0
    %598 = vmatprep.subr.mxu0 0.0
    %599 = vmatpush1.msra.mxu0 0.0
    %600 = vmatprep.subr.mxu0 0.0
    %601 = vmatpush1.msra.mxu0 0.0
    %602 = vmatprep.subr.mxu0 0.0
    %603 = vmatpush1.msra.mxu0 0.0
    %604 = vmatprep.subr.mxu0 0.0
    %605 = vmatpush1.msra.mxu0 0.0
    %606 = vmatprep.subr.mxu0 0.0
    %607 = vmatpush1.msra.mxu0 0.0
    %608 = vmatprep.subr.mxu0 0.0
    %609 = vmatpush1.msra.mxu0 0.0
    %610 = vmatprep.subr.mxu0 0.0
    %611 = vmatpush1.msra.mxu0 0.0
    %612 = vmatprep.subr.mxu0 0.0
    %613 = vmatpush1.msra.mxu0 0.0
    %614 = vmatprep.subr.mxu0 0.0
    %615 = vmatpush1.msra.mxu0 0.0
    %616 = vmatprep.subr.mxu0 0.0
    %617 = vmatpush1.msra.mxu0 0.0
    %618 = vmatprep.subr.mxu0 0.0
    %619 = vmatpush1.msra.mxu0 0.0
    %620 = vmatprep.subr.mxu0 0.0
    %621 = vmatpush1.msra.mxu0 0.0
    %622 = vmatprep.subr.mxu0 0.0
    %623 = vmatpush1.msra.mxu0 0.0
    %624 = vmatprep.subr.mxu0 0.0
    %625 = vmatpush1.msra.mxu0 0.0
    %626 = vmatprep.subr.mxu0 0.0
    %627 = vmatpush1.msra.mxu0 0.0
    %628 = vmatprep.subr.mxu0 0.0
    %629 = vmatpush1.msra.mxu0 0.0
    %630 = vmatprep.subr.mxu0 0.0
    %631 = vmatpush1.msra.mxu0 0.0
    %632 = vmatprep.subr.mxu0 0.0
    %633 = vmatpush1.msra.mxu0 0.0
    %634 = vmatprep.subr.mxu0 0.0
    %635 = vmatpush1.msra.mxu0 0.0
    %636 = vmatprep.subr.mxu0 0.0
    %637 = vmatpush1.msra.mxu0 0.0
    %638 = vmatprep.subr.mxu0 0.0
    %639 = vmatpush1.msra.mxu0 0.0
    %640 = vmatprep.subr.mxu0 0.0
    %641 = vmatpush1.msra.mxu0 0.0
    %642 = vmatprep.subr.mxu0 0.0
    %643 = vmatpush1.msra.mxu0 0.0
    %644 = vmatprep.subr.mxu0 0.0
    %645 = vmatpush1.msra.mxu0 0.0
    %646 = vmatprep.mubr.f32.mxu0 0.0
    %647 = vmatmul.mubr.f32.gmra.mrb[0].mxu0 %v571
    %v648 = vpop.f32.mrb[0].mxu0
    %v649 = vadd.f32 %v569, %v648
    %v650 = vpop.f32.mrb[0].mxu0
    %651 = vmatprep.mubr.f32.mxu0 0.0
    %652 = vmatmul.mubr.f32.gmra.mrb[0].mxu0 %v574
    %v653 = vpop.f32.mrb[0].mxu0
    %v654 = vadd.f32 %v569, %v653
    %v655 = vpop.f32.mrb[0].mxu0
    %656 = vmatprep.mubr.f32.mxu0 0.0
    %657 = vmatmul.mubr.f32.gmra.mrb[0].mxu0 %v577
    %v658 = vpop.f32.mrb[0].mxu0
    %v659 = vadd.f32 %v569, %v658
    %v660 = vpop.f32.mrb[0].mxu0
    %661 = vmatprep.mubr.f32.mxu0 0.0
    %662 = vmatmul.mubr.f32.gmra.mrb[0].mxu0 %v580
    %v663 = vpop.f32.mrb[0].mxu0
    %v664 = vadd.f32 %v569, %v663
    %v665 = vpop.f32.mrb[0].mxu0
    %666 = vdwg.mxu0
    %671 = vrot.lane.b32.xlu0 %v649, 120
    %v672 = vpop.permute.xlu0 %671
    %673 = vrot.lane.b32.xlu0 %v654, 120
    %v674 = vpop.permute.xlu0 %673
    %675 = vrot.lane.b32.xlu0 %v659, 120
    %v676 = vpop.permute.xlu0 %675
    %677 = vrot.lane.b32.xlu0 %v664, 120
    %v678 = vpop.permute.xlu0 %677
    %679 = vrot.lane.b32.xlu0 %v649, 112
    %v680 = vpop.permute.xlu0 %679
    %681 = vrot.lane.b32.xlu0 %v654, 112
    %v682 = vpop.permute.xlu0 %681
    %683 = vrot.lane.b32.xlu0 %v659, 112
    %v684 = vpop.permute.xlu0 %683
    %685 = vrot.lane.b32.xlu0 %v664, 112
    %v686 = vpop.permute.xlu0 %685
    %687 = vrot.lane.b32.xlu0 %v649, 104
    %v688 = vpop.permute.xlu0 %687
    %689 = vrot.lane.b32.xlu0 %v654, 104
    %v690 = vpop.permute.xlu0 %689
    %691 = vrot.lane.b32.xlu0 %v659, 104
    %v692 = vpop.permute.xlu0 %691
    %693 = vrot.lane.b32.xlu0 %v664, 104
    %v694 = vpop.permute.xlu0 %693
    %695 = vrot.lane.b32.xlu0 %v649, 96
    %v696 = vpop.permute.xlu0 %695
    %vm697 = vcmask 64512
    %v698 = vsel %vm697, %v649, 0
    %v700 = vsel %vm697, %v696, 0
    %702 = vmatprep.subr.mxu0 0.0
    %703 = vmatpush1.xpose.msra.mxu0 %v700
    %704 = vmatprep.subr.mxu0 0.0
    %705 = vmatpush1.xpose.msra.mxu0 0.0
    %706 = vmatprep.subr.mxu0 0.0
    %707 = vmatpush1.xpose.msra.mxu0 0.0
    %708 = vmatprep.subr.mxu0 0.0
    %709 = vmatpush1.xpose.msra.mxu0 0.0
    %710 = vmatprep.subr.mxu0 0.0
    %711 = vmatpush1.xpose.msra.mxu0 0.0
    %712 = vmatprep.subr.mxu0 0.0
    %713 = vmatpush1.xpose.msra.mxu0 0.0
    %714 = vmatprep.subr.mxu0 0.0
    %715 = vmatpush1.xpose.msra.mxu0 0.0
    %716 = vmatprep.subr.mxu0 0.0
    %717 = vmatpush1.xpose.msra.mxu0 0.0
    %718 = vmatprep.subr.mxu0 0.0
    %719 = vmatpush1.xpose.msra.mxu0 0.0
    %720 = vmatprep.subr.mxu0 0.0
    %721 = vmatpush1.xpose.msra.mxu0 0.0
    %722 = vmatprep.subr.mxu0 0.0
    %723 = vmatpush1.xpose.msra.mxu0 0.0
    %724 = vmatprep.subr.mxu0 0.0
    %725 = vmatpush1.xpose.msra.mxu0 0.0
    %726 = vmatprep.subr.mxu0 0.0
    %727 = vmatpush1.xpose.msra.mxu0 0.0
    %728 = vmatprep.subr.mxu0 0.0
    %729 = vmatpush1.xpose.msra.mxu0 0.0
    %730 = vmatprep.subr.mxu0 0.0
    %731 = vmatpush1.xpose.msra.mxu0 0.0
    %732 = vmatprep.subr.mxu0 0.0
    %733 = vmatpush1.xpose.msra.mxu0 0.0
    %734 = vmatprep.subr.mxu0 0.0
    %735 = vmatpush1.xpose.msra.mxu0 0.0
    %736 = vmatprep.subr.mxu0 0.0
    %737 = vmatpush1.xpose.msra.mxu0 0.0
    %738 = vmatprep.subr.mxu0 0.0
    %739 = vmatpush1.xpose.msra.mxu0 0.0
    %740 = vmatprep.subr.mxu0 0.0
    %741 = vmatpush1.xpose.msra.mxu0 0.0
    %742 = vmatprep.subr.mxu0 0.0
    %743 = vmatpush1.xpose.msra.mxu0 0.0
    %744 = vmatprep.subr.mxu0 0.0
    %745 = vmatpush1.xpose.msra.mxu0 0.0
    %746 = vmatprep.subr.mxu0 0.0
    %747 = vmatpush1.xpose.msra.mxu0 0.0
    %748 = vmatprep.subr.mxu0 0.0
    %749 = vmatpush1.xpose.msra.mxu0 0.0
    %750 = vmatprep.subr.mxu0 0.0
    %751 = vmatpush1.xpose.msra.mxu0 0.0
    %752 = vmatprep.subr.mxu0 0.0
    %753 = vmatpush1.xpose.msra.mxu0 0.0
    %754 = vmatprep.subr.mxu0 0.0
    %755 = vmatpush1.xpose.msra.mxu0 0.0
    %756 = vmatprep.subr.mxu0 0.0
    %757 = vmatpush1.xpose.msra.mxu0 0.0
    %758 = vmatprep.subr.mxu0 0.0
    %759 = vmatpush1.xpose.msra.mxu0 0.0
    %760 = vmatprep.subr.mxu0 0.0
    %761 = vmatpush1.xpose.msra.mxu0 0.0
    %762 = vmatprep.subr.mxu0 0.0
    %763 = vmatpush1.xpose.msra.mxu0 0.0
    %764 = vmatprep.subr.mxu0 0.0
    %765 = vmatpush1.xpose.msra.mxu0 0.0
    %766 = vmatprep.mubr.f32.mxu0 0.0
    %767 = vmatmul.mubr.f32.gmra.mrb[0].mxu0 %v698
    %v768 = vpop.f32.mrb[0].mxu0
    %v769 = vadd.f32 0.0, %v768
    %v770 = vpop.f32.mrb[0].mxu0
    %771 = vdwg.mxu0
    %772 = vrot.lane.b32.xlu0 %v654, 96
    %v773 = vpop.permute.xlu0 %772
    %v774 = vsel %vm697, %v654, 0
    %v776 = vsel %vm697, %v773, 0
    %778 = vmatprep.subr.mxu0 0.0
    %779 = vmatpush1.xpose.msra.mxu0 %v776
    %780 = vmatprep.subr.mxu0 0.0
    %781 = vmatpush1.xpose.msra.mxu0 0.0
    %782 = vmatprep.subr.mxu0 0.0
    %783 = vmatpush1.xpose.msra.mxu0 0.0
    %784 = vmatprep.subr.mxu0 0.0
    %785 = vmatpush1.xpose.msra.mxu0 0.0
    %786 = vmatprep.subr.mxu0 0.0
    %787 = vmatpush1.xpose.msra.mxu0 0.0
    %788 = vmatprep.subr.mxu0 0.0
    %789 = vmatpush1.xpose.msra.mxu0 0.0
    %790 = vmatprep.subr.mxu0 0.0
    %791 = vmatpush1.xpose.msra.mxu0 0.0
    %792 = vmatprep.subr.mxu0 0.0
    %793 = vmatpush1.xpose.msra.mxu0 0.0
    %794 = vmatprep.subr.mxu0 0.0
    %795 = vmatpush1.xpose.msra.mxu0 0.0
    %796 = vmatprep.subr.mxu0 0.0
    %797 = vmatpush1.xpose.msra.mxu0 0.0
    %798 = vmatprep.subr.mxu0 0.0
    %799 = vmatpush1.xpose.msra.mxu0 0.0
    %800 = vmatprep.subr.mxu0 0.0
    %801 = vmatpush1.xpose.msra.mxu0 0.0
    %802 = vmatprep.subr.mxu0 0.0
    %803 = vmatpush1.xpose.msra.mxu0 0.0
    %804 = vmatprep.subr.mxu0 0.0
    %805 = vmatpush1.xpose.msra.mxu0 0.0
    %806 = vmatprep.subr.mxu0 0.0
    %807 = vmatpush1.xpose.msra.mxu0 0.0
    %808 = vmatprep.subr.mxu0 0.0
    %809 = vmatpush1.xpose.msra.mxu0 0.0
    %810 = vmatprep.subr.mxu0 0.0
    %811 = vmatpush1.xpose.msra.mxu0 0.0
    %812 = vmatprep.subr.mxu0 0.0
    %813 = vmatpush1.xpose.msra.mxu0 0.0
    %814 = vmatprep.subr.mxu0 0.0
    %815 = vmatpush1.xpose.msra.mxu0 0.0
    %816 = vmatprep.subr.mxu0 0.0
    %817 = vmatpush1.xpose.msra.mxu0 0.0
    %818 = vmatprep.subr.mxu0 0.0
    %819 = vmatpush1.xpose.msra.mxu0 0.0
    %820 = vmatprep.subr.mxu0 0.0
    %821 = vmatpush1.xpose.msra.mxu0 0.0
    %822 = vmatprep.subr.mxu0 0.0
    %823 = vmatpush1.xpose.msra.mxu0 0.0
    %824 = vmatprep.subr.mxu0 0.0
    %825 = vmatpush1.xpose.msra.mxu0 0.0
    %826 = vmatprep.subr.mxu0 0.0
    %827 = vmatpush1.xpose.msra.mxu0 0.0
    %828 = vmatprep.subr.mxu0 0.0
    %829 = vmatpush1.xpose.msra.mxu0 0.0
    %830 = vmatprep.subr.mxu0 0.0
    %831 = vmatpush1.xpose.msra.mxu0 0.0
    %832 = vmatprep.subr.mxu0 0.0
    %833 = vmatpush1.xpose.msra.mxu0 0.0
    %834 = vmatprep.subr.mxu0 0.0
    %835 = vmatpush1.xpose.msra.mxu0 0.0
    %836 = vmatprep.subr.mxu0 0.0
    %837 = vmatpush1.xpose.msra.mxu0 0.0
    %838 = vmatprep.subr.mxu0 0.0
    %839 = vmatpush1.xpose.msra.mxu0 0.0
    %840 = vmatprep.subr.mxu0 0.0
    %841 = vmatpush1.xpose.msra.mxu0 0.0
    %842 = vmatprep.mubr.f32.mxu0 0.0
    %843 = vmatmul.mubr.f32.gmra.mrb[0].mxu0 %v774
    %v844 = vpop.f32.mrb[0].mxu0
    %v845 = vadd.f32 0.0, %v844
    %v846 = vpop.f32.mrb[0].mxu0
    %847 = vdwg.mxu0
    %848 = vrot.lane.b32.xlu0 %v659, 96
    %v849 = vpop.permute.xlu0 %848
    %v850 = vsel %vm697, %v659, 0
    %v852 = vsel %vm697, %v849, 0
    %854 = vmatprep.subr.mxu0 0.0
    %855 = vmatpush1.xpose.msra.mxu0 %v852
    %856 = vmatprep.subr.mxu0 0.0
    %857 = vmatpush1.xpose.msra.mxu0 0.0
    %858 = vmatprep.subr.mxu0 0.0
    %859 = vmatpush1.xpose.msra.mxu0 0.0
    %860 = vmatprep.subr.mxu0 0.0
    %861 = vmatpush1.xpose.msra.mxu0 0.0
    %862 = vmatprep.subr.mxu0 0.0
    %863 = vmatpush1.xpose.msra.mxu0 0.0
    %864 = vmatprep.subr.mxu0 0.0
    %865 = vmatpush1.xpose.msra.mxu0 0.0
    %866 = vmatprep.subr.mxu0 0.0
    %867 = vmatpush1.xpose.msra.mxu0 0.0
    %868 = vmatprep.subr.mxu0 0.0
    %869 = vmatpush1.xpose.msra.mxu0 0.0
    %870 = vmatprep.subr.mxu0 0.0
    %871 = vmatpush1.xpose.msra.mxu0 0.0
    %872 = vmatprep.subr.mxu0 0.0
    %873 = vmatpush1.xpose.msra.mxu0 0.0
    %874 = vmatprep.subr.mxu0 0.0
    %875 = vmatpush1.xpose.msra.mxu0 0.0
    %876 = vmatprep.subr.mxu0 0.0
    %877 = vmatpush1.xpose.msra.mxu0 0.0
    %878 = vmatprep.subr.mxu0 0.0
    %879 = vmatpush1.xpose.msra.mxu0 0.0
    %880 = vmatprep.subr.mxu0 0.0
    %881 = vmatpush1.xpose.msra.mxu0 0.0
    %882 = vmatprep.subr.mxu0 0.0
    %883 = vmatpush1.xpose.msra.mxu0 0.0
    %884 = vmatprep.subr.mxu0 0.0
    %885 = vmatpush1.xpose.msra.mxu0 0.0
    %886 = vmatprep.subr.mxu0 0.0
    %887 = vmatpush1.xpose.msra.mxu0 0.0
    %888 = vmatprep.subr.mxu0 0.0
    %889 = vmatpush1.xpose.msra.mxu0 0.0
    %890 = vmatprep.subr.mxu0 0.0
    %891 = vmatpush1.xpose.msra.mxu0 0.0
    %892 = vmatprep.subr.mxu0 0.0
    %893 = vmatpush1.xpose.msra.mxu0 0.0
    %894 = vmatprep.subr.mxu0 0.0
    %895 = vmatpush1.xpose.msra.mxu0 0.0
    %896 = vmatprep.subr.mxu0 0.0
    %897 = vmatpush1.xpose.msra.mxu0 0.0
    %898 = vmatprep.subr.mxu0 0.0
    %899 = vmatpush1.xpose.msra.mxu0 0.0
    %900 = vmatprep.subr.mxu0 0.0
    %901 = vmatpush1.xpose.msra.mxu0 0.0
    %902 = vmatprep.subr.mxu0 0.0
    %903 = vmatpush1.xpose.msra.mxu0 0.0
    %904 = vmatprep.subr.mxu0 0.0
    %905 = vmatpush1.xpose.msra.mxu0 0.0
    %906 = vmatprep.subr.mxu0 0.0
    %907 = vmatpush1.xpose.msra.mxu0 0.0
    %908 = vmatprep.subr.mxu0 0.0
    %909 = vmatpush1.xpose.msra.mxu0 0.0
    %910 = vmatprep.subr.mxu0 0.0
    %911 = vmatpush1.xpose.msra.mxu0 0.0
    %912 = vmatprep.subr.mxu0 0.0
    %913 = vmatpush1.xpose.msra.mxu0 0.0
    %914 = vmatprep.subr.mxu0 0.0
    %915 = vmatpush1.xpose.msra.mxu0 0.0
    %916 = vmatprep.subr.mxu0 0.0
    %917 = vmatpush1.xpose.msra.mxu0 0.0
    %918 = vmatprep.mubr.f32.mxu0 0.0
    %919 = vmatmul.mubr.f32.gmra.mrb[0].mxu0 %v850
    %v920 = vpop.f32.mrb[0].mxu0
    %v921 = vadd.f32 0.0, %v920
    %v922 = vpop.f32.mrb[0].mxu0
    %923 = vdwg.mxu0
    %924 = vrot.lane.b32.xlu0 %v664, 96
    %v925 = vpop.permute.xlu0 %924
    %v926 = vsel %vm697, %v664, 0
    %v928 = vsel %vm697, %v925, 0
    %930 = vmatprep.subr.mxu0 0.0
    %931 = vmatpush1.xpose.msra.mxu0 %v928
    %932 = vmatprep.subr.mxu0 0.0
    %933 = vmatpush1.xpose.msra.mxu0 0.0
    %934 = vmatprep.subr.mxu0 0.0
    %935 = vmatpush1.xpose.msra.mxu0 0.0
    %936 = vmatprep.subr.mxu0 0.0
    %937 = vmatpush1.xpose.msra.mxu0 0.0
    %938 = vmatprep.subr.mxu0 0.0
    %939 = vmatpush1.xpose.msra.mxu0 0.0
    %940 = vmatprep.subr.mxu0 0.0
    %941 = vmatpush1.xpose.msra.mxu0 0.0
    %942 = vmatprep.subr.mxu0 0.0
    %943 = vmatpush1.xpose.msra.mxu0 0.0
    %944 = vmatprep.subr.mxu0 0.0
    %945 = vmatpush1.xpose.msra.mxu0 0.0
    %946 = vmatprep.subr.mxu0 0.0
    %947 = vmatpush1.xpose.msra.mxu0 0.0
    %948 = vmatprep.subr.mxu0 0.0
    %949 = vmatpush1.xpose.msra.mxu0 0.0
    %950 = vmatprep.subr.mxu0 0.0
    %951 = vmatpush1.xpose.msra.mxu0 0.0
    %952 = vmatprep.subr.mxu0 0.0
    %953 = vmatpush1.xpose.msra.mxu0 0.0
    %954 = vmatprep.subr.mxu0 0.0
    %955 = vmatpush1.xpose.msra.mxu0 0.0
    %956 = vmatprep.subr.mxu0 0.0
    %957 = vmatpush1.xpose.msra.mxu0 0.0
    %958 = vmatprep.subr.mxu0 0.0
    %959 = vmatpush1.xpose.msra.mxu0 0.0
    %960 = vmatprep.subr.mxu0 0.0
    %961 = vmatpush1.xpose.msra.mxu0 0.0
    %962 = vmatprep.subr.mxu0 0.0
    %963 = vmatpush1.xpose.msra.mxu0 0.0
    %964 = vmatprep.subr.mxu0 0.0
    %965 = vmatpush1.xpose.msra.mxu0 0.0
    %966 = vmatprep.subr.mxu0 0.0
    %967 = vmatpush1.xpose.msra.mxu0 0.0
    %968 = vmatprep.subr.mxu0 0.0
    %969 = vmatpush1.xpose.msra.mxu0 0.0
    %970 = vmatprep.subr.mxu0 0.0
    %971 = vmatpush1.xpose.msra.mxu0 0.0
    %972 = vmatprep.subr.mxu0 0.0
    %973 = vmatpush1.xpose.msra.mxu0 0.0
    %974 = vmatprep.subr.mxu0 0.0
    %975 = vmatpush1.xpose.msra.mxu0 0.0
    %976 = vmatprep.subr.mxu0 0.0
    %977 = vmatpush1.xpose.msra.mxu0 0.0
    %978 = vmatprep.subr.mxu0 0.0
    %979 = vmatpush1.xpose.msra.mxu0 0.0
    %980 = vmatprep.subr.mxu0 0.0
    %981 = vmatpush1.xpose.msra.mxu0 0.0
    %982 = vmatprep.subr.mxu0 0.0
    %983 = vmatpush1.xpose.msra.mxu0 0.0
    %984 = vmatprep.subr.mxu0 0.0
    %985 = vmatpush1.xpose.msra.mxu0 0.0
    %986 = vmatprep.subr.mxu0 0.0
    %987 = vmatpush1.xpose.msra.mxu0 0.0
    %988 = vmatprep.subr.mxu0 0.0
    %989 = vmatpush1.xpose.msra.mxu0 0.0
    %990 = vmatprep.subr.mxu0 0.0
    %991 = vmatpush1.xpose.msra.mxu0 0.0
    %992 = vmatprep.subr.mxu0 0.0
    %993 = vmatpush1.xpose.msra.mxu0 0.0
    %994 = vmatprep.mubr.f32.mxu0 0.0
    %995 = vmatmul.mubr.f32.gmra.mrb[0].mxu0 %v926
    %v996 = vpop.f32.mrb[0].mxu0
    %v997 = vadd.f32 0.0, %v996
    %v998 = vpop.f32.mrb[0].mxu0
    %999 = vdwg.mxu0
    %1000 = vrot.lane.b32.xlu0 %v672, 96
    %v1001 = vpop.permute.xlu0 %1000
    %v1002 = vsel %vm697, %v672, 0
    %v1004 = vsel %vm697, %v1001, 0
    %1006 = vmatprep.subr.mxu0 0.0
    %1007 = vmatpush1.xpose.msra.mxu0 %v1004
    %1008 = vmatprep.subr.mxu0 0.0
    %1009 = vmatpush1.xpose.msra.mxu0 0.0
    %1010 = vmatprep.subr.mxu0 0.0
    %1011 = vmatpush1.xpose.msra.mxu0 0.0
    %1012 = vmatprep.subr.mxu0 0.0
    %1013 = vmatpush1.xpose.msra.mxu0 0.0
    %1014 = vmatprep.subr.mxu0 0.0
    %1015 = vmatpush1.xpose.msra.mxu0 0.0
    %1016 = vmatprep.subr.mxu0 0.0
    %1017 = vmatpush1.xpose.msra.mxu0 0.0
    %1018 = vmatprep.subr.mxu0 0.0
    %1019 = vmatpush1.xpose.msra.mxu0 0.0
    %1020 = vmatprep.subr.mxu0 0.0
    %1021 = vmatpush1.xpose.msra.mxu0 0.0
    %1022 = vmatprep.subr.mxu0 0.0
    %1023 = vmatpush1.xpose.msra.mxu0 0.0
    %1024 = vmatprep.subr.mxu0 0.0
    %1025 = vmatpush1.xpose.msra.mxu0 0.0
    %1026 = vmatprep.subr.mxu0 0.0
    %1027 = vmatpush1.xpose.msra.mxu0 0.0
    %1028 = vmatprep.subr.mxu0 0.0
    %1029 = vmatpush1.xpose.msra.mxu0 0.0
    %1030 = vmatprep.subr.mxu0 0.0
    %1031 = vmatpush1.xpose.msra.mxu0 0.0
    %1032 = vmatprep.subr.mxu0 0.0
    %1033 = vmatpush1.xpose.msra.mxu0 0.0
    %1034 = vmatprep.subr.mxu0 0.0
    %1035 = vmatpush1.xpose.msra.mxu0 0.0
    %1036 = vmatprep.subr.mxu0 0.0
    %1037 = vmatpush1.xpose.msra.mxu0 0.0
    %1038 = vmatprep.subr.mxu0 0.0
    %1039 = vmatpush1.xpose.msra.mxu0 0.0
    %1040 = vmatprep.subr.mxu0 0.0
    %1041 = vmatpush1.xpose.msra.mxu0 0.0
    %1042 = vmatprep.subr.mxu0 0.0
    %1043 = vmatpush1.xpose.msra.mxu0 0.0
    %1044 = vmatprep.subr.mxu0 0.0
    %1045 = vmatpush1.xpose.msra.mxu0 0.0
    %1046 = vmatprep.subr.mxu0 0.0
    %1047 = vmatpush1.xpose.msra.mxu0 0.0
    %1048 = vmatprep.subr.mxu0 0.0
    %1049 = vmatpush1.xpose.msra.mxu0 0.0
    %1050 = vmatprep.subr.mxu0 0.0
    %1051 = vmatpush1.xpose.msra.mxu0 0.0
    %1052 = vmatprep.subr.mxu0 0.0
    %1053 = vmatpush1.xpose.msra.mxu0 0.0
    %1054 = vmatprep.subr.mxu0 0.0
    %1055 = vmatpush1.xpose.msra.mxu0 0.0
    %1056 = vmatprep.subr.mxu0 0.0
    %1057 = vmatpush1.xpose.msra.mxu0 0.0
    %1058 = vmatprep.subr.mxu0 0.0
    %1059 = vmatpush1.xpose.msra.mxu0 0.0
    %1060 = vmatprep.subr.mxu0 0.0
    %1061 = vmatpush1.xpose.msra.mxu0 0.0
    %1062 = vmatprep.subr.mxu0 0.0
    %1063 = vmatpush1.xpose.msra.mxu0 0.0
    %1064 = vmatprep.subr.mxu0 0.0
    %1065 = vmatpush1.xpose.msra.mxu0 0.0
    %1066 = vmatprep.subr.mxu0 0.0
    %1067 = vmatpush1.xpose.msra.mxu0 0.0
    %1068 = vmatprep.subr.mxu0 0.0
    %1069 = vmatpush1.xpose.msra.mxu0 0.0
    %1070 = vmatprep.mubr.f32.mxu0 0.0
    %1071 = vmatmul.mubr.f32.gmra.mrb[0].mxu0 %v1002
    %v1072 = vpop.f32.mrb[0].mxu0
    %v1073 = vadd.f32 0.0, %v1072
    %v1074 = vpop.f32.mrb[0].mxu0
    %1075 = vdwg.mxu0
    %1076 = vrot.lane.b32.xlu0 %v674, 96
    %v1077 = vpop.permute.xlu0 %1076
    %v1078 = vsel %vm697, %v674, 0
    %v1080 = vsel %vm697, %v1077, 0
    %1082 = vmatprep.subr.mxu0 0.0
    %1083 = vmatpush1.xpose.msra.mxu0 %v1080
    %1084 = vmatprep.subr.mxu0 0.0
    %1085 = vmatpush1.xpose.msra.mxu0 0.0
    %1086 = vmatprep.subr.mxu0 0.0
    %1087 = vmatpush1.xpose.msra.mxu0 0.0
    %1088 = vmatprep.subr.mxu0 0.0
    %1089 = vmatpush1.xpose.msra.mxu0 0.0
    %1090 = vmatprep.subr.mxu0 0.0
    %1091 = vmatpush1.xpose.msra.mxu0 0.0
    %1092 = vmatprep.subr.mxu0 0.0
    %1093 = vmatpush1.xpose.msra.mxu0 0.0
    %1094 = vmatprep.subr.mxu0 0.0
    %1095 = vmatpush1.xpose.msra.mxu0 0.0
    %1096 = vmatprep.subr.mxu0 0.0
    %1097 = vmatpush1.xpose.msra.mxu0 0.0
    %1098 = vmatprep.subr.mxu0 0.0
    %1099 = vmatpush1.xpose.msra.mxu0 0.0
    %1100 = vmatprep.subr.mxu0 0.0
    %1101 = vmatpush1.xpose.msra.mxu0 0.0
    %1102 = vmatprep.subr.mxu0 0.0
    %1103 = vmatpush1.xpose.msra.mxu0 0.0
    %1104 = vmatprep.subr.mxu0 0.0
    %1105 = vmatpush1.xpose.msra.mxu0 0.0
    %1106 = vmatprep.subr.mxu0 0.0
    %1107 = vmatpush1.xpose.msra.mxu0 0.0
    %1108 = vmatprep.subr.mxu0 0.0
    %1109 = vmatpush1.xpose.msra.mxu0 0.0
    %1110 = vmatprep.subr.mxu0 0.0
    %1111 = vmatpush1.xpose.msra.mxu0 0.0
    %1112 = vmatprep.subr.mxu0 0.0
    %1113 = vmatpush1.xpose.msra.mxu0 0.0
    %1114 = vmatprep.subr.mxu0 0.0
    %1115 = vmatpush1.xpose.msra.mxu0 0.0
    %1116 = vmatprep.subr.mxu0 0.0
    %1117 = vmatpush1.xpose.msra.mxu0 0.0
    %1118 = vmatprep.subr.mxu0 0.0
    %1119 = vmatpush1.xpose.msra.mxu0 0.0
    %1120 = vmatprep.subr.mxu0 0.0
    %1121 = vmatpush1.xpose.msra.mxu0 0.0
    %1122 = vmatprep.subr.mxu0 0.0
    %1123 = vmatpush1.xpose.msra.mxu0 0.0
    %1124 = vmatprep.subr.mxu0 0.0
    %1125 = vmatpush1.xpose.msra.mxu0 0.0
    %1126 = vmatprep.subr.mxu0 0.0
    %1127 = vmatpush1.xpose.msra.mxu0 0.0
    %1128 = vmatprep.subr.mxu0 0.0
    %1129 = vmatpush1.xpose.msra.mxu0 0.0
    %1130 = vmatprep.subr.mxu0 0.0
    %1131 = vmatpush1.xpose.msra.mxu0 0.0
    %1132 = vmatprep.subr.mxu0 0.0
    %1133 = vmatpush1.xpose.msra.mxu0 0.0
    %1134 = vmatprep.subr.mxu0 0.0
    %1135 = vmatpush1.xpose.msra.mxu0 0.0
    %1136 = vmatprep.subr.mxu0 0.0
    %1137 = vmatpush1.xpose.msra.mxu0 0.0
    %1138 = vmatprep.subr.mxu0 0.0
    %1139 = vmatpush1.xpose.msra.mxu0 0.0
    %1140 = vmatprep.subr.mxu0 0.0
    %1141 = vmatpush1.xpose.msra.mxu0 0.0
    %1142 = vmatprep.subr.mxu0 0.0
    %1143 = vmatpush1.xpose.msra.mxu0 0.0
    %1144 = vmatprep.subr.mxu0 0.0
    %1145 = vmatpush1.xpose.msra.mxu0 0.0
    %1146 = vmatprep.mubr.f32.mxu0 0.0
    %1147 = vmatmul.mubr.f32.gmra.mrb[0].mxu0 %v1078
    %v1148 = vpop.f32.mrb[0].mxu0
    %v1149 = vadd.f32 0.0, %v1148
    %v1150 = vpop.f32.mrb[0].mxu0
    %1151 = vdwg.mxu0
    %1152 = vrot.lane.b32.xlu0 %v676, 96
    %v1153 = vpop.permute.xlu0 %1152
    %v1154 = vsel %vm697, %v676, 0
    %v1156 = vsel %vm697, %v1153, 0
    %1158 = vmatprep.subr.mxu0 0.0
    %1159 = vmatpush1.xpose.msra.mxu0 %v1156
    %1160 = vmatprep.subr.mxu0 0.0
    %1161 = vmatpush1.xpose.msra.mxu0 0.0
    %1162 = vmatprep.subr.mxu0 0.0
    %1163 = vmatpush1.xpose.msra.mxu0 0.0
    %1164 = vmatprep.subr.mxu0 0.0
    %1165 = vmatpush1.xpose.msra.mxu0 0.0
    %1166 = vmatprep.subr.mxu0 0.0
    %1167 = vmatpush1.xpose.msra.mxu0 0.0
    %1168 = vmatprep.subr.mxu0 0.0
    %1169 = vmatpush1.xpose.msra.mxu0 0.0
    %1170 = vmatprep.subr.mxu0 0.0
    %1171 = vmatpush1.xpose.msra.mxu0 0.0
    %1172 = vmatprep.subr.mxu0 0.0
    %1173 = vmatpush1.xpose.msra.mxu0 0.0
    %1174 = vmatprep.subr.mxu0 0.0
    %1175 = vmatpush1.xpose.msra.mxu0 0.0
    %1176 = vmatprep.subr.mxu0 0.0
    %1177 = vmatpush1.xpose.msra.mxu0 0.0
    %1178 = vmatprep.subr.mxu0 0.0
    %1179 = vmatpush1.xpose.msra.mxu0 0.0
    %1180 = vmatprep.subr.mxu0 0.0
    %1181 = vmatpush1.xpose.msra.mxu0 0.0
    %1182 = vmatprep.subr.mxu0 0.0
    %1183 = vmatpush1.xpose.msra.mxu0 0.0
    %1184 = vmatprep.subr.mxu0 0.0
    %1185 = vmatpush1.xpose.msra.mxu0 0.0
    %1186 = vmatprep.subr.mxu0 0.0
    %1187 = vmatpush1.xpose.msra.mxu0 0.0
    %1188 = vmatprep.subr.mxu0 0.0
    %1189 = vmatpush1.xpose.msra.mxu0 0.0
    %1190 = vmatprep.subr.mxu0 0.0
    %1191 = vmatpush1.xpose.msra.mxu0 0.0
    %1192 = vmatprep.subr.mxu0 0.0
    %1193 = vmatpush1.xpose.msra.mxu0 0.0
    %1194 = vmatprep.subr.mxu0 0.0
    %1195 = vmatpush1.xpose.msra.mxu0 0.0
    %1196 = vmatprep.subr.mxu0 0.0
    %1197 = vmatpush1.xpose.msra.mxu0 0.0
    %1198 = vmatprep.subr.mxu0 0.0
    %1199 = vmatpush1.xpose.msra.mxu0 0.0
    %1200 = vmatprep.subr.mxu0 0.0
    %1201 = vmatpush1.xpose.msra.mxu0 0.0
    %1202 = vmatprep.subr.mxu0 0.0
    %1203 = vmatpush1.xpose.msra.mxu0 0.0
    %1204 = vmatprep.subr.mxu0 0.0
    %1205 = vmatpush1.xpose.msra.mxu0 0.0
    %1206 = vmatprep.subr.mxu0 0.0
    %1207 = vmatpush1.xpose.msra.mxu0 0.0
    %1208 = vmatprep.subr.mxu0 0.0
    %1209 = vmatpush1.xpose.msra.mxu0 0.0
    %1210 = vmatprep.subr.mxu0 0.0
    %1211 = vmatpush1.xpose.msra.mxu0 0.0
    %1212 = vmatprep.subr.mxu0 0.0
    %1213 = vmatpush1.xpose.msra.mxu0 0.0
    %1214 = vmatprep.subr.mxu0 0.0
    %1215 = vmatpush1.xpose.msra.mxu0 0.0
    %1216 = vmatprep.subr.mxu0 0.0
    %1217 = vmatpush1.xpose.msra.mxu0 0.0
    %1218 = vmatprep.subr.mxu0 0.0
    %1219 = vmatpush1.xpose.msra.mxu0 0.0
    %1220 = vmatprep.subr.mxu0 0.0
    %1221 = vmatpush1.xpose.msra.mxu0 0.0
    %1222 = vmatprep.mubr.f32.mxu0 0.0
    %1223 = vmatmul.mubr.f32.gmra.mrb[0].mxu0 %v1154
    %v1224 = vpop.f32.mrb[0].mxu0
    %v1225 = vadd.f32 0.0, %v1224
    %v1226 = vpop.f32.mrb[0].mxu0
    %1227 = vdwg.mxu0
    %1228 = vrot.lane.b32.xlu0 %v678, 96
    %v1229 = vpop.permute.xlu0 %1228
    %v1230 = vsel %vm697, %v678, 0
    %v1232 = vsel %vm697, %v1229, 0
    %1234 = vmatprep.subr.mxu0 0.0
    %1235 = vmatpush1.xpose.msra.mxu0 %v1232
    %1236 = vmatprep.subr.mxu0 0.0
    %1237 = vmatpush1.xpose.msra.mxu0 0.0
    %1238 = vmatprep.subr.mxu0 0.0
    %1239 = vmatpush1.xpose.msra.mxu0 0.0
    %1240 = vmatprep.subr.mxu0 0.0
    %1241 = vmatpush1.xpose.msra.mxu0 0.0
    %1242 = vmatprep.subr.mxu0 0.0
    %1243 = vmatpush1.xpose.msra.mxu0 0.0
    %1244 = vmatprep.subr.mxu0 0.0
    %1245 = vmatpush1.xpose.msra.mxu0 0.0
    %1246 = vmatprep.subr.mxu0 0.0
    %1247 = vmatpush1.xpose.msra.mxu0 0.0
    %1248 = vmatprep.subr.mxu0 0.0
    %1249 = vmatpush1.xpose.msra.mxu0 0.0
    %1250 = vmatprep.subr.mxu0 0.0
    %1251 = vmatpush1.xpose.msra.mxu0 0.0
    %1252 = vmatprep.subr.mxu0 0.0
    %1253 = vmatpush1.xpose.msra.mxu0 0.0
    %1254 = vmatprep.subr.mxu0 0.0
    %1255 = vmatpush1.xpose.msra.mxu0 0.0
    %1256 = vmatprep.subr.mxu0 0.0
    %1257 = vmatpush1.xpose.msra.mxu0 0.0
    %1258 = vmatprep.subr.mxu0 0.0
    %1259 = vmatpush1.xpose.msra.mxu0 0.0
    %1260 = vmatprep.subr.mxu0 0.0
    %1261 = vmatpush1.xpose.msra.mxu0 0.0
    %1262 = vmatprep.subr.mxu0 0.0
    %1263 = vmatpush1.xpose.msra.mxu0 0.0
    %1264 = vmatprep.subr.mxu0 0.0
    %1265 = vmatpush1.xpose.msra.mxu0 0.0
    %1266 = vmatprep.subr.mxu0 0.0
    %1267 = vmatpush1.xpose.msra.mxu0 0.0
    %1268 = vmatprep.subr.mxu0 0.0
    %1269 = vmatpush1.xpose.msra.mxu0 0.0
    %1270 = vmatprep.subr.mxu0 0.0
    %1271 = vmatpush1.xpose.msra.mxu0 0.0
    %1272 = vmatprep.subr.mxu0 0.0
    %1273 = vmatpush1.xpose.msra.mxu0 0.0
    %1274 = vmatprep.subr.mxu0 0.0
    %1275 = vmatpush1.xpose.msra.mxu0 0.0
    %1276 = vmatprep.subr.mxu0 0.0
    %1277 = vmatpush1.xpose.msra.mxu0 0.0
    %1278 = vmatprep.subr.mxu0 0.0
    %1279 = vmatpush1.xpose.msra.mxu0 0.0
    %1280 = vmatprep.subr.mxu0 0.0
    %1281 = vmatpush1.xpose.msra.mxu0 0.0
    %1282 = vmatprep.subr.mxu0 0.0
    %1283 = vmatpush1.xpose.msra.mxu0 0.0
    %1284 = vmatprep.subr.mxu0 0.0
    %1285 = vmatpush1.xpose.msra.mxu0 0.0
    %1286 = vmatprep.subr.mxu0 0.0
    %1287 = vmatpush1.xpose.msra.mxu0 0.0
    %1288 = vmatprep.subr.mxu0 0.0
    %1289 = vmatpush1.xpose.msra.mxu0 0.0
    %1290 = vmatprep.subr.mxu0 0.0
    %1291 = vmatpush1.xpose.msra.mxu0 0.0
    %1292 = vmatprep.subr.mxu0 0.0
    %1293 = vmatpush1.xpose.msra.mxu0 0.0
    %1294 = vmatprep.subr.mxu0 0.0
    %1295 = vmatpush1.xpose.msra.mxu0 0.0
    %1296 = vmatprep.subr.mxu0 0.0
    %1297 = vmatpush1.xpose.msra.mxu0 0.0
    %1298 = vmatprep.mubr.f32.mxu0 0.0
    %1299 = vmatmul.mubr.f32.gmra.mrb[0].mxu0 %v1230
    %v1300 = vpop.f32.mrb[0].mxu0
    %v1301 = vadd.f32 0.0, %v1300
    %v1302 = vpop.f32.mrb[0].mxu0
    %1303 = vdwg.mxu0
    %1304 = vrot.lane.b32.xlu0 %v680, 96
    %v1305 = vpop.permute.xlu0 %1304
    %v1306 = vsel %vm697, %v680, 0
    %v1308 = vsel %vm697, %v1305, 0
    %1310 = vmatprep.subr.mxu0 0.0
    %1311 = vmatpush1.xpose.msra.mxu0 %v1308
    %1312 = vmatprep.subr.mxu0 0.0
    %1313 = vmatpush1.xpose.msra.mxu0 0.0
    %1314 = vmatprep.subr.mxu0 0.0
    %1315 = vmatpush1.xpose.msra.mxu0 0.0
    %1316 = vmatprep.subr.mxu0 0.0
    %1317 = vmatpush1.xpose.msra.mxu0 0.0
    %1318 = vmatprep.subr.mxu0 0.0
    %1319 = vmatpush1.xpose.msra.mxu0 0.0
    %1320 = vmatprep.subr.mxu0 0.0
    %1321 = vmatpush1.xpose.msra.mxu0 0.0
    %1322 = vmatprep.subr.mxu0 0.0
    %1323 = vmatpush1.xpose.msra.mxu0 0.0
    %1324 = vmatprep.subr.mxu0 0.0
    %1325 = vmatpush1.xpose.msra.mxu0 0.0
    %1326 = vmatprep.subr.mxu0 0.0
    %1327 = vmatpush1.xpose.msra.mxu0 0.0
    %1328 = vmatprep.subr.mxu0 0.0
    %1329 = vmatpush1.xpose.msra.mxu0 0.0
    %1330 = vmatprep.subr.mxu0 0.0
    %1331 = vmatpush1.xpose.msra.mxu0 0.0
    %1332 = vmatprep.subr.mxu0 0.0
    %1333 = vmatpush1.xpose.msra.mxu0 0.0
    %1334 = vmatprep.subr.mxu0 0.0
    %1335 = vmatpush1.xpose.msra.mxu0 0.0
    %1336 = vmatprep.subr.mxu0 0.0
    %1337 = vmatpush1.xpose.msra.mxu0 0.0
    %1338 = vmatprep.subr.mxu0 0.0
    %1339 = vmatpush1.xpose.msra.mxu0 0.0
    %1340 = vmatprep.subr.mxu0 0.0
    %1341 = vmatpush1.xpose.msra.mxu0 0.0
    %1342 = vmatprep.subr.mxu0 0.0
    %1343 = vmatpush1.xpose.msra.mxu0 0.0
    %1344 = vmatprep.subr.mxu0 0.0
    %1345 = vmatpush1.xpose.msra.mxu0 0.0
    %1346 = vmatprep.subr.mxu0 0.0
    %1347 = vmatpush1.xpose.msra.mxu0 0.0
    %1348 = vmatprep.subr.mxu0 0.0
    %1349 = vmatpush1.xpose.msra.mxu0 0.0
    %1350 = vmatprep.subr.mxu0 0.0
    %1351 = vmatpush1.xpose.msra.mxu0 0.0
    %1352 = vmatprep.subr.mxu0 0.0
    %1353 = vmatpush1.xpose.msra.mxu0 0.0
    %1354 = vmatprep.subr.mxu0 0.0
    %1355 = vmatpush1.xpose.msra.mxu0 0.0
    %1356 = vmatprep.subr.mxu0 0.0
    %1357 = vmatpush1.xpose.msra.mxu0 0.0
    %1358 = vmatprep.subr.mxu0 0.0
    %1359 = vmatpush1.xpose.msra.mxu0 0.0
    %1360 = vmatprep.subr.mxu0 0.0
    %1361 = vmatpush1.xpose.msra.mxu0 0.0
    %1362 = vmatprep.subr.mxu0 0.0
    %1363 = vmatpush1.xpose.msra.mxu0 0.0
    %1364 = vmatprep.subr.mxu0 0.0
    %1365 = vmatpush1.xpose.msra.mxu0 0.0
    %1366 = vmatprep.subr.mxu0 0.0
    %1367 = vmatpush1.xpose.msra.mxu0 0.0
    %1368 = vmatprep.subr.mxu0 0.0
    %1369 = vmatpush1.xpose.msra.mxu0 0.0
    %1370 = vmatprep.subr.mxu0 0.0
    %1371 = vmatpush1.xpose.msra.mxu0 0.0
    %1372 = vmatprep.subr.mxu0 0.0
    %1373 = vmatpush1.xpose.msra.mxu0 0.0
    %1374 = vmatprep.mubr.f32.mxu0 0.0
    %1375 = vmatmul.mubr.f32.gmra.mrb[0].mxu0 %v1306
    %v1376 = vpop.f32.mrb[0].mxu0
    %v1377 = vadd.f32 0.0, %v1376
    %v1378 = vpop.f32.mrb[0].mxu0
    %1379 = vdwg.mxu0
    %1380 = vrot.lane.b32.xlu0 %v682, 96
    %v1381 = vpop.permute.xlu0 %1380
    %v1382 = vsel %vm697, %v682, 0
    %v1384 = vsel %vm697, %v1381, 0
    %1386 = vmatprep.subr.mxu0 0.0
    %1387 = vmatpush1.xpose.msra.mxu0 %v1384
    %1388 = vmatprep.subr.mxu0 0.0
    %1389 = vmatpush1.xpose.msra.mxu0 0.0
    %1390 = vmatprep.subr.mxu0 0.0
    %1391 = vmatpush1.xpose.msra.mxu0 0.0
    %1392 = vmatprep.subr.mxu0 0.0
    %1393 = vmatpush1.xpose.msra.mxu0 0.0
    %1394 = vmatprep.subr.mxu0 0.0
    %1395 = vmatpush1.xpose.msra.mxu0 0.0
    %1396 = vmatprep.subr.mxu0 0.0
    %1397 = vmatpush1.xpose.msra.mxu0 0.0
    %1398 = vmatprep.subr.mxu0 0.0
    %1399 = vmatpush1.xpose.msra.mxu0 0.0
    %1400 = vmatprep.subr.mxu0 0.0
    %1401 = vmatpush1.xpose.msra.mxu0 0.0
    %1402 = vmatprep.subr.mxu0 0.0
    %1403 = vmatpush1.xpose.msra.mxu0 0.0
    %1404 = vmatprep.subr.mxu0 0.0
    %1405 = vmatpush1.xpose.msra.mxu0 0.0
    %1406 = vmatprep.subr.mxu0 0.0
    %1407 = vmatpush1.xpose.msra.mxu0 0.0
    %1408 = vmatprep.subr.mxu0 0.0
    %1409 = vmatpush1.xpose.msra.mxu0 0.0
    %1410 = vmatprep.subr.mxu0 0.0
    %1411 = vmatpush1.xpose.msra.mxu0 0.0
    %1412 = vmatprep.subr.mxu0 0.0
    %1413 = vmatpush1.xpose.msra.mxu0 0.0
    %1414 = vmatprep.subr.mxu0 0.0
    %1415 = vmatpush1.xpose.msra.mxu0 0.0
    %1416 = vmatprep.subr.mxu0 0.0
    %1417 = vmatpush1.xpose.msra.mxu0 0.0
    %1418 = vmatprep.subr.mxu0 0.0
    %1419 = vmatpush1.xpose.msra.mxu0 0.0
    %1420 = vmatprep.subr.mxu0 0.0
    %1421 = vmatpush1.xpose.msra.mxu0 0.0
    %1422 = vmatprep.subr.mxu0 0.0
    %1423 = vmatpush1.xpose.msra.mxu0 0.0
    %1424 = vmatprep.subr.mxu0 0.0
    %1425 = vmatpush1.xpose.msra.mxu0 0.0
    %1426 = vmatprep.subr.mxu0 0.0
    %1427 = vmatpush1.xpose.msra.mxu0 0.0
    %1428 = vmatprep.subr.mxu0 0.0
    %1429 = vmatpush1.xpose.msra.mxu0 0.0
    %1430 = vmatprep.subr.mxu0 0.0
    %1431 = vmatpush1.xpose.msra.mxu0 0.0
    %1432 = vmatprep.subr.mxu0 0.0
    %1433 = vmatpush1.xpose.msra.mxu0 0.0
    %1434 = vmatprep.subr.mxu0 0.0
    %1435 = vmatpush1.xpose.msra.mxu0 0.0
    %1436 = vmatprep.subr.mxu0 0.0
    %1437 = vmatpush1.xpose.msra.mxu0 0.0
    %1438 = vmatprep.subr.mxu0 0.0
    %1439 = vmatpush1.xpose.msra.mxu0 0.0
    %1440 = vmatprep.subr.mxu0 0.0
    %1441 = vmatpush1.xpose.msra.mxu0 0.0
    %1442 = vmatprep.subr.mxu0 0.0
    %1443 = vmatpush1.xpose.msra.mxu0 0.0
    %1444 = vmatprep.subr.mxu0 0.0
    %1445 = vmatpush1.xpose.msra.mxu0 0.0
    %1446 = vmatprep.subr.mxu0 0.0
    %1447 = vmatpush1.xpose.msra.mxu0 0.0
    %1448 = vmatprep.subr.mxu0 0.0
    %1449 = vmatpush1.xpose.msra.mxu0 0.0
    %1450 = vmatprep.mubr.f32.mxu0 0.0
    %1451 = vmatmul.mubr.f32.gmra.mrb[0].mxu0 %v1382
    %v1452 = vpop.f32.mrb[0].mxu0
    %v1453 = vadd.f32 0.0, %v1452
    %v1454 = vpop.f32.mrb[0].mxu0
    %1455 = vdwg.mxu0
    %1456 = vrot.lane.b32.xlu0 %v684, 96
    %v1457 = vpop.permute.xlu0 %1456
    %v1458 = vsel %vm697, %v684, 0
    %v1460 = vsel %vm697, %v1457, 0
    %1462 = vmatprep.subr.mxu0 0.0
    %1463 = vmatpush1.xpose.msra.mxu0 %v1460
    %1464 = vmatprep.subr.mxu0 0.0
    %1465 = vmatpush1.xpose.msra.mxu0 0.0
    %1466 = vmatprep.subr.mxu0 0.0
    %1467 = vmatpush1.xpose.msra.mxu0 0.0
    %1468 = vmatprep.subr.mxu0 0.0
    %1469 = vmatpush1.xpose.msra.mxu0 0.0
    %1470 = vmatprep.subr.mxu0 0.0
    %1471 = vmatpush1.xpose.msra.mxu0 0.0
    %1472 = vmatprep.subr.mxu0 0.0
    %1473 = vmatpush1.xpose.msra.mxu0 0.0
    %1474 = vmatprep.subr.mxu0 0.0
    %1475 = vmatpush1.xpose.msra.mxu0 0.0
    %1476 = vmatprep.subr.mxu0 0.0
    %1477 = vmatpush1.xpose.msra.mxu0 0.0
    %1478 = vmatprep.subr.mxu0 0.0
    %1479 = vmatpush1.xpose.msra.mxu0 0.0
    %1480 = vmatprep.subr.mxu0 0.0
    %1481 = vmatpush1.xpose.msra.mxu0 0.0
    %1482 = vmatprep.subr.mxu0 0.0
    %1483 = vmatpush1.xpose.msra.mxu0 0.0
    %1484 = vmatprep.subr.mxu0 0.0
    %1485 = vmatpush1.xpose.msra.mxu0 0.0
    %1486 = vmatprep.subr.mxu0 0.0
    %1487 = vmatpush1.xpose.msra.mxu0 0.0
    %1488 = vmatprep.subr.mxu0 0.0
    %1489 = vmatpush1.xpose.msra.mxu0 0.0
    %1490 = vmatprep.subr.mxu0 0.0
    %1491 = vmatpush1.xpose.msra.mxu0 0.0
    %1492 = vmatprep.subr.mxu0 0.0
    %1493 = vmatpush1.xpose.msra.mxu0 0.0
    %1494 = vmatprep.subr.mxu0 0.0
    %1495 = vmatpush1.xpose.msra.mxu0 0.0
    %1496 = vmatprep.subr.mxu0 0.0
    %1497 = vmatpush1.xpose.msra.mxu0 0.0
    %1498 = vmatprep.subr.mxu0 0.0
    %1499 = vmatpush1.xpose.msra.mxu0 0.0
    %1500 = vmatprep.subr.mxu0 0.0
    %1501 = vmatpush1.xpose.msra.mxu0 0.0
    %1502 = vmatprep.subr.mxu0 0.0
    %1503 = vmatpush1.xpose.msra.mxu0 0.0
    %1504 = vmatprep.subr.mxu0 0.0
    %1505 = vmatpush1.xpose.msra.mxu0 0.0
    %1506 = vmatprep.subr.mxu0 0.0
    %1507 = vmatpush1.xpose.msra.mxu0 0.0
    %1508 = vmatprep.subr.mxu0 0.0
    %1509 = vmatpush1.xpose.msra.mxu0 0.0
    %1510 = vmatprep.subr.mxu0 0.0
    %1511 = vmatpush1.xpose.msra.mxu0 0.0
    %1512 = vmatprep.subr.mxu0 0.0
    %1513 = vmatpush1.xpose.msra.mxu0 0.0
    %1514 = vmatprep.subr.mxu0 0.0
    %1515 = vmatpush1.xpose.msra.mxu0 0.0
    %1516 = vmatprep.subr.mxu0 0.0
    %1517 = vmatpush1.xpose.msra.mxu0 0.0
    %1518 = vmatprep.subr.mxu0 0.0
    %1519 = vmatpush1.xpose.msra.mxu0 0.0
    %1520 = vmatprep.subr.mxu0 0.0
    %1521 = vmatpush1.xpose.msra.mxu0 0.0
    %1522 = vmatprep.subr.mxu0 0.0
    %1523 = vmatpush1.xpose.msra.mxu0 0.0
    %1524 = vmatprep.subr.mxu0 0.0
    %1525 = vmatpush1.xpose.msra.mxu0 0.0
    %1526 = vmatprep.mubr.f32.mxu0 0.0
    %1527 = vmatmul.mubr.f32.gmra.mrb[0].mxu0 %v1458
    %v1528 = vpop.f32.mrb[0].mxu0
    %v1529 = vadd.f32 0.0, %v1528
    %v1530 = vpop.f32.mrb[0].mxu0
    %1531 = vdwg.mxu0
    %1532 = vrot.lane.b32.xlu0 %v686, 96
    %v1533 = vpop.permute.xlu0 %1532
    %v1534 = vsel %vm697, %v686, 0
    %v1536 = vsel %vm697, %v1533, 0
    %1538 = vmatprep.subr.mxu0 0.0
    %1539 = vmatpush1.xpose.msra.mxu0 %v1536
    %1540 = vmatprep.subr.mxu0 0.0
    %1541 = vmatpush1.xpose.msra.mxu0 0.0
    %1542 = vmatprep.subr.mxu0 0.0
    %1543 = vmatpush1.xpose.msra.mxu0 0.0
    %1544 = vmatprep.subr.mxu0 0.0
    %1545 = vmatpush1.xpose.msra.mxu0 0.0
    %1546 = vmatprep.subr.mxu0 0.0
    %1547 = vmatpush1.xpose.msra.mxu0 0.0
    %1548 = vmatprep.subr.mxu0 0.0
    %1549 = vmatpush1.xpose.msra.mxu0 0.0
    %1550 = vmatprep.subr.mxu0 0.0
    %1551 = vmatpush1.xpose.msra.mxu0 0.0
    %1552 = vmatprep.subr.mxu0 0.0
    %1553 = vmatpush1.xpose.msra.mxu0 0.0
    %1554 = vmatprep.subr.mxu0 0.0
    %1555 = vmatpush1.xpose.msra.mxu0 0.0
    %1556 = vmatprep.subr.mxu0 0.0
    %1557 = vmatpush1.xpose.msra.mxu0 0.0
    %1558 = vmatprep.subr.mxu0 0.0
    %1559 = vmatpush1.xpose.msra.mxu0 0.0
    %1560 = vmatprep.subr.mxu0 0.0
    %1561 = vmatpush1.xpose.msra.mxu0 0.0
    %1562 = vmatprep.subr.mxu0 0.0
    %1563 = vmatpush1.xpose.msra.mxu0 0.0
    %1564 = vmatprep.subr.mxu0 0.0
    %1565 = vmatpush1.xpose.msra.mxu0 0.0
    %1566 = vmatprep.subr.mxu0 0.0
    %1567 = vmatpush1.xpose.msra.mxu0 0.0
    %1568 = vmatprep.subr.mxu0 0.0
    %1569 = vmatpush1.xpose.msra.mxu0 0.0
    %1570 = vmatprep.subr.mxu0 0.0
    %1571 = vmatpush1.xpose.msra.mxu0 0.0
    %1572 = vmatprep.subr.mxu0 0.0
    %1573 = vmatpush1.xpose.msra.mxu0 0.0
    %1574 = vmatprep.subr.mxu0 0.0
    %1575 = vmatpush1.xpose.msra.mxu0 0.0
    %1576 = vmatprep.subr.mxu0 0.0
    %1577 = vmatpush1.xpose.msra.mxu0 0.0
    %1578 = vmatprep.subr.mxu0 0.0
    %1579 = vmatpush1.xpose.msra.mxu0 0.0
    %1580 = vmatprep.subr.mxu0 0.0
    %1581 = vmatpush1.xpose.msra.mxu0 0.0
    %1582 = vmatprep.subr.mxu0 0.0
    %1583 = vmatpush1.xpose.msra.mxu0 0.0
    %1584 = vmatprep.subr.mxu0 0.0
    %1585 = vmatpush1.xpose.msra.mxu0 0.0
    %1586 = vmatprep.subr.mxu0 0.0
    %1587 = vmatpush1.xpose.msra.mxu0 0.0
    %1588 = vmatprep.subr.mxu0 0.0
    %1589 = vmatpush1.xpose.msra.mxu0 0.0
    %1590 = vmatprep.subr.mxu0 0.0
    %1591 = vmatpush1.xpose.msra.mxu0 0.0
    %1592 = vmatprep.subr.mxu0 0.0
    %1593 = vmatpush1.xpose.msra.mxu0 0.0
    %1594 = vmatprep.subr.mxu0 0.0
    %1595 = vmatpush1.xpose.msra.mxu0 0.0
    %1596 = vmatprep.subr.mxu0 0.0
    %1597 = vmatpush1.xpose.msra.mxu0 0.0
    %1598 = vmatprep.subr.mxu0 0.0
    %1599 = vmatpush1.xpose.msra.mxu0 0.0
    %1600 = vmatprep.subr.mxu0 0.0
    %1601 = vmatpush1.xpose.msra.mxu0 0.0
    %1602 = vmatprep.mubr.f32.mxu0 0.0
    %1603 = vmatmul.mubr.f32.gmra.mrb[0].mxu0 %v1534
    %v1604 = vpop.f32.mrb[0].mxu0
    %v1605 = vadd.f32 0.0, %v1604
    %v1606 = vpop.f32.mrb[0].mxu0
    %1607 = vdwg.mxu0
    %1608 = vrot.lane.b32.xlu0 %v688, 96
    %v1609 = vpop.permute.xlu0 %1608
    %v1610 = vsel %vm697, %v688, 0
    %v1612 = vsel %vm697, %v1609, 0
    %1614 = vmatprep.subr.mxu0 0.0
    %1615 = vmatpush1.xpose.msra.mxu0 %v1612
    %1616 = vmatprep.subr.mxu0 0.0
    %1617 = vmatpush1.xpose.msra.mxu0 0.0
    %1618 = vmatprep.subr.mxu0 0.0
    %1619 = vmatpush1.xpose.msra.mxu0 0.0
    %1620 = vmatprep.subr.mxu0 0.0
    %1621 = vmatpush1.xpose.msra.mxu0 0.0
    %1622 = vmatprep.subr.mxu0 0.0
    %1623 = vmatpush1.xpose.msra.mxu0 0.0
    %1624 = vmatprep.subr.mxu0 0.0
    %1625 = vmatpush1.xpose.msra.mxu0 0.0
    %1626 = vmatprep.subr.mxu0 0.0
    %1627 = vmatpush1.xpose.msra.mxu0 0.0
    %1628 = vmatprep.subr.mxu0 0.0
    %1629 = vmatpush1.xpose.msra.mxu0 0.0
    %1630 = vmatprep.subr.mxu0 0.0
    %1631 = vmatpush1.xpose.msra.mxu0 0.0
    %1632 = vmatprep.subr.mxu0 0.0
    %1633 = vmatpush1.xpose.msra.mxu0 0.0
    %1634 = vmatprep.subr.mxu0 0.0
    %1635 = vmatpush1.xpose.msra.mxu0 0.0
    %1636 = vmatprep.subr.mxu0 0.0
    %1637 = vmatpush1.xpose.msra.mxu0 0.0
    %1638 = vmatprep.subr.mxu0 0.0
    %1639 = vmatpush1.xpose.msra.mxu0 0.0
    %1640 = vmatprep.subr.mxu0 0.0
    %1641 = vmatpush1.xpose.msra.mxu0 0.0
    %1642 = vmatprep.subr.mxu0 0.0
    %1643 = vmatpush1.xpose.msra.mxu0 0.0
    %1644 = vmatprep.subr.mxu0 0.0
    %1645 = vmatpush1.xpose.msra.mxu0 0.0
    %1646 = vmatprep.subr.mxu0 0.0
    %1647 = vmatpush1.xpose.msra.mxu0 0.0
    %1648 = vmatprep.subr.mxu0 0.0
    %1649 = vmatpush1.xpose.msra.mxu0 0.0
    %1650 = vmatprep.subr.mxu0 0.0
    %1651 = vmatpush1.xpose.msra.mxu0 0.0
    %1652 = vmatprep.subr.mxu0 0.0
    %1653 = vmatpush1.xpose.msra.mxu0 0.0
    %1654 = vmatprep.subr.mxu0 0.0
    %1655 = vmatpush1.xpose.msra.mxu0 0.0
    %1656 = vmatprep.subr.mxu0 0.0
    %1657 = vmatpush1.xpose.msra.mxu0 0.0
    %1658 = vmatprep.subr.mxu0 0.0
    %1659 = vmatpush1.xpose.msra.mxu0 0.0
    %1660 = vmatprep.subr.mxu0 0.0
    %1661 = vmatpush1.xpose.msra.mxu0 0.0
    %1662 = vmatprep.subr.mxu0 0.0
    %1663 = vmatpush1.xpose.msra.mxu0 0.0
    %1664 = vmatprep.subr.mxu0 0.0
    %1665 = vmatpush1.xpose.msra.mxu0 0.0
    %1666 = vmatprep.subr.mxu0 0.0
    %1667 = vmatpush1.xpose.msra.mxu0 0.0
    %1668 = vmatprep.subr.mxu0 0.0
    %1669 = vmatpush1.xpose.msra.mxu0 0.0
    %1670 = vmatprep.subr.mxu0 0.0
    %1671 = vmatpush1.xpose.msra.mxu0 0.0
    %1672 = vmatprep.subr.mxu0 0.0
    %1673 = vmatpush1.xpose.msra.mxu0 0.0
    %1674 = vmatprep.subr.mxu0 0.0
    %1675 = vmatpush1.xpose.msra.mxu0 0.0
    %1676 = vmatprep.subr.mxu0 0.0
    %1677 = vmatpush1.xpose.msra.mxu0 0.0
    %1678 = vmatprep.mubr.f32.mxu0 0.0
    %1679 = vmatmul.mubr.f32.gmra.mrb[0].mxu0 %v1610
    %v1680 = vpop.f32.mrb[0].mxu0
    %v1681 = vadd.f32 0.0, %v1680
    %v1682 = vpop.f32.mrb[0].mxu0
    %1683 = vdwg.mxu0
    %1684 = vrot.lane.b32.xlu0 %v690, 96
    %v1685 = vpop.permute.xlu0 %1684
    %v1686 = vsel %vm697, %v690, 0
    %v1688 = vsel %vm697, %v1685, 0
    %1690 = vmatprep.subr.mxu0 0.0
    %1691 = vmatpush1.xpose.msra.mxu0 %v1688
    %1692 = vmatprep.subr.mxu0 0.0
    %1693 = vmatpush1.xpose.msra.mxu0 0.0
    %1694 = vmatprep.subr.mxu0 0.0
    %1695 = vmatpush1.xpose.msra.mxu0 0.0
    %1696 = vmatprep.subr.mxu0 0.0
    %1697 = vmatpush1.xpose.msra.mxu0 0.0
    %1698 = vmatprep.subr.mxu0 0.0
    %1699 = vmatpush1.xpose.msra.mxu0 0.0
    %1700 = vmatprep.subr.mxu0 0.0
    %1701 = vmatpush1.xpose.msra.mxu0 0.0
    %1702 = vmatprep.subr.mxu0 0.0
    %1703 = vmatpush1.xpose.msra.mxu0 0.0
    %1704 = vmatprep.subr.mxu0 0.0
    %1705 = vmatpush1.xpose.msra.mxu0 0.0
    %1706 = vmatprep.subr.mxu0 0.0
    %1707 = vmatpush1.xpose.msra.mxu0 0.0
    %1708 = vmatprep.subr.mxu0 0.0
    %1709 = vmatpush1.xpose.msra.mxu0 0.0
    %1710 = vmatprep.subr.mxu0 0.0
    %1711 = vmatpush1.xpose.msra.mxu0 0.0
    %1712 = vmatprep.subr.mxu0 0.0
    %1713 = vmatpush1.xpose.msra.mxu0 0.0
    %1714 = vmatprep.subr.mxu0 0.0
    %1715 = vmatpush1.xpose.msra.mxu0 0.0
    %1716 = vmatprep.subr.mxu0 0.0
    %1717 = vmatpush1.xpose.msra.mxu0 0.0
    %1718 = vmatprep.subr.mxu0 0.0
    %1719 = vmatpush1.xpose.msra.mxu0 0.0
    %1720 = vmatprep.subr.mxu0 0.0
    %1721 = vmatpush1.xpose.msra.mxu0 0.0
    %1722 = vmatprep.subr.mxu0 0.0
    %1723 = vmatpush1.xpose.msra.mxu0 0.0
    %1724 = vmatprep.subr.mxu0 0.0
    %1725 = vmatpush1.xpose.msra.mxu0 0.0
    %1726 = vmatprep.subr.mxu0 0.0
    %1727 = vmatpush1.xpose.msra.mxu0 0.0
    %1728 = vmatprep.subr.mxu0 0.0
    %1729 = vmatpush1.xpose.msra.mxu0 0.0
    %1730 = vmatprep.subr.mxu0 0.0
    %1731 = vmatpush1.xpose.msra.mxu0 0.0
    %1732 = vmatprep.subr.mxu0 0.0
    %1733 = vmatpush1.xpose.msra.mxu0 0.0
    %1734 = vmatprep.subr.mxu0 0.0
    %1735 = vmatpush1.xpose.msra.mxu0 0.0
    %1736 = vmatprep.subr.mxu0 0.0
    %1737 = vmatpush1.xpose.msra.mxu0 0.0
    %1738 = vmatprep.subr.mxu0 0.0
    %1739 = vmatpush1.xpose.msra.mxu0 0.0
    %1740 = vmatprep.subr.mxu0 0.0
    %1741 = vmatpush1.xpose.msra.mxu0 0.0
    %1742 = vmatprep.subr.mxu0 0.0
    %1743 = vmatpush1.xpose.msra.mxu0 0.0
    %1744 = vmatprep.subr.mxu0 0.0
    %1745 = vmatpush1.xpose.msra.mxu0 0.0
    %1746 = vmatprep.subr.mxu0 0.0
    %1747 = vmatpush1.xpose.msra.mxu0 0.0
    %1748 = vmatprep.subr.mxu0 0.0
    %1749 = vmatpush1.xpose.msra.mxu0 0.0
    %1750 = vmatprep.subr.mxu0 0.0
    %1751 = vmatpush1.xpose.msra.mxu0 0.0
    %1752 = vmatprep.subr.mxu0 0.0
    %1753 = vmatpush1.xpose.msra.mxu0 0.0
    %1754 = vmatprep.mubr.f32.mxu0 0.0
    %1755 = vmatmul.mubr.f32.gmra.mrb[0].mxu0 %v1686
    %v1756 = vpop.f32.mrb[0].mxu0
    %v1757 = vadd.f32 0.0, %v1756
    %v1758 = vpop.f32.mrb[0].mxu0
    %1759 = vdwg.mxu0
    %1760 = vrot.lane.b32.xlu0 %v692, 96
    %v1761 = vpop.permute.xlu0 %1760
    %v1762 = vsel %vm697, %v692, 0
    %v1764 = vsel %vm697, %v1761, 0
    %1766 = vmatprep.subr.mxu0 0.0
    %1767 = vmatpush1.xpose.msra.mxu0 %v1764
    %1768 = vmatprep.subr.mxu0 0.0
    %1769 = vmatpush1.xpose.msra.mxu0 0.0
    %1770 = vmatprep.subr.mxu0 0.0
    %1771 = vmatpush1.xpose.msra.mxu0 0.0
    %1772 = vmatprep.subr.mxu0 0.0
    %1773 = vmatpush1.xpose.msra.mxu0 0.0
    %1774 = vmatprep.subr.mxu0 0.0
    %1775 = vmatpush1.xpose.msra.mxu0 0.0
    %1776 = vmatprep.subr.mxu0 0.0
    %1777 = vmatpush1.xpose.msra.mxu0 0.0
    %1778 = vmatprep.subr.mxu0 0.0
    %1779 = vmatpush1.xpose.msra.mxu0 0.0
    %1780 = vmatprep.subr.mxu0 0.0
    %1781 = vmatpush1.xpose.msra.mxu0 0.0
    %1782 = vmatprep.subr.mxu0 0.0
    %1783 = vmatpush1.xpose.msra.mxu0 0.0
    %1784 = vmatprep.subr.mxu0 0.0
    %1785 = vmatpush1.xpose.msra.mxu0 0.0
    %1786 = vmatprep.subr.mxu0 0.0
    %1787 = vmatpush1.xpose.msra.mxu0 0.0
    %1788 = vmatprep.subr.mxu0 0.0
    %1789 = vmatpush1.xpose.msra.mxu0 0.0
    %1790 = vmatprep.subr.mxu0 0.0
    %1791 = vmatpush1.xpose.msra.mxu0 0.0
    %1792 = vmatprep.subr.mxu0 0.0
    %1793 = vmatpush1.xpose.msra.mxu0 0.0
    %1794 = vmatprep.subr.mxu0 0.0
    %1795 = vmatpush1.xpose.msra.mxu0 0.0
    %1796 = vmatprep.subr.mxu0 0.0
    %1797 = vmatpush1.xpose.msra.mxu0 0.0
    %1798 = vmatprep.subr.mxu0 0.0
    %1799 = vmatpush1.xpose.msra.mxu0 0.0
    %1800 = vmatprep.subr.mxu0 0.0
    %1801 = vmatpush1.xpose.msra.mxu0 0.0
    %1802 = vmatprep.subr.mxu0 0.0
    %1803 = vmatpush1.xpose.msra.mxu0 0.0
    %1804 = vmatprep.subr.mxu0 0.0
    %1805 = vmatpush1.xpose.msra.mxu0 0.0
    %1806 = vmatprep.subr.mxu0 0.0
    %1807 = vmatpush1.xpose.msra.mxu0 0.0
    %1808 = vmatprep.subr.mxu0 0.0
    %1809 = vmatpush1.xpose.msra.mxu0 0.0
    %1810 = vmatprep.subr.mxu0 0.0
    %1811 = vmatpush1.xpose.msra.mxu0 0.0
    %1812 = vmatprep.subr.mxu0 0.0
    %1813 = vmatpush1.xpose.msra.mxu0 0.0
    %1814 = vmatprep.subr.mxu0 0.0
    %1815 = vmatpush1.xpose.msra.mxu0 0.0
    %1816 = vmatprep.subr.mxu0 0.0
    %1817 = vmatpush1.xpose.msra.mxu0 0.0
    %1818 = vmatprep.subr.mxu0 0.0
    %1819 = vmatpush1.xpose.msra.mxu0 0.0
    %1820 = vmatprep.subr.mxu0 0.0
    %1821 = vmatpush1.xpose.msra.mxu0 0.0
    %1822 = vmatprep.subr.mxu0 0.0
    %1823 = vmatpush1.xpose.msra.mxu0 0.0
    %1824 = vmatprep.subr.mxu0 0.0
    %1825 = vmatpush1.xpose.msra.mxu0 0.0
    %1826 = vmatprep.subr.mxu0 0.0
    %1827 = vmatpush1.xpose.msra.mxu0 0.0
    %1828 = vmatprep.subr.mxu0 0.0
    %1829 = vmatpush1.xpose.msra.mxu0 0.0
    %1830 = vmatprep.mubr.f32.mxu0 0.0
    %1831 = vmatmul.mubr.f32.gmra.mrb[0].mxu0 %v1762
    %v1832 = vpop.f32.mrb[0].mxu0
    %v1833 = vadd.f32 0.0, %v1832
    %v1834 = vpop.f32.mrb[0].mxu0
    %1835 = vdwg.mxu0
    %1836 = vrot.lane.b32.xlu0 %v694, 96
    %v1837 = vpop.permute.xlu0 %1836
    %v1838 = vsel %vm697, %v694, 0
    %v1840 = vsel %vm697, %v1837, 0
    %1842 = vmatprep.subr.mxu0 0.0
    %1843 = vmatpush1.xpose.msra.mxu0 %v1840
    %1844 = vmatprep.subr.mxu0 0.0
    %1845 = vmatpush1.xpose.msra.mxu0 0.0
    %1846 = vmatprep.subr.mxu0 0.0
    %1847 = vmatpush1.xpose.msra.mxu0 0.0
    %1848 = vmatprep.subr.mxu0 0.0
    %1849 = vmatpush1.xpose.msra.mxu0 0.0
    %1850 = vmatprep.subr.mxu0 0.0
    %1851 = vmatpush1.xpose.msra.mxu0 0.0
    %1852 = vmatprep.subr.mxu0 0.0
    %1853 = vmatpush1.xpose.msra.mxu0 0.0
    %1854 = vmatprep.subr.mxu0 0.0
    %1855 = vmatpush1.xpose.msra.mxu0 0.0
    %1856 = vmatprep.subr.mxu0 0.0
    %1857 = vmatpush1.xpose.msra.mxu0 0.0
    %1858 = vmatprep.subr.mxu0 0.0
    %1859 = vmatpush1.xpose.msra.mxu0 0.0
    %1860 = vmatprep.subr.mxu0 0.0
    %1861 = vmatpush1.xpose.msra.mxu0 0.0
    %1862 = vmatprep.subr.mxu0 0.0
    %1863 = vmatpush1.xpose.msra.mxu0 0.0
    %1864 = vmatprep.subr.mxu0 0.0
    %1865 = vmatpush1.xpose.msra.mxu0 0.0
    %1866 = vmatprep.subr.mxu0 0.0
    %1867 = vmatpush1.xpose.msra.mxu0 0.0
    %1868 = vmatprep.subr.mxu0 0.0
    %1869 = vmatpush1.xpose.msra.mxu0 0.0
    %1870 = vmatprep.subr.mxu0 0.0
    %1871 = vmatpush1.xpose.msra.mxu0 0.0
    %1872 = vmatprep.subr.mxu0 0.0
    %1873 = vmatpush1.xpose.msra.mxu0 0.0
    %1874 = vmatprep.subr.mxu0 0.0
    %1875 = vmatpush1.xpose.msra.mxu0 0.0
    %1876 = vmatprep.subr.mxu0 0.0
    %1877 = vmatpush1.xpose.msra.mxu0 0.0
    %1878 = vmatprep.subr.mxu0 0.0
    %1879 = vmatpush1.xpose.msra.mxu0 0.0
    %1880 = vmatprep.subr.mxu0 0.0
    %1881 = vmatpush1.xpose.msra.mxu0 0.0
    %1882 = vmatprep.subr.mxu0 0.0
    %1883 = vmatpush1.xpose.msra.mxu0 0.0
    %1884 = vmatprep.subr.mxu0 0.0
    %1885 = vmatpush1.xpose.msra.mxu0 0.0
    %1886 = vmatprep.subr.mxu0 0.0
    %1887 = vmatpush1.xpose.msra.mxu0 0.0
    %1888 = vmatprep.subr.mxu0 0.0
    %1889 = vmatpush1.xpose.msra.mxu0 0.0
    %1890 = vmatprep.subr.mxu0 0.0
    %1891 = vmatpush1.xpose.msra.mxu0 0.0
    %1892 = vmatprep.subr.mxu0 0.0
    %1893 = vmatpush1.xpose.msra.mxu0 0.0
    %1894 = vmatprep.subr.mxu0 0.0
    %1895 = vmatpush1.xpose.msra.mxu0 0.0
    %1896 = vmatprep.subr.mxu0 0.0
    %1897 = vmatpush1.xpose.msra.mxu0 0.0
    %1898 = vmatprep.subr.mxu0 0.0
    %1899 = vmatpush1.xpose.msra.mxu0 0.0
    %1900 = vmatprep.subr.mxu0 0.0
    %1901 = vmatpush1.xpose.msra.mxu0 0.0
    %1902 = vmatprep.subr.mxu0 0.0
    %1903 = vmatpush1.xpose.msra.mxu0 0.0
    %1904 = vmatprep.subr.mxu0 0.0
    %1905 = vmatpush1.xpose.msra.mxu0 0.0
    %1906 = vmatprep.mubr.f32.mxu0 0.0
    %1907 = vmatmul.mubr.f32.gmra.mrb[0].mxu0 %v1838
    %v1908 = vpop.f32.mrb[0].mxu0
    %v1909 = vadd.f32 0.0, %v1908
    %v1910 = vpop.f32.mrb[0].mxu0
    %1911 = vdwg.mxu0
    %v1912 = vmul.f32 %v769, 0.35355338
    %v1913 = vmul.f32 %v845, 0.35355338
    %v1914 = vmul.f32 %v921, 0.35355338
    %v1915 = vmul.f32 %v997, 0.35355338
    %v1916 = vmul.f32 %v1073, 0.35355338
    %v1917 = vmul.f32 %v1149, 0.35355338
    %v1918 = vmul.f32 %v1225, 0.35355338
    %v1919 = vmul.f32 %v1301, 0.35355338
    %v1920 = vmul.f32 %v1377, 0.35355338
    %v1921 = vmul.f32 %v1453, 0.35355338
    %v1922 = vmul.f32 %v1529, 0.35355338
    %v1923 = vmul.f32 %v1605, 0.35355338
    %v1924 = vmul.f32 %v1681, 0.35355338
    %v1925 = vmul.f32 %v1757, 0.35355338
    %v1926 = vmul.f32 %v1833, 0.35355338
    %v1927 = vmul.f32 %v1909, 0.35355338
    %v1928 = vsel %vm697, %v1912, -inf
    %1929 = vmax.xlane.f32.xlu0 %v1928
    %v1930 = vpop.xlane.xlu0 %1929
    %v1931 = vsel %vm697, %v1913, -inf
    %1932 = vmax.xlane.f32.xlu0 %v1931
    %v1933 = vpop.xlane.xlu0 %1932
    %v1934 = vsel %vm697, %v1914, -inf
    %1935 = vmax.xlane.f32.xlu0 %v1934
    %v1936 = vpop.xlane.xlu0 %1935
    %v1937 = vsel %vm697, %v1915, -inf
    %1938 = vmax.xlane.f32.xlu0 %v1937
    %v1939 = vpop.xlane.xlu0 %1938
    %v1940 = vsel %vm697, %v1916, -inf
    %1941 = vmax.xlane.f32.xlu0 %v1940
    %v1942 = vpop.xlane.xlu0 %1941
    %v1943 = vsel %vm697, %v1917, -inf
    %1944 = vmax.xlane.f32.xlu0 %v1943
    %v1945 = vpop.xlane.xlu0 %1944
    %v1946 = vsel %vm697, %v1918, -inf
    %1947 = vmax.xlane.f32.xlu0 %v1946
    %v1948 = vpop.xlane.xlu0 %1947
    %v1949 = vsel %vm697, %v1919, -inf
    %1950 = vmax.xlane.f32.xlu0 %v1949
    %v1951 = vpop.xlane.xlu0 %1950
    %v1952 = vsel %vm697, %v1920, -inf
    %1953 = vmax.xlane.f32.xlu0 %v1952
    %v1954 = vpop.xlane.xlu0 %1953
    %v1955 = vsel %vm697, %v1921, -inf
    %1956 = vmax.xlane.f32.xlu0 %v1955
    %v1957 = vpop.xlane.xlu0 %1956
    %v1958 = vsel %vm697, %v1922, -inf
    %1959 = vmax.xlane.f32.xlu0 %v1958
    %v1960 = vpop.xlane.xlu0 %1959
    %v1961 = vsel %vm697, %v1923, -inf
    %1962 = vmax.xlane.f32.xlu0 %v1961
    %v1963 = vpop.xlane.xlu0 %1962
    %v1964 = vsel %vm697, %v1924, -inf
    %1965 = vmax.xlane.f32.xlu0 %v1964
    %v1966 = vpop.xlane.xlu0 %1965
    %v1967 = vsel %vm697, %v1925, -inf
    %1968 = vmax.xlane.f32.xlu0 %v1967
    %v1969 = vpop.xlane.xlu0 %1968
    %v1970 = vsel %vm697, %v1926, -inf
    %1971 = vmax.xlane.f32.xlu0 %v1970
    %v1972 = vpop.xlane.xlu0 %1971
    %v1973 = vsel %vm697, %v1927, -inf
    %1974 = vmax.xlane.f32.xlu0 %v1973
    %v1975 = vpop.xlane.xlu0 %1974
    %v1976 = vsub.f32 %v1912, %v1930
    %v1977 = vsub.f32 %v1913, %v1933
    %v1978 = vsub.f32 %v1914, %v1936
    %v1979 = vsub.f32 %v1915, %v1939
    %v1980 = vsub.f32 %v1916, %v1942
    %v1981 = vsub.f32 %v1917, %v1945
    %v1982 = vsub.f32 %v1918, %v1948
    %v1983 = vsub.f32 %v1919, %v1951
    %v1984 = vsub.f32 %v1920, %v1954
    %v1985 = vsub.f32 %v1921, %v1957
    %v1986 = vsub.f32 %v1922, %v1960
    %v1987 = vsub.f32 %v1923, %v1963
    %v1988 = vsub.f32 %v1924, %v1966
    %v1989 = vsub.f32 %v1925, %v1969
    %v1990 = vsub.f32 %v1926, %v1972
    %v1991 = vsub.f32 %v1927, %v1975
    %v1992 = vmul.f32 %v1976, 1.442695
    %v1993 = vpow.pop %v1992
    %v1994 = vmul.f32 %v1977, 1.442695
    %v1995 = vpow.pop %v1994
    %v1996 = vmul.f32 %v1978, 1.442695
    %v1997 = vpow.pop %v1996
    %v1998 = vmul.f32 %v1979, 1.442695
    %v1999 = vpow.pop %v1998
    %v2000 = vmul.f32 %v1980, 1.442695
    %v2001 = vpow.pop %v2000
    %v2002 = vmul.f32 %v1981, 1.442695
    %v2003 = vpow.pop %v2002
    %v2004 = vmul.f32 %v1982, 1.442695
    %v2005 = vpow.pop %v2004
    %v2006 = vmul.f32 %v1983, 1.442695
    %v2007 = vpow.pop %v2006
    %v2008 = vmul.f32 %v1984, 1.442695
    %v2009 = vpow.pop %v2008
    %v2010 = vmul.f32 %v1985, 1.442695
    %v2011 = vpow.pop %v2010
    %v2012 = vmul.f32 %v1986, 1.442695
    %v2013 = vpow.pop %v2012
    %v2014 = vmul.f32 %v1987, 1.442695
    %v2015 = vpow.pop %v2014
    %v2016 = vmul.f32 %v1988, 1.442695
    %v2017 = vpow.pop %v2016
    %v2018 = vmul.f32 %v1989, 1.442695
    %v2019 = vpow.pop %v2018
    %v2020 = vmul.f32 %v1990, 1.442695
    %v2021 = vpow.pop %v2020
    %v2022 = vmul.f32 %v1991, 1.442695
    %v2023 = vpow.pop %v2022
    %v2024 = vsel %vm697, %v1993, 0.0
    %2025 = vadd.xlane.f32.xlu0 %v2024
    %v2026 = vpop.xlane.xlu0 %2025
    %v2027 = vsel %vm697, %v1995, 0.0
    %2028 = vadd.xlane.f32.xlu0 %v2027
    %v2029 = vpop.xlane.xlu0 %2028
    %v2030 = vsel %vm697, %v1997, 0.0
    %2031 = vadd.xlane.f32.xlu0 %v2030
    %v2032 = vpop.xlane.xlu0 %2031
    %v2033 = vsel %vm697, %v1999, 0.0
    %2034 = vadd.xlane.f32.xlu0 %v2033
    %v2035 = vpop.xlane.xlu0 %2034
    %v2036 = vsel %vm697, %v2001, 0.0
    %2037 = vadd.xlane.f32.xlu0 %v2036
    %v2038 = vpop.xlane.xlu0 %2037
    %v2039 = vsel %vm697, %v2003, 0.0
    %2040 = vadd.xlane.f32.xlu0 %v2039
    %v2041 = vpop.xlane.xlu0 %2040
    %v2042 = vsel %vm697, %v2005, 0.0
    %2043 = vadd.xlane.f32.xlu0 %v2042
    %v2044 = vpop.xlane.xlu0 %2043
    %v2045 = vsel %vm697, %v2007, 0.0
    %2046 = vadd.xlane.f32.xlu0 %v2045
    %v2047 = vpop.xlane.xlu0 %2046
    %v2048 = vsel %vm697, %v2009, 0.0
    %2049 = vadd.xlane.f32.xlu0 %v2048
    %v2050 = vpop.xlane.xlu0 %2049
    %v2051 = vsel %vm697, %v2011, 0.0
    %2052 = vadd.xlane.f32.xlu0 %v2051
    %v2053 = vpop.xlane.xlu0 %2052
    %v2054 = vsel %vm697, %v2013, 0.0
    %2055 = vadd.xlane.f32.xlu0 %v2054
    %v2056 = vpop.xlane.xlu0 %2055
    %v2057 = vsel %vm697, %v2015, 0.0
    %2058 = vadd.xlane.f32.xlu0 %v2057
    %v2059 = vpop.xlane.xlu0 %2058
    %v2060 = vsel %vm697, %v2017, 0.0
    %2061 = vadd.xlane.f32.xlu0 %v2060
    %v2062 = vpop.xlane.xlu0 %2061
    %v2063 = vsel %vm697, %v2019, 0.0
    %2064 = vadd.xlane.f32.xlu0 %v2063
    %v2065 = vpop.xlane.xlu0 %2064
    %v2066 = vsel %vm697, %v2021, 0.0
    %2067 = vadd.xlane.f32.xlu0 %v2066
    %v2068 = vpop.xlane.xlu0 %2067
    %v2069 = vsel %vm697, %v2023, 0.0
    %2070 = vadd.xlane.f32.xlu0 %v2069
    %v2071 = vpop.xlane.xlu0 %2070
    %v2072 = vrcp.pop %v2026
    %v2073 = vrcp.pop %v2029
    %v2074 = vrcp.pop %v2032
    %v2075 = vrcp.pop %v2035
    %v2076 = vrcp.pop %v2038
    %v2077 = vrcp.pop %v2041
    %v2078 = vrcp.pop %v2044
    %v2079 = vrcp.pop %v2047
    %v2080 = vrcp.pop %v2050
    %v2081 = vrcp.pop %v2053
    %v2082 = vrcp.pop %v2056
    %v2083 = vrcp.pop %v2059
    %v2084 = vrcp.pop %v2062
    %v2085 = vrcp.pop %v2065
    %v2086 = vrcp.pop %v2068
    %v2087 = vrcp.pop %v2071
    %v2088 = vmul.f32 %v1993, %v2072
    %v2089 = vmul.f32 %v1995, %v2073
    %v2090 = vmul.f32 %v1997, %v2074
    %v2091 = vmul.f32 %v1999, %v2075
    %v2092 = vmul.f32 %v2001, %v2076
    %v2093 = vmul.f32 %v2003, %v2077
    %v2094 = vmul.f32 %v2005, %v2078
    %v2095 = vmul.f32 %v2007, %v2079
    %v2096 = vmul.f32 %v2009, %v2080
    %v2097 = vmul.f32 %v2011, %v2081
    %v2098 = vmul.f32 %v2013, %v2082
    %v2099 = vmul.f32 %v2015, %v2083
    %v2100 = vmul.f32 %v2017, %v2084
    %v2101 = vmul.f32 %v2019, %v2085
    %v2102 = vmul.f32 %v2021, %v2086
    %v2103 = vmul.f32 %v2023, %v2087
    %2104 = vrot.lane.b32.xlu0 %v649, 64
    %v2105 = vpop.permute.xlu0 %2104
    %v2108 = vsel %vm697, %v2088, 0
    %2110 = vmatprep.subr.mxu0 0.0
    %2111 = vmatpush1.msra.mxu0 %v2105
    %2112 = vmatprep.subr.mxu0 0.0
    %2113 = vmatpush1.msra.mxu0 0.0
    %2114 = vmatprep.subr.mxu0 0.0
    %2115 = vmatpush1.msra.mxu0 0.0
    %2116 = vmatprep.subr.mxu0 0.0
    %2117 = vmatpush1.msra.mxu0 0.0
    %2118 = vmatprep.subr.mxu0 0.0
    %2119 = vmatpush1.msra.mxu0 0.0
    %2120 = vmatprep.subr.mxu0 0.0
    %2121 = vmatpush1.msra.mxu0 0.0
    %2122 = vmatprep.subr.mxu0 0.0
    %2123 = vmatpush1.msra.mxu0 0.0
    %2124 = vmatprep.subr.mxu0 0.0
    %2125 = vmatpush1.msra.mxu0 0.0
    %2126 = vmatprep.subr.mxu0 0.0
    %2127 = vmatpush1.msra.mxu0 0.0
    %2128 = vmatprep.subr.mxu0 0.0
    %2129 = vmatpush1.msra.mxu0 0.0
    %2130 = vmatprep.subr.mxu0 0.0
    %2131 = vmatpush1.msra.mxu0 0.0
    %2132 = vmatprep.subr.mxu0 0.0
    %2133 = vmatpush1.msra.mxu0 0.0
    %2134 = vmatprep.subr.mxu0 0.0
    %2135 = vmatpush1.msra.mxu0 0.0
    %2136 = vmatprep.subr.mxu0 0.0
    %2137 = vmatpush1.msra.mxu0 0.0
    %2138 = vmatprep.subr.mxu0 0.0
    %2139 = vmatpush1.msra.mxu0 0.0
    %2140 = vmatprep.subr.mxu0 0.0
    %2141 = vmatpush1.msra.mxu0 0.0
    %2142 = vmatprep.subr.mxu0 0.0
    %2143 = vmatpush1.msra.mxu0 0.0
    %2144 = vmatprep.subr.mxu0 0.0
    %2145 = vmatpush1.msra.mxu0 0.0
    %2146 = vmatprep.subr.mxu0 0.0
    %2147 = vmatpush1.msra.mxu0 0.0
    %2148 = vmatprep.subr.mxu0 0.0
    %2149 = vmatpush1.msra.mxu0 0.0
    %2150 = vmatprep.subr.mxu0 0.0
    %2151 = vmatpush1.msra.mxu0 0.0
    %2152 = vmatprep.subr.mxu0 0.0
    %2153 = vmatpush1.msra.mxu0 0.0
    %2154 = vmatprep.subr.mxu0 0.0
    %2155 = vmatpush1.msra.mxu0 0.0
    %2156 = vmatprep.subr.mxu0 0.0
    %2157 = vmatpush1.msra.mxu0 0.0
    %2158 = vmatprep.subr.mxu0 0.0
    %2159 = vmatpush1.msra.mxu0 0.0
    %2160 = vmatprep.subr.mxu0 0.0
    %2161 = vmatpush1.msra.mxu0 0.0
    %2162 = vmatprep.subr.mxu0 0.0
    %2163 = vmatpush1.msra.mxu0 0.0
    %2164 = vmatprep.subr.mxu0 0.0
    %2165 = vmatpush1.msra.mxu0 0.0
    %2166 = vmatprep.subr.mxu0 0.0
    %2167 = vmatpush1.msra.mxu0 0.0
    %2168 = vmatprep.subr.mxu0 0.0
    %2169 = vmatpush1.msra.mxu0 0.0
    %2170 = vmatprep.subr.mxu0 0.0
    %2171 = vmatpush1.msra.mxu0 0.0
    %2172 = vmatprep.subr.mxu0 0.0
    %2173 = vmatpush1.msra.mxu0 0.0
    %2174 = vmatprep.mubr.f32.mxu0 0.0
    %2175 = vmatmul.mubr.f32.gmra.mrb[0].mxu0 %v2108
    %v2176 = vpop.f32.mrb[0].mxu0
    %v2177 = vadd.f32 0.0, %v2176
    %v2178 = vpop.f32.mrb[0].mxu0
    %2179 = vdwg.mxu0
    %2180 = vrot.lane.b32.xlu0 %v654, 64
    %v2181 = vpop.permute.xlu0 %2180
    %v2184 = vsel %vm697, %v2089, 0
    %2186 = vmatprep.subr.mxu0 0.0
    %2187 = vmatpush1.msra.mxu0 %v2181
    %2188 = vmatprep.subr.mxu0 0.0
    %2189 = vmatpush1.msra.mxu0 0.0
    %2190 = vmatprep.subr.mxu0 0.0
    %2191 = vmatpush1.msra.mxu0 0.0
    %2192 = vmatprep.subr.mxu0 0.0
    %2193 = vmatpush1.msra.mxu0 0.0
    %2194 = vmatprep.subr.mxu0 0.0
    %2195 = vmatpush1.msra.mxu0 0.0
    %2196 = vmatprep.subr.mxu0 0.0
    %2197 = vmatpush1.msra.mxu0 0.0
    %2198 = vmatprep.subr.mxu0 0.0
    %2199 = vmatpush1.msra.mxu0 0.0
    %2200 = vmatprep.subr.mxu0 0.0
    %2201 = vmatpush1.msra.mxu0 0.0
    %2202 = vmatprep.subr.mxu0 0.0
    %2203 = vmatpush1.msra.mxu0 0.0
    %2204 = vmatprep.subr.mxu0 0.0
    %2205 = vmatpush1.msra.mxu0 0.0
    %2206 = vmatprep.subr.mxu0 0.0
    %2207 = vmatpush1.msra.mxu0 0.0
    %2208 = vmatprep.subr.mxu0 0.0
    %2209 = vmatpush1.msra.mxu0 0.0
    %2210 = vmatprep.subr.mxu0 0.0
    %2211 = vmatpush1.msra.mxu0 0.0
    %2212 = vmatprep.subr.mxu0 0.0
    %2213 = vmatpush1.msra.mxu0 0.0
    %2214 = vmatprep.subr.mxu0 0.0
    %2215 = vmatpush1.msra.mxu0 0.0
    %2216 = vmatprep.subr.mxu0 0.0
    %2217 = vmatpush1.msra.mxu0 0.0
    %2218 = vmatprep.subr.mxu0 0.0
    %2219 = vmatpush1.msra.mxu0 0.0
    %2220 = vmatprep.subr.mxu0 0.0
    %2221 = vmatpush1.msra.mxu0 0.0
    %2222 = vmatprep.subr.mxu0 0.0
    %2223 = vmatpush1.msra.mxu0 0.0
    %2224 = vmatprep.subr.mxu0 0.0
    %2225 = vmatpush1.msra.mxu0 0.0
    %2226 = vmatprep.subr.mxu0 0.0
    %2227 = vmatpush1.msra.mxu0 0.0
    %2228 = vmatprep.subr.mxu0 0.0
    %2229 = vmatpush1.msra.mxu0 0.0
    %2230 = vmatprep.subr.mxu0 0.0
    %2231 = vmatpush1.msra.mxu0 0.0
    %2232 = vmatprep.subr.mxu0 0.0
    %2233 = vmatpush1.msra.mxu0 0.0
    %2234 = vmatprep.subr.mxu0 0.0
    %2235 = vmatpush1.msra.mxu0 0.0
    %2236 = vmatprep.subr.mxu0 0.0
    %2237 = vmatpush1.msra.mxu0 0.0
    %2238 = vmatprep.subr.mxu0 0.0
    %2239 = vmatpush1.msra.mxu0 0.0
    %2240 = vmatprep.subr.mxu0 0.0
    %2241 = vmatpush1.msra.mxu0 0.0
    %2242 = vmatprep.subr.mxu0 0.0
    %2243 = vmatpush1.msra.mxu0 0.0
    %2244 = vmatprep.subr.mxu0 0.0
    %2245 = vmatpush1.msra.mxu0 0.0
    %2246 = vmatprep.subr.mxu0 0.0
    %2247 = vmatpush1.msra.mxu0 0.0
    %2248 = vmatprep.subr.mxu0 0.0
    %2249 = vmatpush1.msra.mxu0 0.0
    %2250 = vmatprep.mubr.f32.mxu0 0.0
    %2251 = vmatmul.mubr.f32.gmra.mrb[0].mxu0 %v2184
    %v2252 = vpop.f32.mrb[0].mxu0
    %v2253 = vadd.f32 0.0, %v2252
    %v2254 = vpop.f32.mrb[0].mxu0
    %2255 = vdwg.mxu0
    %2256 = vrot.lane.b32.xlu0 %v659, 64
    %v2257 = vpop.permute.xlu0 %2256
    %v2260 = vsel %vm697, %v2090, 0
    %2262 = vmatprep.subr.mxu0 0.0
    %2263 = vmatpush1.msra.mxu0 %v2257
    %2264 = vmatprep.subr.mxu0 0.0
    %2265 = vmatpush1.msra.mxu0 0.0
    %2266 = vmatprep.subr.mxu0 0.0
    %2267 = vmatpush1.msra.mxu0 0.0
    %2268 = vmatprep.subr.mxu0 0.0
    %2269 = vmatpush1.msra.mxu0 0.0
    %2270 = vmatprep.subr.mxu0 0.0
    %2271 = vmatpush1.msra.mxu0 0.0
    %2272 = vmatprep.subr.mxu0 0.0
    %2273 = vmatpush1.msra.mxu0 0.0
    %2274 = vmatprep.subr.mxu0 0.0
    %2275 = vmatpush1.msra.mxu0 0.0
    %2276 = vmatprep.subr.mxu0 0.0
    %2277 = vmatpush1.msra.mxu0 0.0
    %2278 = vmatprep.subr.mxu0 0.0
    %2279 = vmatpush1.msra.mxu0 0.0
    %2280 = vmatprep.subr.mxu0 0.0
    %2281 = vmatpush1.msra.mxu0 0.0
    %2282 = vmatprep.subr.mxu0 0.0
    %2283 = vmatpush1.msra.mxu0 0.0
    %2284 = vmatprep.subr.mxu0 0.0
    %2285 = vmatpush1.msra.mxu0 0.0
    %2286 = vmatprep.subr.mxu0 0.0
    %2287 = vmatpush1.msra.mxu0 0.0
    %2288 = vmatprep.subr.mxu0 0.0
    %2289 = vmatpush1.msra.mxu0 0.0
    %2290 = vmatprep.subr.mxu0 0.0
    %2291 = vmatpush1.msra.mxu0 0.0
    %2292 = vmatprep.subr.mxu0 0.0
    %2293 = vmatpush1.msra.mxu0 0.0
    %2294 = vmatprep.subr.mxu0 0.0
    %2295 = vmatpush1.msra.mxu0 0.0
    %2296 = vmatprep.subr.mxu0 0.0
    %2297 = vmatpush1.msra.mxu0 0.0
    %2298 = vmatprep.subr.mxu0 0.0
    %2299 = vmatpush1.msra.mxu0 0.0
    %2300 = vmatprep.subr.mxu0 0.0
    %2301 = vmatpush1.msra.mxu0 0.0
    %2302 = vmatprep.subr.mxu0 0.0
    %2303 = vmatpush1.msra.mxu0 0.0
    %2304 = vmatprep.subr.mxu0 0.0
    %2305 = vmatpush1.msra.mxu0 0.0
    %2306 = vmatprep.subr.mxu0 0.0
    %2307 = vmatpush1.msra.mxu0 0.0
    %2308 = vmatprep.subr.mxu0 0.0
    %2309 = vmatpush1.msra.mxu0 0.0
    %2310 = vmatprep.subr.mxu0 0.0
    %2311 = vmatpush1.msra.mxu0 0.0
    %2312 = vmatprep.subr.mxu0 0.0
    %2313 = vmatpush1.msra.mxu0 0.0
    %2314 = vmatprep.subr.mxu0 0.0
    %2315 = vmatpush1.msra.mxu0 0.0
    %2316 = vmatprep.subr.mxu0 0.0
    %2317 = vmatpush1.msra.mxu0 0.0
    %2318 = vmatprep.subr.mxu0 0.0
    %2319 = vmatpush1.msra.mxu0 0.0
    %2320 = vmatprep.subr.mxu0 0.0
    %2321 = vmatpush1.msra.mxu0 0.0
    %2322 = vmatprep.subr.mxu0 0.0
    %2323 = vmatpush1.msra.mxu0 0.0
    %2324 = vmatprep.subr.mxu0 0.0
    %2325 = vmatpush1.msra.mxu0 0.0
    %2326 = vmatprep.mubr.f32.mxu0 0.0
    %2327 = vmatmul.mubr.f32.gmra.mrb[0].mxu0 %v2260
    %v2328 = vpop.f32.mrb[0].mxu0
    %v2329 = vadd.f32 0.0, %v2328
    %v2330 = vpop.f32.mrb[0].mxu0
    %2331 = vdwg.mxu0
    %2332 = vrot.lane.b32.xlu0 %v664, 64
    %v2333 = vpop.permute.xlu0 %2332
    %v2336 = vsel %vm697, %v2091, 0
    %2338 = vmatprep.subr.mxu0 0.0
    %2339 = vmatpush1.msra.mxu0 %v2333
    %2340 = vmatprep.subr.mxu0 0.0
    %2341 = vmatpush1.msra.mxu0 0.0
    %2342 = vmatprep.subr.mxu0 0.0
    %2343 = vmatpush1.msra.mxu0 0.0
    %2344 = vmatprep.subr.mxu0 0.0
    %2345 = vmatpush1.msra.mxu0 0.0
    %2346 = vmatprep.subr.mxu0 0.0
    %2347 = vmatpush1.msra.mxu0 0.0
    %2348 = vmatprep.subr.mxu0 0.0
    %2349 = vmatpush1.msra.mxu0 0.0
    %2350 = vmatprep.subr.mxu0 0.0
    %2351 = vmatpush1.msra.mxu0 0.0
    %2352 = vmatprep.subr.mxu0 0.0
    %2353 = vmatpush1.msra.mxu0 0.0
    %2354 = vmatprep.subr.mxu0 0.0
    %2355 = vmatpush1.msra.mxu0 0.0
    %2356 = vmatprep.subr.mxu0 0.0
    %2357 = vmatpush1.msra.mxu0 0.0
    %2358 = vmatprep.subr.mxu0 0.0
    %2359 = vmatpush1.msra.mxu0 0.0
    %2360 = vmatprep.subr.mxu0 0.0
    %2361 = vmatpush1.msra.mxu0 0.0
    %2362 = vmatprep.subr.mxu0 0.0
    %2363 = vmatpush1.msra.mxu0 0.0
    %2364 = vmatprep.subr.mxu0 0.0
    %2365 = vmatpush1.msra.mxu0 0.0
    %2366 = vmatprep.subr.mxu0 0.0
    %2367 = vmatpush1.msra.mxu0 0.0
    %2368 = vmatprep.subr.mxu0 0.0
    %2369 = vmatpush1.msra.mxu0 0.0
    %2370 = vmatprep.subr.mxu0 0.0
    %2371 = vmatpush1.msra.mxu0 0.0
    %2372 = vmatprep.subr.mxu0 0.0
    %2373 = vmatpush1.msra.mxu0 0.0
    %2374 = vmatprep.subr.mxu0 0.0
    %2375 = vmatpush1.msra.mxu0 0.0
    %2376 = vmatprep.subr.mxu0 0.0
    %2377 = vmatpush1.msra.mxu0 0.0
    %2378 = vmatprep.subr.mxu0 0.0
    %2379 = vmatpush1.msra.mxu0 0.0
    %2380 = vmatprep.subr.mxu0 0.0
    %2381 = vmatpush1.msra.mxu0 0.0
    %2382 = vmatprep.subr.mxu0 0.0
    %2383 = vmatpush1.msra.mxu0 0.0
    %2384 = vmatprep.subr.mxu0 0.0
    %2385 = vmatpush1.msra.mxu0 0.0
    %2386 = vmatprep.subr.mxu0 0.0
    %2387 = vmatpush1.msra.mxu0 0.0
    %2388 = vmatprep.subr.mxu0 0.0
    %2389 = vmatpush1.msra.mxu0 0.0
    %2390 = vmatprep.subr.mxu0 0.0
    %2391 = vmatpush1.msra.mxu0 0.0
    %2392 = vmatprep.subr.mxu0 0.0
    %2393 = vmatpush1.msra.mxu0 0.0
    %2394 = vmatprep.subr.mxu0 0.0
    %2395 = vmatpush1.msra.mxu0 0.0
    %2396 = vmatprep.subr.mxu0 0.0
    %2397 = vmatpush1.msra.mxu0 0.0
    %2398 = vmatprep.subr.mxu0 0.0
    %2399 = vmatpush1.msra.mxu0 0.0
    %2400 = vmatprep.subr.mxu0 0.0
    %2401 = vmatpush1.msra.mxu0 0.0
    %2402 = vmatprep.mubr.f32.mxu0 0.0
    %2403 = vmatmul.mubr.f32.gmra.mrb[0].mxu0 %v2336
    %v2404 = vpop.f32.mrb[0].mxu0
    %v2405 = vadd.f32 0.0, %v2404
    %v2406 = vpop.f32.mrb[0].mxu0
    %2407 = vdwg.mxu0
    %2408 = vrot.lane.b32.xlu0 %v672, 64
    %v2409 = vpop.permute.xlu0 %2408
    %v2412 = vsel %vm697, %v2092, 0
    %2414 = vmatprep.subr.mxu0 0.0
    %2415 = vmatpush1.msra.mxu0 %v2409
    %2416 = vmatprep.subr.mxu0 0.0
    %2417 = vmatpush1.msra.mxu0 0.0
    %2418 = vmatprep.subr.mxu0 0.0
    %2419 = vmatpush1.msra.mxu0 0.0
    %2420 = vmatprep.subr.mxu0 0.0
    %2421 = vmatpush1.msra.mxu0 0.0
    %2422 = vmatprep.subr.mxu0 0.0
    %2423 = vmatpush1.msra.mxu0 0.0
    %2424 = vmatprep.subr.mxu0 0.0
    %2425 = vmatpush1.msra.mxu0 0.0
    %2426 = vmatprep.subr.mxu0 0.0
    %2427 = vmatpush1.msra.mxu0 0.0
    %2428 = vmatprep.subr.mxu0 0.0
    %2429 = vmatpush1.msra.mxu0 0.0
    %2430 = vmatprep.subr.mxu0 0.0
    %2431 = vmatpush1.msra.mxu0 0.0
    %2432 = vmatprep.subr.mxu0 0.0
    %2433 = vmatpush1.msra.mxu0 0.0
    %2434 = vmatprep.subr.mxu0 0.0
    %2435 = vmatpush1.msra.mxu0 0.0
    %2436 = vmatprep.subr.mxu0 0.0
    %2437 = vmatpush1.msra.mxu0 0.0
    %2438 = vmatprep.subr.mxu0 0.0
    %2439 = vmatpush1.msra.mxu0 0.0
    %2440 = vmatprep.subr.mxu0 0.0
    %2441 = vmatpush1.msra.mxu0 0.0
    %2442 = vmatprep.subr.mxu0 0.0
    %2443 = vmatpush1.msra.mxu0 0.0
    %2444 = vmatprep.subr.mxu0 0.0
    %2445 = vmatpush1.msra.mxu0 0.0
    %2446 = vmatprep.subr.mxu0 0.0
    %2447 = vmatpush1.msra.mxu0 0.0
    %2448 = vmatprep.subr.mxu0 0.0
    %2449 = vmatpush1.msra.mxu0 0.0
    %2450 = vmatprep.subr.mxu0 0.0
    %2451 = vmatpush1.msra.mxu0 0.0
    %2452 = vmatprep.subr.mxu0 0.0
    %2453 = vmatpush1.msra.mxu0 0.0
    %2454 = vmatprep.subr.mxu0 0.0
    %2455 = vmatpush1.msra.mxu0 0.0
    %2456 = vmatprep.subr.mxu0 0.0
    %2457 = vmatpush1.msra.mxu0 0.0
    %2458 = vmatprep.subr.mxu0 0.0
    %2459 = vmatpush1.msra.mxu0 0.0
    %2460 = vmatprep.subr.mxu0 0.0
    %2461 = vmatpush1.msra.mxu0 0.0
    %2462 = vmatprep.subr.mxu0 0.0
    %2463 = vmatpush1.msra.mxu0 0.0
    %2464 = vmatprep.subr.mxu0 0.0
    %2465 = vmatpush1.msra.mxu0 0.0
    %2466 = vmatprep.subr.mxu0 0.0
    %2467 = vmatpush1.msra.mxu0 0.0
    %2468 = vmatprep.subr.mxu0 0.0
    %2469 = vmatpush1.msra.mxu0 0.0
    %2470 = vmatprep.subr.mxu0 0.0
    %2471 = vmatpush1.msra.mxu0 0.0
    %2472 = vmatprep.subr.mxu0 0.0
    %2473 = vmatpush1.msra.mxu0 0.0
    %2474 = vmatprep.subr.mxu0 0.0
    %2475 = vmatpush1.msra.mxu0 0.0
    %2476 = vmatprep.subr.mxu0 0.0
    %2477 = vmatpush1.msra.mxu0 0.0
    %2478 = vmatprep.mubr.f32.mxu0 0.0
    %2479 = vmatmul.mubr.f32.gmra.mrb[0].mxu0 %v2412
    %v2480 = vpop.f32.mrb[0].mxu0
    %v2481 = vadd.f32 0.0, %v2480
    %v2482 = vpop.f32.mrb[0].mxu0
    %2483 = vdwg.mxu0
    %2484 = vrot.lane.b32.xlu0 %v674, 64
    %v2485 = vpop.permute.xlu0 %2484
    %v2488 = vsel %vm697, %v2093, 0
    %2490 = vmatprep.subr.mxu0 0.0
    %2491 = vmatpush1.msra.mxu0 %v2485
    %2492 = vmatprep.subr.mxu0 0.0
    %2493 = vmatpush1.msra.mxu0 0.0
    %2494 = vmatprep.subr.mxu0 0.0
    %2495 = vmatpush1.msra.mxu0 0.0
    %2496 = vmatprep.subr.mxu0 0.0
    %2497 = vmatpush1.msra.mxu0 0.0
    %2498 = vmatprep.subr.mxu0 0.0
    %2499 = vmatpush1.msra.mxu0 0.0
    %2500 = vmatprep.subr.mxu0 0.0
    %2501 = vmatpush1.msra.mxu0 0.0
    %2502 = vmatprep.subr.mxu0 0.0
    %2503 = vmatpush1.msra.mxu0 0.0
    %2504 = vmatprep.subr.mxu0 0.0
    %2505 = vmatpush1.msra.mxu0 0.0
    %2506 = vmatprep.subr.mxu0 0.0
    %2507 = vmatpush1.msra.mxu0 0.0
    %2508 = vmatprep.subr.mxu0 0.0
    %2509 = vmatpush1.msra.mxu0 0.0
    %2510 = vmatprep.subr.mxu0 0.0
    %2511 = vmatpush1.msra.mxu0 0.0
    %2512 = vmatprep.subr.mxu0 0.0
    %2513 = vmatpush1.msra.mxu0 0.0
    %2514 = vmatprep.subr.mxu0 0.0
    %2515 = vmatpush1.msra.mxu0 0.0
    %2516 = vmatprep.subr.mxu0 0.0
    %2517 = vmatpush1.msra.mxu0 0.0
    %2518 = vmatprep.subr.mxu0 0.0
    %2519 = vmatpush1.msra.mxu0 0.0
    %2520 = vmatprep.subr.mxu0 0.0
    %2521 = vmatpush1.msra.mxu0 0.0
    %2522 = vmatprep.subr.mxu0 0.0
    %2523 = vmatpush1.msra.mxu0 0.0
    %2524 = vmatprep.subr.mxu0 0.0
    %2525 = vmatpush1.msra.mxu0 0.0
    %2526 = vmatprep.subr.mxu0 0.0
    %2527 = vmatpush1.msra.mxu0 0.0
    %2528 = vmatprep.subr.mxu0 0.0
    %2529 = vmatpush1.msra.mxu0 0.0
    %2530 = vmatprep.subr.mxu0 0.0
    %2531 = vmatpush1.msra.mxu0 0.0
    %2532 = vmatprep.subr.mxu0 0.0
    %2533 = vmatpush1.msra.mxu0 0.0
    %2534 = vmatprep.subr.mxu0 0.0
    %2535 = vmatpush1.msra.mxu0 0.0
    %2536 = vmatprep.subr.mxu0 0.0
    %2537 = vmatpush1.msra.mxu0 0.0
    %2538 = vmatprep.subr.mxu0 0.0
    %2539 = vmatpush1.msra.mxu0 0.0
    %2540 = vmatprep.subr.mxu0 0.0
    %2541 = vmatpush1.msra.mxu0 0.0
    %2542 = vmatprep.subr.mxu0 0.0
    %2543 = vmatpush1.msra.mxu0 0.0
    %2544 = vmatprep.subr.mxu0 0.0
    %2545 = vmatpush1.msra.mxu0 0.0
    %2546 = vmatprep.subr.mxu0 0.0
    %2547 = vmatpush1.msra.mxu0 0.0
    %2548 = vmatprep.subr.mxu0 0.0
    %2549 = vmatpush1.msra.mxu0 0.0
    %2550 = vmatprep.subr.mxu0 0.0
    %2551 = vmatpush1.msra.mxu0 0.0
    %2552 = vmatprep.subr.mxu0 0.0
    %2553 = vmatpush1.msra.mxu0 0.0
    %2554 = vmatprep.mubr.f32.mxu0 0.0
    %2555 = vmatmul.mubr.f32.gmra.mrb[0].mxu0 %v2488
    %v2556 = vpop.f32.mrb[0].mxu0
    %v2557 = vadd.f32 0.0, %v2556
    %v2558 = vpop.f32.mrb[0].mxu0
    %2559 = vdwg.mxu0
    %2560 = vrot.lane.b32.xlu0 %v676, 64
    %v2561 = vpop.permute.xlu0 %2560
    %v2564 = vsel %vm697, %v2094, 0
    %2566 = vmatprep.subr.mxu0 0.0
    %2567 = vmatpush1.msra.mxu0 %v2561
    %2568 = vmatprep.subr.mxu0 0.0
    %2569 = vmatpush1.msra.mxu0 0.0
    %2570 = vmatprep.subr.mxu0 0.0
    %2571 = vmatpush1.msra.mxu0 0.0
    %2572 = vmatprep.subr.mxu0 0.0
    %2573 = vmatpush1.msra.mxu0 0.0
    %2574 = vmatprep.subr.mxu0 0.0
    %2575 = vmatpush1.msra.mxu0 0.0
    %2576 = vmatprep.subr.mxu0 0.0
    %2577 = vmatpush1.msra.mxu0 0.0
    %2578 = vmatprep.subr.mxu0 0.0
    %2579 = vmatpush1.msra.mxu0 0.0
    %2580 = vmatprep.subr.mxu0 0.0
    %2581 = vmatpush1.msra.mxu0 0.0
    %2582 = vmatprep.subr.mxu0 0.0
    %2583 = vmatpush1.msra.mxu0 0.0
    %2584 = vmatprep.subr.mxu0 0.0
    %2585 = vmatpush1.msra.mxu0 0.0
    %2586 = vmatprep.subr.mxu0 0.0
    %2587 = vmatpush1.msra.mxu0 0.0
    %2588 = vmatprep.subr.mxu0 0.0
    %2589 = vmatpush1.msra.mxu0 0.0
    %2590 = vmatprep.subr.mxu0 0.0
    %2591 = vmatpush1.msra.mxu0 0.0
    %2592 = vmatprep.subr.mxu0 0.0
    %2593 = vmatpush1.msra.mxu0 0.0
    %2594 = vmatprep.subr.mxu0 0.0
    %2595 = vmatpush1.msra.mxu0 0.0
    %2596 = vmatprep.subr.mxu0 0.0
    %2597 = vmatpush1.msra.mxu0 0.0
    %2598 = vmatprep.subr.mxu0 0.0
    %2599 = vmatpush1.msra.mxu0 0.0
    %2600 = vmatprep.subr.mxu0 0.0
    %2601 = vmatpush1.msra.mxu0 0.0
    %2602 = vmatprep.subr.mxu0 0.0
    %2603 = vmatpush1.msra.mxu0 0.0
    %2604 = vmatprep.subr.mxu0 0.0
    %2605 = vmatpush1.msra.mxu0 0.0
    %2606 = vmatprep.subr.mxu0 0.0
    %2607 = vmatpush1.msra.mxu0 0.0
    %2608 = vmatprep.subr.mxu0 0.0
    %2609 = vmatpush1.msra.mxu0 0.0
    %2610 = vmatprep.subr.mxu0 0.0
    %2611 = vmatpush1.msra.mxu0 0.0
    %2612 = vmatprep.subr.mxu0 0.0
    %2613 = vmatpush1.msra.mxu0 0.0
    %2614 = vmatprep.subr.mxu0 0.0
    %2615 = vmatpush1.msra.mxu0 0.0
    %2616 = vmatprep.subr.mxu0 0.0
    %2617 = vmatpush1.msra.mxu0 0.0
    %2618 = vmatprep.subr.mxu0 0.0
    %2619 = vmatpush1.msra.mxu0 0.0
    %2620 = vmatprep.subr.mxu0 0.0
    %2621 = vmatpush1.msra.mxu0 0.0
    %2622 = vmatprep.subr.mxu0 0.0
    %2623 = vmatpush1.msra.mxu0 0.0
    %2624 = vmatprep.subr.mxu0 0.0
    %2625 = vmatpush1.msra.mxu0 0.0
    %2626 = vmatprep.subr.mxu0 0.0
    %2627 = vmatpush1.msra.mxu0 0.0
    %2628 = vmatprep.subr.mxu0 0.0
    %2629 = vmatpush1.msra.mxu0 0.0
    %2630 = vmatprep.mubr.f32.mxu0 0.0
    %2631 = vmatmul.mubr.f32.gmra.mrb[0].mxu0 %v2564
    %v2632 = vpop.f32.mrb[0].mxu0
    %v2633 = vadd.f32 0.0, %v2632
    %v2634 = vpop.f32.mrb[0].mxu0
    %2635 = vdwg.mxu0
    %2636 = vrot.lane.b32.xlu0 %v678, 64
    %v2637 = vpop.permute.xlu0 %2636
    %v2640 = vsel %vm697, %v2095, 0
    %2642 = vmatprep.subr.mxu0 0.0
    %2643 = vmatpush1.msra.mxu0 %v2637
    %2644 = vmatprep.subr.mxu0 0.0
    %2645 = vmatpush1.msra.mxu0 0.0
    %2646 = vmatprep.subr.mxu0 0.0
    %2647 = vmatpush1.msra.mxu0 0.0
    %2648 = vmatprep.subr.mxu0 0.0
    %2649 = vmatpush1.msra.mxu0 0.0
    %2650 = vmatprep.subr.mxu0 0.0
    %2651 = vmatpush1.msra.mxu0 0.0
    %2652 = vmatprep.subr.mxu0 0.0
    %2653 = vmatpush1.msra.mxu0 0.0
    %2654 = vmatprep.subr.mxu0 0.0
    %2655 = vmatpush1.msra.mxu0 0.0
    %2656 = vmatprep.subr.mxu0 0.0
    %2657 = vmatpush1.msra.mxu0 0.0
    %2658 = vmatprep.subr.mxu0 0.0
    %2659 = vmatpush1.msra.mxu0 0.0
    %2660 = vmatprep.subr.mxu0 0.0
    %2661 = vmatpush1.msra.mxu0 0.0
    %2662 = vmatprep.subr.mxu0 0.0
    %2663 = vmatpush1.msra.mxu0 0.0
    %2664 = vmatprep.subr.mxu0 0.0
    %2665 = vmatpush1.msra.mxu0 0.0
    %2666 = vmatprep.subr.mxu0 0.0
    %2667 = vmatpush1.msra.mxu0 0.0
    %2668 = vmatprep.subr.mxu0 0.0
    %2669 = vmatpush1.msra.mxu0 0.0
    %2670 = vmatprep.subr.mxu0 0.0
    %2671 = vmatpush1.msra.mxu0 0.0
    %2672 = vmatprep.subr.mxu0 0.0
    %2673 = vmatpush1.msra.mxu0 0.0
    %2674 = vmatprep.subr.mxu0 0.0
    %2675 = vmatpush1.msra.mxu0 0.0
    %2676 = vmatprep.subr.mxu0 0.0
    %2677 = vmatpush1.msra.mxu0 0.0
    %2678 = vmatprep.subr.mxu0 0.0
    %2679 = vmatpush1.msra.mxu0 0.0
    %2680 = vmatprep.subr.mxu0 0.0
    %2681 = vmatpush1.msra.mxu0 0.0
    %2682 = vmatprep.subr.mxu0 0.0
    %2683 = vmatpush1.msra.mxu0 0.0
    %2684 = vmatprep.subr.mxu0 0.0
    %2685 = vmatpush1.msra.mxu0 0.0
    %2686 = vmatprep.subr.mxu0 0.0
    %2687 = vmatpush1.msra.mxu0 0.0
    %2688 = vmatprep.subr.mxu0 0.0
    %2689 = vmatpush1.msra.mxu0 0.0
    %2690 = vmatprep.subr.mxu0 0.0
    %2691 = vmatpush1.msra.mxu0 0.0
    %2692 = vmatprep.subr.mxu0 0.0
    %2693 = vmatpush1.msra.mxu0 0.0
    %2694 = vmatprep.subr.mxu0 0.0
    %2695 = vmatpush1.msra.mxu0 0.0
    %2696 = vmatprep.subr.mxu0 0.0
    %2697 = vmatpush1.msra.mxu0 0.0
    %2698 = vmatprep.subr.mxu0 0.0
    %2699 = vmatpush1.msra.mxu0 0.0
    %2700 = vmatprep.subr.mxu0 0.0
    %2701 = vmatpush1.msra.mxu0 0.0
    %2702 = vmatprep.subr.mxu0 0.0
    %2703 = vmatpush1.msra.mxu0 0.0
    %2704 = vmatprep.subr.mxu0 0.0
    %2705 = vmatpush1.msra.mxu0 0.0
    %2706 = vmatprep.mubr.f32.mxu0 0.0
    %2707 = vmatmul.mubr.f32.gmra.mrb[0].mxu0 %v2640
    %v2708 = vpop.f32.mrb[0].mxu0
    %v2709 = vadd.f32 0.0, %v2708
    %v2710 = vpop.f32.mrb[0].mxu0
    %2711 = vdwg.mxu0
    %2712 = vrot.lane.b32.xlu0 %v680, 64
    %v2713 = vpop.permute.xlu0 %2712
    %v2716 = vsel %vm697, %v2096, 0
    %2718 = vmatprep.subr.mxu0 0.0
    %2719 = vmatpush1.msra.mxu0 %v2713
    %2720 = vmatprep.subr.mxu0 0.0
    %2721 = vmatpush1.msra.mxu0 0.0
    %2722 = vmatprep.subr.mxu0 0.0
    %2723 = vmatpush1.msra.mxu0 0.0
    %2724 = vmatprep.subr.mxu0 0.0
    %2725 = vmatpush1.msra.mxu0 0.0
    %2726 = vmatprep.subr.mxu0 0.0
    %2727 = vmatpush1.msra.mxu0 0.0
    %2728 = vmatprep.subr.mxu0 0.0
    %2729 = vmatpush1.msra.mxu0 0.0
    %2730 = vmatprep.subr.mxu0 0.0
    %2731 = vmatpush1.msra.mxu0 0.0
    %2732 = vmatprep.subr.mxu0 0.0
    %2733 = vmatpush1.msra.mxu0 0.0
    %2734 = vmatprep.subr.mxu0 0.0
    %2735 = vmatpush1.msra.mxu0 0.0
    %2736 = vmatprep.subr.mxu0 0.0
    %2737 = vmatpush1.msra.mxu0 0.0
    %2738 = vmatprep.subr.mxu0 0.0
    %2739 = vmatpush1.msra.mxu0 0.0
    %2740 = vmatprep.subr.mxu0 0.0
    %2741 = vmatpush1.msra.mxu0 0.0
    %2742 = vmatprep.subr.mxu0 0.0
    %2743 = vmatpush1.msra.mxu0 0.0
    %2744 = vmatprep.subr.mxu0 0.0
    %2745 = vmatpush1.msra.mxu0 0.0
    %2746 = vmatprep.subr.mxu0 0.0
    %2747 = vmatpush1.msra.mxu0 0.0
    %2748 = vmatprep.subr.mxu0 0.0
    %2749 = vmatpush1.msra.mxu0 0.0
    %2750 = vmatprep.subr.mxu0 0.0
    %2751 = vmatpush1.msra.mxu0 0.0
    %2752 = vmatprep.subr.mxu0 0.0
    %2753 = vmatpush1.msra.mxu0 0.0
    %2754 = vmatprep.subr.mxu0 0.0
    %2755 = vmatpush1.msra.mxu0 0.0
    %2756 = vmatprep.subr.mxu0 0.0
    %2757 = vmatpush1.msra.mxu0 0.0
    %2758 = vmatprep.subr.mxu0 0.0
    %2759 = vmatpush1.msra.mxu0 0.0
    %2760 = vmatprep.subr.mxu0 0.0
    %2761 = vmatpush1.msra.mxu0 0.0
    %2762 = vmatprep.subr.mxu0 0.0
    %2763 = vmatpush1.msra.mxu0 0.0
    %2764 = vmatprep.subr.mxu0 0.0
    %2765 = vmatpush1.msra.mxu0 0.0
    %2766 = vmatprep.subr.mxu0 0.0
    %2767 = vmatpush1.msra.mxu0 0.0
    %2768 = vmatprep.subr.mxu0 0.0
    %2769 = vmatpush1.msra.mxu0 0.0
    %2770 = vmatprep.subr.mxu0 0.0
    %2771 = vmatpush1.msra.mxu0 0.0
    %2772 = vmatprep.subr.mxu0 0.0
    %2773 = vmatpush1.msra.mxu0 0.0
    %2774 = vmatprep.subr.mxu0 0.0
    %2775 = vmatpush1.msra.mxu0 0.0
    %2776 = vmatprep.subr.mxu0 0.0
    %2777 = vmatpush1.msra.mxu0 0.0
    %2778 = vmatprep.subr.mxu0 0.0
    %2779 = vmatpush1.msra.mxu0 0.0
    %2780 = vmatprep.subr.mxu0 0.0
    %2781 = vmatpush1.msra.mxu0 0.0
    %2782 = vmatprep.mubr.f32.mxu0 0.0
    %2783 = vmatmul.mubr.f32.gmra.mrb[0].mxu0 %v2716
    %v2784 = vpop.f32.mrb[0].mxu0
    %v2785 = vadd.f32 0.0, %v2784
    %v2786 = vpop.f32.mrb[0].mxu0
    %2787 = vdwg.mxu0
    %2788 = vrot.lane.b32.xlu0 %v682, 64
    %v2789 = vpop.permute.xlu0 %2788
    %v2792 = vsel %vm697, %v2097, 0
    %2794 = vmatprep.subr.mxu0 0.0
    %2795 = vmatpush1.msra.mxu0 %v2789
    %2796 = vmatprep.subr.mxu0 0.0
    %2797 = vmatpush1.msra.mxu0 0.0
    %2798 = vmatprep.subr.mxu0 0.0
    %2799 = vmatpush1.msra.mxu0 0.0
    %2800 = vmatprep.subr.mxu0 0.0
    %2801 = vmatpush1.msra.mxu0 0.0
    %2802 = vmatprep.subr.mxu0 0.0
    %2803 = vmatpush1.msra.mxu0 0.0
    %2804 = vmatprep.subr.mxu0 0.0
    %2805 = vmatpush1.msra.mxu0 0.0
    %2806 = vmatprep.subr.mxu0 0.0
    %2807 = vmatpush1.msra.mxu0 0.0
    %2808 = vmatprep.subr.mxu0 0.0
    %2809 = vmatpush1.msra.mxu0 0.0
    %2810 = vmatprep.subr.mxu0 0.0
    %2811 = vmatpush1.msra.mxu0 0.0
    %2812 = vmatprep.subr.mxu0 0.0
    %2813 = vmatpush1.msra.mxu0 0.0
    %2814 = vmatprep.subr.mxu0 0.0
    %2815 = vmatpush1.msra.mxu0 0.0
    %2816 = vmatprep.subr.mxu0 0.0
    %2817 = vmatpush1.msra.mxu0 0.0
    %2818 = vmatprep.subr.mxu0 0.0
    %2819 = vmatpush1.msra.mxu0 0.0
    %2820 = vmatprep.subr.mxu0 0.0
    %2821 = vmatpush1.msra.mxu0 0.0
    %2822 = vmatprep.subr.mxu0 0.0
    %2823 = vmatpush1.msra.mxu0 0.0
    %2824 = vmatprep.subr.mxu0 0.0
    %2825 = vmatpush1.msra.mxu0 0.0
    %2826 = vmatprep.subr.mxu0 0.0
    %2827 = vmatpush1.msra.mxu0 0.0
    %2828 = vmatprep.subr.mxu0 0.0
    %2829 = vmatpush1.msra.mxu0 0.0
    %2830 = vmatprep.subr.mxu0 0.0
    %2831 = vmatpush1.msra.mxu0 0.0
    %2832 = vmatprep.subr.mxu0 0.0
    %2833 = vmatpush1.msra.mxu0 0.0
    %2834 = vmatprep.subr.mxu0 0.0
    %2835 = vmatpush1.msra.mxu0 0.0
    %2836 = vmatprep.subr.mxu0 0.0
    %2837 = vmatpush1.msra.mxu0 0.0
    %2838 = vmatprep.subr.mxu0 0.0
    %2839 = vmatpush1.msra.mxu0 0.0
    %2840 = vmatprep.subr.mxu0 0.0
    %2841 = vmatpush1.msra.mxu0 0.0
    %2842 = vmatprep.subr.mxu0 0.0
    %2843 = vmatpush1.msra.mxu0 0.0
    %2844 = vmatprep.subr.mxu0 0.0
    %2845 = vmatpush1.msra.mxu0 0.0
    %2846 = vmatprep.subr.mxu0 0.0
    %2847 = vmatpush1.msra.mxu0 0.0
    %2848 = vmatprep.subr.mxu0 0.0
    %2849 = vmatpush1.msra.mxu0 0.0
    %2850 = vmatprep.subr.mxu0 0.0
    %2851 = vmatpush1.msra.mxu0 0.0
    %2852 = vmatprep.subr.mxu0 0.0
    %2853 = vmatpush1.msra.mxu0 0.0
    %2854 = vmatprep.subr.mxu0 0.0
    %2855 = vmatpush1.msra.mxu0 0.0
    %2856 = vmatprep.subr.mxu0 0.0
    %2857 = vmatpush1.msra.mxu0 0.0
    %2858 = vmatprep.mubr.f32.mxu0 0.0
    %2859 = vmatmul.mubr.f32.gmra.mrb[0].mxu0 %v2792
    %v2860 = vpop.f32.mrb[0].mxu0
    %v2861 = vadd.f32 0.0, %v2860
    %v2862 = vpop.f32.mrb[0].mxu0
    %2863 = vdwg.mxu0
    %2864 = vrot.lane.b32.xlu0 %v684, 64
    %v2865 = vpop.permute.xlu0 %2864
    %v2868 = vsel %vm697, %v2098, 0
    %2870 = vmatprep.subr.mxu0 0.0
    %2871 = vmatpush1.msra.mxu0 %v2865
    %2872 = vmatprep.subr.mxu0 0.0
    %2873 = vmatpush1.msra.mxu0 0.0
    %2874 = vmatprep.subr.mxu0 0.0
    %2875 = vmatpush1.msra.mxu0 0.0
    %2876 = vmatprep.subr.mxu0 0.0
    %2877 = vmatpush1.msra.mxu0 0.0
    %2878 = vmatprep.subr.mxu0 0.0
    %2879 = vmatpush1.msra.mxu0 0.0
    %2880 = vmatprep.subr.mxu0 0.0
    %2881 = vmatpush1.msra.mxu0 0.0
    %2882 = vmatprep.subr.mxu0 0.0
    %2883 = vmatpush1.msra.mxu0 0.0
    %2884 = vmatprep.subr.mxu0 0.0
    %2885 = vmatpush1.msra.mxu0 0.0
    %2886 = vmatprep.subr.mxu0 0.0
    %2887 = vmatpush1.msra.mxu0 0.0
    %2888 = vmatprep.subr.mxu0 0.0
    %2889 = vmatpush1.msra.mxu0 0.0
    %2890 = vmatprep.subr.mxu0 0.0
    %2891 = vmatpush1.msra.mxu0 0.0
    %2892 = vmatprep.subr.mxu0 0.0
    %2893 = vmatpush1.msra.mxu0 0.0
    %2894 = vmatprep.subr.mxu0 0.0
    %2895 = vmatpush1.msra.mxu0 0.0
    %2896 = vmatprep.subr.mxu0 0.0
    %2897 = vmatpush1.msra.mxu0 0.0
    %2898 = vmatprep.subr.mxu0 0.0
    %2899 = vmatpush1.msra.mxu0 0.0
    %2900 = vmatprep.subr.mxu0 0.0
    %2901 = vmatpush1.msra.mxu0 0.0
    %2902 = vmatprep.subr.mxu0 0.0
    %2903 = vmatpush1.msra.mxu0 0.0
    %2904 = vmatprep.subr.mxu0 0.0
    %2905 = vmatpush1.msra.mxu0 0.0
    %2906 = vmatprep.subr.mxu0 0.0
    %2907 = vmatpush1.msra.mxu0 0.0
    %2908 = vmatprep.subr.mxu0 0.0
    %2909 = vmatpush1.msra.mxu0 0.0
    %2910 = vmatprep.subr.mxu0 0.0
    %2911 = vmatpush1.msra.mxu0 0.0
    %2912 = vmatprep.subr.mxu0 0.0
    %2913 = vmatpush1.msra.mxu0 0.0
    %2914 = vmatprep.subr.mxu0 0.0
    %2915 = vmatpush1.msra.mxu0 0.0
    %2916 = vmatprep.subr.mxu0 0.0
    %2917 = vmatpush1.msra.mxu0 0.0
    %2918 = vmatprep.subr.mxu0 0.0
    %2919 = vmatpush1.msra.mxu0 0.0
    %2920 = vmatprep.subr.mxu0 0.0
    %2921 = vmatpush1.msra.mxu0 0.0
    %2922 = vmatprep.subr.mxu0 0.0
    %2923 = vmatpush1.msra.mxu0 0.0
    %2924 = vmatprep.subr.mxu0 0.0
    %2925 = vmatpush1.msra.mxu0 0.0
    %2926 = vmatprep.subr.mxu0 0.0
    %2927 = vmatpush1.msra.mxu0 0.0
    %2928 = vmatprep.subr.mxu0 0.0
    %2929 = vmatpush1.msra.mxu0 0.0
    %2930 = vmatprep.subr.mxu0 0.0
    %2931 = vmatpush1.msra.mxu0 0.0
    %2932 = vmatprep.subr.mxu0 0.0
    %2933 = vmatpush1.msra.mxu0 0.0
    %2934 = vmatprep.mubr.f32.mxu0 0.0
    %2935 = vmatmul.mubr.f32.gmra.mrb[0].mxu0 %v2868
    %v2936 = vpop.f32.mrb[0].mxu0
    %v2937 = vadd.f32 0.0, %v2936
    %v2938 = vpop.f32.mrb[0].mxu0
    %2939 = vdwg.mxu0
    %2940 = vrot.lane.b32.xlu0 %v686, 64
    %v2941 = vpop.permute.xlu0 %2940
    %v2944 = vsel %vm697, %v2099, 0
    %2946 = vmatprep.subr.mxu0 0.0
    %2947 = vmatpush1.msra.mxu0 %v2941
    %2948 = vmatprep.subr.mxu0 0.0
    %2949 = vmatpush1.msra.mxu0 0.0
    %2950 = vmatprep.subr.mxu0 0.0
    %2951 = vmatpush1.msra.mxu0 0.0
    %2952 = vmatprep.subr.mxu0 0.0
    %2953 = vmatpush1.msra.mxu0 0.0
    %2954 = vmatprep.subr.mxu0 0.0
    %2955 = vmatpush1.msra.mxu0 0.0
    %2956 = vmatprep.subr.mxu0 0.0
    %2957 = vmatpush1.msra.mxu0 0.0
    %2958 = vmatprep.subr.mxu0 0.0
    %2959 = vmatpush1.msra.mxu0 0.0
    %2960 = vmatprep.subr.mxu0 0.0
    %2961 = vmatpush1.msra.mxu0 0.0
    %2962 = vmatprep.subr.mxu0 0.0
    %2963 = vmatpush1.msra.mxu0 0.0
    %2964 = vmatprep.subr.mxu0 0.0
    %2965 = vmatpush1.msra.mxu0 0.0
    %2966 = vmatprep.subr.mxu0 0.0
    %2967 = vmatpush1.msra.mxu0 0.0
    %2968 = vmatprep.subr.mxu0 0.0
    %2969 = vmatpush1.msra.mxu0 0.0
    %2970 = vmatprep.subr.mxu0 0.0
    %2971 = vmatpush1.msra.mxu0 0.0
    %2972 = vmatprep.subr.mxu0 0.0
    %2973 = vmatpush1.msra.mxu0 0.0
    %2974 = vmatprep.subr.mxu0 0.0
    %2975 = vmatpush1.msra.mxu0 0.0
    %2976 = vmatprep.subr.mxu0 0.0
    %2977 = vmatpush1.msra.mxu0 0.0
    %2978 = vmatprep.subr.mxu0 0.0
    %2979 = vmatpush1.msra.mxu0 0.0
    %2980 = vmatprep.subr.mxu0 0.0
    %2981 = vmatpush1.msra.mxu0 0.0
    %2982 = vmatprep.subr.mxu0 0.0
    %2983 = vmatpush1.msra.mxu0 0.0
    %2984 = vmatprep.subr.mxu0 0.0
    %2985 = vmatpush1.msra.mxu0 0.0
    %2986 = vmatprep.subr.mxu0 0.0
    %2987 = vmatpush1.msra.mxu0 0.0
    %2988 = vmatprep.subr.mxu0 0.0
    %2989 = vmatpush1.msra.mxu0 0.0
    %2990 = vmatprep.subr.mxu0 0.0
    %2991 = vmatpush1.msra.mxu0 0.0
    %2992 = vmatprep.subr.mxu0 0.0
    %2993 = vmatpush1.msra.mxu0 0.0
    %2994 = vmatprep.subr.mxu0 0.0
    %2995 = vmatpush1.msra.mxu0 0.0
    %2996 = vmatprep.subr.mxu0 0.0
    %2997 = vmatpush1.msra.mxu0 0.0
    %2998 = vmatprep.subr.mxu0 0.0
    %2999 = vmatpush1.msra.mxu0 0.0
    %3000 = vmatprep.subr.mxu0 0.0
    %3001 = vmatpush1.msra.mxu0 0.0
    %3002 = vmatprep.subr.mxu0 0.0
    %3003 = vmatpush1.msra.mxu0 0.0
    %3004 = vmatprep.subr.mxu0 0.0
    %3005 = vmatpush1.msra.mxu0 0.0
    %3006 = vmatprep.subr.mxu0 0.0
    %3007 = vmatpush1.msra.mxu0 0.0
    %3008 = vmatprep.subr.mxu0 0.0
    %3009 = vmatpush1.msra.mxu0 0.0
    %3010 = vmatprep.mubr.f32.mxu0 0.0
    %3011 = vmatmul.mubr.f32.gmra.mrb[0].mxu0 %v2944
    %v3012 = vpop.f32.mrb[0].mxu0
    %v3013 = vadd.f32 0.0, %v3012
    %v3014 = vpop.f32.mrb[0].mxu0
    %3015 = vdwg.mxu0
    %3016 = vrot.lane.b32.xlu0 %v688, 64
    %v3017 = vpop.permute.xlu0 %3016
    %v3020 = vsel %vm697, %v2100, 0
    %3022 = vmatprep.subr.mxu0 0.0
    %3023 = vmatpush1.msra.mxu0 %v3017
    %3024 = vmatprep.subr.mxu0 0.0
    %3025 = vmatpush1.msra.mxu0 0.0
    %3026 = vmatprep.subr.mxu0 0.0
    %3027 = vmatpush1.msra.mxu0 0.0
    %3028 = vmatprep.subr.mxu0 0.0
    %3029 = vmatpush1.msra.mxu0 0.0
    %3030 = vmatprep.subr.mxu0 0.0
    %3031 = vmatpush1.msra.mxu0 0.0
    %3032 = vmatprep.subr.mxu0 0.0
    %3033 = vmatpush1.msra.mxu0 0.0
    %3034 = vmatprep.subr.mxu0 0.0
    %3035 = vmatpush1.msra.mxu0 0.0
    %3036 = vmatprep.subr.mxu0 0.0
    %3037 = vmatpush1.msra.mxu0 0.0
    %3038 = vmatprep.subr.mxu0 0.0
    %3039 = vmatpush1.msra.mxu0 0.0
    %3040 = vmatprep.subr.mxu0 0.0
    %3041 = vmatpush1.msra.mxu0 0.0
    %3042 = vmatprep.subr.mxu0 0.0
    %3043 = vmatpush1.msra.mxu0 0.0
    %3044 = vmatprep.subr.mxu0 0.0
    %3045 = vmatpush1.msra.mxu0 0.0
    %3046 = vmatprep.subr.mxu0 0.0
    %3047 = vmatpush1.msra.mxu0 0.0
    %3048 = vmatprep.subr.mxu0 0.0
    %3049 = vmatpush1.msra.mxu0 0.0
    %3050 = vmatprep.subr.mxu0 0.0
    %3051 = vmatpush1.msra.mxu0 0.0
    %3052 = vmatprep.subr.mxu0 0.0
    %3053 = vmatpush1.msra.mxu0 0.0
    %3054 = vmatprep.subr.mxu0 0.0
    %3055 = vmatpush1.msra.mxu0 0.0
    %3056 = vmatprep.subr.mxu0 0.0
    %3057 = vmatpush1.msra.mxu0 0.0
    %3058 = vmatprep.subr.mxu0 0.0
    %3059 = vmatpush1.msra.mxu0 0.0
    %3060 = vmatprep.subr.mxu0 0.0
    %3061 = vmatpush1.msra.mxu0 0.0
    %3062 = vmatprep.subr.mxu0 0.0
    %3063 = vmatpush1.msra.mxu0 0.0
    %3064 = vmatprep.subr.mxu0 0.0
    %3065 = vmatpush1.msra.mxu0 0.0
    %3066 = vmatprep.subr.mxu0 0.0
    %3067 = vmatpush1.msra.mxu0 0.0
    %3068 = vmatprep.subr.mxu0 0.0
    %3069 = vmatpush1.msra.mxu0 0.0
    %3070 = vmatprep.subr.mxu0 0.0
    %3071 = vmatpush1.msra.mxu0 0.0
    %3072 = vmatprep.subr.mxu0 0.0
    %3073 = vmatpush1.msra.mxu0 0.0
    %3074 = vmatprep.subr.mxu0 0.0
    %3075 = vmatpush1.msra.mxu0 0.0
    %3076 = vmatprep.subr.mxu0 0.0
    %3077 = vmatpush1.msra.mxu0 0.0
    %3078 = vmatprep.subr.mxu0 0.0
    %3079 = vmatpush1.msra.mxu0 0.0
    %3080 = vmatprep.subr.mxu0 0.0
    %3081 = vmatpush1.msra.mxu0 0.0
    %3082 = vmatprep.subr.mxu0 0.0
    %3083 = vmatpush1.msra.mxu0 0.0
    %3084 = vmatprep.subr.mxu0 0.0
    %3085 = vmatpush1.msra.mxu0 0.0
    %3086 = vmatprep.mubr.f32.mxu0 0.0
    %3087 = vmatmul.mubr.f32.gmra.mrb[0].mxu0 %v3020
    %v3088 = vpop.f32.mrb[0].mxu0
    %v3089 = vadd.f32 0.0, %v3088
    %v3090 = vpop.f32.mrb[0].mxu0
    %3091 = vdwg.mxu0
    %3092 = vrot.lane.b32.xlu0 %v690, 64
    %v3093 = vpop.permute.xlu0 %3092
    %v3096 = vsel %vm697, %v2101, 0
    %3098 = vmatprep.subr.mxu0 0.0
    %3099 = vmatpush1.msra.mxu0 %v3093
    %3100 = vmatprep.subr.mxu0 0.0
    %3101 = vmatpush1.msra.mxu0 0.0
    %3102 = vmatprep.subr.mxu0 0.0
    %3103 = vmatpush1.msra.mxu0 0.0
    %3104 = vmatprep.subr.mxu0 0.0
    %3105 = vmatpush1.msra.mxu0 0.0
    %3106 = vmatprep.subr.mxu0 0.0
    %3107 = vmatpush1.msra.mxu0 0.0
    %3108 = vmatprep.subr.mxu0 0.0
    %3109 = vmatpush1.msra.mxu0 0.0
    %3110 = vmatprep.subr.mxu0 0.0
    %3111 = vmatpush1.msra.mxu0 0.0
    %3112 = vmatprep.subr.mxu0 0.0
    %3113 = vmatpush1.msra.mxu0 0.0
    %3114 = vmatprep.subr.mxu0 0.0
    %3115 = vmatpush1.msra.mxu0 0.0
    %3116 = vmatprep.subr.mxu0 0.0
    %3117 = vmatpush1.msra.mxu0 0.0
    %3118 = vmatprep.subr.mxu0 0.0
    %3119 = vmatpush1.msra.mxu0 0.0
    %3120 = vmatprep.subr.mxu0 0.0
    %3121 = vmatpush1.msra.mxu0 0.0
    %3122 = vmatprep.subr.mxu0 0.0
    %3123 = vmatpush1.msra.mxu0 0.0
    %3124 = vmatprep.subr.mxu0 0.0
    %3125 = vmatpush1.msra.mxu0 0.0
    %3126 = vmatprep.subr.mxu0 0.0
    %3127 = vmatpush1.msra.mxu0 0.0
    %3128 = vmatprep.subr.mxu0 0.0
    %3129 = vmatpush1.msra.mxu0 0.0
    %3130 = vmatprep.subr.mxu0 0.0
    %3131 = vmatpush1.msra.mxu0 0.0
    %3132 = vmatprep.subr.mxu0 0.0
    %3133 = vmatpush1.msra.mxu0 0.0
    %3134 = vmatprep.subr.mxu0 0.0
    %3135 = vmatpush1.msra.mxu0 0.0
    %3136 = vmatprep.subr.mxu0 0.0
    %3137 = vmatpush1.msra.mxu0 0.0
    %3138 = vmatprep.subr.mxu0 0.0
    %3139 = vmatpush1.msra.mxu0 0.0
    %3140 = vmatprep.subr.mxu0 0.0
    %3141 = vmatpush1.msra.mxu0 0.0
    %3142 = vmatprep.subr.mxu0 0.0
    %3143 = vmatpush1.msra.mxu0 0.0
    %3144 = vmatprep.subr.mxu0 0.0
    %3145 = vmatpush1.msra.mxu0 0.0
    %3146 = vmatprep.subr.mxu0 0.0
    %3147 = vmatpush1.msra.mxu0 0.0
    %3148 = vmatprep.subr.mxu0 0.0
    %3149 = vmatpush1.msra.mxu0 0.0
    %3150 = vmatprep.subr.mxu0 0.0
    %3151 = vmatpush1.msra.mxu0 0.0
    %3152 = vmatprep.subr.mxu0 0.0
    %3153 = vmatpush1.msra.mxu0 0.0
    %3154 = vmatprep.subr.mxu0 0.0
    %3155 = vmatpush1.msra.mxu0 0.0
    %3156 = vmatprep.subr.mxu0 0.0
    %3157 = vmatpush1.msra.mxu0 0.0
    %3158 = vmatprep.subr.mxu0 0.0
    %3159 = vmatpush1.msra.mxu0 0.0
    %3160 = vmatprep.subr.mxu0 0.0
    %3161 = vmatpush1.msra.mxu0 0.0
    %3162 = vmatprep.mubr.f32.mxu0 0.0
    %3163 = vmatmul.mubr.f32.gmra.mrb[0].mxu0 %v3096
    %v3164 = vpop.f32.mrb[0].mxu0
    %v3165 = vadd.f32 0.0, %v3164
    %v3166 = vpop.f32.mrb[0].mxu0
    %3167 = vdwg.mxu0
    %3168 = vrot.lane.b32.xlu0 %v692, 64
    %v3169 = vpop.permute.xlu0 %3168
    %v3172 = vsel %vm697, %v2102, 0
    %3174 = vmatprep.subr.mxu0 0.0
    %3175 = vmatpush1.msra.mxu0 %v3169
    %3176 = vmatprep.subr.mxu0 0.0
    %3177 = vmatpush1.msra.mxu0 0.0
    %3178 = vmatprep.subr.mxu0 0.0
    %3179 = vmatpush1.msra.mxu0 0.0
    %3180 = vmatprep.subr.mxu0 0.0
    %3181 = vmatpush1.msra.mxu0 0.0
    %3182 = vmatprep.subr.mxu0 0.0
    %3183 = vmatpush1.msra.mxu0 0.0
    %3184 = vmatprep.subr.mxu0 0.0
    %3185 = vmatpush1.msra.mxu0 0.0
    %3186 = vmatprep.subr.mxu0 0.0
    %3187 = vmatpush1.msra.mxu0 0.0
    %3188 = vmatprep.subr.mxu0 0.0
    %3189 = vmatpush1.msra.mxu0 0.0
    %3190 = vmatprep.subr.mxu0 0.0
    %3191 = vmatpush1.msra.mxu0 0.0
    %3192 = vmatprep.subr.mxu0 0.0
    %3193 = vmatpush1.msra.mxu0 0.0
    %3194 = vmatprep.subr.mxu0 0.0
    %3195 = vmatpush1.msra.mxu0 0.0
    %3196 = vmatprep.subr.mxu0 0.0
    %3197 = vmatpush1.msra.mxu0 0.0
    %3198 = vmatprep.subr.mxu0 0.0
    %3199 = vmatpush1.msra.mxu0 0.0
    %3200 = vmatprep.subr.mxu0 0.0
    %3201 = vmatpush1.msra.mxu0 0.0
    %3202 = vmatprep.subr.mxu0 0.0
    %3203 = vmatpush1.msra.mxu0 0.0
    %3204 = vmatprep.subr.mxu0 0.0
    %3205 = vmatpush1.msra.mxu0 0.0
    %3206 = vmatprep.subr.mxu0 0.0
    %3207 = vmatpush1.msra.mxu0 0.0
    %3208 = vmatprep.subr.mxu0 0.0
    %3209 = vmatpush1.msra.mxu0 0.0
    %3210 = vmatprep.subr.mxu0 0.0
    %3211 = vmatpush1.msra.mxu0 0.0
    %3212 = vmatprep.subr.mxu0 0.0
    %3213 = vmatpush1.msra.mxu0 0.0
    %3214 = vmatprep.subr.mxu0 0.0
    %3215 = vmatpush1.msra.mxu0 0.0
    %3216 = vmatprep.subr.mxu0 0.0
    %3217 = vmatpush1.msra.mxu0 0.0
    %3218 = vmatprep.subr.mxu0 0.0
    %3219 = vmatpush1.msra.mxu0 0.0
    %3220 = vmatprep.subr.mxu0 0.0
    %3221 = vmatpush1.msra.mxu0 0.0
    %3222 = vmatprep.subr.mxu0 0.0
    %3223 = vmatpush1.msra.mxu0 0.0
    %3224 = vmatprep.subr.mxu0 0.0
    %3225 = vmatpush1.msra.mxu0 0.0
    %3226 = vmatprep.subr.mxu0 0.0
    %3227 = vmatpush1.msra.mxu0 0.0
    %3228 = vmatprep.subr.mxu0 0.0
    %3229 = vmatpush1.msra.mxu0 0.0
    %3230 = vmatprep.subr.mxu0 0.0
    %3231 = vmatpush1.msra.mxu0 0.0
    %3232 = vmatprep.subr.mxu0 0.0
    %3233 = vmatpush1.msra.mxu0 0.0
    %3234 = vmatprep.subr.mxu0 0.0
    %3235 = vmatpush1.msra.mxu0 0.0
    %3236 = vmatprep.subr.mxu0 0.0
    %3237 = vmatpush1.msra.mxu0 0.0
    %3238 = vmatprep.mubr.f32.mxu0 0.0
    %3239 = vmatmul.mubr.f32.gmra.mrb[0].mxu0 %v3172
    %v3240 = vpop.f32.mrb[0].mxu0
    %v3241 = vadd.f32 0.0, %v3240
    %v3242 = vpop.f32.mrb[0].mxu0
    %3243 = vdwg.mxu0
    %3244 = vrot.lane.b32.xlu0 %v694, 64
    %v3245 = vpop.permute.xlu0 %3244
    %v3248 = vsel %vm697, %v2103, 0
    %3250 = vmatprep.subr.mxu0 0.0
    %3251 = vmatpush1.msra.mxu0 %v3245
    %3252 = vmatprep.subr.mxu0 0.0
    %3253 = vmatpush1.msra.mxu0 0.0
    %3254 = vmatprep.subr.mxu0 0.0
    %3255 = vmatpush1.msra.mxu0 0.0
    %3256 = vmatprep.subr.mxu0 0.0
    %3257 = vmatpush1.msra.mxu0 0.0
    %3258 = vmatprep.subr.mxu0 0.0
    %3259 = vmatpush1.msra.mxu0 0.0
    %3260 = vmatprep.subr.mxu0 0.0
    %3261 = vmatpush1.msra.mxu0 0.0
    %3262 = vmatprep.subr.mxu0 0.0
    %3263 = vmatpush1.msra.mxu0 0.0
    %3264 = vmatprep.subr.mxu0 0.0
    %3265 = vmatpush1.msra.mxu0 0.0
    %3266 = vmatprep.subr.mxu0 0.0
    %3267 = vmatpush1.msra.mxu0 0.0
    %3268 = vmatprep.subr.mxu0 0.0
    %3269 = vmatpush1.msra.mxu0 0.0
    %3270 = vmatprep.subr.mxu0 0.0
    %3271 = vmatpush1.msra.mxu0 0.0
    %3272 = vmatprep.subr.mxu0 0.0
    %3273 = vmatpush1.msra.mxu0 0.0
    %3274 = vmatprep.subr.mxu0 0.0
    %3275 = vmatpush1.msra.mxu0 0.0
    %3276 = vmatprep.subr.mxu0 0.0
    %3277 = vmatpush1.msra.mxu0 0.0
    %3278 = vmatprep.subr.mxu0 0.0
    %3279 = vmatpush1.msra.mxu0 0.0
    %3280 = vmatprep.subr.mxu0 0.0
    %3281 = vmatpush1.msra.mxu0 0.0
    %3282 = vmatprep.subr.mxu0 0.0
    %3283 = vmatpush1.msra.mxu0 0.0
    %3284 = vmatprep.subr.mxu0 0.0
    %3285 = vmatpush1.msra.mxu0 0.0
    %3286 = vmatprep.subr.mxu0 0.0
    %3287 = vmatpush1.msra.mxu0 0.0
    %3288 = vmatprep.subr.mxu0 0.0
    %3289 = vmatpush1.msra.mxu0 0.0
    %3290 = vmatprep.subr.mxu0 0.0
    %3291 = vmatpush1.msra.mxu0 0.0
    %3292 = vmatprep.subr.mxu0 0.0
    %3293 = vmatpush1.msra.mxu0 0.0
    %3294 = vmatprep.subr.mxu0 0.0
    %3295 = vmatpush1.msra.mxu0 0.0
    %3296 = vmatprep.subr.mxu0 0.0
    %3297 = vmatpush1.msra.mxu0 0.0
    %3298 = vmatprep.subr.mxu0 0.0
    %3299 = vmatpush1.msra.mxu0 0.0
    %3300 = vmatprep.subr.mxu0 0.0
    %3301 = vmatpush1.msra.mxu0 0.0
    %3302 = vmatprep.subr.mxu0 0.0
    %3303 = vmatpush1.msra.mxu0 0.0
    %3304 = vmatprep.subr.mxu0 0.0
    %3305 = vmatpush1.msra.mxu0 0.0
    %3306 = vmatprep.subr.mxu0 0.0
    %3307 = vmatpush1.msra.mxu0 0.0
    %3308 = vmatprep.subr.mxu0 0.0
    %3309 = vmatpush1.msra.mxu0 0.0
    %3310 = vmatprep.subr.mxu0 0.0
    %3311 = vmatpush1.msra.mxu0 0.0
    %3312 = vmatprep.subr.mxu0 0.0
    %3313 = vmatpush1.msra.mxu0 0.0
    %3314 = vmatprep.mubr.f32.mxu0 0.0
    %3315 = vmatmul.mubr.f32.gmra.mrb[0].mxu0 %v3248
    %v3316 = vpop.f32.mrb[0].mxu0
    %v3317 = vadd.f32 0.0, %v3316
    %v3318 = vpop.f32.mrb[0].mxu0
    %3319 = vdwg.mxu0
    %3324 = vrot.lane.b32.xlu0 %v2481, 8
    %v3325 = vpop.permute.xlu0 %3324
    %3326 = vrot.lane.b32.xlu0 %v2557, 8
    %v3327 = vpop.permute.xlu0 %3326
    %3328 = vrot.lane.b32.xlu0 %v2633, 8
    %v3329 = vpop.permute.xlu0 %3328
    %3330 = vrot.lane.b32.xlu0 %v2709, 8
    %v3331 = vpop.permute.xlu0 %3330
    %3340 = vrot.lane.b32.xlu0 %v2785, 16
    %v3341 = vpop.permute.xlu0 %3340
    %3342 = vrot.lane.b32.xlu0 %v2861, 16
    %v3343 = vpop.permute.xlu0 %3342
    %3344 = vrot.lane.b32.xlu0 %v2937, 16
    %v3345 = vpop.permute.xlu0 %3344
    %3346 = vrot.lane.b32.xlu0 %v3013, 16
    %v3347 = vpop.permute.xlu0 %3346
    %3356 = vrot.lane.b32.xlu0 %v3089, 24
    %v3357 = vpop.permute.xlu0 %3356
    %3358 = vrot.lane.b32.xlu0 %v3165, 24
    %v3359 = vpop.permute.xlu0 %3358
    %3360 = vrot.lane.b32.xlu0 %v3241, 24
    %v3361 = vpop.permute.xlu0 %3360
    %3362 = vrot.lane.b32.xlu0 %v3317, 24
    %v3363 = vpop.permute.xlu0 %3362
    %v3368 = vsel %vm697, %v2177, %v3325
    %v3369 = vsel %vm697, %v2253, %v3327
    %v3370 = vsel %vm697, %v2329, %v3329
    %v3371 = vsel %vm697, %v2405, %v3331
    %vm3372 = vcmask 130048
    %v3373 = vsel %vm3372, %v3368, %v3341
    %v3374 = vsel %vm3372, %v3369, %v3343
    %v3375 = vsel %vm3372, %v3370, %v3345
    %v3376 = vsel %vm3372, %v3371, %v3347
    %vm3377 = vcmask 195584
    %v3378 = vsel %vm3377, %v3373, %v3357
    %v3379 = vsel %vm3377, %v3374, %v3359
    %v3380 = vsel %vm3377, %v3375, %v3361
    %v3381 = vsel %vm3377, %v3376, %v3363
    %v3382 = vld [vmem:[%s14 + $0x4] sm:$0x1]
    %v3383 = vlaneseq
    %v3384 = vshrl.u32 %v3383, 7
    %v3385 = vsub.s32 0, %v3384
    %v3386 = vrot.slane %v3382, %v3385
    %v3388 = vsel %vm259, %v3378, 0
    %v3391 = vsel %vm259, %v3379, 0
    %v3394 = vsel %vm259, %v3380, 0
    %v3397 = vsel %vm259, %v3381, 0
    %3399 = vmatprep.subr.mxu0 0.0
    %3400 = vmatpush1.msra.mxu0 %v561
    %3401 = vmatprep.subr.mxu0 0.0
    %3402 = vmatpush1.msra.mxu0 %v562
    %3403 = vmatprep.subr.mxu0 0.0
    %3404 = vmatpush1.msra.mxu0 %v563
    %3405 = vmatprep.subr.mxu0 0.0
    %3406 = vmatpush1.msra.mxu0 %v564
    %3407 = vmatprep.subr.mxu0 0.0
    %3408 = vmatpush1.msra.mxu0 0.0
    %3409 = vmatprep.subr.mxu0 0.0
    %3410 = vmatpush1.msra.mxu0 0.0
    %3411 = vmatprep.subr.mxu0 0.0
    %3412 = vmatpush1.msra.mxu0 0.0
    %3413 = vmatprep.subr.mxu0 0.0
    %3414 = vmatpush1.msra.mxu0 0.0
    %3415 = vmatprep.subr.mxu0 0.0
    %3416 = vmatpush1.msra.mxu0 0.0
    %3417 = vmatprep.subr.mxu0 0.0
    %3418 = vmatpush1.msra.mxu0 0.0
    %3419 = vmatprep.subr.mxu0 0.0
    %3420 = vmatpush1.msra.mxu0 0.0
    %3421 = vmatprep.subr.mxu0 0.0
    %3422 = vmatpush1.msra.mxu0 0.0
    %3423 = vmatprep.subr.mxu0 0.0
    %3424 = vmatpush1.msra.mxu0 0.0
    %3425 = vmatprep.subr.mxu0 0.0
    %3426 = vmatpush1.msra.mxu0 0.0
    %3427 = vmatprep.subr.mxu0 0.0
    %3428 = vmatpush1.msra.mxu0 0.0
    %3429 = vmatprep.subr.mxu0 0.0
    %3430 = vmatpush1.msra.mxu0 0.0
    %3431 = vmatprep.subr.mxu0 0.0
    %3432 = vmatpush1.msra.mxu0 0.0
    %3433 = vmatprep.subr.mxu0 0.0
    %3434 = vmatpush1.msra.mxu0 0.0
    %3435 = vmatprep.subr.mxu0 0.0
    %3436 = vmatpush1.msra.mxu0 0.0
    %3437 = vmatprep.subr.mxu0 0.0
    %3438 = vmatpush1.msra.mxu0 0.0
    %3439 = vmatprep.subr.mxu0 0.0
    %3440 = vmatpush1.msra.mxu0 0.0
    %3441 = vmatprep.subr.mxu0 0.0
    %3442 = vmatpush1.msra.mxu0 0.0
    %3443 = vmatprep.subr.mxu0 0.0
    %3444 = vmatpush1.msra.mxu0 0.0
    %3445 = vmatprep.subr.mxu0 0.0
    %3446 = vmatpush1.msra.mxu0 0.0
    %3447 = vmatprep.subr.mxu0 0.0
    %3448 = vmatpush1.msra.mxu0 0.0
    %3449 = vmatprep.subr.mxu0 0.0
    %3450 = vmatpush1.msra.mxu0 0.0
    %3451 = vmatprep.subr.mxu0 0.0
    %3452 = vmatpush1.msra.mxu0 0.0
    %3453 = vmatprep.subr.mxu0 0.0
    %3454 = vmatpush1.msra.mxu0 0.0
    %3455 = vmatprep.subr.mxu0 0.0
    %3456 = vmatpush1.msra.mxu0 0.0
    %3457 = vmatprep.subr.mxu0 0.0
    %3458 = vmatpush1.msra.mxu0 0.0
    %3459 = vmatprep.subr.mxu0 0.0
    %3460 = vmatpush1.msra.mxu0 0.0
    %3461 = vmatprep.subr.mxu0 0.0
    %3462 = vmatpush1.msra.mxu0 0.0
    %3463 = vmatprep.mubr.f32.mxu0 0.0
    %3464 = vmatmul.mubr.f32.gmra.mrb[0].mxu0 %v3388
    %v3465 = vpop.f32.mrb[0].mxu0
    %v3466 = vadd.f32 %v3386, %v3465
    %v3467 = vpop.f32.mrb[0].mxu0
    %3468 = vmatprep.mubr.f32.mxu0 0.0
    %3469 = vmatmul.mubr.f32.gmra.mrb[0].mxu0 %v3391
    %v3470 = vpop.f32.mrb[0].mxu0
    %v3471 = vadd.f32 %v3386, %v3470
    %v3472 = vpop.f32.mrb[0].mxu0
    %3473 = vmatprep.mubr.f32.mxu0 0.0
    %3474 = vmatmul.mubr.f32.gmra.mrb[0].mxu0 %v3394
    %v3475 = vpop.f32.mrb[0].mxu0
    %v3476 = vadd.f32 %v3386, %v3475
    %v3477 = vpop.f32.mrb[0].mxu0
    %3478 = vmatprep.mubr.f32.mxu0 0.0
    %3479 = vmatmul.mubr.f32.gmra.mrb[0].mxu0 %v3397
    %v3480 = vpop.f32.mrb[0].mxu0
    %v3481 = vadd.f32 %v3386, %v3480
    %v3482 = vpop.f32.mrb[0].mxu0
    %3483 = vdwg.mxu0
    %v3484 = vadd.f32 %v555, %v3466
    %v3485 = vadd.f32 %v556, %v3471
    %v3486 = vadd.f32 %v253, %v3476
    %v3487 = vadd.f32 %v254, %v3481
    %v3488 = vld [vmem:[%s14 + $0x5] sm:$0x1]
    %v3489 = vld [vmem:[%s14 + $0x6] sm:$0x1]
    %v3490 = vsel %vm259, %v3484, 0.0
    %3491 = vadd.xlane.f32.xlu0 %v3490
    %v3492 = vpop.xlane.xlu0 %3491
    %v3493 = vsel %vm259, %v3485, 0.0
    %3494 = vadd.xlane.f32.xlu0 %v3493
    %v3495 = vpop.xlane.xlu0 %3494
    %v3496 = vsel %vm259, %v3486, 0.0
    %3497 = vadd.xlane.f32.xlu0 %v3496
    %v3498 = vpop.xlane.xlu0 %3497
    %v3499 = vsel %vm259, %v3487, 0.0
    %3500 = vadd.xlane.f32.xlu0 %v3499
    %v3501 = vpop.xlane.xlu0 %3500
    %v3502 = vrcp.pop 32.0
    %v3503 = vmul.f32 %v3492, %v3502
    %v3504 = vmul.f32 %v3495, %v3502
    %v3505 = vmul.f32 %v3498, %v3502
    %v3506 = vmul.f32 %v3501, %v3502
    %v3507 = vsub.f32 %v3484, %v3503
    %v3508 = vsub.f32 %v3485, %v3504
    %v3509 = vsub.f32 %v3486, %v3505
    %v3510 = vsub.f32 %v3487, %v3506
    %v3511 = vmul.f32 %v3507, %v3507
    %v3512 = vmul.f32 %v3508, %v3508
    %v3513 = vmul.f32 %v3509, %v3509
    %v3514 = vmul.f32 %v3510, %v3510
    %v3515 = vsel %vm259, %v3511, 0.0
    %3516 = vadd.xlane.f32.xlu0 %v3515
    %v3517 = vpop.xlane.xlu0 %3516
    %v3518 = vsel %vm259, %v3512, 0.0
    %3519 = vadd.xlane.f32.xlu0 %v3518
    %v3520 = vpop.xlane.xlu0 %3519
    %v3521 = vsel %vm259, %v3513, 0.0
    %3522 = vadd.xlane.f32.xlu0 %v3521
    %v3523 = vpop.xlane.xlu0 %3522
    %v3524 = vsel %vm259, %v3514, 0.0
    %3525 = vadd.xlane.f32.xlu0 %v3524
    %v3526 = vpop.xlane.xlu0 %3525
    %v3527 = vmul.f32 %v3517, %v3502
    %v3528 = vmul.f32 %v3520, %v3502
    %v3529 = vmul.f32 %v3523, %v3502
    %v3530 = vmul.f32 %v3526, %v3502
    %v3531 = vadd.f32 %v3527, 1e-05
    %v3532 = vadd.f32 %v3528, 1e-05
    %v3533 = vadd.f32 %v3529, 1e-05
    %v3534 = vadd.f32 %v3530, 1e-05
    %v3535 = vrsqrt.pop %v3531
    %v3536 = vrsqrt.pop %v3532
    %v3537 = vrsqrt.pop %v3533
    %v3538 = vrsqrt.pop %v3534
    %v3539 = vmul.f32 %v3507, %v3535
    %v3540 = vmul.f32 %v3508, %v3536
    %v3541 = vmul.f32 %v3509, %v3537
    %v3542 = vmul.f32 %v3510, %v3538
    %v3543 = vlaneseq
    %v3544 = vshrl.u32 %v3543, 7
    %v3545 = vsub.s32 0, %v3544
    %v3546 = vrot.slane %v3488, %v3545
    %v3547 = vmul.f32 %v3539, %v3546
    %v3548 = vmul.f32 %v3540, %v3546
    %v3549 = vmul.f32 %v3541, %v3546
    %v3550 = vmul.f32 %v3542, %v3546
    %v3551 = vlaneseq
    %v3552 = vshrl.u32 %v3551, 7
    %v3553 = vsub.s32 0, %v3552
    %v3554 = vrot.slane %v3489, %v3553
    %v3555 = vadd.f32 %v3547, %v3554
    %v3556 = vadd.f32 %v3548, %v3554
    %v3557 = vadd.f32 %v3549, %v3554
    %v3558 = vadd.f32 %v3550, %v3554
    %v3559 = vld [vmem:[%s8] sm:$0xff]
    %v3560 = vld [vmem:[%s8 + $0x8] sm:$0xff]
    %v3561 = vld [vmem:[%s8 + $0x10] sm:$0xff]
    %v3562 = vld [vmem:[%s8 + $0x18] sm:$0xff]
    %v3563 = vld [vmem:[%s14 + $0x7] sm:$0x1]
    %v3564 = vlaneseq
    %v3565 = vshrl.u32 %v3564, 7
    %v3566 = vsub.s32 0, %v3565
    %v3567 = vrot.slane %v3563, %v3566
    %v3569 = vsel %vm259, %v3555, 0
    %v3572 = vsel %vm259, %v3556, 0
    %v3575 = vsel %vm259, %v3557, 0
    %v3578 = vsel %vm259, %v3558, 0
    %3580 = vmatprep.subr.mxu0 0.0
    %3581 = vmatpush1.msra.mxu0 %v3559
    %3582 = vmatprep.subr.mxu0 0.0
    %3583 = vmatpush1.msra.mxu0 %v3560
    %3584 = vmatprep.subr.mxu0 0.0
    %3585 = vmatpush1.msra.mxu0 %v3561
    %3586 = vmatprep.subr.mxu0 0.0
    %3587 = vmatpush1.msra.mxu0 %v3562
    %3588 = vmatprep.subr.mxu0 0.0
    %3589 = vmatpush1.msra.mxu0 0.0
    %3590 = vmatprep.subr.mxu0 0.0
    %3591 = vmatpush1.msra.mxu0 0.0
    %3592 = vmatprep.subr.mxu0 0.0
    %3593 = vmatpush1.msra.mxu0 0.0
    %3594 = vmatprep.subr.mxu0 0.0
    %3595 = vmatpush1.msra.mxu0 0.0
    %3596 = vmatprep.subr.mxu0 0.0
    %3597 = vmatpush1.msra.mxu0 0.0
    %3598 = vmatprep.subr.mxu0 0.0
    %3599 = vmatpush1.msra.mxu0 0.0
    %3600 = vmatprep.subr.mxu0 0.0
    %3601 = vmatpush1.msra.mxu0 0.0
    %3602 = vmatprep.subr.mxu0 0.0
    %3603 = vmatpush1.msra.mxu0 0.0
    %3604 = vmatprep.subr.mxu0 0.0
    %3605 = vmatpush1.msra.mxu0 0.0
    %3606 = vmatprep.subr.mxu0 0.0
    %3607 = vmatpush1.msra.mxu0 0.0
    %3608 = vmatprep.subr.mxu0 0.0
    %3609 = vmatpush1.msra.mxu0 0.0
    %3610 = vmatprep.subr.mxu0 0.0
    %3611 = vmatpush1.msra.mxu0 0.0
    %3612 = vmatprep.subr.mxu0 0.0
    %3613 = vmatpush1.msra.mxu0 0.0
    %3614 = vmatprep.subr.mxu0 0.0
    %3615 = vmatpush1.msra.mxu0 0.0
    %3616 = vmatprep.subr.mxu0 0.0
    %3617 = vmatpush1.msra.mxu0 0.0
    %3618 = vmatprep.subr.mxu0 0.0
    %3619 = vmatpush1.msra.mxu0 0.0
    %3620 = vmatprep.subr.mxu0 0.0
    %3621 = vmatpush1.msra.mxu0 0.0
    %3622 = vmatprep.subr.mxu0 0.0
    %3623 = vmatpush1.msra.mxu0 0.0
    %3624 = vmatprep.subr.mxu0 0.0
    %3625 = vmatpush1.msra.mxu0 0.0
    %3626 = vmatprep.subr.mxu0 0.0
    %3627 = vmatpush1.msra.mxu0 0.0
    %3628 = vmatprep.subr.mxu0 0.0
    %3629 = vmatpush1.msra.mxu0 0.0
    %3630 = vmatprep.subr.mxu0 0.0
    %3631 = vmatpush1.msra.mxu0 0.0
    %3632 = vmatprep.subr.mxu0 0.0
    %3633 = vmatpush1.msra.mxu0 0.0
    %3634 = vmatprep.subr.mxu0 0.0
    %3635 = vmatpush1.msra.mxu0 0.0
    %3636 = vmatprep.subr.mxu0 0.0
    %3637 = vmatpush1.msra.mxu0 0.0
    %3638 = vmatprep.subr.mxu0 0.0
    %3639 = vmatpush1.msra.mxu0 0.0
    %3640 = vmatprep.subr.mxu0 0.0
    %3641 = vmatpush1.msra.mxu0 0.0
    %3642 = vmatprep.subr.mxu0 0.0
    %3643 = vmatpush1.msra.mxu0 0.0
    %3644 = vmatprep.mubr.f32.mxu0 0.0
    %3645 = vmatmul.mubr.f32.gmra.mrb[0].mxu0 %v3569
    %v3646 = vpop.f32.mrb[0].mxu0
    %v3647 = vadd.f32 %v3567, %v3646
    %v3648 = vpop.f32.mrb[0].mxu0
    %3649 = vmatprep.mubr.f32.mxu0 0.0
    %3650 = vmatmul.mubr.f32.gmra.mrb[0].mxu0 %v3572
    %v3651 = vpop.f32.mrb[0].mxu0
    %v3652 = vadd.f32 %v3567, %v3651
    %v3653 = vpop.f32.mrb[0].mxu0
    %3654 = vmatprep.mubr.f32.mxu0 0.0
    %3655 = vmatmul.mubr.f32.gmra.mrb[0].mxu0 %v3575
    %v3656 = vpop.f32.mrb[0].mxu0
    %v3657 = vadd.f32 %v3567, %v3656
    %v3658 = vpop.f32.mrb[0].mxu0
    %3659 = vmatprep.mubr.f32.mxu0 0.0
    %3660 = vmatmul.mubr.f32.gmra.mrb[0].mxu0 %v3578
    %v3661 = vpop.f32.mrb[0].mxu0
    %v3662 = vadd.f32 %v3567, %v3661
    %v3663 = vpop.f32.mrb[0].mxu0
    %3664 = vdwg.mxu0
    %v3665 = vmax.f32 %v3647, 0.0
    %v3666 = vmax.f32 %v3652, 0.0
    %v3667 = vmax.f32 %v3657, 0.0
    %v3668 = vmax.f32 %v3662, 0.0
    %v3669 = vld [vmem:[%s9] sm:$0xff]
    %v3670 = vld [vmem:[%s9 + $0x8] sm:$0xff]
    %v3671 = vld [vmem:[%s9 + $0x10] sm:$0xff]
    %v3672 = vld [vmem:[%s9 + $0x18] sm:$0xff]
    %v3673 = vld [vmem:[%s9 + $0x20] sm:$0xff]
    %v3674 = vld [vmem:[%s9 + $0x28] sm:$0xff]
    %v3675 = vld [vmem:[%s9 + $0x30] sm:$0xff]
    %v3676 = vld [vmem:[%s9 + $0x38] sm:$0xff]
    %v3677 = vld [vmem:[%s9 + $0x40] sm:$0xff]
    %v3678 = vld [vmem:[%s9 + $0x48] sm:$0xff]
    %v3679 = vld [vmem:[%s9 + $0x50] sm:$0xff]
    %v3680 = vld [vmem:[%s9 + $0x58] sm:$0xff]
    %v3681 = vld [vmem:[%s9 + $0x60] sm:$0xff]
    %v3682 = vld [vmem:[%s9 + $0x68] sm:$0xff]
    %v3683 = vld [vmem:[%s9 + $0x70] sm:$0xff]
    %v3684 = vld [vmem:[%s9 + $0x78] sm:$0xff]
    %v3685 = vld [vmem:[%s14 + $0x8] sm:$0x1]
    %v3686 = vlaneseq
    %v3687 = vshrl.u32 %v3686, 7
    %v3688 = vsub.s32 0, %v3687
    %v3689 = vrot.slane %v3685, %v3688
    %3690 = vmatprep.subr.mxu0 0.0
    %3691 = vmatpush1.msra.mxu0 %v3669
    %3692 = vmatprep.subr.mxu0 0.0
    %3693 = vmatpush1.msra.mxu0 %v3670
    %3694 = vmatprep.subr.mxu0 0.0
    %3695 = vmatpush1.msra.mxu0 %v3671
    %3696 = vmatprep.subr.mxu0 0.0
    %3697 = vmatpush1.msra.mxu0 %v3672
    %3698 = vmatprep.subr.mxu0 0.0
    %3699 = vmatpush1.msra.mxu0 %v3673
    %3700 = vmatprep.subr.mxu0 0.0
    %3701 = vmatpush1.msra.mxu0 %v3674
    %3702 = vmatprep.subr.mxu0 0.0
    %3703 = vmatpush1.msra.mxu0 %v3675
    %3704 = vmatprep.subr.mxu0 0.0
    %3705 = vmatpush1.msra.mxu0 %v3676
    %3706 = vmatprep.subr.mxu0 0.0
    %3707 = vmatpush1.msra.mxu0 %v3677
    %3708 = vmatprep.subr.mxu0 0.0
    %3709 = vmatpush1.msra.mxu0 %v3678
    %3710 = vmatprep.subr.mxu0 0.0
    %3711 = vmatpush1.msra.mxu0 %v3679
    %3712 = vmatprep.subr.mxu0 0.0
    %3713 = vmatpush1.msra.mxu0 %v3680
    %3714 = vmatprep.subr.mxu0 0.0
    %3715 = vmatpush1.msra.mxu0 %v3681
    %3716 = vmatprep.subr.mxu0 0.0
    %3717 = vmatpush1.msra.mxu0 %v3682
    %3718 = vmatprep.subr.mxu0 0.0
    %3719 = vmatpush1.msra.mxu0 %v3683
    %3720 = vmatprep.subr.mxu0 0.0
    %3721 = vmatpush1.msra.mxu0 %v3684
    %3722 = vmatprep.subr.mxu0 0.0
    %3723 = vmatpush1.msra.mxu0 0.0
    %3724 = vmatprep.subr.mxu0 0.0
    %3725 = vmatpush1.msra.mxu0 0.0
    %3726 = vmatprep.subr.mxu0 0.0
    %3727 = vmatpush1.msra.mxu0 0.0
    %3728 = vmatprep.subr.mxu0 0.0
    %3729 = vmatpush1.msra.mxu0 0.0
    %3730 = vmatprep.subr.mxu0 0.0
    %3731 = vmatpush1.msra.mxu0 0.0
    %3732 = vmatprep.subr.mxu0 0.0
    %3733 = vmatpush1.msra.mxu0 0.0
    %3734 = vmatprep.subr.mxu0 0.0
    %3735 = vmatpush1.msra.mxu0 0.0
    %3736 = vmatprep.subr.mxu0 0.0
    %3737 = vmatpush1.msra.mxu0 0.0
    %3738 = vmatprep.subr.mxu0 0.0
    %3739 = vmatpush1.msra.mxu0 0.0
    %3740 = vmatprep.subr.mxu0 0.0
    %3741 = vmatpush1.msra.mxu0 0.0
    %3742 = vmatprep.subr.mxu0 0.0
    %3743 = vmatpush1.msra.mxu0 0.0
    %3744 = vmatprep.subr.mxu0 0.0
    %3745 = vmatpush1.msra.mxu0 0.0
    %3746 = vmatprep.subr.mxu0 0.0
    %3747 = vmatpush1.msra.mxu0 0.0
    %3748 = vmatprep.subr.mxu0 0.0
    %3749 = vmatpush1.msra.mxu0 0.0
    %3750 = vmatprep.subr.mxu0 0.0
    %3751 = vmatpush1.msra.mxu0 0.0
    %3752 = vmatprep.subr.mxu0 0.0
    %3753 = vmatpush1.msra.mxu0 0.0
    %3754 = vmatprep.mubr.f32.mxu0 0.0
    %3755 = vmatmul.mubr.f32.gmra.mrb[0].mxu0 %v3665
    %v3756 = vpop.f32.mrb[0].mxu0
    %v3757 = vadd.f32 %v3689, %v3756
    %v3758 = vpop.f32.mrb[0].mxu0
    %3759 = vmatprep.mubr.f32.mxu0 0.0
    %3760 = vmatmul.mubr.f32.gmra.mrb[0].mxu0 %v3666
    %v3761 = vpop.f32.mrb[0].mxu0
    %v3762 = vadd.f32 %v3689, %v3761
    %v3763 = vpop.f32.mrb[0].mxu0
    %3764 = vmatprep.mubr.f32.mxu0 0.0
    %3765 = vmatmul.mubr.f32.gmra.mrb[0].mxu0 %v3667
    %v3766 = vpop.f32.mrb[0].mxu0
    %v3767 = vadd.f32 %v3689, %v3766
    %v3768 = vpop.f32.mrb[0].mxu0
    %3769 = vmatprep.mubr.f32.mxu0 0.0
    %3770 = vmatmul.mubr.f32.gmra.mrb[0].mxu0 %v3668
    %v3771 = vpop.f32.mrb[0].mxu0
    %v3772 = vadd.f32 %v3689, %v3771
    %v3773 = vpop.f32.mrb[0].mxu0
    %3774 = vdwg.mxu0
    %v3775 = vadd.f32 %v3555, %v3757
    %v3776 = vadd.f32 %v3556, %v3762
    %v3777 = vadd.f32 %v3557, %v3767
    %v3778 = vadd.f32 %v3558, %v3772
    %v3779 = vld [vmem:[%s14 + $0x9] sm:$0x1]
    %v3780 = vld [vmem:[%s14 + $0xa] sm:$0x1]
    %v3781 = vsel %vm259, %v3775, 0.0
    %3782 = vadd.xlane.f32.xlu0 %v3781
    %v3783 = vpop.xlane.xlu0 %3782
    %v3784 = vsel %vm259, %v3776, 0.0
    %3785 = vadd.xlane.f32.xlu0 %v3784
    %v3786 = vpop.xlane.xlu0 %3785
    %v3787 = vsel %vm259, %v3777, 0.0
    %3788 = vadd.xlane.f32.xlu0 %v3787
    %v3789 = vpop.xlane.xlu0 %3788
    %v3790 = vsel %vm259, %v3778, 0.0
    %3791 = vadd.xlane.f32.xlu0 %v3790
    %v3792 = vpop.xlane.xlu0 %3791
    %v3793 = vmul.f32 %v3783, %v3502
    %v3794 = vmul.f32 %v3786, %v3502
    %v3795 = vmul.f32 %v3789, %v3502
    %v3796 = vmul.f32 %v3792, %v3502
    %v3797 = vsub.f32 %v3775, %v3793
    %v3798 = vsub.f32 %v3776, %v3794
    %v3799 = vsub.f32 %v3777, %v3795
    %v3800 = vsub.f32 %v3778, %v3796
    %v3801 = vmul.f32 %v3797, %v3797
    %v3802 = vmul.f32 %v3798, %v3798
    %v3803 = vmul.f32 %v3799, %v3799
    %v3804 = vmul.f32 %v3800, %v3800
    %v3805 = vsel %vm259, %v3801, 0.0
    %3806 = vadd.xlane.f32.xlu0 %v3805
    %v3807 = vpop.xlane.xlu0 %3806
    %v3808 = vsel %vm259, %v3802, 0.0
    %3809 = vadd.xlane.f32.xlu0 %v3808
    %v3810 = vpop.xlane.xlu0 %3809
    %v3811 = vsel %vm259, %v3803, 0.0
    %3812 = vadd.xlane.f32.xlu0 %v3811
    %v3813 = vpop.xlane.xlu0 %3812
    %v3814 = vsel %vm259, %v3804, 0.0
    %3815 = vadd.xlane.f32.xlu0 %v3814
    %v3816 = vpop.xlane.xlu0 %3815
    %v3817 = vmul.f32 %v3807, %v3502
    %v3818 = vmul.f32 %v3810, %v3502
    %v3819 = vmul.f32 %v3813, %v3502
    %v3820 = vmul.f32 %v3816, %v3502
    %v3821 = vadd.f32 %v3817, 1e-05
    %v3822 = vadd.f32 %v3818, 1e-05
    %v3823 = vadd.f32 %v3819, 1e-05
    %v3824 = vadd.f32 %v3820, 1e-05
    %v3825 = vrsqrt.pop %v3821
    %v3826 = vrsqrt.pop %v3822
    %v3827 = vrsqrt.pop %v3823
    %v3828 = vrsqrt.pop %v3824
    %v3829 = vmul.f32 %v3797, %v3825
    %v3830 = vmul.f32 %v3798, %v3826
    %v3831 = vmul.f32 %v3799, %v3827
    %v3832 = vmul.f32 %v3800, %v3828
    %v3833 = vlaneseq
    %v3834 = vshrl.u32 %v3833, 7
    %v3835 = vsub.s32 0, %v3834
    %v3836 = vrot.slane %v3779, %v3835
    %v3837 = vmul.f32 %v3829, %v3836
    %v3838 = vmul.f32 %v3830, %v3836
    %v3839 = vmul.f32 %v3831, %v3836
    %v3840 = vmul.f32 %v3832, %v3836
    %v3841 = vlaneseq
    %v3842 = vshrl.u32 %v3841, 7
    %v3843 = vsub.s32 0, %v3842
    %v3844 = vrot.slane %v3780, %v3843
    %v3845 = vadd.f32 %v3837, %v3844
    %v3846 = vadd.f32 %v3838, %v3844
    %v3847 = vadd.f32 %v3839, %v3844
    %v3848 = vadd.f32 %v3840, %v3844
    %s3849 = scalar_lea.vmem %s6, 32
    %v3850 = vld [vmem:[%s3849] sm:$0xff]
    %v3851 = vld [vmem:[%s3849 + $0x8] sm:$0xff]
    %v3852 = vld [vmem:[%s3849 + $0x10] sm:$0xff]
    %v3853 = vld [vmem:[%s3849 + $0x18] sm:$0xff]
    %s3854 = scalar_lea.vmem %s7, 32
    %v3855 = vld [vmem:[%s3854] sm:$0xff]
    %v3856 = vld [vmem:[%s3854 + $0x8] sm:$0xff]
    %v3857 = vld [vmem:[%s3854 + $0x10] sm:$0xff]
    %v3858 = vld [vmem:[%s3854 + $0x18] sm:$0xff]
    %v3859 = vld [vmem:[%s14 + $0xb] sm:$0x1]
    %v3860 = vlaneseq
    %v3861 = vshrl.u32 %v3860, 7
    %v3862 = vsub.s32 0, %v3861
    %v3863 = vrot.slane %v3859, %v3862
    %v3865 = vsel %vm259, %v3845, 0
    %v3868 = vsel %vm259, %v3846, 0
    %v3871 = vsel %vm259, %v3847, 0
    %v3874 = vsel %vm259, %v3848, 0
    %3876 = vmatprep.subr.mxu0 0.0
    %3877 = vmatpush1.msra.mxu0 %v3850
    %3878 = vmatprep.subr.mxu0 0.0
    %3879 = vmatpush1.msra.mxu0 %v3851
    %3880 = vmatprep.subr.mxu0 0.0
    %3881 = vmatpush1.msra.mxu0 %v3852
    %3882 = vmatprep.subr.mxu0 0.0
    %3883 = vmatpush1.msra.mxu0 %v3853
    %3884 = vmatprep.subr.mxu0 0.0
    %3885 = vmatpush1.msra.mxu0 0.0
    %3886 = vmatprep.subr.mxu0 0.0
    %3887 = vmatpush1.msra.mxu0 0.0
    %3888 = vmatprep.subr.mxu0 0.0
    %3889 = vmatpush1.msra.mxu0 0.0
    %3890 = vmatprep.subr.mxu0 0.0
    %3891 = vmatpush1.msra.mxu0 0.0
    %3892 = vmatprep.subr.mxu0 0.0
    %3893 = vmatpush1.msra.mxu0 0.0
    %3894 = vmatprep.subr.mxu0 0.0
    %3895 = vmatpush1.msra.mxu0 0.0
    %3896 = vmatprep.subr.mxu0 0.0
    %3897 = vmatpush1.msra.mxu0 0.0
    %3898 = vmatprep.subr.mxu0 0.0
    %3899 = vmatpush1.msra.mxu0 0.0
    %3900 = vmatprep.subr.mxu0 0.0
    %3901 = vmatpush1.msra.mxu0 0.0
    %3902 = vmatprep.subr.mxu0 0.0
    %3903 = vmatpush1.msra.mxu0 0.0
    %3904 = vmatprep.subr.mxu0 0.0
    %3905 = vmatpush1.msra.mxu0 0.0
    %3906 = vmatprep.subr.mxu0 0.0
    %3907 = vmatpush1.msra.mxu0 0.0
    %3908 = vmatprep.subr.mxu0 0.0
    %3909 = vmatpush1.msra.mxu0 0.0
    %3910 = vmatprep.subr.mxu0 0.0
    %3911 = vmatpush1.msra.mxu0 0.0
    %3912 = vmatprep.subr.mxu0 0.0
    %3913 = vmatpush1.msra.mxu0 0.0
    %3914 = vmatprep.subr.mxu0 0.0
    %3915 = vmatpush1.msra.mxu0 0.0
    %3916 = vmatprep.subr.mxu0 0.0
    %3917 = vmatpush1.msra.mxu0 0.0
    %3918 = vmatprep.subr.mxu0 0.0
    %3919 = vmatpush1.msra.mxu0 0.0
    %3920 = vmatprep.subr.mxu0 0.0
    %3921 = vmatpush1.msra.mxu0 0.0
    %3922 = vmatprep.subr.mxu0 0.0
    %3923 = vmatpush1.msra.mxu0 0.0
    %3924 = vmatprep.subr.mxu0 0.0
    %3925 = vmatpush1.msra.mxu0 0.0
    %3926 = vmatprep.subr.mxu0 0.0
    %3927 = vmatpush1.msra.mxu0 0.0
    %3928 = vmatprep.subr.mxu0 0.0
    %3929 = vmatpush1.msra.mxu0 0.0
    %3930 = vmatprep.subr.mxu0 0.0
    %3931 = vmatpush1.msra.mxu0 0.0
    %3932 = vmatprep.subr.mxu0 0.0
    %3933 = vmatpush1.msra.mxu0 0.0
    %3934 = vmatprep.subr.mxu0 0.0
    %3935 = vmatpush1.msra.mxu0 0.0
    %3936 = vmatprep.subr.mxu0 0.0
    %3937 = vmatpush1.msra.mxu0 0.0
    %3938 = vmatprep.subr.mxu0 0.0
    %3939 = vmatpush1.msra.mxu0 0.0
    %3940 = vmatprep.mubr.f32.mxu0 0.0
    %3941 = vmatmul.mubr.f32.gmra.mrb[0].mxu0 %v3865
    %v3942 = vpop.f32.mrb[0].mxu0
    %v3943 = vadd.f32 %v3863, %v3942
    %v3944 = vpop.f32.mrb[0].mxu0
    %3945 = vmatprep.mubr.f32.mxu0 0.0
    %3946 = vmatmul.mubr.f32.gmra.mrb[0].mxu0 %v3868
    %v3947 = vpop.f32.mrb[0].mxu0
    %v3948 = vadd.f32 %v3863, %v3947
    %v3949 = vpop.f32.mrb[0].mxu0
    %3950 = vmatprep.mubr.f32.mxu0 0.0
    %3951 = vmatmul.mubr.f32.gmra.mrb[0].mxu0 %v3871
    %v3952 = vpop.f32.mrb[0].mxu0
    %v3953 = vadd.f32 %v3863, %v3952
    %v3954 = vpop.f32.mrb[0].mxu0
    %3955 = vmatprep.mubr.f32.mxu0 0.0
    %3956 = vmatmul.mubr.f32.gmra.mrb[0].mxu0 %v3874
    %v3957 = vpop.f32.mrb[0].mxu0
    %v3958 = vadd.f32 %v3863, %v3957
    %v3959 = vpop.f32.mrb[0].mxu0
    %3960 = vdwg.mxu0
    %3965 = vrot.lane.b32.xlu0 %v3943, 120
    %v3966 = vpop.permute.xlu0 %3965
    %3967 = vrot.lane.b32.xlu0 %v3948, 120
    %v3968 = vpop.permute.xlu0 %3967
    %3969 = vrot.lane.b32.xlu0 %v3953, 120
    %v3970 = vpop.permute.xlu0 %3969
    %3971 = vrot.lane.b32.xlu0 %v3958, 120
    %v3972 = vpop.permute.xlu0 %3971
    %3973 = vrot.lane.b32.xlu0 %v3943, 112
    %v3974 = vpop.permute.xlu0 %3973
    %3975 = vrot.lane.b32.xlu0 %v3948, 112
    %v3976 = vpop.permute.xlu0 %3975
    %3977 = vrot.lane.b32.xlu0 %v3953, 112
    %v3978 = vpop.permute.xlu0 %3977
    %3979 = vrot.lane.b32.xlu0 %v3958, 112
    %v3980 = vpop.permute.xlu0 %3979
    %3981 = vrot.lane.b32.xlu0 %v3943, 104
    %v3982 = vpop.permute.xlu0 %3981
    %3983 = vrot.lane.b32.xlu0 %v3948, 104
    %v3984 = vpop.permute.xlu0 %3983
    %3985 = vrot.lane.b32.xlu0 %v3953, 104
    %v3986 = vpop.permute.xlu0 %3985
    %3987 = vrot.lane.b32.xlu0 %v3958, 104
    %v3988 = vpop.permute.xlu0 %3987
    %3989 = vrot.lane.b32.xlu0 %v3943, 96
    %v3990 = vpop.permute.xlu0 %3989
    %v3991 = vsel %vm697, %v3943, 0
    %v3993 = vsel %vm697, %v3990, 0
    %3995 = vmatprep.subr.mxu0 0.0
    %3996 = vmatpush1.xpose.msra.mxu0 %v3993
    %3997 = vmatprep.subr.mxu0 0.0
    %3998 = vmatpush1.xpose.msra.mxu0 0.0
    %3999 = vmatprep.subr.mxu0 0.0
    %4000 = vmatpush1.xpose.msra.mxu0 0.0
    %4001 = vmatprep.subr.mxu0 0.0
    %4002 = vmatpush1.xpose.msra.mxu0 0.0
    %4003 = vmatprep.subr.mxu0 0.0
    %4004 = vmatpush1.xpose.msra.mxu0 0.0
    %4005 = vmatprep.subr.mxu0 0.0
    %4006 = vmatpush1.xpose.msra.mxu0 0.0
    %4007 = vmatprep.subr.mxu0 0.0
    %4008 = vmatpush1.xpose.msra.mxu0 0.0
    %4009 = vmatprep.subr.mxu0 0.0
    %4010 = vmatpush1.xpose.msra.mxu0 0.0
    %4011 = vmatprep.subr.mxu0 0.0
    %4012 = vmatpush1.xpose.msra.mxu0 0.0
    %4013 = vmatprep.subr.mxu0 0.0
    %4014 = vmatpush1.xpose.msra.mxu0 0.0
    %4015 = vmatprep.subr.mxu0 0.0
    %4016 = vmatpush1.xpose.msra.mxu0 0.0
    %4017 = vmatprep.subr.mxu0 0.0
    %4018 = vmatpush1.xpose.msra.mxu0 0.0
    %4019 = vmatprep.subr.mxu0 0.0
    %4020 = vmatpush1.xpose.msra.mxu0 0.0
    %4021 = vmatprep.subr.mxu0 0.0
    %4022 = vmatpush1.xpose.msra.mxu0 0.0
    %4023 = vmatprep.subr.mxu0 0.0
    %4024 = vmatpush1.xpose.msra.mxu0 0.0
    %4025 = vmatprep.subr.mxu0 0.0
    %4026 = vmatpush1.xpose.msra.mxu0 0.0
    %4027 = vmatprep.subr.mxu0 0.0
    %4028 = vmatpush1.xpose.msra.mxu0 0.0
    %4029 = vmatprep.subr.mxu0 0.0
    %4030 = vmatpush1.xpose.msra.mxu0 0.0
    %4031 = vmatprep.subr.mxu0 0.0
    %4032 = vmatpush1.xpose.msra.mxu0 0.0
    %4033 = vmatprep.subr.mxu0 0.0
    %4034 = vmatpush1.xpose.msra.mxu0 0.0
    %4035 = vmatprep.subr.mxu0 0.0
    %4036 = vmatpush1.xpose.msra.mxu0 0.0
    %4037 = vmatprep.subr.mxu0 0.0
    %4038 = vmatpush1.xpose.msra.mxu0 0.0
    %4039 = vmatprep.subr.mxu0 0.0
    %4040 = vmatpush1.xpose.msra.mxu0 0.0
    %4041 = vmatprep.subr.mxu0 0.0
    %4042 = vmatpush1.xpose.msra.mxu0 0.0
    %4043 = vmatprep.subr.mxu0 0.0
    %4044 = vmatpush1.xpose.msra.mxu0 0.0
    %4045 = vmatprep.subr.mxu0 0.0
    %4046 = vmatpush1.xpose.msra.mxu0 0.0
    %4047 = vmatprep.subr.mxu0 0.0
    %4048 = vmatpush1.xpose.msra.mxu0 0.0
    %4049 = vmatprep.subr.mxu0 0.0
    %4050 = vmatpush1.xpose.msra.mxu0 0.0
    %4051 = vmatprep.subr.mxu0 0.0
    %4052 = vmatpush1.xpose.msra.mxu0 0.0
    %4053 = vmatprep.subr.mxu0 0.0
    %4054 = vmatpush1.xpose.msra.mxu0 0.0
    %4055 = vmatprep.subr.mxu0 0.0
    %4056 = vmatpush1.xpose.msra.mxu0 0.0
    %4057 = vmatprep.subr.mxu0 0.0
    %4058 = vmatpush1.xpose.msra.mxu0 0.0
    %4059 = vmatprep.mubr.f32.mxu0 0.0
    %4060 = vmatmul.mubr.f32.gmra.mrb[0].mxu0 %v3991
    %v4061 = vpop.f32.mrb[0].mxu0
    %v4062 = vadd.f32 0.0, %v4061
    %v4063 = vpop.f32.mrb[0].mxu0
    %4064 = vdwg.mxu0
    %4065 = vrot.lane.b32.xlu0 %v3948, 96
    %v4066 = vpop.permute.xlu0 %4065
    %v4067 = vsel %vm697, %v3948, 0
    %v4069 = vsel %vm697, %v4066, 0
    %4071 = vmatprep.subr.mxu0 0.0
    %4072 = vmatpush1.xpose.msra.mxu0 %v4069
    %4073 = vmatprep.subr.mxu0 0.0
    %4074 = vmatpush1.xpose.msra.mxu0 0.0
    %4075 = vmatprep.subr.mxu0 0.0
    %4076 = vmatpush1.xpose.msra.mxu0 0.0
    %4077 = vmatprep.subr.mxu0 0.0
    %4078 = vmatpush1.xpose.msra.mxu0 0.0
    %4079 = vmatprep.subr.mxu0 0.0
    %4080 = vmatpush1.xpose.msra.mxu0 0.0
    %4081 = vmatprep.subr.mxu0 0.0
    %4082 = vmatpush1.xpose.msra.mxu0 0.0
    %4083 = vmatprep.subr.mxu0 0.0
    %4084 = vmatpush1.xpose.msra.mxu0 0.0
    %4085 = vmatprep.subr.mxu0 0.0
    %4086 = vmatpush1.xpose.msra.mxu0 0.0
    %4087 = vmatprep.subr.mxu0 0.0
    %4088 = vmatpush1.xpose.msra.mxu0 0.0
    %4089 = vmatprep.subr.mxu0 0.0
    %4090 = vmatpush1.xpose.msra.mxu0 0.0
    %4091 = vmatprep.subr.mxu0 0.0
    %4092 = vmatpush1.xpose.msra.mxu0 0.0
    %4093 = vmatprep.subr.mxu0 0.0
    %4094 = vmatpush1.xpose.msra.mxu0 0.0
    %4095 = vmatprep.subr.mxu0 0.0
    %4096 = vmatpush1.xpose.msra.mxu0 0.0
    %4097 = vmatprep.subr.mxu0 0.0
    %4098 = vmatpush1.xpose.msra.mxu0 0.0
    %4099 = vmatprep.subr.mxu0 0.0
    %4100 = vmatpush1.xpose.msra.mxu0 0.0
    %4101 = vmatprep.subr.mxu0 0.0
    %4102 = vmatpush1.xpose.msra.mxu0 0.0
    %4103 = vmatprep.subr.mxu0 0.0
    %4104 = vmatpush1.xpose.msra.mxu0 0.0
    %4105 = vmatprep.subr.mxu0 0.0
    %4106 = vmatpush1.xpose.msra.mxu0 0.0
    %4107 = vmatprep.subr.mxu0 0.0
    %4108 = vmatpush1.xpose.msra.mxu0 0.0
    %4109 = vmatprep.subr.mxu0 0.0
    %4110 = vmatpush1.xpose.msra.mxu0 0.0
    %4111 = vmatprep.subr.mxu0 0.0
    %4112 = vmatpush1.xpose.msra.mxu0 0.0
    %4113 = vmatprep.subr.mxu0 0.0
    %4114 = vmatpush1.xpose.msra.mxu0 0.0
    %4115 = vmatprep.subr.mxu0 0.0
    %4116 = vmatpush1.xpose.msra.mxu0 0.0
    %4117 = vmatprep.subr.mxu0 0.0
    %4118 = vmatpush1.xpose.msra.mxu0 0.0
    %4119 = vmatprep.subr.mxu0 0.0
    %4120 = vmatpush1.xpose.msra.mxu0 0.0
    %4121 = vmatprep.subr.mxu0 0.0
    %4122 = vmatpush1.xpose.msra.mxu0 0.0
    %4123 = vmatprep.subr.mxu0 0.0
    %4124 = vmatpush1.xpose.msra.mxu0 0.0
    %4125 = vmatprep.subr.mxu0 0.0
    %4126 = vmatpush1.xpose.msra.mxu0 0.0
    %4127 = vmatprep.subr.mxu0 0.0
    %4128 = vmatpush1.xpose.msra.mxu0 0.0
    %4129 = vmatprep.subr.mxu0 0.0
    %4130 = vmatpush1.xpose.msra.mxu0 0.0
    %4131 = vmatprep.subr.mxu0 0.0
    %4132 = vmatpush1.xpose.msra.mxu0 0.0
    %4133 = vmatprep.subr.mxu0 0.0
    %4134 = vmatpush1.xpose.msra.mxu0 0.0
    %4135 = vmatprep.mubr.f32.mxu0 0.0
    %4136 = vmatmul.mubr.f32.gmra.mrb[0].mxu0 %v4067
    %v4137 = vpop.f32.mrb[0].mxu0
    %v4138 = vadd.f32 0.0, %v4137
    %v4139 = vpop.f32.mrb[0].mxu0
    %4140 = vdwg.mxu0
    %4141 = vrot.lane.b32.xlu0 %v3953, 96
    %v4142 = vpop.permute.xlu0 %4141
    %v4143 = vsel %vm697, %v3953, 0
    %v4145 = vsel %vm697, %v4142, 0
    %4147 = vmatprep.subr.mxu0 0.0
    %4148 = vmatpush1.xpose.msra.mxu0 %v4145
    %4149 = vmatprep.subr.mxu0 0.0
    %4150 = vmatpush1.xpose.msra.mxu0 0.0
    %4151 = vmatprep.subr.mxu0 0.0
    %4152 = vmatpush1.xpose.msra.mxu0 0.0
    %4153 = vmatprep.subr.mxu0 0.0
    %4154 = vmatpush1.xpose.msra.mxu0 0.0
    %4155 = vmatprep.subr.mxu0 0.0
    %4156 = vmatpush1.xpose.msra.mxu0 0.0
    %4157 = vmatprep.subr.mxu0 0.0
    %4158 = vmatpush1.xpose.msra.mxu0 0.0
    %4159 = vmatprep.subr.mxu0 0.0
    %4160 = vmatpush1.xpose.msra.mxu0 0.0
    %4161 = vmatprep.subr.mxu0 0.0
    %4162 = vmatpush1.xpose.msra.mxu0 0.0
    %4163 = vmatprep.subr.mxu0 0.0
    %4164 = vmatpush1.xpose.msra.mxu0 0.0
    %4165 = vmatprep.subr.mxu0 0.0
    %4166 = vmatpush1.xpose.msra.mxu0 0.0
    %4167 = vmatprep.subr.mxu0 0.0
    %4168 = vmatpush1.xpose.msra.mxu0 0.0
    %4169 = vmatprep.subr.mxu0 0.0
    %4170 = vmatpush1.xpose.msra.mxu0 0.0
    %4171 = vmatprep.subr.mxu0 0.0
    %4172 = vmatpush1.xpose.msra.mxu0 0.0
    %4173 = vmatprep.subr.mxu0 0.0
    %4174 = vmatpush1.xpose.msra.mxu0 0.0
    %4175 = vmatprep.subr.mxu0 0.0
    %4176 = vmatpush1.xpose.msra.mxu0 0.0
    %4177 = vmatprep.subr.mxu0 0.0
    %4178 = vmatpush1.xpose.msra.mxu0 0.0
    %4179 = vmatprep.subr.mxu0 0.0
    %4180 = vmatpush1.xpose.msra.mxu0 0.0
    %4181 = vmatprep.subr.mxu0 0.0
    %4182 = vmatpush1.xpose.msra.mxu0 0.0
    %4183 = vmatprep.subr.mxu0 0.0
    %4184 = vmatpush1.xpose.msra.mxu0 0.0
    %4185 = vmatprep.subr.mxu0 0.0
    %4186 = vmatpush1.xpose.msra.mxu0 0.0
    %4187 = vmatprep.subr.mxu0 0.0
    %4188 = vmatpush1.xpose.msra.mxu0 0.0
    %4189 = vmatprep.subr.mxu0 0.0
    %4190 = vmatpush1.xpose.msra.mxu0 0.0
    %4191 = vmatprep.subr.mxu0 0.0
    %4192 = vmatpush1.xpose.msra.mxu0 0.0
    %4193 = vmatprep.subr.mxu0 0.0
    %4194 = vmatpush1.xpose.msra.mxu0 0.0
    %4195 = vmatprep.subr.mxu0 0.0
    %4196 = vmatpush1.xpose.msra.mxu0 0.0
    %4197 = vmatprep.subr.mxu0 0.0
    %4198 = vmatpush1.xpose.msra.mxu0 0.0
    %4199 = vmatprep.subr.mxu0 0.0
    %4200 = vmatpush1.xpose.msra.mxu0 0.0
    %4201 = vmatprep.subr.mxu0 0.0
    %4202 = vmatpush1.xpose.msra.mxu0 0.0
    %4203 = vmatprep.subr.mxu0 0.0
    %4204 = vmatpush1.xpose.msra.mxu0 0.0
    %4205 = vmatprep.subr.mxu0 0.0
    %4206 = vmatpush1.xpose.msra.mxu0 0.0
    %4207 = vmatprep.subr.mxu0 0.0
    %4208 = vmatpush1.xpose.msra.mxu0 0.0
    %4209 = vmatprep.subr.mxu0 0.0
    %4210 = vmatpush1.xpose.msra.mxu0 0.0
    %4211 = vmatprep.mubr.f32.mxu0 0.0
    %4212 = vmatmul.mubr.f32.gmra.mrb[0].mxu0 %v4143
    %v4213 = vpop.f32.mrb[0].mxu0
    %v4214 = vadd.f32 0.0, %v4213
    %v4215 = vpop.f32.mrb[0].mxu0
    %4216 = vdwg.mxu0
    %4217 = vrot.lane.b32.xlu0 %v3958, 96
    %v4218 = vpop.permute.xlu0 %4217
    %v4219 = vsel %vm697, %v3958, 0
    %v4221 = vsel %vm697, %v4218, 0
    %4223 = vmatprep.subr.mxu0 0.0
    %4224 = vmatpush1.xpose.msra.mxu0 %v4221
    %4225 = vmatprep.subr.mxu0 0.0
    %4226 = vmatpush1.xpose.msra.mxu0 0.0
    %4227 = vmatprep.subr.mxu0 0.0
    %4228 = vmatpush1.xpose.msra.mxu0 0.0
    %4229 = vmatprep.subr.mxu0 0.0
    %4230 = vmatpush1.xpose.msra.mxu0 0.0
    %4231 = vmatprep.subr.mxu0 0.0
    %4232 = vmatpush1.xpose.msra.mxu0 0.0
    %4233 = vmatprep.subr.mxu0 0.0
    %4234 = vmatpush1.xpose.msra.mxu0 0.0
    %4235 = vmatprep.subr.mxu0 0.0
    %4236 = vmatpush1.xpose.msra.mxu0 0.0
    %4237 = vmatprep.subr.mxu0 0.0
    %4238 = vmatpush1.xpose.msra.mxu0 0.0
    %4239 = vmatprep.subr.mxu0 0.0
    %4240 = vmatpush1.xpose.msra.mxu0 0.0
    %4241 = vmatprep.subr.mxu0 0.0
    %4242 = vmatpush1.xpose.msra.mxu0 0.0
    %4243 = vmatprep.subr.mxu0 0.0
    %4244 = vmatpush1.xpose.msra.mxu0 0.0
    %4245 = vmatprep.subr.mxu0 0.0
    %4246 = vmatpush1.xpose.msra.mxu0 0.0
    %4247 = vmatprep.subr.mxu0 0.0
    %4248 = vmatpush1.xpose.msra.mxu0 0.0
    %4249 = vmatprep.subr.mxu0 0.0
    %4250 = vmatpush1.xpose.msra.mxu0 0.0
    %4251 = vmatprep.subr.mxu0 0.0
    %4252 = vmatpush1.xpose.msra.mxu0 0.0
    %4253 = vmatprep.subr.mxu0 0.0
    %4254 = vmatpush1.xpose.msra.mxu0 0.0
    %4255 = vmatprep.subr.mxu0 0.0
    %4256 = vmatpush1.xpose.msra.mxu0 0.0
    %4257 = vmatprep.subr.mxu0 0.0
    %4258 = vmatpush1.xpose.msra.mxu0 0.0
    %4259 = vmatprep.subr.mxu0 0.0
    %4260 = vmatpush1.xpose.msra.mxu0 0.0
    %4261 = vmatprep.subr.mxu0 0.0
    %4262 = vmatpush1.xpose.msra.mxu0 0.0
    %4263 = vmatprep.subr.mxu0 0.0
    %4264 = vmatpush1.xpose.msra.mxu0 0.0
    %4265 = vmatprep.subr.mxu0 0.0
    %4266 = vmatpush1.xpose.msra.mxu0 0.0
    %4267 = vmatprep.subr.mxu0 0.0
    %4268 = vmatpush1.xpose.msra.mxu0 0.0
    %4269 = vmatprep.subr.mxu0 0.0
    %4270 = vmatpush1.xpose.msra.mxu0 0.0
    %4271 = vmatprep.subr.mxu0 0.0
    %4272 = vmatpush1.xpose.msra.mxu0 0.0
    %4273 = vmatprep.subr.mxu0 0.0
    %4274 = vmatpush1.xpose.msra.mxu0 0.0
    %4275 = vmatprep.subr.mxu0 0.0
    %4276 = vmatpush1.xpose.msra.mxu0 0.0
    %4277 = vmatprep.subr.mxu0 0.0
    %4278 = vmatpush1.xpose.msra.mxu0 0.0
    %4279 = vmatprep.subr.mxu0 0.0
    %4280 = vmatpush1.xpose.msra.mxu0 0.0
    %4281 = vmatprep.subr.mxu0 0.0
    %4282 = vmatpush1.xpose.msra.mxu0 0.0
    %4283 = vmatprep.subr.mxu0 0.0
    %4284 = vmatpush1.xpose.msra.mxu0 0.0
    %4285 = vmatprep.subr.mxu0 0.0
    %4286 = vmatpush1.xpose.msra.mxu0 0.0
    %4287 = vmatprep.mubr.f32.mxu0 0.0
    %4288 = vmatmul.mubr.f32.gmra.mrb[0].mxu0 %v4219
    %v4289 = vpop.f32.mrb[0].mxu0
    %v4290 = vadd.f32 0.0, %v4289
    %v4291 = vpop.f32.mrb[0].mxu0
    %4292 = vdwg.mxu0
    %4293 = vrot.lane.b32.xlu0 %v3966, 96
    %v4294 = vpop.permute.xlu0 %4293
    %v4295 = vsel %vm697, %v3966, 0
    %v4297 = vsel %vm697, %v4294, 0
    %4299 = vmatprep.subr.mxu0 0.0
    %4300 = vmatpush1.xpose.msra.mxu0 %v4297
    %4301 = vmatprep.subr.mxu0 0.0
    %4302 = vmatpush1.xpose.msra.mxu0 0.0
    %4303 = vmatprep.subr.mxu0 0.0
    %4304 = vmatpush1.xpose.msra.mxu0 0.0
    %4305 = vmatprep.subr.mxu0 0.0
    %4306 = vmatpush1.xpose.msra.mxu0 0.0
    %4307 = vmatprep.subr.mxu0 0.0
    %4308 = vmatpush1.xpose.msra.mxu0 0.0
    %4309 = vmatprep.subr.mxu0 0.0
    %4310 = vmatpush1.xpose.msra.mxu0 0.0
    %4311 = vmatprep.subr.mxu0 0.0
    %4312 = vmatpush1.xpose.msra.mxu0 0.0
    %4313 = vmatprep.subr.mxu0 0.0
    %4314 = vmatpush1.xpose.msra.mxu0 0.0
    %4315 = vmatprep.subr.mxu0 0.0
    %4316 = vmatpush1.xpose.msra.mxu0 0.0
    %4317 = vmatprep.subr.mxu0 0.0
    %4318 = vmatpush1.xpose.msra.mxu0 0.0
    %4319 = vmatprep.subr.mxu0 0.0
    %4320 = vmatpush1.xpose.msra.mxu0 0.0
    %4321 = vmatprep.subr.mxu0 0.0
    %4322 = vmatpush1.xpose.msra.mxu0 0.0
    %4323 = vmatprep.subr.mxu0 0.0
    %4324 = vmatpush1.xpose.msra.mxu0 0.0
    %4325 = vmatprep.subr.mxu0 0.0
    %4326 = vmatpush1.xpose.msra.mxu0 0.0
    %4327 = vmatprep.subr.mxu0 0.0
    %4328 = vmatpush1.xpose.msra.mxu0 0.0
    %4329 = vmatprep.subr.mxu0 0.0
    %4330 = vmatpush1.xpose.msra.mxu0 0.0
    %4331 = vmatprep.subr.mxu0 0.0
    %4332 = vmatpush1.xpose.msra.mxu0 0.0
    %4333 = vmatprep.subr.mxu0 0.0
    %4334 = vmatpush1.xpose.msra.mxu0 0.0
    %4335 = vmatprep.subr.mxu0 0.0
    %4336 = vmatpush1.xpose.msra.mxu0 0.0
    %4337 = vmatprep.subr.mxu0 0.0
    %4338 = vmatpush1.xpose.msra.mxu0 0.0
    %4339 = vmatprep.subr.mxu0 0.0
    %4340 = vmatpush1.xpose.msra.mxu0 0.0
    %4341 = vmatprep.subr.mxu0 0.0
    %4342 = vmatpush1.xpose.msra.mxu0 0.0
    %4343 = vmatprep.subr.mxu0 0.0
    %4344 = vmatpush1.xpose.msra.mxu0 0.0
    %4345 = vmatprep.subr.mxu0 0.0
    %4346 = vmatpush1.xpose.msra.mxu0 0.0
    %4347 = vmatprep.subr.mxu0 0.0
    %4348 = vmatpush1.xpose.msra.mxu0 0.0
    %4349 = vmatprep.subr.mxu0 0.0
    %4350 = vmatpush1.xpose.msra.mxu0 0.0
    %4351 = vmatprep.subr.mxu0 0.0
    %4352 = vmatpush1.xpose.msra.mxu0 0.0
    %4353 = vmatprep.subr.mxu0 0.0
    %4354 = vmatpush1.xpose.msra.mxu0 0.0
    %4355 = vmatprep.subr.mxu0 0.0
    %4356 = vmatpush1.xpose.msra.mxu0 0.0
    %4357 = vmatprep.subr.mxu0 0.0
    %4358 = vmatpush1.xpose.msra.mxu0 0.0
    %4359 = vmatprep.subr.mxu0 0.0
    %4360 = vmatpush1.xpose.msra.mxu0 0.0
    %4361 = vmatprep.subr.mxu0 0.0
    %4362 = vmatpush1.xpose.msra.mxu0 0.0
    %4363 = vmatprep.mubr.f32.mxu0 0.0
    %4364 = vmatmul.mubr.f32.gmra.mrb[0].mxu0 %v4295
    %v4365 = vpop.f32.mrb[0].mxu0
    %v4366 = vadd.f32 0.0, %v4365
    %v4367 = vpop.f32.mrb[0].mxu0
    %4368 = vdwg.mxu0
    %4369 = vrot.lane.b32.xlu0 %v3968, 96
    %v4370 = vpop.permute.xlu0 %4369
    %v4371 = vsel %vm697, %v3968, 0
    %v4373 = vsel %vm697, %v4370, 0
    %4375 = vmatprep.subr.mxu0 0.0
    %4376 = vmatpush1.xpose.msra.mxu0 %v4373
    %4377 = vmatprep.subr.mxu0 0.0
    %4378 = vmatpush1.xpose.msra.mxu0 0.0
    %4379 = vmatprep.subr.mxu0 0.0
    %4380 = vmatpush1.xpose.msra.mxu0 0.0
    %4381 = vmatprep.subr.mxu0 0.0
    %4382 = vmatpush1.xpose.msra.mxu0 0.0
    %4383 = vmatprep.subr.mxu0 0.0
    %4384 = vmatpush1.xpose.msra.mxu0 0.0
    %4385 = vmatprep.subr.mxu0 0.0
    %4386 = vmatpush1.xpose.msra.mxu0 0.0
    %4387 = vmatprep.subr.mxu0 0.0
    %4388 = vmatpush1.xpose.msra.mxu0 0.0
    %4389 = vmatprep.subr.mxu0 0.0
    %4390 = vmatpush1.xpose.msra.mxu0 0.0
    %4391 = vmatprep.subr.mxu0 0.0
    %4392 = vmatpush1.xpose.msra.mxu0 0.0
    %4393 = vmatprep.subr.mxu0 0.0
    %4394 = vmatpush1.xpose.msra.mxu0 0.0
    %4395 = vmatprep.subr.mxu0 0.0
    %4396 = vmatpush1.xpose.msra.mxu0 0.0
    %4397 = vmatprep.subr.mxu0 0.0
    %4398 = vmatpush1.xpose.msra.mxu0 0.0
    %4399 = vmatprep.subr.mxu0 0.0
    %4400 = vmatpush1.xpose.msra.mxu0 0.0
    %4401 = vmatprep.subr.mxu0 0.0
    %4402 = vmatpush1.xpose.msra.mxu0 0.0
    %4403 = vmatprep.subr.mxu0 0.0
    %4404 = vmatpush1.xpose.msra.mxu0 0.0
    %4405 = vmatprep.subr.mxu0 0.0
    %4406 = vmatpush1.xpose.msra.mxu0 0.0
    %4407 = vmatprep.subr.mxu0 0.0
    %4408 = vmatpush1.xpose.msra.mxu0 0.0
    %4409 = vmatprep.subr.mxu0 0.0
    %4410 = vmatpush1.xpose.msra.mxu0 0.0
    %4411 = vmatprep.subr.mxu0 0.0
    %4412 = vmatpush1.xpose.msra.mxu0 0.0
    %4413 = vmatprep.subr.mxu0 0.0
    %4414 = vmatpush1.xpose.msra.mxu0 0.0
    %4415 = vmatprep.subr.mxu0 0.0
    %4416 = vmatpush1.xpose.msra.mxu0 0.0
    %4417 = vmatprep.subr.mxu0 0.0
    %4418 = vmatpush1.xpose.msra.mxu0 0.0
    %4419 = vmatprep.subr.mxu0 0.0
    %4420 = vmatpush1.xpose.msra.mxu0 0.0
    %4421 = vmatprep.subr.mxu0 0.0
    %4422 = vmatpush1.xpose.msra.mxu0 0.0
    %4423 = vmatprep.subr.mxu0 0.0
    %4424 = vmatpush1.xpose.msra.mxu0 0.0
    %4425 = vmatprep.subr.mxu0 0.0
    %4426 = vmatpush1.xpose.msra.mxu0 0.0
    %4427 = vmatprep.subr.mxu0 0.0
    %4428 = vmatpush1.xpose.msra.mxu0 0.0
    %4429 = vmatprep.subr.mxu0 0.0
    %4430 = vmatpush1.xpose.msra.mxu0 0.0
    %4431 = vmatprep.subr.mxu0 0.0
    %4432 = vmatpush1.xpose.msra.mxu0 0.0
    %4433 = vmatprep.subr.mxu0 0.0
    %4434 = vmatpush1.xpose.msra.mxu0 0.0
    %4435 = vmatprep.subr.mxu0 0.0
    %4436 = vmatpush1.xpose.msra.mxu0 0.0
    %4437 = vmatprep.subr.mxu0 0.0
    %4438 = vmatpush1.xpose.msra.mxu0 0.0
    %4439 = vmatprep.mubr.f32.mxu0 0.0
    %4440 = vmatmul.mubr.f32.gmra.mrb[0].mxu0 %v4371
    %v4441 = vpop.f32.mrb[0].mxu0
    %v4442 = vadd.f32 0.0, %v4441
    %v4443 = vpop.f32.mrb[0].mxu0
    %4444 = vdwg.mxu0
    %4445 = vrot.lane.b32.xlu0 %v3970, 96
    %v4446 = vpop.permute.xlu0 %4445
    %v4447 = vsel %vm697, %v3970, 0
    %v4449 = vsel %vm697, %v4446, 0
    %4451 = vmatprep.subr.mxu0 0.0
    %4452 = vmatpush1.xpose.msra.mxu0 %v4449
    %4453 = vmatprep.subr.mxu0 0.0
    %4454 = vmatpush1.xpose.msra.mxu0 0.0
    %4455 = vmatprep.subr.mxu0 0.0
    %4456 = vmatpush1.xpose.msra.mxu0 0.0
    %4457 = vmatprep.subr.mxu0 0.0
    %4458 = vmatpush1.xpose.msra.mxu0 0.0
    %4459 = vmatprep.subr.mxu0 0.0
    %4460 = vmatpush1.xpose.msra.mxu0 0.0
    %4461 = vmatprep.subr.mxu0 0.0
    %4462 = vmatpush1.xpose.msra.mxu0 0.0
    %4463 = vmatprep.subr.mxu0 0.0
    %4464 = vmatpush1.xpose.msra.mxu0 0.0
    %4465 = vmatprep.subr.mxu0 0.0
    %4466 = vmatpush1.xpose.msra.mxu0 0.0
    %4467 = vmatprep.subr.mxu0 0.0
    %4468 = vmatpush1.xpose.msra.mxu0 0.0
    %4469 = vmatprep.subr.mxu0 0.0
    %4470 = vmatpush1.xpose.msra.mxu0 0.0
    %4471 = vmatprep.subr.mxu0 0.0
    %4472 = vmatpush1.xpose.msra.mxu0 0.0
    %4473 = vmatprep.subr.mxu0 0.0
    %4474 = vmatpush1.xpose.msra.mxu0 0.0
    %4475 = vmatprep.subr.mxu0 0.0
    %4476 = vmatpush1.xpose.msra.mxu0 0.0
    %4477 = vmatprep.subr.mxu0 0.0
    %4478 = vmatpush1.xpose.msra.mxu0 0.0
    %4479 = vmatprep.subr.mxu0 0.0
    %4480 = vmatpush1.xpose.msra.mxu0 0.0
    %4481 = vmatprep.subr.mxu0 0.0
    %4482 = vmatpush1.xpose.msra.mxu0 0.0
    %4483 = vmatprep.subr.mxu0 0.0
    %4484 = vmatpush1.xpose.msra.mxu0 0.0
    %4485 = vmatprep.subr.mxu0 0.0
    %4486 = vmatpush1.xpose.msra.mxu0 0.0
    %4487 = vmatprep.subr.mxu0 0.0
    %4488 = vmatpush1.xpose.msra.mxu0 0.0
    %4489 = vmatprep.subr.mxu0 0.0
    %4490 = vmatpush1.xpose.msra.mxu0 0.0
    %4491 = vmatprep.subr.mxu0 0.0
    %4492 = vmatpush1.xpose.msra.mxu0 0.0
    %4493 = vmatprep.subr.mxu0 0.0
    %4494 = vmatpush1.xpose.msra.mxu0 0.0
    %4495 = vmatprep.subr.mxu0 0.0
    %4496 = vmatpush1.xpose.msra.mxu0 0.0
    %4497 = vmatprep.subr.mxu0 0.0
    %4498 = vmatpush1.xpose.msra.mxu0 0.0
    %4499 = vmatprep.subr.mxu0 0.0
    %4500 = vmatpush1.xpose.msra.mxu0 0.0
    %4501 = vmatprep.subr.mxu0 0.0
    %4502 = vmatpush1.xpose.msra.mxu0 0.0
    %4503 = vmatprep.subr.mxu0 0.0
    %4504 = vmatpush1.xpose.msra.mxu0 0.0
    %4505 = vmatprep.subr.mxu0 0.0
    %4506 = vmatpush1.xpose.msra.mxu0 0.0
    %4507 = vmatprep.subr.mxu0 0.0
    %4508 = vmatpush1.xpose.msra.mxu0 0.0
    %4509 = vmatprep.subr.mxu0 0.0
    %4510 = vmatpush1.xpose.msra.mxu0 0.0
    %4511 = vmatprep.subr.mxu0 0.0
    %4512 = vmatpush1.xpose.msra.mxu0 0.0
    %4513 = vmatprep.subr.mxu0 0.0
    %4514 = vmatpush1.xpose.msra.mxu0 0.0
    %4515 = vmatprep.mubr.f32.mxu0 0.0
    %4516 = vmatmul.mubr.f32.gmra.mrb[0].mxu0 %v4447
    %v4517 = vpop.f32.mrb[0].mxu0
    %v4518 = vadd.f32 0.0, %v4517
    %v4519 = vpop.f32.mrb[0].mxu0
    %4520 = vdwg.mxu0
    %4521 = vrot.lane.b32.xlu0 %v3972, 96
    %v4522 = vpop.permute.xlu0 %4521
    %v4523 = vsel %vm697, %v3972, 0
    %v4525 = vsel %vm697, %v4522, 0
    %4527 = vmatprep.subr.mxu0 0.0
    %4528 = vmatpush1.xpose.msra.mxu0 %v4525
    %4529 = vmatprep.subr.mxu0 0.0
    %4530 = vmatpush1.xpose.msra.mxu0 0.0
    %4531 = vmatprep.subr.mxu0 0.0
    %4532 = vmatpush1.xpose.msra.mxu0 0.0
    %4533 = vmatprep.subr.mxu0 0.0
    %4534 = vmatpush1.xpose.msra.mxu0 0.0
    %4535 = vmatprep.subr.mxu0 0.0
    %4536 = vmatpush1.xpose.msra.mxu0 0.0
    %4537 = vmatprep.subr.mxu0 0.0
    %4538 = vmatpush1.xpose.msra.mxu0 0.0
    %4539 = vmatprep.subr.mxu0 0.0
    %4540 = vmatpush1.xpose.msra.mxu0 0.0
    %4541 = vmatprep.subr.mxu0 0.0
    %4542 = vmatpush1.xpose.msra.mxu0 0.0
    %4543 = vmatprep.subr.mxu0 0.0
    %4544 = vmatpush1.xpose.msra.mxu0 0.0
    %4545 = vmatprep.subr.mxu0 0.0
    %4546 = vmatpush1.xpose.msra.mxu0 0.0
    %4547 = vmatprep.subr.mxu0 0.0
    %4548 = vmatpush1.xpose.msra.mxu0 0.0
    %4549 = vmatprep.subr.mxu0 0.0
    %4550 = vmatpush1.xpose.msra.mxu0 0.0
    %4551 = vmatprep.subr.mxu0 0.0
    %4552 = vmatpush1.xpose.msra.mxu0 0.0
    %4553 = vmatprep.subr.mxu0 0.0
    %4554 = vmatpush1.xpose.msra.mxu0 0.0
    %4555 = vmatprep.subr.mxu0 0.0
    %4556 = vmatpush1.xpose.msra.mxu0 0.0
    %4557 = vmatprep.subr.mxu0 0.0
    %4558 = vmatpush1.xpose.msra.mxu0 0.0
    %4559 = vmatprep.subr.mxu0 0.0
    %4560 = vmatpush1.xpose.msra.mxu0 0.0
    %4561 = vmatprep.subr.mxu0 0.0
    %4562 = vmatpush1.xpose.msra.mxu0 0.0
    %4563 = vmatprep.subr.mxu0 0.0
    %4564 = vmatpush1.xpose.msra.mxu0 0.0
    %4565 = vmatprep.subr.mxu0 0.0
    %4566 = vmatpush1.xpose.msra.mxu0 0.0
    %4567 = vmatprep.subr.mxu0 0.0
    %4568 = vmatpush1.xpose.msra.mxu0 0.0
    %4569 = vmatprep.subr.mxu0 0.0
    %4570 = vmatpush1.xpose.msra.mxu0 0.0
    %4571 = vmatprep.subr.mxu0 0.0
    %4572 = vmatpush1.xpose.msra.mxu0 0.0
    %4573 = vmatprep.subr.mxu0 0.0
    %4574 = vmatpush1.xpose.msra.mxu0 0.0
    %4575 = vmatprep.subr.mxu0 0.0
    %4576 = vmatpush1.xpose.msra.mxu0 0.0
    %4577 = vmatprep.subr.mxu0 0.0
    %4578 = vmatpush1.xpose.msra.mxu0 0.0
    %4579 = vmatprep.subr.mxu0 0.0
    %4580 = vmatpush1.xpose.msra.mxu0 0.0
    %4581 = vmatprep.subr.mxu0 0.0
    %4582 = vmatpush1.xpose.msra.mxu0 0.0
    %4583 = vmatprep.subr.mxu0 0.0
    %4584 = vmatpush1.xpose.msra.mxu0 0.0
    %4585 = vmatprep.subr.mxu0 0.0
    %4586 = vmatpush1.xpose.msra.mxu0 0.0
    %4587 = vmatprep.subr.mxu0 0.0
    %4588 = vmatpush1.xpose.msra.mxu0 0.0
    %4589 = vmatprep.subr.mxu0 0.0
    %4590 = vmatpush1.xpose.msra.mxu0 0.0
    %4591 = vmatprep.mubr.f32.mxu0 0.0
    %4592 = vmatmul.mubr.f32.gmra.mrb[0].mxu0 %v4523
    %v4593 = vpop.f32.mrb[0].mxu0
    %v4594 = vadd.f32 0.0, %v4593
    %v4595 = vpop.f32.mrb[0].mxu0
    %4596 = vdwg.mxu0
    %4597 = vrot.lane.b32.xlu0 %v3974, 96
    %v4598 = vpop.permute.xlu0 %4597
    %v4599 = vsel %vm697, %v3974, 0
    %v4601 = vsel %vm697, %v4598, 0
    %4603 = vmatprep.subr.mxu0 0.0
    %4604 = vmatpush1.xpose.msra.mxu0 %v4601
    %4605 = vmatprep.subr.mxu0 0.0
    %4606 = vmatpush1.xpose.msra.mxu0 0.0
    %4607 = vmatprep.subr.mxu0 0.0
    %4608 = vmatpush1.xpose.msra.mxu0 0.0
    %4609 = vmatprep.subr.mxu0 0.0
    %4610 = vmatpush1.xpose.msra.mxu0 0.0
    %4611 = vmatprep.subr.mxu0 0.0
    %4612 = vmatpush1.xpose.msra.mxu0 0.0
    %4613 = vmatprep.subr.mxu0 0.0
    %4614 = vmatpush1.xpose.msra.mxu0 0.0
    %4615 = vmatprep.subr.mxu0 0.0
    %4616 = vmatpush1.xpose.msra.mxu0 0.0
    %4617 = vmatprep.subr.mxu0 0.0
    %4618 = vmatpush1.xpose.msra.mxu0 0.0
    %4619 = vmatprep.subr.mxu0 0.0
    %4620 = vmatpush1.xpose.msra.mxu0 0.0
    %4621 = vmatprep.subr.mxu0 0.0
    %4622 = vmatpush1.xpose.msra.mxu0 0.0
    %4623 = vmatprep.subr.mxu0 0.0
    %4624 = vmatpush1.xpose.msra.mxu0 0.0
    %4625 = vmatprep.subr.mxu0 0.0
    %4626 = vmatpush1.xpose.msra.mxu0 0.0
    %4627 = vmatprep.subr.mxu0 0.0
    %4628 = vmatpush1.xpose.msra.mxu0 0.0
    %4629 = vmatprep.subr.mxu0 0.0
    %4630 = vmatpush1.xpose.msra.mxu0 0.0
    %4631 = vmatprep.subr.mxu0 0.0
    %4632 = vmatpush1.xpose.msra.mxu0 0.0
    %4633 = vmatprep.subr.mxu0 0.0
    %4634 = vmatpush1.xpose.msra.mxu0 0.0
    %4635 = vmatprep.subr.mxu0 0.0
    %4636 = vmatpush1.xpose.msra.mxu0 0.0
    %4637 = vmatprep.subr.mxu0 0.0
    %4638 = vmatpush1.xpose.msra.mxu0 0.0
    %4639 = vmatprep.subr.mxu0 0.0
    %4640 = vmatpush1.xpose.msra.mxu0 0.0
    %4641 = vmatprep.subr.mxu0 0.0
    %4642 = vmatpush1.xpose.msra.mxu0 0.0
    %4643 = vmatprep.subr.mxu0 0.0
    %4644 = vmatpush1.xpose.msra.mxu0 0.0
    %4645 = vmatprep.subr.mxu0 0.0
    %4646 = vmatpush1.xpose.msra.mxu0 0.0
    %4647 = vmatprep.subr.mxu0 0.0
    %4648 = vmatpush1.xpose.msra.mxu0 0.0
    %4649 = vmatprep.subr.mxu0 0.0
    %4650 = vmatpush1.xpose.msra.mxu0 0.0
    %4651 = vmatprep.subr.mxu0 0.0
    %4652 = vmatpush1.xpose.msra.mxu0 0.0
    %4653 = vmatprep.subr.mxu0 0.0
    %4654 = vmatpush1.xpose.msra.mxu0 0.0
    %4655 = vmatprep.subr.mxu0 0.0
    %4656 = vmatpush1.xpose.msra.mxu0 0.0
    %4657 = vmatprep.subr.mxu0 0.0
    %4658 = vmatpush1.xpose.msra.mxu0 0.0
    %4659 = vmatprep.subr.mxu0 0.0
    %4660 = vmatpush1.xpose.msra.mxu0 0.0
    %4661 = vmatprep.subr.mxu0 0.0
    %4662 = vmatpush1.xpose.msra.mxu0 0.0
    %4663 = vmatprep.subr.mxu0 0.0
    %4664 = vmatpush1.xpose.msra.mxu0 0.0
    %4665 = vmatprep.subr.mxu0 0.0
    %4666 = vmatpush1.xpose.msra.mxu0 0.0
    %4667 = vmatprep.mubr.f32.mxu0 0.0
    %4668 = vmatmul.mubr.f32.gmra.mrb[0].mxu0 %v4599
    %v4669 = vpop.f32.mrb[0].mxu0
    %v4670 = vadd.f32 0.0, %v4669
    %v4671 = vpop.f32.mrb[0].mxu0
    %4672 = vdwg.mxu0
    %4673 = vrot.lane.b32.xlu0 %v3976, 96
    %v4674 = vpop.permute.xlu0 %4673
    %v4675 = vsel %vm697, %v3976, 0
    %v4677 = vsel %vm697, %v4674, 0
    %4679 = vmatprep.subr.mxu0 0.0
    %4680 = vmatpush1.xpose.msra.mxu0 %v4677
    %4681 = vmatprep.subr.mxu0 0.0
    %4682 = vmatpush1.xpose.msra.mxu0 0.0
    %4683 = vmatprep.subr.mxu0 0.0
    %4684 = vmatpush1.xpose.msra.mxu0 0.0
    %4685 = vmatprep.subr.mxu0 0.0
    %4686 = vmatpush1.xpose.msra.mxu0 0.0
    %4687 = vmatprep.subr.mxu0 0.0
    %4688 = vmatpush1.xpose.msra.mxu0 0.0
    %4689 = vmatprep.subr.mxu0 0.0
    %4690 = vmatpush1.xpose.msra.mxu0 0.0
    %4691 = vmatprep.subr.mxu0 0.0
    %4692 = vmatpush1.xpose.msra.mxu0 0.0
    %4693 = vmatprep.subr.mxu0 0.0
    %4694 = vmatpush1.xpose.msra.mxu0 0.0
    %4695 = vmatprep.subr.mxu0 0.0
    %4696 = vmatpush1.xpose.msra.mxu0 0.0
    %4697 = vmatprep.subr.mxu0 0.0
    %4698 = vmatpush1.xpose.msra.mxu0 0.0
    %4699 = vmatprep.subr.mxu0 0.0
    %4700 = vmatpush1.xpose.msra.mxu0 0.0
    %4701 = vmatprep.subr.mxu0 0.0
    %4702 = vmatpush1.xpose.msra.mxu0 0.0
    %4703 = vmatprep.subr.mxu0 0.0
    %4704 = vmatpush1.xpose.msra.mxu0 0.0
    %4705 = vmatprep.subr.mxu0 0.0
    %4706 = vmatpush1.xpose.msra.mxu0 0.0
    %4707 = vmatprep.subr.mxu0 0.0
    %4708 = vmatpush1.xpose.msra.mxu0 0.0
    %4709 = vmatprep.subr.mxu0 0.0
    %4710 = vmatpush1.xpose.msra.mxu0 0.0
    %4711 = vmatprep.subr.mxu0 0.0
    %4712 = vmatpush1.xpose.msra.mxu0 0.0
    %4713 = vmatprep.subr.mxu0 0.0
    %4714 = vmatpush1.xpose.msra.mxu0 0.0
    %4715 = vmatprep.subr.mxu0 0.0
    %4716 = vmatpush1.xpose.msra.mxu0 0.0
    %4717 = vmatprep.subr.mxu0 0.0
    %4718 = vmatpush1.xpose.msra.mxu0 0.0
    %4719 = vmatprep.subr.mxu0 0.0
    %4720 = vmatpush1.xpose.msra.mxu0 0.0
    %4721 = vmatprep.subr.mxu0 0.0
    %4722 = vmatpush1.xpose.msra.mxu0 0.0
    %4723 = vmatprep.subr.mxu0 0.0
    %4724 = vmatpush1.xpose.msra.mxu0 0.0
    %4725 = vmatprep.subr.mxu0 0.0
    %4726 = vmatpush1.xpose.msra.mxu0 0.0
    %4727 = vmatprep.subr.mxu0 0.0
    %4728 = vmatpush1.xpose.msra.mxu0 0.0
    %4729 = vmatprep.subr.mxu0 0.0
    %4730 = vmatpush1.xpose.msra.mxu0 0.0
    %4731 = vmatprep.subr.mxu0 0.0
    %4732 = vmatpush1.xpose.msra.mxu0 0.0
    %4733 = vmatprep.subr.mxu0 0.0
    %4734 = vmatpush1.xpose.msra.mxu0 0.0
    %4735 = vmatprep.subr.mxu0 0.0
    %4736 = vmatpush1.xpose.msra.mxu0 0.0
    %4737 = vmatprep.subr.mxu0 0.0
    %4738 = vmatpush1.xpose.msra.mxu0 0.0
    %4739 = vmatprep.subr.mxu0 0.0
    %4740 = vmatpush1.xpose.msra.mxu0 0.0
    %4741 = vmatprep.subr.mxu0 0.0
    %4742 = vmatpush1.xpose.msra.mxu0 0.0
    %4743 = vmatprep.mubr.f32.mxu0 0.0
    %4744 = vmatmul.mubr.f32.gmra.mrb[0].mxu0 %v4675
    %v4745 = vpop.f32.mrb[0].mxu0
    %v4746 = vadd.f32 0.0, %v4745
    %v4747 = vpop.f32.mrb[0].mxu0
    %4748 = vdwg.mxu0
    %4749 = vrot.lane.b32.xlu0 %v3978, 96
    %v4750 = vpop.permute.xlu0 %4749
    %v4751 = vsel %vm697, %v3978, 0
    %v4753 = vsel %vm697, %v4750, 0
    %4755 = vmatprep.subr.mxu0 0.0
    %4756 = vmatpush1.xpose.msra.mxu0 %v4753
    %4757 = vmatprep.subr.mxu0 0.0
    %4758 = vmatpush1.xpose.msra.mxu0 0.0
    %4759 = vmatprep.subr.mxu0 0.0
    %4760 = vmatpush1.xpose.msra.mxu0 0.0
    %4761 = vmatprep.subr.mxu0 0.0
    %4762 = vmatpush1.xpose.msra.mxu0 0.0
    %4763 = vmatprep.subr.mxu0 0.0
    %4764 = vmatpush1.xpose.msra.mxu0 0.0
    %4765 = vmatprep.subr.mxu0 0.0
    %4766 = vmatpush1.xpose.msra.mxu0 0.0
    %4767 = vmatprep.subr.mxu0 0.0
    %4768 = vmatpush1.xpose.msra.mxu0 0.0
    %4769 = vmatprep.subr.mxu0 0.0
    %4770 = vmatpush1.xpose.msra.mxu0 0.0
    %4771 = vmatprep.subr.mxu0 0.0
    %4772 = vmatpush1.xpose.msra.mxu0 0.0
    %4773 = vmatprep.subr.mxu0 0.0
    %4774 = vmatpush1.xpose.msra.mxu0 0.0
    %4775 = vmatprep.subr.mxu0 0.0
    %4776 = vmatpush1.xpose.msra.mxu0 0.0
    %4777 = vmatprep.subr.mxu0 0.0
    %4778 = vmatpush1.xpose.msra.mxu0 0.0
    %4779 = vmatprep.subr.mxu0 0.0
    %4780 = vmatpush1.xpose.msra.mxu0 0.0
    %4781 = vmatprep.subr.mxu0 0.0
    %4782 = vmatpush1.xpose.msra.mxu0 0.0
    %4783 = vmatprep.subr.mxu0 0.0
    %4784 = vmatpush1.xpose.msra.mxu0 0.0
    %4785 = vmatprep.subr.mxu0 0.0
    %4786 = vmatpush1.xpose.msra.mxu0 0.0
    %4787 = vmatprep.subr.mxu0 0.0
    %4788 = vmatpush1.xpose.msra.mxu0 0.0
    %4789 = vmatprep.subr.mxu0 0.0
    %4790 = vmatpush1.xpose.msra.mxu0 0.0
    %4791 = vmatprep.subr.mxu0 0.0
    %4792 = vmatpush1.xpose.msra.mxu0 0.0
    %4793 = vmatprep.subr.mxu0 0.0
    %4794 = vmatpush1.xpose.msra.mxu0 0.0
    %4795 = vmatprep.subr.mxu0 0.0
    %4796 = vmatpush1.xpose.msra.mxu0 0.0
    %4797 = vmatprep.subr.mxu0 0.0
    %4798 = vmatpush1.xpose.msra.mxu0 0.0
    %4799 = vmatprep.subr.mxu0 0.0
    %4800 = vmatpush1.xpose.msra.mxu0 0.0
    %4801 = vmatprep.subr.mxu0 0.0
    %4802 = vmatpush1.xpose.msra.mxu0 0.0
    %4803 = vmatprep.subr.mxu0 0.0
    %4804 = vmatpush1.xpose.msra.mxu0 0.0
    %4805 = vmatprep.subr.mxu0 0.0
    %4806 = vmatpush1.xpose.msra.mxu0 0.0
    %4807 = vmatprep.subr.mxu0 0.0
    %4808 = vmatpush1.xpose.msra.mxu0 0.0
    %4809 = vmatprep.subr.mxu0 0.0
    %4810 = vmatpush1.xpose.msra.mxu0 0.0
    %4811 = vmatprep.subr.mxu0 0.0
    %4812 = vmatpush1.xpose.msra.mxu0 0.0
    %4813 = vmatprep.subr.mxu0 0.0
    %4814 = vmatpush1.xpose.msra.mxu0 0.0
    %4815 = vmatprep.subr.mxu0 0.0
    %4816 = vmatpush1.xpose.msra.mxu0 0.0
    %4817 = vmatprep.subr.mxu0 0.0
    %4818 = vmatpush1.xpose.msra.mxu0 0.0
    %4819 = vmatprep.mubr.f32.mxu0 0.0
    %4820 = vmatmul.mubr.f32.gmra.mrb[0].mxu0 %v4751
    %v4821 = vpop.f32.mrb[0].mxu0
    %v4822 = vadd.f32 0.0, %v4821
    %v4823 = vpop.f32.mrb[0].mxu0
    %4824 = vdwg.mxu0
    %4825 = vrot.lane.b32.xlu0 %v3980, 96
    %v4826 = vpop.permute.xlu0 %4825
    %v4827 = vsel %vm697, %v3980, 0
    %v4829 = vsel %vm697, %v4826, 0
    %4831 = vmatprep.subr.mxu0 0.0
    %4832 = vmatpush1.xpose.msra.mxu0 %v4829
    %4833 = vmatprep.subr.mxu0 0.0
    %4834 = vmatpush1.xpose.msra.mxu0 0.0
    %4835 = vmatprep.subr.mxu0 0.0
    %4836 = vmatpush1.xpose.msra.mxu0 0.0
    %4837 = vmatprep.subr.mxu0 0.0
    %4838 = vmatpush1.xpose.msra.mxu0 0.0
    %4839 = vmatprep.subr.mxu0 0.0
    %4840 = vmatpush1.xpose.msra.mxu0 0.0
    %4841 = vmatprep.subr.mxu0 0.0
    %4842 = vmatpush1.xpose.msra.mxu0 0.0
    %4843 = vmatprep.subr.mxu0 0.0
    %4844 = vmatpush1.xpose.msra.mxu0 0.0
    %4845 = vmatprep.subr.mxu0 0.0
    %4846 = vmatpush1.xpose.msra.mxu0 0.0
    %4847 = vmatprep.subr.mxu0 0.0
    %4848 = vmatpush1.xpose.msra.mxu0 0.0
    %4849 = vmatprep.subr.mxu0 0.0
    %4850 = vmatpush1.xpose.msra.mxu0 0.0
    %4851 = vmatprep.subr.mxu0 0.0
    %4852 = vmatpush1.xpose.msra.mxu0 0.0
    %4853 = vmatprep.subr.mxu0 0.0
    %4854 = vmatpush1.xpose.msra.mxu0 0.0
    %4855 = vmatprep.subr.mxu0 0.0
    %4856 = vmatpush1.xpose.msra.mxu0 0.0
    %4857 = vmatprep.subr.mxu0 0.0
    %4858 = vmatpush1.xpose.msra.mxu0 0.0
    %4859 = vmatprep.subr.mxu0 0.0
    %4860 = vmatpush1.xpose.msra.mxu0 0.0
    %4861 = vmatprep.subr.mxu0 0.0
    %4862 = vmatpush1.xpose.msra.mxu0 0.0
    %4863 = vmatprep.subr.mxu0 0.0
    %4864 = vmatpush1.xpose.msra.mxu0 0.0
    %4865 = vmatprep.subr.mxu0 0.0
    %4866 = vmatpush1.xpose.msra.mxu0 0.0
    %4867 = vmatprep.subr.mxu0 0.0
    %4868 = vmatpush1.xpose.msra.mxu0 0.0
    %4869 = vmatprep.subr.mxu0 0.0
    %4870 = vmatpush1.xpose.msra.mxu0 0.0
    %4871 = vmatprep.subr.mxu0 0.0
    %4872 = vmatpush1.xpose.msra.mxu0 0.0
    %4873 = vmatprep.subr.mxu0 0.0
    %4874 = vmatpush1.xpose.msra.mxu0 0.0
    %4875 = vmatprep.subr.mxu0 0.0
    %4876 = vmatpush1.xpose.msra.mxu0 0.0
    %4877 = vmatprep.subr.mxu0 0.0
    %4878 = vmatpush1.xpose.msra.mxu0 0.0
    %4879 = vmatprep.subr.mxu0 0.0
    %4880 = vmatpush1.xpose.msra.mxu0 0.0
    %4881 = vmatprep.subr.mxu0 0.0
    %4882 = vmatpush1.xpose.msra.mxu0 0.0
    %4883 = vmatprep.subr.mxu0 0.0
    %4884 = vmatpush1.xpose.msra.mxu0 0.0
    %4885 = vmatprep.subr.mxu0 0.0
    %4886 = vmatpush1.xpose.msra.mxu0 0.0
    %4887 = vmatprep.subr.mxu0 0.0
    %4888 = vmatpush1.xpose.msra.mxu0 0.0
    %4889 = vmatprep.subr.mxu0 0.0
    %4890 = vmatpush1.xpose.msra.mxu0 0.0
    %4891 = vmatprep.subr.mxu0 0.0
    %4892 = vmatpush1.xpose.msra.mxu0 0.0
    %4893 = vmatprep.subr.mxu0 0.0
    %4894 = vmatpush1.xpose.msra.mxu0 0.0
    %4895 = vmatprep.mubr.f32.mxu0 0.0
    %4896 = vmatmul.mubr.f32.gmra.mrb[0].mxu0 %v4827
    %v4897 = vpop.f32.mrb[0].mxu0
    %v4898 = vadd.f32 0.0, %v4897
    %v4899 = vpop.f32.mrb[0].mxu0
    %4900 = vdwg.mxu0
    %4901 = vrot.lane.b32.xlu0 %v3982, 96
    %v4902 = vpop.permute.xlu0 %4901
    %v4903 = vsel %vm697, %v3982, 0
    %v4905 = vsel %vm697, %v4902, 0
    %4907 = vmatprep.subr.mxu0 0.0
    %4908 = vmatpush1.xpose.msra.mxu0 %v4905
    %4909 = vmatprep.subr.mxu0 0.0
    %4910 = vmatpush1.xpose.msra.mxu0 0.0
    %4911 = vmatprep.subr.mxu0 0.0
    %4912 = vmatpush1.xpose.msra.mxu0 0.0
    %4913 = vmatprep.subr.mxu0 0.0
    %4914 = vmatpush1.xpose.msra.mxu0 0.0
    %4915 = vmatprep.subr.mxu0 0.0
    %4916 = vmatpush1.xpose.msra.mxu0 0.0
    %4917 = vmatprep.subr.mxu0 0.0
    %4918 = vmatpush1.xpose.msra.mxu0 0.0
    %4919 = vmatprep.subr.mxu0 0.0
    %4920 = vmatpush1.xpose.msra.mxu0 0.0
    %4921 = vmatprep.subr.mxu0 0.0
    %4922 = vmatpush1.xpose.msra.mxu0 0.0
    %4923 = vmatprep.subr.mxu0 0.0
    %4924 = vmatpush1.xpose.msra.mxu0 0.0
    %4925 = vmatprep.subr.mxu0 0.0
    %4926 = vmatpush1.xpose.msra.mxu0 0.0
    %4927 = vmatprep.subr.mxu0 0.0
    %4928 = vmatpush1.xpose.msra.mxu0 0.0
    %4929 = vmatprep.subr.mxu0 0.0
    %4930 = vmatpush1.xpose.msra.mxu0 0.0
    %4931 = vmatprep.subr.mxu0 0.0
    %4932 = vmatpush1.xpose.msra.mxu0 0.0
    %4933 = vmatprep.subr.mxu0 0.0
    %4934 = vmatpush1.xpose.msra.mxu0 0.0
    %4935 = vmatprep.subr.mxu0 0.0
    %4936 = vmatpush1.xpose.msra.mxu0 0.0
    %4937 = vmatprep.subr.mxu0 0.0
    %4938 = vmatpush1.xpose.msra.mxu0 0.0
    %4939 = vmatprep.subr.mxu0 0.0
    %4940 = vmatpush1.xpose.msra.mxu0 0.0
    %4941 = vmatprep.subr.mxu0 0.0
    %4942 = vmatpush1.xpose.msra.mxu0 0.0
    %4943 = vmatprep.subr.mxu0 0.0
    %4944 = vmatpush1.xpose.msra.mxu0 0.0
    %4945 = vmatprep.subr.mxu0 0.0
    %4946 = vmatpush1.xpose.msra.mxu0 0.0
    %4947 = vmatprep.subr.mxu0 0.0
    %4948 = vmatpush1.xpose.msra.mxu0 0.0
    %4949 = vmatprep.subr.mxu0 0.0
    %4950 = vmatpush1.xpose.msra.mxu0 0.0
    %4951 = vmatprep.subr.mxu0 0.0
    %4952 = vmatpush1.xpose.msra.mxu0 0.0
    %4953 = vmatprep.subr.mxu0 0.0
    %4954 = vmatpush1.xpose.msra.mxu0 0.0
    %4955 = vmatprep.subr.mxu0 0.0
    %4956 = vmatpush1.xpose.msra.mxu0 0.0
    %4957 = vmatprep.subr.mxu0 0.0
    %4958 = vmatpush1.xpose.msra.mxu0 0.0
    %4959 = vmatprep.subr.mxu0 0.0
    %4960 = vmatpush1.xpose.msra.mxu0 0.0
    %4961 = vmatprep.subr.mxu0 0.0
    %4962 = vmatpush1.xpose.msra.mxu0 0.0
    %4963 = vmatprep.subr.mxu0 0.0
    %4964 = vmatpush1.xpose.msra.mxu0 0.0
    %4965 = vmatprep.subr.mxu0 0.0
    %4966 = vmatpush1.xpose.msra.mxu0 0.0
    %4967 = vmatprep.subr.mxu0 0.0
    %4968 = vmatpush1.xpose.msra.mxu0 0.0
    %4969 = vmatprep.subr.mxu0 0.0
    %4970 = vmatpush1.xpose.msra.mxu0 0.0
    %4971 = vmatprep.mubr.f32.mxu0 0.0
    %4972 = vmatmul.mubr.f32.gmra.mrb[0].mxu0 %v4903
    %v4973 = vpop.f32.mrb[0].mxu0
    %v4974 = vadd.f32 0.0, %v4973
    %v4975 = vpop.f32.mrb[0].mxu0
    %4976 = vdwg.mxu0
    %4977 = vrot.lane.b32.xlu0 %v3984, 96
    %v4978 = vpop.permute.xlu0 %4977
    %v4979 = vsel %vm697, %v3984, 0
    %v4981 = vsel %vm697, %v4978, 0
    %4983 = vmatprep.subr.mxu0 0.0
    %4984 = vmatpush1.xpose.msra.mxu0 %v4981
    %4985 = vmatprep.subr.mxu0 0.0
    %4986 = vmatpush1.xpose.msra.mxu0 0.0
    %4987 = vmatprep.subr.mxu0 0.0
    %4988 = vmatpush1.xpose.msra.mxu0 0.0
    %4989 = vmatprep.subr.mxu0 0.0
    %4990 = vmatpush1.xpose.msra.mxu0 0.0
    %4991 = vmatprep.subr.mxu0 0.0
    %4992 = vmatpush1.xpose.msra.mxu0 0.0
    %4993 = vmatprep.subr.mxu0 0.0
    %4994 = vmatpush1.xpose.msra.mxu0 0.0
    %4995 = vmatprep.subr.mxu0 0.0
    %4996 = vmatpush1.xpose.msra.mxu0 0.0
    %4997 = vmatprep.subr.mxu0 0.0
    %4998 = vmatpush1.xpose.msra.mxu0 0.0
    %4999 = vmatprep.subr.mxu0 0.0
    %5000 = vmatpush1.xpose.msra.mxu0 0.0
    %5001 = vmatprep.subr.mxu0 0.0
    %5002 = vmatpush1.xpose.msra.mxu0 0.0
    %5003 = vmatprep.subr.mxu0 0.0
    %5004 = vmatpush1.xpose.msra.mxu0 0.0
    %5005 = vmatprep.subr.mxu0 0.0
    %5006 = vmatpush1.xpose.msra.mxu0 0.0
    %5007 = vmatprep.subr.mxu0 0.0
    %5008 = vmatpush1.xpose.msra.mxu0 0.0
    %5009 = vmatprep.subr.mxu0 0.0
    %5010 = vmatpush1.xpose.msra.mxu0 0.0
    %5011 = vmatprep.subr.mxu0 0.0
    %5012 = vmatpush1.xpose.msra.mxu0 0.0
    %5013 = vmatprep.subr.mxu0 0.0
    %5014 = vmatpush1.xpose.msra.mxu0 0.0
    %5015 = vmatprep.subr.mxu0 0.0
    %5016 = vmatpush1.xpose.msra.mxu0 0.0
    %5017 = vmatprep.subr.mxu0 0.0
    %5018 = vmatpush1.xpose.msra.mxu0 0.0
    %5019 = vmatprep.subr.mxu0 0.0
    %5020 = vmatpush1.xpose.msra.mxu0 0.0
    %5021 = vmatprep.subr.mxu0 0.0
    %5022 = vmatpush1.xpose.msra.mxu0 0.0
    %5023 = vmatprep.subr.mxu0 0.0
    %5024 = vmatpush1.xpose.msra.mxu0 0.0
    %5025 = vmatprep.subr.mxu0 0.0
    %5026 = vmatpush1.xpose.msra.mxu0 0.0
    %5027 = vmatprep.subr.mxu0 0.0
    %5028 = vmatpush1.xpose.msra.mxu0 0.0
    %5029 = vmatprep.subr.mxu0 0.0
    %5030 = vmatpush1.xpose.msra.mxu0 0.0
    %5031 = vmatprep.subr.mxu0 0.0
    %5032 = vmatpush1.xpose.msra.mxu0 0.0
    %5033 = vmatprep.subr.mxu0 0.0
    %5034 = vmatpush1.xpose.msra.mxu0 0.0
    %5035 = vmatprep.subr.mxu0 0.0
    %5036 = vmatpush1.xpose.msra.mxu0 0.0
    %5037 = vmatprep.subr.mxu0 0.0
    %5038 = vmatpush1.xpose.msra.mxu0 0.0
    %5039 = vmatprep.subr.mxu0 0.0
    %5040 = vmatpush1.xpose.msra.mxu0 0.0
    %5041 = vmatprep.subr.mxu0 0.0
    %5042 = vmatpush1.xpose.msra.mxu0 0.0
    %5043 = vmatprep.subr.mxu0 0.0
    %5044 = vmatpush1.xpose.msra.mxu0 0.0
    %5045 = vmatprep.subr.mxu0 0.0
    %5046 = vmatpush1.xpose.msra.mxu0 0.0
    %5047 = vmatprep.mubr.f32.mxu0 0.0
    %5048 = vmatmul.mubr.f32.gmra.mrb[0].mxu0 %v4979
    %v5049 = vpop.f32.mrb[0].mxu0
    %v5050 = vadd.f32 0.0, %v5049
    %v5051 = vpop.f32.mrb[0].mxu0
    %5052 = vdwg.mxu0
    %5053 = vrot.lane.b32.xlu0 %v3986, 96
    %v5054 = vpop.permute.xlu0 %5053
    %v5055 = vsel %vm697, %v3986, 0
    %v5057 = vsel %vm697, %v5054, 0
    %5059 = vmatprep.subr.mxu0 0.0
    %5060 = vmatpush1.xpose.msra.mxu0 %v5057
    %5061 = vmatprep.subr.mxu0 0.0
    %5062 = vmatpush1.xpose.msra.mxu0 0.0
    %5063 = vmatprep.subr.mxu0 0.0
    %5064 = vmatpush1.xpose.msra.mxu0 0.0
    %5065 = vmatprep.subr.mxu0 0.0
    %5066 = vmatpush1.xpose.msra.mxu0 0.0
    %5067 = vmatprep.subr.mxu0 0.0
    %5068 = vmatpush1.xpose.msra.mxu0 0.0
    %5069 = vmatprep.subr.mxu0 0.0
    %5070 = vmatpush1.xpose.msra.mxu0 0.0
    %5071 = vmatprep.subr.mxu0 0.0
    %5072 = vmatpush1.xpose.msra.mxu0 0.0
    %5073 = vmatprep.subr.mxu0 0.0
    %5074 = vmatpush1.xpose.msra.mxu0 0.0
    %5075 = vmatprep.subr.mxu0 0.0
    %5076 = vmatpush1.xpose.msra.mxu0 0.0
    %5077 = vmatprep.subr.mxu0 0.0
    %5078 = vmatpush1.xpose.msra.mxu0 0.0
    %5079 = vmatprep.subr.mxu0 0.0
    %5080 = vmatpush1.xpose.msra.mxu0 0.0
    %5081 = vmatprep.subr.mxu0 0.0
    %5082 = vmatpush1.xpose.msra.mxu0 0.0
    %5083 = vmatprep.subr.mxu0 0.0
    %5084 = vmatpush1.xpose.msra.mxu0 0.0
    %5085 = vmatprep.subr.mxu0 0.0
    %5086 = vmatpush1.xpose.msra.mxu0 0.0
    %5087 = vmatprep.subr.mxu0 0.0
    %5088 = vmatpush1.xpose.msra.mxu0 0.0
    %5089 = vmatprep.subr.mxu0 0.0
    %5090 = vmatpush1.xpose.msra.mxu0 0.0
    %5091 = vmatprep.subr.mxu0 0.0
    %5092 = vmatpush1.xpose.msra.mxu0 0.0
    %5093 = vmatprep.subr.mxu0 0.0
    %5094 = vmatpush1.xpose.msra.mxu0 0.0
    %5095 = vmatprep.subr.mxu0 0.0
    %5096 = vmatpush1.xpose.msra.mxu0 0.0
    %5097 = vmatprep.subr.mxu0 0.0
    %5098 = vmatpush1.xpose.msra.mxu0 0.0
    %5099 = vmatprep.subr.mxu0 0.0
    %5100 = vmatpush1.xpose.msra.mxu0 0.0
    %5101 = vmatprep.subr.mxu0 0.0
    %5102 = vmatpush1.xpose.msra.mxu0 0.0
    %5103 = vmatprep.subr.mxu0 0.0
    %5104 = vmatpush1.xpose.msra.mxu0 0.0
    %5105 = vmatprep.subr.mxu0 0.0
    %5106 = vmatpush1.xpose.msra.mxu0 0.0
    %5107 = vmatprep.subr.mxu0 0.0
    %5108 = vmatpush1.xpose.msra.mxu0 0.0
    %5109 = vmatprep.subr.mxu0 0.0
    %5110 = vmatpush1.xpose.msra.mxu0 0.0
    %5111 = vmatprep.subr.mxu0 0.0
    %5112 = vmatpush1.xpose.msra.mxu0 0.0
    %5113 = vmatprep.subr.mxu0 0.0
    %5114 = vmatpush1.xpose.msra.mxu0 0.0
    %5115 = vmatprep.subr.mxu0 0.0
    %5116 = vmatpush1.xpose.msra.mxu0 0.0
    %5117 = vmatprep.subr.mxu0 0.0
    %5118 = vmatpush1.xpose.msra.mxu0 0.0
    %5119 = vmatprep.subr.mxu0 0.0
    %5120 = vmatpush1.xpose.msra.mxu0 0.0
    %5121 = vmatprep.subr.mxu0 0.0
    %5122 = vmatpush1.xpose.msra.mxu0 0.0
    %5123 = vmatprep.mubr.f32.mxu0 0.0
    %5124 = vmatmul.mubr.f32.gmra.mrb[0].mxu0 %v5055
    %v5125 = vpop.f32.mrb[0].mxu0
    %v5126 = vadd.f32 0.0, %v5125
    %v5127 = vpop.f32.mrb[0].mxu0
    %5128 = vdwg.mxu0
    %5129 = vrot.lane.b32.xlu0 %v3988, 96
    %v5130 = vpop.permute.xlu0 %5129
    %v5131 = vsel %vm697, %v3988, 0
    %v5133 = vsel %vm697, %v5130, 0
    %5135 = vmatprep.subr.mxu0 0.0
    %5136 = vmatpush1.xpose.msra.mxu0 %v5133
    %5137 = vmatprep.subr.mxu0 0.0
    %5138 = vmatpush1.xpose.msra.mxu0 0.0
    %5139 = vmatprep.subr.mxu0 0.0
    %5140 = vmatpush1.xpose.msra.mxu0 0.0
    %5141 = vmatprep.subr.mxu0 0.0
    %5142 = vmatpush1.xpose.msra.mxu0 0.0
    %5143 = vmatprep.subr.mxu0 0.0
    %5144 = vmatpush1.xpose.msra.mxu0 0.0
    %5145 = vmatprep.subr.mxu0 0.0
    %5146 = vmatpush1.xpose.msra.mxu0 0.0
    %5147 = vmatprep.subr.mxu0 0.0
    %5148 = vmatpush1.xpose.msra.mxu0 0.0
    %5149 = vmatprep.subr.mxu0 0.0
    %5150 = vmatpush1.xpose.msra.mxu0 0.0
    %5151 = vmatprep.subr.mxu0 0.0
    %5152 = vmatpush1.xpose.msra.mxu0 0.0
    %5153 = vmatprep.subr.mxu0 0.0
    %5154 = vmatpush1.xpose.msra.mxu0 0.0
    %5155 = vmatprep.subr.mxu0 0.0
    %5156 = vmatpush1.xpose.msra.mxu0 0.0
    %5157 = vmatprep.subr.mxu0 0.0
    %5158 = vmatpush1.xpose.msra.mxu0 0.0
    %5159 = vmatprep.subr.mxu0 0.0
    %5160 = vmatpush1.xpose.msra.mxu0 0.0
    %5161 = vmatprep.subr.mxu0 0.0
    %5162 = vmatpush1.xpose.msra.mxu0 0.0
    %5163 = vmatprep.subr.mxu0 0.0
    %5164 = vmatpush1.xpose.msra.mxu0 0.0
    %5165 = vmatprep.subr.mxu0 0.0
    %5166 = vmatpush1.xpose.msra.mxu0 0.0
    %5167 = vmatprep.subr.mxu0 0.0
    %5168 = vmatpush1.xpose.msra.mxu0 0.0
    %5169 = vmatprep.subr.mxu0 0.0
    %5170 = vmatpush1.xpose.msra.mxu0 0.0
    %5171 = vmatprep.subr.mxu0 0.0
    %5172 = vmatpush1.xpose.msra.mxu0 0.0
    %5173 = vmatprep.subr.mxu0 0.0
    %5174 = vmatpush1.xpose.msra.mxu0 0.0
    %5175 = vmatprep.subr.mxu0 0.0
    %5176 = vmatpush1.xpose.msra.mxu0 0.0
    %5177 = vmatprep.subr.mxu0 0.0
    %5178 = vmatpush1.xpose.msra.mxu0 0.0
    %5179 = vmatprep.subr.mxu0 0.0
    %5180 = vmatpush1.xpose.msra.mxu0 0.0
    %5181 = vmatprep.subr.mxu0 0.0
    %5182 = vmatpush1.xpose.msra.mxu0 0.0
    %5183 = vmatprep.subr.mxu0 0.0
    %5184 = vmatpush1.xpose.msra.mxu0 0.0
    %5185 = vmatprep.subr.mxu0 0.0
    %5186 = vmatpush1.xpose.msra.mxu0 0.0
    %5187 = vmatprep.subr.mxu0 0.0
    %5188 = vmatpush1.xpose.msra.mxu0 0.0
    %5189 = vmatprep.subr.mxu0 0.0
    %5190 = vmatpush1.xpose.msra.mxu0 0.0
    %5191 = vmatprep.subr.mxu0 0.0
    %5192 = vmatpush1.xpose.msra.mxu0 0.0
    %5193 = vmatprep.subr.mxu0 0.0
    %5194 = vmatpush1.xpose.msra.mxu0 0.0
    %5195 = vmatprep.subr.mxu0 0.0
    %5196 = vmatpush1.xpose.msra.mxu0 0.0
    %5197 = vmatprep.subr.mxu0 0.0
    %5198 = vmatpush1.xpose.msra.mxu0 0.0
    %5199 = vmatprep.mubr.f32.mxu0 0.0
    %5200 = vmatmul.mubr.f32.gmra.mrb[0].mxu0 %v5131
    %v5201 = vpop.f32.mrb[0].mxu0
    %v5202 = vadd.f32 0.0, %v5201
    %v5203 = vpop.f32.mrb[0].mxu0
    %5204 = vdwg.mxu0
    %v5205 = vmul.f32 %v4062, 0.35355338
    %v5206 = vmul.f32 %v4138, 0.35355338
    %v5207 = vmul.f32 %v4214, 0.35355338
    %v5208 = vmul.f32 %v4290, 0.35355338
    %v5209 = vmul.f32 %v4366, 0.35355338
    %v5210 = vmul.f32 %v4442, 0.35355338
    %v5211 = vmul.f32 %v4518, 0.35355338
    %v5212 = vmul.f32 %v4594, 0.35355338
    %v5213 = vmul.f32 %v4670, 0.35355338
    %v5214 = vmul.f32 %v4746, 0.35355338
    %v5215 = vmul.f32 %v4822, 0.35355338
    %v5216 = vmul.f32 %v4898, 0.35355338
    %v5217 = vmul.f32 %v4974, 0.35355338
    %v5218 = vmul.f32 %v5050, 0.35355338
    %v5219 = vmul.f32 %v5126, 0.35355338
    %v5220 = vmul.f32 %v5202, 0.35355338
    %v5221 = vsel %vm697, %v5205, -inf
    %5222 = vmax.xlane.f32.xlu0 %v5221
    %v5223 = vpop.xlane.xlu0 %5222
    %v5224 = vsel %vm697, %v5206, -inf
    %5225 = vmax.xlane.f32.xlu0 %v5224
    %v5226 = vpop.xlane.xlu0 %5225
    %v5227 = vsel %vm697, %v5207, -inf
    %5228 = vmax.xlane.f32.xlu0 %v5227
    %v5229 = vpop.xlane.xlu0 %5228
    %v5230 = vsel %vm697, %v5208, -inf
    %5231 = vmax.xlane.f32.xlu0 %v5230
    %v5232 = vpop.xlane.xlu0 %5231
    %v5233 = vsel %vm697, %v5209, -inf
    %5234 = vmax.xlane.f32.xlu0 %v5233
    %v5235 = vpop.xlane.xlu0 %5234
    %v5236 = vsel %vm697, %v5210, -inf
    %5237 = vmax.xlane.f32.xlu0 %v5236
    %v5238 = vpop.xlane.xlu0 %5237
    %v5239 = vsel %vm697, %v5211, -inf
    %5240 = vmax.xlane.f32.xlu0 %v5239
    %v5241 = vpop.xlane.xlu0 %5240
    %v5242 = vsel %vm697, %v5212, -inf
    %5243 = vmax.xlane.f32.xlu0 %v5242
    %v5244 = vpop.xlane.xlu0 %5243
    %v5245 = vsel %vm697, %v5213, -inf
    %5246 = vmax.xlane.f32.xlu0 %v5245
    %v5247 = vpop.xlane.xlu0 %5246
    %v5248 = vsel %vm697, %v5214, -inf
    %5249 = vmax.xlane.f32.xlu0 %v5248
    %v5250 = vpop.xlane.xlu0 %5249
    %v5251 = vsel %vm697, %v5215, -inf
    %5252 = vmax.xlane.f32.xlu0 %v5251
    %v5253 = vpop.xlane.xlu0 %5252
    %v5254 = vsel %vm697, %v5216, -inf
    %5255 = vmax.xlane.f32.xlu0 %v5254
    %v5256 = vpop.xlane.xlu0 %5255
    %v5257 = vsel %vm697, %v5217, -inf
    %5258 = vmax.xlane.f32.xlu0 %v5257
    %v5259 = vpop.xlane.xlu0 %5258
    %v5260 = vsel %vm697, %v5218, -inf
    %5261 = vmax.xlane.f32.xlu0 %v5260
    %v5262 = vpop.xlane.xlu0 %5261
    %v5263 = vsel %vm697, %v5219, -inf
    %5264 = vmax.xlane.f32.xlu0 %v5263
    %v5265 = vpop.xlane.xlu0 %5264
    %v5266 = vsel %vm697, %v5220, -inf
    %5267 = vmax.xlane.f32.xlu0 %v5266
    %v5268 = vpop.xlane.xlu0 %5267
    %v5269 = vsub.f32 %v5205, %v5223
    %v5270 = vsub.f32 %v5206, %v5226
    %v5271 = vsub.f32 %v5207, %v5229
    %v5272 = vsub.f32 %v5208, %v5232
    %v5273 = vsub.f32 %v5209, %v5235
    %v5274 = vsub.f32 %v5210, %v5238
    %v5275 = vsub.f32 %v5211, %v5241
    %v5276 = vsub.f32 %v5212, %v5244
    %v5277 = vsub.f32 %v5213, %v5247
    %v5278 = vsub.f32 %v5214, %v5250
    %v5279 = vsub.f32 %v5215, %v5253
    %v5280 = vsub.f32 %v5216, %v5256
    %v5281 = vsub.f32 %v5217, %v5259
    %v5282 = vsub.f32 %v5218, %v5262
    %v5283 = vsub.f32 %v5219, %v5265
    %v5284 = vsub.f32 %v5220, %v5268
    %v5285 = vmul.f32 %v5269, 1.442695
    %v5286 = vpow.pop %v5285
    %v5287 = vmul.f32 %v5270, 1.442695
    %v5288 = vpow.pop %v5287
    %v5289 = vmul.f32 %v5271, 1.442695
    %v5290 = vpow.pop %v5289
    %v5291 = vmul.f32 %v5272, 1.442695
    %v5292 = vpow.pop %v5291
    %v5293 = vmul.f32 %v5273, 1.442695
    %v5294 = vpow.pop %v5293
    %v5295 = vmul.f32 %v5274, 1.442695
    %v5296 = vpow.pop %v5295
    %v5297 = vmul.f32 %v5275, 1.442695
    %v5298 = vpow.pop %v5297
    %v5299 = vmul.f32 %v5276, 1.442695
    %v5300 = vpow.pop %v5299
    %v5301 = vmul.f32 %v5277, 1.442695
    %v5302 = vpow.pop %v5301
    %v5303 = vmul.f32 %v5278, 1.442695
    %v5304 = vpow.pop %v5303
    %v5305 = vmul.f32 %v5279, 1.442695
    %v5306 = vpow.pop %v5305
    %v5307 = vmul.f32 %v5280, 1.442695
    %v5308 = vpow.pop %v5307
    %v5309 = vmul.f32 %v5281, 1.442695
    %v5310 = vpow.pop %v5309
    %v5311 = vmul.f32 %v5282, 1.442695
    %v5312 = vpow.pop %v5311
    %v5313 = vmul.f32 %v5283, 1.442695
    %v5314 = vpow.pop %v5313
    %v5315 = vmul.f32 %v5284, 1.442695
    %v5316 = vpow.pop %v5315
    %v5317 = vsel %vm697, %v5286, 0.0
    %5318 = vadd.xlane.f32.xlu0 %v5317
    %v5319 = vpop.xlane.xlu0 %5318
    %v5320 = vsel %vm697, %v5288, 0.0
    %5321 = vadd.xlane.f32.xlu0 %v5320
    %v5322 = vpop.xlane.xlu0 %5321
    %v5323 = vsel %vm697, %v5290, 0.0
    %5324 = vadd.xlane.f32.xlu0 %v5323
    %v5325 = vpop.xlane.xlu0 %5324
    %v5326 = vsel %vm697, %v5292, 0.0
    %5327 = vadd.xlane.f32.xlu0 %v5326
    %v5328 = vpop.xlane.xlu0 %5327
    %v5329 = vsel %vm697, %v5294, 0.0
    %5330 = vadd.xlane.f32.xlu0 %v5329
    %v5331 = vpop.xlane.xlu0 %5330
    %v5332 = vsel %vm697, %v5296, 0.0
    %5333 = vadd.xlane.f32.xlu0 %v5332
    %v5334 = vpop.xlane.xlu0 %5333
    %v5335 = vsel %vm697, %v5298, 0.0
    %5336 = vadd.xlane.f32.xlu0 %v5335
    %v5337 = vpop.xlane.xlu0 %5336
    %v5338 = vsel %vm697, %v5300, 0.0
    %5339 = vadd.xlane.f32.xlu0 %v5338
    %v5340 = vpop.xlane.xlu0 %5339
    %v5341 = vsel %vm697, %v5302, 0.0
    %5342 = vadd.xlane.f32.xlu0 %v5341
    %v5343 = vpop.xlane.xlu0 %5342
    %v5344 = vsel %vm697, %v5304, 0.0
    %5345 = vadd.xlane.f32.xlu0 %v5344
    %v5346 = vpop.xlane.xlu0 %5345
    %v5347 = vsel %vm697, %v5306, 0.0
    %5348 = vadd.xlane.f32.xlu0 %v5347
    %v5349 = vpop.xlane.xlu0 %5348
    %v5350 = vsel %vm697, %v5308, 0.0
    %5351 = vadd.xlane.f32.xlu0 %v5350
    %v5352 = vpop.xlane.xlu0 %5351
    %v5353 = vsel %vm697, %v5310, 0.0
    %5354 = vadd.xlane.f32.xlu0 %v5353
    %v5355 = vpop.xlane.xlu0 %5354
    %v5356 = vsel %vm697, %v5312, 0.0
    %5357 = vadd.xlane.f32.xlu0 %v5356
    %v5358 = vpop.xlane.xlu0 %5357
    %v5359 = vsel %vm697, %v5314, 0.0
    %5360 = vadd.xlane.f32.xlu0 %v5359
    %v5361 = vpop.xlane.xlu0 %5360
    %v5362 = vsel %vm697, %v5316, 0.0
    %5363 = vadd.xlane.f32.xlu0 %v5362
    %v5364 = vpop.xlane.xlu0 %5363
    %v5365 = vrcp.pop %v5319
    %v5366 = vrcp.pop %v5322
    %v5367 = vrcp.pop %v5325
    %v5368 = vrcp.pop %v5328
    %v5369 = vrcp.pop %v5331
    %v5370 = vrcp.pop %v5334
    %v5371 = vrcp.pop %v5337
    %v5372 = vrcp.pop %v5340
    %v5373 = vrcp.pop %v5343
    %v5374 = vrcp.pop %v5346
    %v5375 = vrcp.pop %v5349
    %v5376 = vrcp.pop %v5352
    %v5377 = vrcp.pop %v5355
    %v5378 = vrcp.pop %v5358
    %v5379 = vrcp.pop %v5361
    %v5380 = vrcp.pop %v5364
    %v5381 = vmul.f32 %v5286, %v5365
    %v5382 = vmul.f32 %v5288, %v5366
    %v5383 = vmul.f32 %v5290, %v5367
    %v5384 = vmul.f32 %v5292, %v5368
    %v5385 = vmul.f32 %v5294, %v5369
    %v5386 = vmul.f32 %v5296, %v5370
    %v5387 = vmul.f32 %v5298, %v5371
    %v5388 = vmul.f32 %v5300, %v5372
    %v5389 = vmul.f32 %v5302, %v5373
    %v5390 = vmul.f32 %v5304, %v5374
    %v5391 = vmul.f32 %v5306, %v5375
    %v5392 = vmul.f32 %v5308, %v5376
    %v5393 = vmul.f32 %v5310, %v5377
    %v5394 = vmul.f32 %v5312, %v5378
    %v5395 = vmul.f32 %v5314, %v5379
    %v5396 = vmul.f32 %v5316, %v5380
    %5397 = vrot.lane.b32.xlu0 %v3943, 64
    %v5398 = vpop.permute.xlu0 %5397
    %v5401 = vsel %vm697, %v5381, 0
    %5403 = vmatprep.subr.mxu0 0.0
    %5404 = vmatpush1.msra.mxu0 %v5398
    %5405 = vmatprep.subr.mxu0 0.0
    %5406 = vmatpush1.msra.mxu0 0.0
    %5407 = vmatprep.subr.mxu0 0.0
    %5408 = vmatpush1.msra.mxu0 0.0
    %5409 = vmatprep.subr.mxu0 0.0
    %5410 = vmatpush1.msra.mxu0 0.0
    %5411 = vmatprep.subr.mxu0 0.0
    %5412 = vmatpush1.msra.mxu0 0.0
    %5413 = vmatprep.subr.mxu0 0.0
    %5414 = vmatpush1.msra.mxu0 0.0
    %5415 = vmatprep.subr.mxu0 0.0
    %5416 = vmatpush1.msra.mxu0 0.0
    %5417 = vmatprep.subr.mxu0 0.0
    %5418 = vmatpush1.msra.mxu0 0.0
    %5419 = vmatprep.subr.mxu0 0.0
    %5420 = vmatpush1.msra.mxu0 0.0
    %5421 = vmatprep.subr.mxu0 0.0
    %5422 = vmatpush1.msra.mxu0 0.0
    %5423 = vmatprep.subr.mxu0 0.0
    %5424 = vmatpush1.msra.mxu0 0.0
    %5425 = vmatprep.subr.mxu0 0.0
    %5426 = vmatpush1.msra.mxu0 0.0
    %5427 = vmatprep.subr.mxu0 0.0
    %5428 = vmatpush1.msra.mxu0 0.0
    %5429 = vmatprep.subr.mxu0 0.0
    %5430 = vmatpush1.msra.mxu0 0.0
    %5431 = vmatprep.subr.mxu0 0.0
    %5432 = vmatpush1.msra.mxu0 0.0
    %5433 = vmatprep.subr.mxu0 0.0
    %5434 = vmatpush1.msra.mxu0 0.0
    %5435 = vmatprep.subr.mxu0 0.0
    %5436 = vmatpush1.msra.mxu0 0.0
    %5437 = vmatprep.subr.mxu0 0.0
    %5438 = vmatpush1.msra.mxu0 0.0
    %5439 = vmatprep.subr.mxu0 0.0
    %5440 = vmatpush1.msra.mxu0 0.0
    %5441 = vmatprep.subr.mxu0 0.0
    %5442 = vmatpush1.msra.mxu0 0.0
    %5443 = vmatprep.subr.mxu0 0.0
    %5444 = vmatpush1.msra.mxu0 0.0
    %5445 = vmatprep.subr.mxu0 0.0
    %5446 = vmatpush1.msra.mxu0 0.0
    %5447 = vmatprep.subr.mxu0 0.0
    %5448 = vmatpush1.msra.mxu0 0.0
    %5449 = vmatprep.subr.mxu0 0.0
    %5450 = vmatpush1.msra.mxu0 0.0
    %5451 = vmatprep.subr.mxu0 0.0
    %5452 = vmatpush1.msra.mxu0 0.0
    %5453 = vmatprep.subr.mxu0 0.0
    %5454 = vmatpush1.msra.mxu0 0.0
    %5455 = vmatprep.subr.mxu0 0.0
    %5456 = vmatpush1.msra.mxu0 0.0
    %5457 = vmatprep.subr.mxu0 0.0
    %5458 = vmatpush1.msra.mxu0 0.0
    %5459 = vmatprep.subr.mxu0 0.0
    %5460 = vmatpush1.msra.mxu0 0.0
    %5461 = vmatprep.subr.mxu0 0.0
    %5462 = vmatpush1.msra.mxu0 0.0
    %5463 = vmatprep.subr.mxu0 0.0
    %5464 = vmatpush1.msra.mxu0 0.0
    %5465 = vmatprep.subr.mxu0 0.0
    %5466 = vmatpush1.msra.mxu0 0.0
    %5467 = vmatprep.mubr.f32.mxu0 0.0
    %5468 = vmatmul.mubr.f32.gmra.mrb[0].mxu0 %v5401
    %v5469 = vpop.f32.mrb[0].mxu0
    %v5470 = vadd.f32 0.0, %v5469
    %v5471 = vpop.f32.mrb[0].mxu0
    %5472 = vdwg.mxu0
    %5473 = vrot.lane.b32.xlu0 %v3948, 64
    %v5474 = vpop.permute.xlu0 %5473
    %v5477 = vsel %vm697, %v5382, 0
    %5479 = vmatprep.subr.mxu0 0.0
    %5480 = vmatpush1.msra.mxu0 %v5474
    %5481 = vmatprep.subr.mxu0 0.0
    %5482 = vmatpush1.msra.mxu0 0.0
    %5483 = vmatprep.subr.mxu0 0.0
    %5484 = vmatpush1.msra.mxu0 0.0
    %5485 = vmatprep.subr.mxu0 0.0
    %5486 = vmatpush1.msra.mxu0 0.0
    %5487 = vmatprep.subr.mxu0 0.0
    %5488 = vmatpush1.msra.mxu0 0.0
    %5489 = vmatprep.subr.mxu0 0.0
    %5490 = vmatpush1.msra.mxu0 0.0
    %5491 = vmatprep.subr.mxu0 0.0
    %5492 = vmatpush1.msra.mxu0 0.0
    %5493 = vmatprep.subr.mxu0 0.0
    %5494 = vmatpush1.msra.mxu0 0.0
    %5495 = vmatprep.subr.mxu0 0.0
    %5496 = vmatpush1.msra.mxu0 0.0
    %5497 = vmatprep.subr.mxu0 0.0
    %5498 = vmatpush1.msra.mxu0 0.0
    %5499 = vmatprep.subr.mxu0 0.0
    %5500 = vmatpush1.msra.mxu0 0.0
    %5501 = vmatprep.subr.mxu0 0.0
    %5502 = vmatpush1.msra.mxu0 0.0
    %5503 = vmatprep.subr.mxu0 0.0
    %5504 = vmatpush1.msra.mxu0 0.0
    %5505 = vmatprep.subr.mxu0 0.0
    %5506 = vmatpush1.msra.mxu0 0.0
    %5507 = vmatprep.subr.mxu0 0.0
    %5508 = vmatpush1.msra.mxu0 0.0
    %5509 = vmatprep.subr.mxu0 0.0
    %5510 = vmatpush1.msra.mxu0 0.0
    %5511 = vmatprep.subr.mxu0 0.0
    %5512 = vmatpush1.msra.mxu0 0.0
    %5513 = vmatprep.subr.mxu0 0.0
    %5514 = vmatpush1.msra.mxu0 0.0
    %5515 = vmatprep.subr.mxu0 0.0
    %5516 = vmatpush1.msra.mxu0 0.0
    %5517 = vmatprep.subr.mxu0 0.0
    %5518 = vmatpush1.msra.mxu0 0.0
    %5519 = vmatprep.subr.mxu0 0.0
    %5520 = vmatpush1.msra.mxu0 0.0
    %5521 = vmatprep.subr.mxu0 0.0
    %5522 = vmatpush1.msra.mxu0 0.0
    %5523 = vmatprep.subr.mxu0 0.0
    %5524 = vmatpush1.msra.mxu0 0.0
    %5525 = vmatprep.subr.mxu0 0.0
    %5526 = vmatpush1.msra.mxu0 0.0
    %5527 = vmatprep.subr.mxu0 0.0
    %5528 = vmatpush1.msra.mxu0 0.0
    %5529 = vmatprep.subr.mxu0 0.0
    %5530 = vmatpush1.msra.mxu0 0.0
    %5531 = vmatprep.subr.mxu0 0.0
    %5532 = vmatpush1.msra.mxu0 0.0
    %5533 = vmatprep.subr.mxu0 0.0
    %5534 = vmatpush1.msra.mxu0 0.0
    %5535 = vmatprep.subr.mxu0 0.0
    %5536 = vmatpush1.msra.mxu0 0.0
    %5537 = vmatprep.subr.mxu0 0.0
    %5538 = vmatpush1.msra.mxu0 0.0
    %5539 = vmatprep.subr.mxu0 0.0
    %5540 = vmatpush1.msra.mxu0 0.0
    %5541 = vmatprep.subr.mxu0 0.0
    %5542 = vmatpush1.msra.mxu0 0.0
    %5543 = vmatprep.mubr.f32.mxu0 0.0
    %5544 = vmatmul.mubr.f32.gmra.mrb[0].mxu0 %v5477
    %v5545 = vpop.f32.mrb[0].mxu0
    %v5546 = vadd.f32 0.0, %v5545
    %v5547 = vpop.f32.mrb[0].mxu0
    %5548 = vdwg.mxu0
    %5549 = vrot.lane.b32.xlu0 %v3953, 64
    %v5550 = vpop.permute.xlu0 %5549
    %v5553 = vsel %vm697, %v5383, 0
    %5555 = vmatprep.subr.mxu0 0.0
    %5556 = vmatpush1.msra.mxu0 %v5550
    %5557 = vmatprep.subr.mxu0 0.0
    %5558 = vmatpush1.msra.mxu0 0.0
    %5559 = vmatprep.subr.mxu0 0.0
    %5560 = vmatpush1.msra.mxu0 0.0
    %5561 = vmatprep.subr.mxu0 0.0
    %5562 = vmatpush1.msra.mxu0 0.0
    %5563 = vmatprep.subr.mxu0 0.0
    %5564 = vmatpush1.msra.mxu0 0.0
    %5565 = vmatprep.subr.mxu0 0.0
    %5566 = vmatpush1.msra.mxu0 0.0
    %5567 = vmatprep.subr.mxu0 0.0
    %5568 = vmatpush1.msra.mxu0 0.0
    %5569 = vmatprep.subr.mxu0 0.0
    %5570 = vmatpush1.msra.mxu0 0.0
    %5571 = vmatprep.subr.mxu0 0.0
    %5572 = vmatpush1.msra.mxu0 0.0
    %5573 = vmatprep.subr.mxu0 0.0
    %5574 = vmatpush1.msra.mxu0 0.0
    %5575 = vmatprep.subr.mxu0 0.0
    %5576 = vmatpush1.msra.mxu0 0.0
    %5577 = vmatprep.subr.mxu0 0.0
    %5578 = vmatpush1.msra.mxu0 0.0
    %5579 = vmatprep.subr.mxu0 0.0
    %5580 = vmatpush1.msra.mxu0 0.0
    %5581 = vmatprep.subr.mxu0 0.0
    %5582 = vmatpush1.msra.mxu0 0.0
    %5583 = vmatprep.subr.mxu0 0.0
    %5584 = vmatpush1.msra.mxu0 0.0
    %5585 = vmatprep.subr.mxu0 0.0
    %5586 = vmatpush1.msra.mxu0 0.0
    %5587 = vmatprep.subr.mxu0 0.0
    %5588 = vmatpush1.msra.mxu0 0.0
    %5589 = vmatprep.subr.mxu0 0.0
    %5590 = vmatpush1.msra.mxu0 0.0
    %5591 = vmatprep.subr.mxu0 0.0
    %5592 = vmatpush1.msra.mxu0 0.0
    %5593 = vmatprep.subr.mxu0 0.0
    %5594 = vmatpush1.msra.mxu0 0.0
    %5595 = vmatprep.subr.mxu0 0.0
    %5596 = vmatpush1.msra.mxu0 0.0
    %5597 = vmatprep.subr.mxu0 0.0
    %5598 = vmatpush1.msra.mxu0 0.0
    %5599 = vmatprep.subr.mxu0 0.0
    %5600 = vmatpush1.msra.mxu0 0.0
    %5601 = vmatprep.subr.mxu0 0.0
    %5602 = vmatpush1.msra.mxu0 0.0
    %5603 = vmatprep.subr.mxu0 0.0
    %5604 = vmatpush1.msra.mxu0 0.0
    %5605 = vmatprep.subr.mxu0 0.0
    %5606 = vmatpush1.msra.mxu0 0.0
    %5607 = vmatprep.subr.mxu0 0.0
    %5608 = vmatpush1.msra.mxu0 0.0
    %5609 = vmatprep.subr.mxu0 0.0
    %5610 = vmatpush1.msra.mxu0 0.0
    %5611 = vmatprep.subr.mxu0 0.0
    %5612 = vmatpush1.msra.mxu0 0.0
    %5613 = vmatprep.subr.mxu0 0.0
    %5614 = vmatpush1.msra.mxu0 0.0
    %5615 = vmatprep.subr.mxu0 0.0
    %5616 = vmatpush1.msra.mxu0 0.0
    %5617 = vmatprep.subr.mxu0 0.0
    %5618 = vmatpush1.msra.mxu0 0.0
    %5619 = vmatprep.mubr.f32.mxu0 0.0
    %5620 = vmatmul.mubr.f32.gmra.mrb[0].mxu0 %v5553
    %v5621 = vpop.f32.mrb[0].mxu0
    %v5622 = vadd.f32 0.0, %v5621
    %v5623 = vpop.f32.mrb[0].mxu0
    %5624 = vdwg.mxu0
    %5625 = vrot.lane.b32.xlu0 %v3958, 64
    %v5626 = vpop.permute.xlu0 %5625
    %v5629 = vsel %vm697, %v5384, 0
    %5631 = vmatprep.subr.mxu0 0.0
    %5632 = vmatpush1.msra.mxu0 %v5626
    %5633 = vmatprep.subr.mxu0 0.0
    %5634 = vmatpush1.msra.mxu0 0.0
    %5635 = vmatprep.subr.mxu0 0.0
    %5636 = vmatpush1.msra.mxu0 0.0
    %5637 = vmatprep.subr.mxu0 0.0
    %5638 = vmatpush1.msra.mxu0 0.0
    %5639 = vmatprep.subr.mxu0 0.0
    %5640 = vmatpush1.msra.mxu0 0.0
    %5641 = vmatprep.subr.mxu0 0.0
    %5642 = vmatpush1.msra.mxu0 0.0
    %5643 = vmatprep.subr.mxu0 0.0
    %5644 = vmatpush1.msra.mxu0 0.0
    %5645 = vmatprep.subr.mxu0 0.0
    %5646 = vmatpush1.msra.mxu0 0.0
    %5647 = vmatprep.subr.mxu0 0.0
    %5648 = vmatpush1.msra.mxu0 0.0
    %5649 = vmatprep.subr.mxu0 0.0
    %5650 = vmatpush1.msra.mxu0 0.0
    %5651 = vmatprep.subr.mxu0 0.0
    %5652 = vmatpush1.msra.mxu0 0.0
    %5653 = vmatprep.subr.mxu0 0.0
    %5654 = vmatpush1.msra.mxu0 0.0
    %5655 = vmatprep.subr.mxu0 0.0
    %5656 = vmatpush1.msra.mxu0 0.0
    %5657 = vmatprep.subr.mxu0 0.0
    %5658 = vmatpush1.msra.mxu0 0.0
    %5659 = vmatprep.subr.mxu0 0.0
    %5660 = vmatpush1.msra.mxu0 0.0
    %5661 = vmatprep.subr.mxu0 0.0
    %5662 = vmatpush1.msra.mxu0 0.0
    %5663 = vmatprep.subr.mxu0 0.0
    %5664 = vmatpush1.msra.mxu0 0.0
    %5665 = vmatprep.subr.mxu0 0.0
    %5666 = vmatpush1.msra.mxu0 0.0
    %5667 = vmatprep.subr.mxu0 0.0
    %5668 = vmatpush1.msra.mxu0 0.0
    %5669 = vmatprep.subr.mxu0 0.0
    %5670 = vmatpush1.msra.mxu0 0.0
    %5671 = vmatprep.subr.mxu0 0.0
    %5672 = vmatpush1.msra.mxu0 0.0
    %5673 = vmatprep.subr.mxu0 0.0
    %5674 = vmatpush1.msra.mxu0 0.0
    %5675 = vmatprep.subr.mxu0 0.0
    %5676 = vmatpush1.msra.mxu0 0.0
    %5677 = vmatprep.subr.mxu0 0.0
    %5678 = vmatpush1.msra.mxu0 0.0
    %5679 = vmatprep.subr.mxu0 0.0
    %5680 = vmatpush1.msra.mxu0 0.0
    %5681 = vmatprep.subr.mxu0 0.0
    %5682 = vmatpush1.msra.mxu0 0.0
    %5683 = vmatprep.subr.mxu0 0.0
    %5684 = vmatpush1.msra.mxu0 0.0
    %5685 = vmatprep.subr.mxu0 0.0
    %5686 = vmatpush1.msra.mxu0 0.0
    %5687 = vmatprep.subr.mxu0 0.0
    %5688 = vmatpush1.msra.mxu0 0.0
    %5689 = vmatprep.subr.mxu0 0.0
    %5690 = vmatpush1.msra.mxu0 0.0
    %5691 = vmatprep.subr.mxu0 0.0
    %5692 = vmatpush1.msra.mxu0 0.0
    %5693 = vmatprep.subr.mxu0 0.0
    %5694 = vmatpush1.msra.mxu0 0.0
    %5695 = vmatprep.mubr.f32.mxu0 0.0
    %5696 = vmatmul.mubr.f32.gmra.mrb[0].mxu0 %v5629
    %v5697 = vpop.f32.mrb[0].mxu0
    %v5698 = vadd.f32 0.0, %v5697
    %v5699 = vpop.f32.mrb[0].mxu0
    %5700 = vdwg.mxu0
    %5701 = vrot.lane.b32.xlu0 %v3966, 64
    %v5702 = vpop.permute.xlu0 %5701
    %v5705 = vsel %vm697, %v5385, 0
    %5707 = vmatprep.subr.mxu0 0.0
    %5708 = vmatpush1.msra.mxu0 %v5702
    %5709 = vmatprep.subr.mxu0 0.0
    %5710 = vmatpush1.msra.mxu0 0.0
    %5711 = vmatprep.subr.mxu0 0.0
    %5712 = vmatpush1.msra.mxu0 0.0
    %5713 = vmatprep.subr.mxu0 0.0
    %5714 = vmatpush1.msra.mxu0 0.0
    %5715 = vmatprep.subr.mxu0 0.0
    %5716 = vmatpush1.msra.mxu0 0.0
    %5717 = vmatprep.subr.mxu0 0.0
    %5718 = vmatpush1.msra.mxu0 0.0
    %5719 = vmatprep.subr.mxu0 0.0
    %5720 = vmatpush1.msra.mxu0 0.0
    %5721 = vmatprep.subr.mxu0 0.0
    %5722 = vmatpush1.msra.mxu0 0.0
    %5723 = vmatprep.subr.mxu0 0.0
    %5724 = vmatpush1.msra.mxu0 0.0
    %5725 = vmatprep.subr.mxu0 0.0
    %5726 = vmatpush1.msra.mxu0 0.0
    %5727 = vmatprep.subr.mxu0 0.0
    %5728 = vmatpush1.msra.mxu0 0.0
    %5729 = vmatprep.subr.mxu0 0.0
    %5730 = vmatpush1.msra.mxu0 0.0
    %5731 = vmatprep.subr.mxu0 0.0
    %5732 = vmatpush1.msra.mxu0 0.0
    %5733 = vmatprep.subr.mxu0 0.0
    %5734 = vmatpush1.msra.mxu0 0.0
    %5735 = vmatprep.subr.mxu0 0.0
    %5736 = vmatpush1.msra.mxu0 0.0
    %5737 = vmatprep.subr.mxu0 0.0
    %5738 = vmatpush1.msra.mxu0 0.0
    %5739 = vmatprep.subr.mxu0 0.0
    %5740 = vmatpush1.msra.mxu0 0.0
    %5741 = vmatprep.subr.mxu0 0.0
    %5742 = vmatpush1.msra.mxu0 0.0
    %5743 = vmatprep.subr.mxu0 0.0
    %5744 = vmatpush1.msra.mxu0 0.0
    %5745 = vmatprep.subr.mxu0 0.0
    %5746 = vmatpush1.msra.mxu0 0.0
    %5747 = vmatprep.subr.mxu0 0.0
    %5748 = vmatpush1.msra.mxu0 0.0
    %5749 = vmatprep.subr.mxu0 0.0
    %5750 = vmatpush1.msra.mxu0 0.0
    %5751 = vmatprep.subr.mxu0 0.0
    %5752 = vmatpush1.msra.mxu0 0.0
    %5753 = vmatprep.subr.mxu0 0.0
    %5754 = vmatpush1.msra.mxu0 0.0
    %5755 = vmatprep.subr.mxu0 0.0
    %5756 = vmatpush1.msra.mxu0 0.0
    %5757 = vmatprep.subr.mxu0 0.0
    %5758 = vmatpush1.msra.mxu0 0.0
    %5759 = vmatprep.subr.mxu0 0.0
    %5760 = vmatpush1.msra.mxu0 0.0
    %5761 = vmatprep.subr.mxu0 0.0
    %5762 = vmatpush1.msra.mxu0 0.0
    %5763 = vmatprep.subr.mxu0 0.0
    %5764 = vmatpush1.msra.mxu0 0.0
    %5765 = vmatprep.subr.mxu0 0.0
    %5766 = vmatpush1.msra.mxu0 0.0
    %5767 = vmatprep.subr.mxu0 0.0
    %5768 = vmatpush1.msra.mxu0 0.0
    %5769 = vmatprep.subr.mxu0 0.0
    %5770 = vmatpush1.msra.mxu0 0.0
    %5771 = vmatprep.mubr.f32.mxu0 0.0
    %5772 = vmatmul.mubr.f32.gmra.mrb[0].mxu0 %v5705
    %v5773 = vpop.f32.mrb[0].mxu0
    %v5774 = vadd.f32 0.0, %v5773
    %v5775 = vpop.f32.mrb[0].mxu0
    %5776 = vdwg.mxu0
    %5777 = vrot.lane.b32.xlu0 %v3968, 64
    %v5778 = vpop.permute.xlu0 %5777
    %v5781 = vsel %vm697, %v5386, 0
    %5783 = vmatprep.subr.mxu0 0.0
    %5784 = vmatpush1.msra.mxu0 %v5778
    %5785 = vmatprep.subr.mxu0 0.0
    %5786 = vmatpush1.msra.mxu0 0.0
    %5787 = vmatprep.subr.mxu0 0.0
    %5788 = vmatpush1.msra.mxu0 0.0
    %5789 = vmatprep.subr.mxu0 0.0
    %5790 = vmatpush1.msra.mxu0 0.0
    %5791 = vmatprep.subr.mxu0 0.0
    %5792 = vmatpush1.msra.mxu0 0.0
    %5793 = vmatprep.subr.mxu0 0.0
    %5794 = vmatpush1.msra.mxu0 0.0
    %5795 = vmatprep.subr.mxu0 0.0
    %5796 = vmatpush1.msra.mxu0 0.0
    %5797 = vmatprep.subr.mxu0 0.0
    %5798 = vmatpush1.msra.mxu0 0.0
    %5799 = vmatprep.subr.mxu0 0.0
    %5800 = vmatpush1.msra.mxu0 0.0
    %5801 = vmatprep.subr.mxu0 0.0
    %5802 = vmatpush1.msra.mxu0 0.0
    %5803 = vmatprep.subr.mxu0 0.0
    %5804 = vmatpush1.msra.mxu0 0.0
    %5805 = vmatprep.subr.mxu0 0.0
    %5806 = vmatpush1.msra.mxu0 0.0
    %5807 = vmatprep.subr.mxu0 0.0
    %5808 = vmatpush1.msra.mxu0 0.0
    %5809 = vmatprep.subr.mxu0 0.0
    %5810 = vmatpush1.msra.mxu0 0.0
    %5811 = vmatprep.subr.mxu0 0.0
    %5812 = vmatpush1.msra.mxu0 0.0
    %5813 = vmatprep.subr.mxu0 0.0
    %5814 = vmatpush1.msra.mxu0 0.0
    %5815 = vmatprep.subr.mxu0 0.0
    %5816 = vmatpush1.msra.mxu0 0.0
    %5817 = vmatprep.subr.mxu0 0.0
    %5818 = vmatpush1.msra.mxu0 0.0
    %5819 = vmatprep.subr.mxu0 0.0
    %5820 = vmatpush1.msra.mxu0 0.0
    %5821 = vmatprep.subr.mxu0 0.0
    %5822 = vmatpush1.msra.mxu0 0.0
    %5823 = vmatprep.subr.mxu0 0.0
    %5824 = vmatpush1.msra.mxu0 0.0
    %5825 = vmatprep.subr.mxu0 0.0
    %5826 = vmatpush1.msra.mxu0 0.0
    %5827 = vmatprep.subr.mxu0 0.0
    %5828 = vmatpush1.msra.mxu0 0.0
    %5829 = vmatprep.subr.mxu0 0.0
    %5830 = vmatpush1.msra.mxu0 0.0
    %5831 = vmatprep.subr.mxu0 0.0
    %5832 = vmatpush1.msra.mxu0 0.0
    %5833 = vmatprep.subr.mxu0 0.0
    %5834 = vmatpush1.msra.mxu0 0.0
    %5835 = vmatprep.subr.mxu0 0.0
    %5836 = vmatpush1.msra.mxu0 0.0
    %5837 = vmatprep.subr.mxu0 0.0
    %5838 = vmatpush1.msra.mxu0 0.0
    %5839 = vmatprep.subr.mxu0 0.0
    %5840 = vmatpush1.msra.mxu0 0.0
    %5841 = vmatprep.subr.mxu0 0.0
    %5842 = vmatpush1.msra.mxu0 0.0
    %5843 = vmatprep.subr.mxu0 0.0
    %5844 = vmatpush1.msra.mxu0 0.0
    %5845 = vmatprep.subr.mxu0 0.0
    %5846 = vmatpush1.msra.mxu0 0.0
    %5847 = vmatprep.mubr.f32.mxu0 0.0
    %5848 = vmatmul.mubr.f32.gmra.mrb[0].mxu0 %v5781
    %v5849 = vpop.f32.mrb[0].mxu0
    %v5850 = vadd.f32 0.0, %v5849
    %v5851 = vpop.f32.mrb[0].mxu0
    %5852 = vdwg.mxu0
    %5853 = vrot.lane.b32.xlu0 %v3970, 64
    %v5854 = vpop.permute.xlu0 %5853
    %v5857 = vsel %vm697, %v5387, 0
    %5859 = vmatprep.subr.mxu0 0.0
    %5860 = vmatpush1.msra.mxu0 %v5854
    %5861 = vmatprep.subr.mxu0 0.0
    %5862 = vmatpush1.msra.mxu0 0.0
    %5863 = vmatprep.subr.mxu0 0.0
    %5864 = vmatpush1.msra.mxu0 0.0
    %5865 = vmatprep.subr.mxu0 0.0
    %5866 = vmatpush1.msra.mxu0 0.0
    %5867 = vmatprep.subr.mxu0 0.0
    %5868 = vmatpush1.msra.mxu0 0.0
    %5869 = vmatprep.subr.mxu0 0.0
    %5870 = vmatpush1.msra.mxu0 0.0
    %5871 = vmatprep.subr.mxu0 0.0
    %5872 = vmatpush1.msra.mxu0 0.0
    %5873 = vmatprep.subr.mxu0 0.0
    %5874 = vmatpush1.msra.mxu0 0.0
    %5875 = vmatprep.subr.mxu0 0.0
    %5876 = vmatpush1.msra.mxu0 0.0
    %5877 = vmatprep.subr.mxu0 0.0
    %5878 = vmatpush1.msra.mxu0 0.0
    %5879 = vmatprep.subr.mxu0 0.0
    %5880 = vmatpush1.msra.mxu0 0.0
    %5881 = vmatprep.subr.mxu0 0.0
    %5882 = vmatpush1.msra.mxu0 0.0
    %5883 = vmatprep.subr.mxu0 0.0
    %5884 = vmatpush1.msra.mxu0 0.0
    %5885 = vmatprep.subr.mxu0 0.0
    %5886 = vmatpush1.msra.mxu0 0.0
    %5887 = vmatprep.subr.mxu0 0.0
    %5888 = vmatpush1.msra.mxu0 0.0
    %5889 = vmatprep.subr.mxu0 0.0
    %5890 = vmatpush1.msra.mxu0 0.0
    %5891 = vmatprep.subr.mxu0 0.0
    %5892 = vmatpush1.msra.mxu0 0.0
    %5893 = vmatprep.subr.mxu0 0.0
    %5894 = vmatpush1.msra.mxu0 0.0
    %5895 = vmatprep.subr.mxu0 0.0
    %5896 = vmatpush1.msra.mxu0 0.0
    %5897 = vmatprep.subr.mxu0 0.0
    %5898 = vmatpush1.msra.mxu0 0.0
    %5899 = vmatprep.subr.mxu0 0.0
    %5900 = vmatpush1.msra.mxu0 0.0
    %5901 = vmatprep.subr.mxu0 0.0
    %5902 = vmatpush1.msra.mxu0 0.0
    %5903 = vmatprep.subr.mxu0 0.0
    %5904 = vmatpush1.msra.mxu0 0.0
    %5905 = vmatprep.subr.mxu0 0.0
    %5906 = vmatpush1.msra.mxu0 0.0
    %5907 = vmatprep.subr.mxu0 0.0
    %5908 = vmatpush1.msra.mxu0 0.0
    %5909 = vmatprep.subr.mxu0 0.0
    %5910 = vmatpush1.msra.mxu0 0.0
    %5911 = vmatprep.subr.mxu0 0.0
    %5912 = vmatpush1.msra.mxu0 0.0
    %5913 = vmatprep.subr.mxu0 0.0
    %5914 = vmatpush1.msra.mxu0 0.0
    %5915 = vmatprep.subr.mxu0 0.0
    %5916 = vmatpush1.msra.mxu0 0.0
    %5917 = vmatprep.subr.mxu0 0.0
    %5918 = vmatpush1.msra.mxu0 0.0
    %5919 = vmatprep.subr.mxu0 0.0
    %5920 = vmatpush1.msra.mxu0 0.0
    %5921 = vmatprep.subr.mxu0 0.0
    %5922 = vmatpush1.msra.mxu0 0.0
    %5923 = vmatprep.mubr.f32.mxu0 0.0
    %5924 = vmatmul.mubr.f32.gmra.mrb[0].mxu0 %v5857
    %v5925 = vpop.f32.mrb[0].mxu0
    %v5926 = vadd.f32 0.0, %v5925
    %v5927 = vpop.f32.mrb[0].mxu0
    %5928 = vdwg.mxu0
    %5929 = vrot.lane.b32.xlu0 %v3972, 64
    %v5930 = vpop.permute.xlu0 %5929
    %v5933 = vsel %vm697, %v5388, 0
    %5935 = vmatprep.subr.mxu0 0.0
    %5936 = vmatpush1.msra.mxu0 %v5930
    %5937 = vmatprep.subr.mxu0 0.0
    %5938 = vmatpush1.msra.mxu0 0.0
    %5939 = vmatprep.subr.mxu0 0.0
    %5940 = vmatpush1.msra.mxu0 0.0
    %5941 = vmatprep.subr.mxu0 0.0
    %5942 = vmatpush1.msra.mxu0 0.0
    %5943 = vmatprep.subr.mxu0 0.0
    %5944 = vmatpush1.msra.mxu0 0.0
    %5945 = vmatprep.subr.mxu0 0.0
    %5946 = vmatpush1.msra.mxu0 0.0
    %5947 = vmatprep.subr.mxu0 0.0
    %5948 = vmatpush1.msra.mxu0 0.0
    %5949 = vmatprep.subr.mxu0 0.0
    %5950 = vmatpush1.msra.mxu0 0.0
    %5951 = vmatprep.subr.mxu0 0.0
    %5952 = vmatpush1.msra.mxu0 0.0
    %5953 = vmatprep.subr.mxu0 0.0
    %5954 = vmatpush1.msra.mxu0 0.0
    %5955 = vmatprep.subr.mxu0 0.0
    %5956 = vmatpush1.msra.mxu0 0.0
    %5957 = vmatprep.subr.mxu0 0.0
    %5958 = vmatpush1.msra.mxu0 0.0
    %5959 = vmatprep.subr.mxu0 0.0
    %5960 = vmatpush1.msra.mxu0 0.0
    %5961 = vmatprep.subr.mxu0 0.0
    %5962 = vmatpush1.msra.mxu0 0.0
    %5963 = vmatprep.subr.mxu0 0.0
    %5964 = vmatpush1.msra.mxu0 0.0
    %5965 = vmatprep.subr.mxu0 0.0
    %5966 = vmatpush1.msra.mxu0 0.0
    %5967 = vmatprep.subr.mxu0 0.0
    %5968 = vmatpush1.msra.mxu0 0.0
    %5969 = vmatprep.subr.mxu0 0.0
    %5970 = vmatpush1.msra.mxu0 0.0
    %5971 = vmatprep.subr.mxu0 0.0
    %5972 = vmatpush1.msra.mxu0 0.0
    %5973 = vmatprep.subr.mxu0 0.0
    %5974 = vmatpush1.msra.mxu0 0.0
    %5975 = vmatprep.subr.mxu0 0.0
    %5976 = vmatpush1.msra.mxu0 0.0
    %5977 = vmatprep.subr.mxu0 0.0
    %5978 = vmatpush1.msra.mxu0 0.0
    %5979 = vmatprep.subr.mxu0 0.0
    %5980 = vmatpush1.msra.mxu0 0.0
    %5981 = vmatprep.subr.mxu0 0.0
    %5982 = vmatpush1.msra.mxu0 0.0
    %5983 = vmatprep.subr.mxu0 0.0
    %5984 = vmatpush1.msra.mxu0 0.0
    %5985 = vmatprep.subr.mxu0 0.0
    %5986 = vmatpush1.msra.mxu0 0.0
    %5987 = vmatprep.subr.mxu0 0.0
    %5988 = vmatpush1.msra.mxu0 0.0
    %5989 = vmatprep.subr.mxu0 0.0
    %5990 = vmatpush1.msra.mxu0 0.0
    %5991 = vmatprep.subr.mxu0 0.0
    %5992 = vmatpush1.msra.mxu0 0.0
    %5993 = vmatprep.subr.mxu0 0.0
    %5994 = vmatpush1.msra.mxu0 0.0
    %5995 = vmatprep.subr.mxu0 0.0
    %5996 = vmatpush1.msra.mxu0 0.0
    %5997 = vmatprep.subr.mxu0 0.0
    %5998 = vmatpush1.msra.mxu0 0.0
    %5999 = vmatprep.mubr.f32.mxu0 0.0
    %6000 = vmatmul.mubr.f32.gmra.mrb[0].mxu0 %v5933
    %v6001 = vpop.f32.mrb[0].mxu0
    %v6002 = vadd.f32 0.0, %v6001
    %v6003 = vpop.f32.mrb[0].mxu0
    %6004 = vdwg.mxu0
    %6005 = vrot.lane.b32.xlu0 %v3974, 64
    %v6006 = vpop.permute.xlu0 %6005
    %v6009 = vsel %vm697, %v5389, 0
    %6011 = vmatprep.subr.mxu0 0.0
    %6012 = vmatpush1.msra.mxu0 %v6006
    %6013 = vmatprep.subr.mxu0 0.0
    %6014 = vmatpush1.msra.mxu0 0.0
    %6015 = vmatprep.subr.mxu0 0.0
    %6016 = vmatpush1.msra.mxu0 0.0
    %6017 = vmatprep.subr.mxu0 0.0
    %6018 = vmatpush1.msra.mxu0 0.0
    %6019 = vmatprep.subr.mxu0 0.0
    %6020 = vmatpush1.msra.mxu0 0.0
    %6021 = vmatprep.subr.mxu0 0.0
    %6022 = vmatpush1.msra.mxu0 0.0
    %6023 = vmatprep.subr.mxu0 0.0
    %6024 = vmatpush1.msra.mxu0 0.0
    %6025 = vmatprep.subr.mxu0 0.0
    %6026 = vmatpush1.msra.mxu0 0.0
    %6027 = vmatprep.subr.mxu0 0.0
    %6028 = vmatpush1.msra.mxu0 0.0
    %6029 = vmatprep.subr.mxu0 0.0
    %6030 = vmatpush1.msra.mxu0 0.0
    %6031 = vmatprep.subr.mxu0 0.0
    %6032 = vmatpush1.msra.mxu0 0.0
    %6033 = vmatprep.subr.mxu0 0.0
    %6034 = vmatpush1.msra.mxu0 0.0
    %6035 = vmatprep.subr.mxu0 0.0
    %6036 = vmatpush1.msra.mxu0 0.0
    %6037 = vmatprep.subr.mxu0 0.0
    %6038 = vmatpush1.msra.mxu0 0.0
    %6039 = vmatprep.subr.mxu0 0.0
    %6040 = vmatpush1.msra.mxu0 0.0
    %6041 = vmatprep.subr.mxu0 0.0
    %6042 = vmatpush1.msra.mxu0 0.0
    %6043 = vmatprep.subr.mxu0 0.0
    %6044 = vmatpush1.msra.mxu0 0.0
    %6045 = vmatprep.subr.mxu0 0.0
    %6046 = vmatpush1.msra.mxu0 0.0
    %6047 = vmatprep.subr.mxu0 0.0
    %6048 = vmatpush1.msra.mxu0 0.0
    %6049 = vmatprep.subr.mxu0 0.0
    %6050 = vmatpush1.msra.mxu0 0.0
    %6051 = vmatprep.subr.mxu0 0.0
    %6052 = vmatpush1.msra.mxu0 0.0
    %6053 = vmatprep.subr.mxu0 0.0
    %6054 = vmatpush1.msra.mxu0 0.0
    %6055 = vmatprep.subr.mxu0 0.0
    %6056 = vmatpush1.msra.mxu0 0.0
    %6057 = vmatprep.subr.mxu0 0.0
    %6058 = vmatpush1.msra.mxu0 0.0
    %6059 = vmatprep.subr.mxu0 0.0
    %6060 = vmatpush1.msra.mxu0 0.0
    %6061 = vmatprep.subr.mxu0 0.0
    %6062 = vmatpush1.msra.mxu0 0.0
    %6063 = vmatprep.subr.mxu0 0.0
    %6064 = vmatpush1.msra.mxu0 0.0
    %6065 = vmatprep.subr.mxu0 0.0
    %6066 = vmatpush1.msra.mxu0 0.0
    %6067 = vmatprep.subr.mxu0 0.0
    %6068 = vmatpush1.msra.mxu0 0.0
    %6069 = vmatprep.subr.mxu0 0.0
    %6070 = vmatpush1.msra.mxu0 0.0
    %6071 = vmatprep.subr.mxu0 0.0
    %6072 = vmatpush1.msra.mxu0 0.0
    %6073 = vmatprep.subr.mxu0 0.0
    %6074 = vmatpush1.msra.mxu0 0.0
    %6075 = vmatprep.mubr.f32.mxu0 0.0
    %6076 = vmatmul.mubr.f32.gmra.mrb[0].mxu0 %v6009
    %v6077 = vpop.f32.mrb[0].mxu0
    %v6078 = vadd.f32 0.0, %v6077
    %v6079 = vpop.f32.mrb[0].mxu0
    %6080 = vdwg.mxu0
    %6081 = vrot.lane.b32.xlu0 %v3976, 64
    %v6082 = vpop.permute.xlu0 %6081
    %v6085 = vsel %vm697, %v5390, 0
    %6087 = vmatprep.subr.mxu0 0.0
    %6088 = vmatpush1.msra.mxu0 %v6082
    %6089 = vmatprep.subr.mxu0 0.0
    %6090 = vmatpush1.msra.mxu0 0.0
    %6091 = vmatprep.subr.mxu0 0.0
    %6092 = vmatpush1.msra.mxu0 0.0
    %6093 = vmatprep.subr.mxu0 0.0
    %6094 = vmatpush1.msra.mxu0 0.0
    %6095 = vmatprep.subr.mxu0 0.0
    %6096 = vmatpush1.msra.mxu0 0.0
    %6097 = vmatprep.subr.mxu0 0.0
    %6098 = vmatpush1.msra.mxu0 0.0
    %6099 = vmatprep.subr.mxu0 0.0
    %6100 = vmatpush1.msra.mxu0 0.0
    %6101 = vmatprep.subr.mxu0 0.0
    %6102 = vmatpush1.msra.mxu0 0.0
    %6103 = vmatprep.subr.mxu0 0.0
    %6104 = vmatpush1.msra.mxu0 0.0
    %6105 = vmatprep.subr.mxu0 0.0
    %6106 = vmatpush1.msra.mxu0 0.0
    %6107 = vmatprep.subr.mxu0 0.0
    %6108 = vmatpush1.msra.mxu0 0.0
    %6109 = vmatprep.subr.mxu0 0.0
    %6110 = vmatpush1.msra.mxu0 0.0
    %6111 = vmatprep.subr.mxu0 0.0
    %6112 = vmatpush1.msra.mxu0 0.0
    %6113 = vmatprep.subr.mxu0 0.0
    %6114 = vmatpush1.msra.mxu0 0.0
    %6115 = vmatprep.subr.mxu0 0.0
    %6116 = vmatpush1.msra.mxu0 0.0
    %6117 = vmatprep.subr.mxu0 0.0
    %6118 = vmatpush1.msra.mxu0 0.0
    %6119 = vmatprep.subr.mxu0 0.0
    %6120 = vmatpush1.msra.mxu0 0.0
    %6121 = vmatprep.subr.mxu0 0.0
    %6122 = vmatpush1.msra.mxu0 0.0
    %6123 = vmatprep.subr.mxu0 0.0
    %6124 = vmatpush1.msra.mxu0 0.0
    %6125 = vmatprep.subr.mxu0 0.0
    %6126 = vmatpush1.msra.mxu0 0.0
    %6127 = vmatprep.subr.mxu0 0.0
    %6128 = vmatpush1.msra.mxu0 0.0
    %6129 = vmatprep.subr.mxu0 0.0
    %6130 = vmatpush1.msra.mxu0 0.0
    %6131 = vmatprep.subr.mxu0 0.0
    %6132 = vmatpush1.msra.mxu0 0.0
    %6133 = vmatprep.subr.mxu0 0.0
    %6134 = vmatpush1.msra.mxu0 0.0
    %6135 = vmatprep.subr.mxu0 0.0
    %6136 = vmatpush1.msra.mxu0 0.0
    %6137 = vmatprep.subr.mxu0 0.0
    %6138 = vmatpush1.msra.mxu0 0.0
    %6139 = vmatprep.subr.mxu0 0.0
    %6140 = vmatpush1.msra.mxu0 0.0
    %6141 = vmatprep.subr.mxu0 0.0
    %6142 = vmatpush1.msra.mxu0 0.0
    %6143 = vmatprep.subr.mxu0 0.0
    %6144 = vmatpush1.msra.mxu0 0.0
    %6145 = vmatprep.subr.mxu0 0.0
    %6146 = vmatpush1.msra.mxu0 0.0
    %6147 = vmatprep.subr.mxu0 0.0
    %6148 = vmatpush1.msra.mxu0 0.0
    %6149 = vmatprep.subr.mxu0 0.0
    %6150 = vmatpush1.msra.mxu0 0.0
    %6151 = vmatprep.mubr.f32.mxu0 0.0
    %6152 = vmatmul.mubr.f32.gmra.mrb[0].mxu0 %v6085
    %v6153 = vpop.f32.mrb[0].mxu0
    %v6154 = vadd.f32 0.0, %v6153
    %v6155 = vpop.f32.mrb[0].mxu0
    %6156 = vdwg.mxu0
    %6157 = vrot.lane.b32.xlu0 %v3978, 64
    %v6158 = vpop.permute.xlu0 %6157
    %v6161 = vsel %vm697, %v5391, 0
    %6163 = vmatprep.subr.mxu0 0.0
    %6164 = vmatpush1.msra.mxu0 %v6158
    %6165 = vmatprep.subr.mxu0 0.0
    %6166 = vmatpush1.msra.mxu0 0.0
    %6167 = vmatprep.subr.mxu0 0.0
    %6168 = vmatpush1.msra.mxu0 0.0
    %6169 = vmatprep.subr.mxu0 0.0
    %6170 = vmatpush1.msra.mxu0 0.0
    %6171 = vmatprep.subr.mxu0 0.0
    %6172 = vmatpush1.msra.mxu0 0.0
    %6173 = vmatprep.subr.mxu0 0.0
    %6174 = vmatpush1.msra.mxu0 0.0
    %6175 = vmatprep.subr.mxu0 0.0
    %6176 = vmatpush1.msra.mxu0 0.0
    %6177 = vmatprep.subr.mxu0 0.0
    %6178 = vmatpush1.msra.mxu0 0.0
    %6179 = vmatprep.subr.mxu0 0.0
    %6180 = vmatpush1.msra.mxu0 0.0
    %6181 = vmatprep.subr.mxu0 0.0
    %6182 = vmatpush1.msra.mxu0 0.0
    %6183 = vmatprep.subr.mxu0 0.0
    %6184 = vmatpush1.msra.mxu0 0.0
    %6185 = vmatprep.subr.mxu0 0.0
    %6186 = vmatpush1.msra.mxu0 0.0
    %6187 = vmatprep.subr.mxu0 0.0
    %6188 = vmatpush1.msra.mxu0 0.0
    %6189 = vmatprep.subr.mxu0 0.0
    %6190 = vmatpush1.msra.mxu0 0.0
    %6191 = vmatprep.subr.mxu0 0.0
    %6192 = vmatpush1.msra.mxu0 0.0
    %6193 = vmatprep.subr.mxu0 0.0
    %6194 = vmatpush1.msra.mxu0 0.0
    %6195 = vmatprep.subr.mxu0 0.0
    %6196 = vmatpush1.msra.mxu0 0.0
    %6197 = vmatprep.subr.mxu0 0.0
    %6198 = vmatpush1.msra.mxu0 0.0
    %6199 = vmatprep.subr.mxu0 0.0
    %6200 = vmatpush1.msra.mxu0 0.0
    %6201 = vmatprep.subr.mxu0 0.0
    %6202 = vmatpush1.msra.mxu0 0.0
    %6203 = vmatprep.subr.mxu0 0.0
    %6204 = vmatpush1.msra.mxu0 0.0
    %6205 = vmatprep.subr.mxu0 0.0
    %6206 = vmatpush1.msra.mxu0 0.0
    %6207 = vmatprep.subr.mxu0 0.0
    %6208 = vmatpush1.msra.mxu0 0.0
    %6209 = vmatprep.subr.mxu0 0.0
    %6210 = vmatpush1.msra.mxu0 0.0
    %6211 = vmatprep.subr.mxu0 0.0
    %6212 = vmatpush1.msra.mxu0 0.0
    %6213 = vmatprep.subr.mxu0 0.0
    %6214 = vmatpush1.msra.mxu0 0.0
    %6215 = vmatprep.subr.mxu0 0.0
    %6216 = vmatpush1.msra.mxu0 0.0
    %6217 = vmatprep.subr.mxu0 0.0
    %6218 = vmatpush1.msra.mxu0 0.0
    %6219 = vmatprep.subr.mxu0 0.0
    %6220 = vmatpush1.msra.mxu0 0.0
    %6221 = vmatprep.subr.mxu0 0.0
    %6222 = vmatpush1.msra.mxu0 0.0
    %6223 = vmatprep.subr.mxu0 0.0
    %6224 = vmatpush1.msra.mxu0 0.0
    %6225 = vmatprep.subr.mxu0 0.0
    %6226 = vmatpush1.msra.mxu0 0.0
    %6227 = vmatprep.mubr.f32.mxu0 0.0
    %6228 = vmatmul.mubr.f32.gmra.mrb[0].mxu0 %v6161
    %v6229 = vpop.f32.mrb[0].mxu0
    %v6230 = vadd.f32 0.0, %v6229
    %v6231 = vpop.f32.mrb[0].mxu0
    %6232 = vdwg.mxu0
    %6233 = vrot.lane.b32.xlu0 %v3980, 64
    %v6234 = vpop.permute.xlu0 %6233
    %v6237 = vsel %vm697, %v5392, 0
    %6239 = vmatprep.subr.mxu0 0.0
    %6240 = vmatpush1.msra.mxu0 %v6234
    %6241 = vmatprep.subr.mxu0 0.0
    %6242 = vmatpush1.msra.mxu0 0.0
    %6243 = vmatprep.subr.mxu0 0.0
    %6244 = vmatpush1.msra.mxu0 0.0
    %6245 = vmatprep.subr.mxu0 0.0
    %6246 = vmatpush1.msra.mxu0 0.0
    %6247 = vmatprep.subr.mxu0 0.0
    %6248 = vmatpush1.msra.mxu0 0.0
    %6249 = vmatprep.subr.mxu0 0.0
    %6250 = vmatpush1.msra.mxu0 0.0
    %6251 = vmatprep.subr.mxu0 0.0
    %6252 = vmatpush1.msra.mxu0 0.0
    %6253 = vmatprep.subr.mxu0 0.0
    %6254 = vmatpush1.msra.mxu0 0.0
    %6255 = vmatprep.subr.mxu0 0.0
    %6256 = vmatpush1.msra.mxu0 0.0
    %6257 = vmatprep.subr.mxu0 0.0
    %6258 = vmatpush1.msra.mxu0 0.0
    %6259 = vmatprep.subr.mxu0 0.0
    %6260 = vmatpush1.msra.mxu0 0.0
    %6261 = vmatprep.subr.mxu0 0.0
    %6262 = vmatpush1.msra.mxu0 0.0
    %6263 = vmatprep.subr.mxu0 0.0
    %6264 = vmatpush1.msra.mxu0 0.0
    %6265 = vmatprep.subr.mxu0 0.0
    %6266 = vmatpush1.msra.mxu0 0.0
    %6267 = vmatprep.subr.mxu0 0.0
    %6268 = vmatpush1.msra.mxu0 0.0
    %6269 = vmatprep.subr.mxu0 0.0
    %6270 = vmatpush1.msra.mxu0 0.0
    %6271 = vmatprep.subr.mxu0 0.0
    %6272 = vmatpush1.msra.mxu0 0.0
    %6273 = vmatprep.subr.mxu0 0.0
    %6274 = vmatpush1.msra.mxu0 0.0
    %6275 = vmatprep.subr.mxu0 0.0
    %6276 = vmatpush1.msra.mxu0 0.0
    %6277 = vmatprep.subr.mxu0 0.0
    %6278 = vmatpush1.msra.mxu0 0.0
    %6279 = vmatprep.subr.mxu0 0.0
    %6280 = vmatpush1.msra.mxu0 0.0
    %6281 = vmatprep.subr.mxu0 0.0
    %6282 = vmatpush1.msra.mxu0 0.0
    %6283 = vmatprep.subr.mxu0 0.0
    %6284 = vmatpush1.msra.mxu0 0.0
    %6285 = vmatprep.subr.mxu0 0.0
    %6286 = vmatpush1.msra.mxu0 0.0
    %6287 = vmatprep.subr.mxu0 0.0
    %6288 = vmatpush1.msra.mxu0 0.0
    %6289 = vmatprep.subr.mxu0 0.0
    %6290 = vmatpush1.msra.mxu0 0.0
    %6291 = vmatprep.subr.mxu0 0.0
    %6292 = vmatpush1.msra.mxu0 0.0
    %6293 = vmatprep.subr.mxu0 0.0
    %6294 = vmatpush1.msra.mxu0 0.0
    %6295 = vmatprep.subr.mxu0 0.0
    %6296 = vmatpush1.msra.mxu0 0.0
    %6297 = vmatprep.subr.mxu0 0.0
    %6298 = vmatpush1.msra.mxu0 0.0
    %6299 = vmatprep.subr.mxu0 0.0
    %6300 = vmatpush1.msra.mxu0 0.0
    %6301 = vmatprep.subr.mxu0 0.0
    %6302 = vmatpush1.msra.mxu0 0.0
    %6303 = vmatprep.mubr.f32.mxu0 0.0
    %6304 = vmatmul.mubr.f32.gmra.mrb[0].mxu0 %v6237
    %v6305 = vpop.f32.mrb[0].mxu0
    %v6306 = vadd.f32 0.0, %v6305
    %v6307 = vpop.f32.mrb[0].mxu0
    %6308 = vdwg.mxu0
    %6309 = vrot.lane.b32.xlu0 %v3982, 64
    %v6310 = vpop.permute.xlu0 %6309
    %v6313 = vsel %vm697, %v5393, 0
    %6315 = vmatprep.subr.mxu0 0.0
    %6316 = vmatpush1.msra.mxu0 %v6310
    %6317 = vmatprep.subr.mxu0 0.0
    %6318 = vmatpush1.msra.mxu0 0.0
    %6319 = vmatprep.subr.mxu0 0.0
    %6320 = vmatpush1.msra.mxu0 0.0
    %6321 = vmatprep.subr.mxu0 0.0
    %6322 = vmatpush1.msra.mxu0 0.0
    %6323 = vmatprep.subr.mxu0 0.0
    %6324 = vmatpush1.msra.mxu0 0.0
    %6325 = vmatprep.subr.mxu0 0.0
    %6326 = vmatpush1.msra.mxu0 0.0
    %6327 = vmatprep.subr.mxu0 0.0
    %6328 = vmatpush1.msra.mxu0 0.0
    %6329 = vmatprep.subr.mxu0 0.0
    %6330 = vmatpush1.msra.mxu0 0.0
    %6331 = vmatprep.subr.mxu0 0.0
    %6332 = vmatpush1.msra.mxu0 0.0
    %6333 = vmatprep.subr.mxu0 0.0
    %6334 = vmatpush1.msra.mxu0 0.0
    %6335 = vmatprep.subr.mxu0 0.0
    %6336 = vmatpush1.msra.mxu0 0.0
    %6337 = vmatprep.subr.mxu0 0.0
    %6338 = vmatpush1.msra.mxu0 0.0
    %6339 = vmatprep.subr.mxu0 0.0
    %6340 = vmatpush1.msra.mxu0 0.0
    %6341 = vmatprep.subr.mxu0 0.0
    %6342 = vmatpush1.msra.mxu0 0.0
    %6343 = vmatprep.subr.mxu0 0.0
    %6344 = vmatpush1.msra.mxu0 0.0
    %6345 = vmatprep.subr.mxu0 0.0
    %6346 = vmatpush1.msra.mxu0 0.0
    %6347 = vmatprep.subr.mxu0 0.0
    %6348 = vmatpush1.msra.mxu0 0.0
    %6349 = vmatprep.subr.mxu0 0.0
    %6350 = vmatpush1.msra.mxu0 0.0
    %6351 = vmatprep.subr.mxu0 0.0
    %6352 = vmatpush1.msra.mxu0 0.0
    %6353 = vmatprep.subr.mxu0 0.0
    %6354 = vmatpush1.msra.mxu0 0.0
    %6355 = vmatprep.subr.mxu0 0.0
    %6356 = vmatpush1.msra.mxu0 0.0
    %6357 = vmatprep.subr.mxu0 0.0
    %6358 = vmatpush1.msra.mxu0 0.0
    %6359 = vmatprep.subr.mxu0 0.0
    %6360 = vmatpush1.msra.mxu0 0.0
    %6361 = vmatprep.subr.mxu0 0.0
    %6362 = vmatpush1.msra.mxu0 0.0
    %6363 = vmatprep.subr.mxu0 0.0
    %6364 = vmatpush1.msra.mxu0 0.0
    %6365 = vmatprep.subr.mxu0 0.0
    %6366 = vmatpush1.msra.mxu0 0.0
    %6367 = vmatprep.subr.mxu0 0.0
    %6368 = vmatpush1.msra.mxu0 0.0
    %6369 = vmatprep.subr.mxu0 0.0
    %6370 = vmatpush1.msra.mxu0 0.0
    %6371 = vmatprep.subr.mxu0 0.0
    %6372 = vmatpush1.msra.mxu0 0.0
    %6373 = vmatprep.subr.mxu0 0.0
    %6374 = vmatpush1.msra.mxu0 0.0
    %6375 = vmatprep.subr.mxu0 0.0
    %6376 = vmatpush1.msra.mxu0 0.0
    %6377 = vmatprep.subr.mxu0 0.0
    %6378 = vmatpush1.msra.mxu0 0.0
    %6379 = vmatprep.mubr.f32.mxu0 0.0
    %6380 = vmatmul.mubr.f32.gmra.mrb[0].mxu0 %v6313
    %v6381 = vpop.f32.mrb[0].mxu0
    %v6382 = vadd.f32 0.0, %v6381
    %v6383 = vpop.f32.mrb[0].mxu0
    %6384 = vdwg.mxu0
    %6385 = vrot.lane.b32.xlu0 %v3984, 64
    %v6386 = vpop.permute.xlu0 %6385
    %v6389 = vsel %vm697, %v5394, 0
    %6391 = vmatprep.subr.mxu0 0.0
    %6392 = vmatpush1.msra.mxu0 %v6386
    %6393 = vmatprep.subr.mxu0 0.0
    %6394 = vmatpush1.msra.mxu0 0.0
    %6395 = vmatprep.subr.mxu0 0.0
    %6396 = vmatpush1.msra.mxu0 0.0
    %6397 = vmatprep.subr.mxu0 0.0
    %6398 = vmatpush1.msra.mxu0 0.0
    %6399 = vmatprep.subr.mxu0 0.0
    %6400 = vmatpush1.msra.mxu0 0.0
    %6401 = vmatprep.subr.mxu0 0.0
    %6402 = vmatpush1.msra.mxu0 0.0
    %6403 = vmatprep.subr.mxu0 0.0
    %6404 = vmatpush1.msra.mxu0 0.0
    %6405 = vmatprep.subr.mxu0 0.0
    %6406 = vmatpush1.msra.mxu0 0.0
    %6407 = vmatprep.subr.mxu0 0.0
    %6408 = vmatpush1.msra.mxu0 0.0
    %6409 = vmatprep.subr.mxu0 0.0
    %6410 = vmatpush1.msra.mxu0 0.0
    %6411 = vmatprep.subr.mxu0 0.0
    %6412 = vmatpush1.msra.mxu0 0.0
    %6413 = vmatprep.subr.mxu0 0.0
    %6414 = vmatpush1.msra.mxu0 0.0
    %6415 = vmatprep.subr.mxu0 0.0
    %6416 = vmatpush1.msra.mxu0 0.0
    %6417 = vmatprep.subr.mxu0 0.0
    %6418 = vmatpush1.msra.mxu0 0.0
    %6419 = vmatprep.subr.mxu0 0.0
    %6420 = vmatpush1.msra.mxu0 0.0
    %6421 = vmatprep.subr.mxu0 0.0
    %6422 = vmatpush1.msra.mxu0 0.0
    %6423 = vmatprep.subr.mxu0 0.0
    %6424 = vmatpush1.msra.mxu0 0.0
    %6425 = vmatprep.subr.mxu0 0.0
    %6426 = vmatpush1.msra.mxu0 0.0
    %6427 = vmatprep.subr.mxu0 0.0
    %6428 = vmatpush1.msra.mxu0 0.0
    %6429 = vmatprep.subr.mxu0 0.0
    %6430 = vmatpush1.msra.mxu0 0.0
    %6431 = vmatprep.subr.mxu0 0.0
    %6432 = vmatpush1.msra.mxu0 0.0
    %6433 = vmatprep.subr.mxu0 0.0
    %6434 = vmatpush1.msra.mxu0 0.0
    %6435 = vmatprep.subr.mxu0 0.0
    %6436 = vmatpush1.msra.mxu0 0.0
    %6437 = vmatprep.subr.mxu0 0.0
    %6438 = vmatpush1.msra.mxu0 0.0
    %6439 = vmatprep.subr.mxu0 0.0
    %6440 = vmatpush1.msra.mxu0 0.0
    %6441 = vmatprep.subr.mxu0 0.0
    %6442 = vmatpush1.msra.mxu0 0.0
    %6443 = vmatprep.subr.mxu0 0.0
    %6444 = vmatpush1.msra.mxu0 0.0
    %6445 = vmatprep.subr.mxu0 0.0
    %6446 = vmatpush1.msra.mxu0 0.0
    %6447 = vmatprep.subr.mxu0 0.0
    %6448 = vmatpush1.msra.mxu0 0.0
    %6449 = vmatprep.subr.mxu0 0.0
    %6450 = vmatpush1.msra.mxu0 0.0
    %6451 = vmatprep.subr.mxu0 0.0
    %6452 = vmatpush1.msra.mxu0 0.0
    %6453 = vmatprep.subr.mxu0 0.0
    %6454 = vmatpush1.msra.mxu0 0.0
    %6455 = vmatprep.mubr.f32.mxu0 0.0
    %6456 = vmatmul.mubr.f32.gmra.mrb[0].mxu0 %v6389
    %v6457 = vpop.f32.mrb[0].mxu0
    %v6458 = vadd.f32 0.0, %v6457
    %v6459 = vpop.f32.mrb[0].mxu0
    %6460 = vdwg.mxu0
    %6461 = vrot.lane.b32.xlu0 %v3986, 64
    %v6462 = vpop.permute.xlu0 %6461
    %v6465 = vsel %vm697, %v5395, 0
    %6467 = vmatprep.subr.mxu0 0.0
    %6468 = vmatpush1.msra.mxu0 %v6462
    %6469 = vmatprep.subr.mxu0 0.0
    %6470 = vmatpush1.msra.mxu0 0.0
    %6471 = vmatprep.subr.mxu0 0.0
    %6472 = vmatpush1.msra.mxu0 0.0
    %6473 = vmatprep.subr.mxu0 0.0
    %6474 = vmatpush1.msra.mxu0 0.0
    %6475 = vmatprep.subr.mxu0 0.0
    %6476 = vmatpush1.msra.mxu0 0.0
    %6477 = vmatprep.subr.mxu0 0.0
    %6478 = vmatpush1.msra.mxu0 0.0
    %6479 = vmatprep.subr.mxu0 0.0
    %6480 = vmatpush1.msra.mxu0 0.0
    %6481 = vmatprep.subr.mxu0 0.0
    %6482 = vmatpush1.msra.mxu0 0.0
    %6483 = vmatprep.subr.mxu0 0.0
    %6484 = vmatpush1.msra.mxu0 0.0
    %6485 = vmatprep.subr.mxu0 0.0
    %6486 = vmatpush1.msra.mxu0 0.0
    %6487 = vmatprep.subr.mxu0 0.0
    %6488 = vmatpush1.msra.mxu0 0.0
    %6489 = vmatprep.subr.mxu0 0.0
    %6490 = vmatpush1.msra.mxu0 0.0
    %6491 = vmatprep.subr.mxu0 0.0
    %6492 = vmatpush1.msra.mxu0 0.0
    %6493 = vmatprep.subr.mxu0 0.0
    %6494 = vmatpush1.msra.mxu0 0.0
    %6495 = vmatprep.subr.mxu0 0.0
    %6496 = vmatpush1.msra.mxu0 0.0
    %6497 = vmatprep.subr.mxu0 0.0
    %6498 = vmatpush1.msra.mxu0 0.0
    %6499 = vmatprep.subr.mxu0 0.0
    %6500 = vmatpush1.msra.mxu0 0.0
    %6501 = vmatprep.subr.mxu0 0.0
    %6502 = vmatpush1.msra.mxu0 0.0
    %6503 = vmatprep.subr.mxu0 0.0
    %6504 = vmatpush1.msra.mxu0 0.0
    %6505 = vmatprep.subr.mxu0 0.0
    %6506 = vmatpush1.msra.mxu0 0.0
    %6507 = vmatprep.subr.mxu0 0.0
    %6508 = vmatpush1.msra.mxu0 0.0
    %6509 = vmatprep.subr.mxu0 0.0
    %6510 = vmatpush1.msra.mxu0 0.0
    %6511 = vmatprep.subr.mxu0 0.0
    %6512 = vmatpush1.msra.mxu0 0.0
    %6513 = vmatprep.subr.mxu0 0.0
    %6514 = vmatpush1.msra.mxu0 0.0
    %6515 = vmatprep.subr.mxu0 0.0
    %6516 = vmatpush1.msra.mxu0 0.0
    %6517 = vmatprep.subr.mxu0 0.0
    %6518 = vmatpush1.msra.mxu0 0.0
    %6519 = vmatprep.subr.mxu0 0.0
    %6520 = vmatpush1.msra.mxu0 0.0
    %6521 = vmatprep.subr.mxu0 0.0
    %6522 = vmatpush1.msra.mxu0 0.0
    %6523 = vmatprep.subr.mxu0 0.0
    %6524 = vmatpush1.msra.mxu0 0.0
    %6525 = vmatprep.subr.mxu0 0.0
    %6526 = vmatpush1.msra.mxu0 0.0
    %6527 = vmatprep.subr.mxu0 0.0
    %6528 = vmatpush1.msra.mxu0 0.0
    %6529 = vmatprep.subr.mxu0 0.0
    %6530 = vmatpush1.msra.mxu0 0.0
    %6531 = vmatprep.mubr.f32.mxu0 0.0
    %6532 = vmatmul.mubr.f32.gmra.mrb[0].mxu0 %v6465
    %v6533 = vpop.f32.mrb[0].mxu0
    %v6534 = vadd.f32 0.0, %v6533
    %v6535 = vpop.f32.mrb[0].mxu0
    %6536 = vdwg.mxu0
    %6537 = vrot.lane.b32.xlu0 %v3988, 64
    %v6538 = vpop.permute.xlu0 %6537
    %v6541 = vsel %vm697, %v5396, 0
    %6543 = vmatprep.subr.mxu0 0.0
    %6544 = vmatpush1.msra.mxu0 %v6538
    %6545 = vmatprep.subr.mxu0 0.0
    %6546 = vmatpush1.msra.mxu0 0.0
    %6547 = vmatprep.subr.mxu0 0.0
    %6548 = vmatpush1.msra.mxu0 0.0
    %6549 = vmatprep.subr.mxu0 0.0
    %6550 = vmatpush1.msra.mxu0 0.0
    %6551 = vmatprep.subr.mxu0 0.0
    %6552 = vmatpush1.msra.mxu0 0.0
    %6553 = vmatprep.subr.mxu0 0.0
    %6554 = vmatpush1.msra.mxu0 0.0
    %6555 = vmatprep.subr.mxu0 0.0
    %6556 = vmatpush1.msra.mxu0 0.0
    %6557 = vmatprep.subr.mxu0 0.0
    %6558 = vmatpush1.msra.mxu0 0.0
    %6559 = vmatprep.subr.mxu0 0.0
    %6560 = vmatpush1.msra.mxu0 0.0
    %6561 = vmatprep.subr.mxu0 0.0
    %6562 = vmatpush1.msra.mxu0 0.0
    %6563 = vmatprep.subr.mxu0 0.0
    %6564 = vmatpush1.msra.mxu0 0.0
    %6565 = vmatprep.subr.mxu0 0.0
    %6566 = vmatpush1.msra.mxu0 0.0
    %6567 = vmatprep.subr.mxu0 0.0
    %6568 = vmatpush1.msra.mxu0 0.0
    %6569 = vmatprep.subr.mxu0 0.0
    %6570 = vmatpush1.msra.mxu0 0.0
    %6571 = vmatprep.subr.mxu0 0.0
    %6572 = vmatpush1.msra.mxu0 0.0
    %6573 = vmatprep.subr.mxu0 0.0
    %6574 = vmatpush1.msra.mxu0 0.0
    %6575 = vmatprep.subr.mxu0 0.0
    %6576 = vmatpush1.msra.mxu0 0.0
    %6577 = vmatprep.subr.mxu0 0.0
    %6578 = vmatpush1.msra.mxu0 0.0
    %6579 = vmatprep.subr.mxu0 0.0
    %6580 = vmatpush1.msra.mxu0 0.0
    %6581 = vmatprep.subr.mxu0 0.0
    %6582 = vmatpush1.msra.mxu0 0.0
    %6583 = vmatprep.subr.mxu0 0.0
    %6584 = vmatpush1.msra.mxu0 0.0
    %6585 = vmatprep.subr.mxu0 0.0
    %6586 = vmatpush1.msra.mxu0 0.0
    %6587 = vmatprep.subr.mxu0 0.0
    %6588 = vmatpush1.msra.mxu0 0.0
    %6589 = vmatprep.subr.mxu0 0.0
    %6590 = vmatpush1.msra.mxu0 0.0
    %6591 = vmatprep.subr.mxu0 0.0
    %6592 = vmatpush1.msra.mxu0 0.0
    %6593 = vmatprep.subr.mxu0 0.0
    %6594 = vmatpush1.msra.mxu0 0.0
    %6595 = vmatprep.subr.mxu0 0.0
    %6596 = vmatpush1.msra.mxu0 0.0
    %6597 = vmatprep.subr.mxu0 0.0
    %6598 = vmatpush1.msra.mxu0 0.0
    %6599 = vmatprep.subr.mxu0 0.0
    %6600 = vmatpush1.msra.mxu0 0.0
    %6601 = vmatprep.subr.mxu0 0.0
    %6602 = vmatpush1.msra.mxu0 0.0
    %6603 = vmatprep.subr.mxu0 0.0
    %6604 = vmatpush1.msra.mxu0 0.0
    %6605 = vmatprep.subr.mxu0 0.0
    %6606 = vmatpush1.msra.mxu0 0.0
    %6607 = vmatprep.mubr.f32.mxu0 0.0
    %6608 = vmatmul.mubr.f32.gmra.mrb[0].mxu0 %v6541
    %v6609 = vpop.f32.mrb[0].mxu0
    %v6610 = vadd.f32 0.0, %v6609
    %v6611 = vpop.f32.mrb[0].mxu0
    %6612 = vdwg.mxu0
    %6617 = vrot.lane.b32.xlu0 %v5774, 8
    %v6618 = vpop.permute.xlu0 %6617
    %6619 = vrot.lane.b32.xlu0 %v5850, 8
    %v6620 = vpop.permute.xlu0 %6619
    %6621 = vrot.lane.b32.xlu0 %v5926, 8
    %v6622 = vpop.permute.xlu0 %6621
    %6623 = vrot.lane.b32.xlu0 %v6002, 8
    %v6624 = vpop.permute.xlu0 %6623
    %6633 = vrot.lane.b32.xlu0 %v6078, 16
    %v6634 = vpop.permute.xlu0 %6633
    %6635 = vrot.lane.b32.xlu0 %v6154, 16
    %v6636 = vpop.permute.xlu0 %6635
    %6637 = vrot.lane.b32.xlu0 %v6230, 16
    %v6638 = vpop.permute.xlu0 %6637
    %6639 = vrot.lane.b32.xlu0 %v6306, 16
    %v6640 = vpop.permute.xlu0 %6639
    %6649 = vrot.lane.b32.xlu0 %v6382, 24
    %v6650 = vpop.permute.xlu0 %6649
    %6651 = vrot.lane.b32.xlu0 %v6458, 24
    %v6652 = vpop.permute.xlu0 %6651
    %6653 = vrot.lane.b32.xlu0 %v6534, 24
    %v6654 = vpop.permute.xlu0 %6653
    %6655 = vrot.lane.b32.xlu0 %v6610, 24
    %v6656 = vpop.permute.xlu0 %6655
    %v6661 = vsel %vm697, %v5470, %v6618
    %v6662 = vsel %vm697, %v5546, %v6620
    %v6663 = vsel %vm697, %v5622, %v6622
    %v6664 = vsel %vm697, %v5698, %v6624
    %v6665 = vsel %vm3372, %v6661, %v6634
    %v6666 = vsel %vm3372, %v6662, %v6636
    %v6667 = vsel %vm3372, %v6663, %v6638
    %v6668 = vsel %vm3372, %v6664, %v6640
    %v6669 = vsel %vm3377, %v6665, %v6650
    %v6670 = vsel %vm3377, %v6666, %v6652
    %v6671 = vsel %vm3377, %v6667, %v6654
    %v6672 = vsel %vm3377, %v6668, %v6656
    %v6673 = vld [vmem:[%s14 + $0xc] sm:$0x1]
    %v6674 = vlaneseq
    %v6675 = vshrl.u32 %v6674, 7
    %v6676 = vsub.s32 0, %v6675
    %v6677 = vrot.slane %v6673, %v6676
    %v6679 = vsel %vm259, %v6669, 0
    %v6682 = vsel %vm259, %v6670, 0
    %v6685 = vsel %vm259, %v6671, 0
    %v6688 = vsel %vm259, %v6672, 0
    %6690 = vmatprep.subr.mxu0 0.0
    %6691 = vmatpush1.msra.mxu0 %v3855
    %6692 = vmatprep.subr.mxu0 0.0
    %6693 = vmatpush1.msra.mxu0 %v3856
    %6694 = vmatprep.subr.mxu0 0.0
    %6695 = vmatpush1.msra.mxu0 %v3857
    %6696 = vmatprep.subr.mxu0 0.0
    %6697 = vmatpush1.msra.mxu0 %v3858
    %6698 = vmatprep.subr.mxu0 0.0
    %6699 = vmatpush1.msra.mxu0 0.0
    %6700 = vmatprep.subr.mxu0 0.0
    %6701 = vmatpush1.msra.mxu0 0.0
    %6702 = vmatprep.subr.mxu0 0.0
    %6703 = vmatpush1.msra.mxu0 0.0
    %6704 = vmatprep.subr.mxu0 0.0
    %6705 = vmatpush1.msra.mxu0 0.0
    %6706 = vmatprep.subr.mxu0 0.0
    %6707 = vmatpush1.msra.mxu0 0.0
    %6708 = vmatprep.subr.mxu0 0.0
    %6709 = vmatpush1.msra.mxu0 0.0
    %6710 = vmatprep.subr.mxu0 0.0
    %6711 = vmatpush1.msra.mxu0 0.0
    %6712 = vmatprep.subr.mxu0 0.0
    %6713 = vmatpush1.msra.mxu0 0.0
    %6714 = vmatprep.subr.mxu0 0.0
    %6715 = vmatpush1.msra.mxu0 0.0
    %6716 = vmatprep.subr.mxu0 0.0
    %6717 = vmatpush1.msra.mxu0 0.0
    %6718 = vmatprep.subr.mxu0 0.0
    %6719 = vmatpush1.msra.mxu0 0.0
    %6720 = vmatprep.subr.mxu0 0.0
    %6721 = vmatpush1.msra.mxu0 0.0
    %6722 = vmatprep.subr.mxu0 0.0
    %6723 = vmatpush1.msra.mxu0 0.0
    %6724 = vmatprep.subr.mxu0 0.0
    %6725 = vmatpush1.msra.mxu0 0.0
    %6726 = vmatprep.subr.mxu0 0.0
    %6727 = vmatpush1.msra.mxu0 0.0
    %6728 = vmatprep.subr.mxu0 0.0
    %6729 = vmatpush1.msra.mxu0 0.0
    %6730 = vmatprep.subr.mxu0 0.0
    %6731 = vmatpush1.msra.mxu0 0.0
    %6732 = vmatprep.subr.mxu0 0.0
    %6733 = vmatpush1.msra.mxu0 0.0
    %6734 = vmatprep.subr.mxu0 0.0
    %6735 = vmatpush1.msra.mxu0 0.0
    %6736 = vmatprep.subr.mxu0 0.0
    %6737 = vmatpush1.msra.mxu0 0.0
    %6738 = vmatprep.subr.mxu0 0.0
    %6739 = vmatpush1.msra.mxu0 0.0
    %6740 = vmatprep.subr.mxu0 0.0
    %6741 = vmatpush1.msra.mxu0 0.0
    %6742 = vmatprep.subr.mxu0 0.0
    %6743 = vmatpush1.msra.mxu0 0.0
    %6744 = vmatprep.subr.mxu0 0.0
    %6745 = vmatpush1.msra.mxu0 0.0
    %6746 = vmatprep.subr.mxu0 0.0
    %6747 = vmatpush1.msra.mxu0 0.0
    %6748 = vmatprep.subr.mxu0 0.0
    %6749 = vmatpush1.msra.mxu0 0.0
    %6750 = vmatprep.subr.mxu0 0.0
    %6751 = vmatpush1.msra.mxu0 0.0
    %6752 = vmatprep.subr.mxu0 0.0
    %6753 = vmatpush1.msra.mxu0 0.0
    %6754 = vmatprep.mubr.f32.mxu0 0.0
    %6755 = vmatmul.mubr.f32.gmra.mrb[0].mxu0 %v6679
    %v6756 = vpop.f32.mrb[0].mxu0
    %v6757 = vadd.f32 %v6677, %v6756
    %v6758 = vpop.f32.mrb[0].mxu0
    %6759 = vmatprep.mubr.f32.mxu0 0.0
    %6760 = vmatmul.mubr.f32.gmra.mrb[0].mxu0 %v6682
    %v6761 = vpop.f32.mrb[0].mxu0
    %v6762 = vadd.f32 %v6677, %v6761
    %v6763 = vpop.f32.mrb[0].mxu0
    %6764 = vmatprep.mubr.f32.mxu0 0.0
    %6765 = vmatmul.mubr.f32.gmra.mrb[0].mxu0 %v6685
    %v6766 = vpop.f32.mrb[0].mxu0
    %v6767 = vadd.f32 %v6677, %v6766
    %v6768 = vpop.f32.mrb[0].mxu0
    %6769 = vmatprep.mubr.f32.mxu0 0.0
    %6770 = vmatmul.mubr.f32.gmra.mrb[0].mxu0 %v6688
    %v6771 = vpop.f32.mrb[0].mxu0
    %v6772 = vadd.f32 %v6677, %v6771
    %v6773 = vpop.f32.mrb[0].mxu0
    %6774 = vdwg.mxu0
    %v6775 = vadd.f32 %v3845, %v6757
    %v6776 = vadd.f32 %v3846, %v6762
    %v6777 = vadd.f32 %v3847, %v6767
    %v6778 = vadd.f32 %v3848, %v6772
    %v6779 = vld [vmem:[%s14 + $0xd] sm:$0x1]
    %v6780 = vld [vmem:[%s14 + $0xe] sm:$0x1]
    %v6781 = vsel %vm259, %v6775, 0.0
    %6782 = vadd.xlane.f32.xlu0 %v6781
    %v6783 = vpop.xlane.xlu0 %6782
    %v6784 = vsel %vm259, %v6776, 0.0
    %6785 = vadd.xlane.f32.xlu0 %v6784
    %v6786 = vpop.xlane.xlu0 %6785
    %v6787 = vsel %vm259, %v6777, 0.0
    %6788 = vadd.xlane.f32.xlu0 %v6787
    %v6789 = vpop.xlane.xlu0 %6788
    %v6790 = vsel %vm259, %v6778, 0.0
    %6791 = vadd.xlane.f32.xlu0 %v6790
    %v6792 = vpop.xlane.xlu0 %6791
    %v6793 = vmul.f32 %v6783, %v3502
    %v6794 = vmul.f32 %v6786, %v3502
    %v6795 = vmul.f32 %v6789, %v3502
    %v6796 = vmul.f32 %v6792, %v3502
    %v6797 = vsub.f32 %v6775, %v6793
    %v6798 = vsub.f32 %v6776, %v6794
    %v6799 = vsub.f32 %v6777, %v6795
    %v6800 = vsub.f32 %v6778, %v6796
    %v6801 = vmul.f32 %v6797, %v6797
    %v6802 = vmul.f32 %v6798, %v6798
    %v6803 = vmul.f32 %v6799, %v6799
    %v6804 = vmul.f32 %v6800, %v6800
    %v6805 = vsel %vm259, %v6801, 0.0
    %6806 = vadd.xlane.f32.xlu0 %v6805
    %v6807 = vpop.xlane.xlu0 %6806
    %v6808 = vsel %vm259, %v6802, 0.0
    %6809 = vadd.xlane.f32.xlu0 %v6808
    %v6810 = vpop.xlane.xlu0 %6809
    %v6811 = vsel %vm259, %v6803, 0.0
    %6812 = vadd.xlane.f32.xlu0 %v6811
    %v6813 = vpop.xlane.xlu0 %6812
    %v6814 = vsel %vm259, %v6804, 0.0
    %6815 = vadd.xlane.f32.xlu0 %v6814
    %v6816 = vpop.xlane.xlu0 %6815
    %v6817 = vmul.f32 %v6807, %v3502
    %v6818 = vmul.f32 %v6810, %v3502
    %v6819 = vmul.f32 %v6813, %v3502
    %v6820 = vmul.f32 %v6816, %v3502
    %v6821 = vadd.f32 %v6817, 1e-05
    %v6822 = vadd.f32 %v6818, 1e-05
    %v6823 = vadd.f32 %v6819, 1e-05
    %v6824 = vadd.f32 %v6820, 1e-05
    %v6825 = vrsqrt.pop %v6821
    %v6826 = vrsqrt.pop %v6822
    %v6827 = vrsqrt.pop %v6823
    %v6828 = vrsqrt.pop %v6824
    %v6829 = vmul.f32 %v6797, %v6825
    %v6830 = vmul.f32 %v6798, %v6826
    %v6831 = vmul.f32 %v6799, %v6827
    %v6832 = vmul.f32 %v6800, %v6828
    %v6833 = vlaneseq
    %v6834 = vshrl.u32 %v6833, 7
    %v6835 = vsub.s32 0, %v6834
    %v6836 = vrot.slane %v6779, %v6835
    %v6837 = vmul.f32 %v6829, %v6836
    %v6838 = vmul.f32 %v6830, %v6836
    %v6839 = vmul.f32 %v6831, %v6836
    %v6840 = vmul.f32 %v6832, %v6836
    %v6841 = vlaneseq
    %v6842 = vshrl.u32 %v6841, 7
    %v6843 = vsub.s32 0, %v6842
    %v6844 = vrot.slane %v6780, %v6843
    %v6845 = vadd.f32 %v6837, %v6844
    %v6846 = vadd.f32 %v6838, %v6844
    %v6847 = vadd.f32 %v6839, %v6844
    %v6848 = vadd.f32 %v6840, %v6844
    %s6849 = scalar_lea.vmem %s8, 32
    %v6850 = vld [vmem:[%s6849] sm:$0xff]
    %v6851 = vld [vmem:[%s6849 + $0x8] sm:$0xff]
    %v6852 = vld [vmem:[%s6849 + $0x10] sm:$0xff]
    %v6853 = vld [vmem:[%s6849 + $0x18] sm:$0xff]
    %v6854 = vld [vmem:[%s14 + $0xf] sm:$0x1]
    %v6855 = vlaneseq
    %v6856 = vshrl.u32 %v6855, 7
    %v6857 = vsub.s32 0, %v6856
    %v6858 = vrot.slane %v6854, %v6857
    %v6860 = vsel %vm259, %v6845, 0
    %v6863 = vsel %vm259, %v6846, 0
    %v6866 = vsel %vm259, %v6847, 0
    %v6869 = vsel %vm259, %v6848, 0
    %6871 = vmatprep.subr.mxu0 0.0
    %6872 = vmatpush1.msra.mxu0 %v6850
    %6873 = vmatprep.subr.mxu0 0.0
    %6874 = vmatpush1.msra.mxu0 %v6851
    %6875 = vmatprep.subr.mxu0 0.0
    %6876 = vmatpush1.msra.mxu0 %v6852
    %6877 = vmatprep.subr.mxu0 0.0
    %6878 = vmatpush1.msra.mxu0 %v6853
    %6879 = vmatprep.subr.mxu0 0.0
    %6880 = vmatpush1.msra.mxu0 0.0
    %6881 = vmatprep.subr.mxu0 0.0
    %6882 = vmatpush1.msra.mxu0 0.0
    %6883 = vmatprep.subr.mxu0 0.0
    %6884 = vmatpush1.msra.mxu0 0.0
    %6885 = vmatprep.subr.mxu0 0.0
    %6886 = vmatpush1.msra.mxu0 0.0
    %6887 = vmatprep.subr.mxu0 0.0
    %6888 = vmatpush1.msra.mxu0 0.0
    %6889 = vmatprep.subr.mxu0 0.0
    %6890 = vmatpush1.msra.mxu0 0.0
    %6891 = vmatprep.subr.mxu0 0.0
    %6892 = vmatpush1.msra.mxu0 0.0
    %6893 = vmatprep.subr.mxu0 0.0
    %6894 = vmatpush1.msra.mxu0 0.0
    %6895 = vmatprep.subr.mxu0 0.0
    %6896 = vmatpush1.msra.mxu0 0.0
    %6897 = vmatprep.subr.mxu0 0.0
    %6898 = vmatpush1.msra.mxu0 0.0
    %6899 = vmatprep.subr.mxu0 0.0
    %6900 = vmatpush1.msra.mxu0 0.0
    %6901 = vmatprep.subr.mxu0 0.0
    %6902 = vmatpush1.msra.mxu0 0.0
    %6903 = vmatprep.subr.mxu0 0.0
    %6904 = vmatpush1.msra.mxu0 0.0
    %6905 = vmatprep.subr.mxu0 0.0
    %6906 = vmatpush1.msra.mxu0 0.0
    %6907 = vmatprep.subr.mxu0 0.0
    %6908 = vmatpush1.msra.mxu0 0.0
    %6909 = vmatprep.subr.mxu0 0.0
    %6910 = vmatpush1.msra.mxu0 0.0
    %6911 = vmatprep.subr.mxu0 0.0
    %6912 = vmatpush1.msra.mxu0 0.0
    %6913 = vmatprep.subr.mxu0 0.0
    %6914 = vmatpush1.msra.mxu0 0.0
    %6915 = vmatprep.subr.mxu0 0.0
    %6916 = vmatpush1.msra.mxu0 0.0
    %6917 = vmatprep.subr.mxu0 0.0
    %6918 = vmatpush1.msra.mxu0 0.0
    %6919 = vmatprep.subr.mxu0 0.0
    %6920 = vmatpush1.msra.mxu0 0.0
    %6921 = vmatprep.subr.mxu0 0.0
    %6922 = vmatpush1.msra.mxu0 0.0
    %6923 = vmatprep.subr.mxu0 0.0
    %6924 = vmatpush1.msra.mxu0 0.0
    %6925 = vmatprep.subr.mxu0 0.0
    %6926 = vmatpush1.msra.mxu0 0.0
    %6927 = vmatprep.subr.mxu0 0.0
    %6928 = vmatpush1.msra.mxu0 0.0
    %6929 = vmatprep.subr.mxu0 0.0
    %6930 = vmatpush1.msra.mxu0 0.0
    %6931 = vmatprep.subr.mxu0 0.0
    %6932 = vmatpush1.msra.mxu0 0.0
    %6933 = vmatprep.subr.mxu0 0.0
    %6934 = vmatpush1.msra.mxu0 0.0
    %6935 = vmatprep.mubr.f32.mxu0 0.0
    %6936 = vmatmul.mubr.f32.gmra.mrb[0].mxu0 %v6860
    %v6937 = vpop.f32.mrb[0].mxu0
    %v6938 = vadd.f32 %v6858, %v6937
    %v6939 = vpop.f32.mrb[0].mxu0
    %6940 = vmatprep.mubr.f32.mxu0 0.0
    %6941 = vmatmul.mubr.f32.gmra.mrb[0].mxu0 %v6863
    %v6942 = vpop.f32.mrb[0].mxu0
    %v6943 = vadd.f32 %v6858, %v6942
    %v6944 = vpop.f32.mrb[0].mxu0
    %6945 = vmatprep.mubr.f32.mxu0 0.0
    %6946 = vmatmul.mubr.f32.gmra.mrb[0].mxu0 %v6866
    %v6947 = vpop.f32.mrb[0].mxu0
    %v6948 = vadd.f32 %v6858, %v6947
    %v6949 = vpop.f32.mrb[0].mxu0
    %6950 = vmatprep.mubr.f32.mxu0 0.0
    %6951 = vmatmul.mubr.f32.gmra.mrb[0].mxu0 %v6869
    %v6952 = vpop.f32.mrb[0].mxu0
    %v6953 = vadd.f32 %v6858, %v6952
    %v6954 = vpop.f32.mrb[0].mxu0
    %6955 = vdwg.mxu0
    %v6956 = vmax.f32 %v6938, 0.0
    %v6957 = vmax.f32 %v6943, 0.0
    %v6958 = vmax.f32 %v6948, 0.0
    %v6959 = vmax.f32 %v6953, 0.0
    %s6960 = scalar_lea.vmem %s9, 128
    %v6961 = vld [vmem:[%s6960] sm:$0xff]
    %v6962 = vld [vmem:[%s6960 + $0x8] sm:$0xff]
    %v6963 = vld [vmem:[%s6960 + $0x10] sm:$0xff]
    %v6964 = vld [vmem:[%s6960 + $0x18] sm:$0xff]
    %v6965 = vld [vmem:[%s6960 + $0x20] sm:$0xff]
    %v6966 = vld [vmem:[%s6960 + $0x28] sm:$0xff]
    %v6967 = vld [vmem:[%s6960 + $0x30] sm:$0xff]
    %v6968 = vld [vmem:[%s6960 + $0x38] sm:$0xff]
    %v6969 = vld [vmem:[%s6960 + $0x40] sm:$0xff]
    %v6970 = vld [vmem:[%s6960 + $0x48] sm:$0xff]
    %v6971 = vld [vmem:[%s6960 + $0x50] sm:$0xff]
    %v6972 = vld [vmem:[%s6960 + $0x58] sm:$0xff]
    %v6973 = vld [vmem:[%s6960 + $0x60] sm:$0xff]
    %v6974 = vld [vmem:[%s6960 + $0x68] sm:$0xff]
    %v6975 = vld [vmem:[%s6960 + $0x70] sm:$0xff]
    %v6976 = vld [vmem:[%s6960 + $0x78] sm:$0xff]
    %v6977 = vld [vmem:[%s14 + $0x10] sm:$0x1]
    %v6978 = vlaneseq
    %v6979 = vshrl.u32 %v6978, 7
    %v6980 = vsub.s32 0, %v6979
    %v6981 = vrot.slane %v6977, %v6980
    %6982 = vmatprep.subr.mxu0 0.0
    %6983 = vmatpush1.msra.mxu0 %v6961
    %6984 = vmatprep.subr.mxu0 0.0
    %6985 = vmatpush1.msra.mxu0 %v6962
    %6986 = vmatprep.subr.mxu0 0.0
    %6987 = vmatpush1.msra.mxu0 %v6963
    %6988 = vmatprep.subr.mxu0 0.0
    %6989 = vmatpush1.msra.mxu0 %v6964
    %6990 = vmatprep.subr.mxu0 0.0
    %6991 = vmatpush1.msra.mxu0 %v6965
    %6992 = vmatprep.subr.mxu0 0.0
    %6993 = vmatpush1.msra.mxu0 %v6966
    %6994 = vmatprep.subr.mxu0 0.0
    %6995 = vmatpush1.msra.mxu0 %v6967
    %6996 = vmatprep.subr.mxu0 0.0
    %6997 = vmatpush1.msra.mxu0 %v6968
    %6998 = vmatprep.subr.mxu0 0.0
    %6999 = vmatpush1.msra.mxu0 %v6969
    %7000 = vmatprep.subr.mxu0 0.0
    %7001 = vmatpush1.msra.mxu0 %v6970
    %7002 = vmatprep.subr.mxu0 0.0
    %7003 = vmatpush1.msra.mxu0 %v6971
    %7004 = vmatprep.subr.mxu0 0.0
    %7005 = vmatpush1.msra.mxu0 %v6972
    %7006 = vmatprep.subr.mxu0 0.0
    %7007 = vmatpush1.msra.mxu0 %v6973
    %7008 = vmatprep.subr.mxu0 0.0
    %7009 = vmatpush1.msra.mxu0 %v6974
    %7010 = vmatprep.subr.mxu0 0.0
    %7011 = vmatpush1.msra.mxu0 %v6975
    %7012 = vmatprep.subr.mxu0 0.0
    %7013 = vmatpush1.msra.mxu0 %v6976
    %7014 = vmatprep.subr.mxu0 0.0
    %7015 = vmatpush1.msra.mxu0 0.0
    %7016 = vmatprep.subr.mxu0 0.0
    %7017 = vmatpush1.msra.mxu0 0.0
    %7018 = vmatprep.subr.mxu0 0.0
    %7019 = vmatpush1.msra.mxu0 0.0
    %7020 = vmatprep.subr.mxu0 0.0
    %7021 = vmatpush1.msra.mxu0 0.0
    %7022 = vmatprep.subr.mxu0 0.0
    %7023 = vmatpush1.msra.mxu0 0.0
    %7024 = vmatprep.subr.mxu0 0.0
    %7025 = vmatpush1.msra.mxu0 0.0
    %7026 = vmatprep.subr.mxu0 0.0
    %7027 = vmatpush1.msra.mxu0 0.0
    %7028 = vmatprep.subr.mxu0 0.0
    %7029 = vmatpush1.msra.mxu0 0.0
    %7030 = vmatprep.subr.mxu0 0.0
    %7031 = vmatpush1.msra.mxu0 0.0
    %7032 = vmatprep.subr.mxu0 0.0
    %7033 = vmatpush1.msra.mxu0 0.0
    %7034 = vmatprep.subr.mxu0 0.0
    %7035 = vmatpush1.msra.mxu0 0.0
    %7036 = vmatprep.subr.mxu0 0.0
    %7037 = vmatpush1.msra.mxu0 0.0
    %7038 = vmatprep.subr.mxu0 0.0
    %7039 = vmatpush1.msra.mxu0 0.0
    %7040 = vmatprep.subr.mxu0 0.0
    %7041 = vmatpush1.msra.mxu0 0.0
    %7042 = vmatprep.subr.mxu0 0.0
    %7043 = vmatpush1.msra.mxu0 0.0
    %7044 = vmatprep.subr.mxu0 0.0
    %7045 = vmatpush1.msra.mxu0 0.0
    %7046 = vmatprep.mubr.f32.mxu0 0.0
    %7047 = vmatmul.mubr.f32.gmra.mrb[0].mxu0 %v6956
    %v7048 = vpop.f32.mrb[0].mxu0
    %v7049 = vadd.f32 %v6981, %v7048
    %v7050 = vpop.f32.mrb[0].mxu0
    %7051 = vmatprep.mubr.f32.mxu0 0.0
    %7052 = vmatmul.mubr.f32.gmra.mrb[0].mxu0 %v6957
    %v7053 = vpop.f32.mrb[0].mxu0
    %v7054 = vadd.f32 %v6981, %v7053
    %v7055 = vpop.f32.mrb[0].mxu0
    %7056 = vmatprep.mubr.f32.mxu0 0.0
    %7057 = vmatmul.mubr.f32.gmra.mrb[0].mxu0 %v6958
    %v7058 = vpop.f32.mrb[0].mxu0
    %v7059 = vadd.f32 %v6981, %v7058
    %v7060 = vpop.f32.mrb[0].mxu0
    %7061 = vmatprep.mubr.f32.mxu0 0.0
    %7062 = vmatmul.mubr.f32.gmra.mrb[0].mxu0 %v6959
    %v7063 = vpop.f32.mrb[0].mxu0
    %v7064 = vadd.f32 %v6981, %v7063
    %v7065 = vpop.f32.mrb[0].mxu0
    %7066 = vdwg.mxu0
    %v7067 = vadd.f32 %v6845, %v7049
    %v7068 = vadd.f32 %v6846, %v7054
    %v7069 = vadd.f32 %v6847, %v7059
    %v7070 = vadd.f32 %v6848, %v7064
    %v7071 = vld [vmem:[%s14 + $0x11] sm:$0x1]
    %v7072 = vld [vmem:[%s14 + $0x12] sm:$0x1]
    %v7073 = vsel %vm259, %v7067, 0.0
    %7074 = vadd.xlane.f32.xlu0 %v7073
    %v7075 = vpop.xlane.xlu0 %7074
    %v7076 = vsel %vm259, %v7068, 0.0
    %7077 = vadd.xlane.f32.xlu0 %v7076
    %v7078 = vpop.xlane.xlu0 %7077
    %v7079 = vsel %vm259, %v7069, 0.0
    %7080 = vadd.xlane.f32.xlu0 %v7079
    %v7081 = vpop.xlane.xlu0 %7080
    %v7082 = vsel %vm259, %v7070, 0.0
    %7083 = vadd.xlane.f32.xlu0 %v7082
    %v7084 = vpop.xlane.xlu0 %7083
    %v7085 = vmul.f32 %v7075, %v3502
    %v7086 = vmul.f32 %v7078, %v3502
    %v7087 = vmul.f32 %v7081, %v3502
    %v7088 = vmul.f32 %v7084, %v3502
    %v7089 = vsub.f32 %v7067, %v7085
    %v7090 = vsub.f32 %v7068, %v7086
    %v7091 = vsub.f32 %v7069, %v7087
    %v7092 = vsub.f32 %v7070, %v7088
    %v7093 = vmul.f32 %v7089, %v7089
    %v7094 = vmul.f32 %v7090, %v7090
    %v7095 = vmul.f32 %v7091, %v7091
    %v7096 = vmul.f32 %v7092, %v7092
    %v7097 = vsel %vm259, %v7093, 0.0
    %7098 = vadd.xlane.f32.xlu0 %v7097
    %v7099 = vpop.xlane.xlu0 %7098
    %v7100 = vsel %vm259, %v7094, 0.0
    %7101 = vadd.xlane.f32.xlu0 %v7100
    %v7102 = vpop.xlane.xlu0 %7101
    %v7103 = vsel %vm259, %v7095, 0.0
    %7104 = vadd.xlane.f32.xlu0 %v7103
    %v7105 = vpop.xlane.xlu0 %7104
    %v7106 = vsel %vm259, %v7096, 0.0
    %7107 = vadd.xlane.f32.xlu0 %v7106
    %v7108 = vpop.xlane.xlu0 %7107
    %v7109 = vmul.f32 %v7099, %v3502
    %v7110 = vmul.f32 %v7102, %v3502
    %v7111 = vmul.f32 %v7105, %v3502
    %v7112 = vmul.f32 %v7108, %v3502
    %v7113 = vadd.f32 %v7109, 1e-05
    %v7114 = vadd.f32 %v7110, 1e-05
    %v7115 = vadd.f32 %v7111, 1e-05
    %v7116 = vadd.f32 %v7112, 1e-05
    %v7117 = vrsqrt.pop %v7113
    %v7118 = vrsqrt.pop %v7114
    %v7119 = vrsqrt.pop %v7115
    %v7120 = vrsqrt.pop %v7116
    %v7121 = vmul.f32 %v7089, %v7117
    %v7122 = vmul.f32 %v7090, %v7118
    %v7123 = vmul.f32 %v7091, %v7119
    %v7124 = vmul.f32 %v7092, %v7120
    %v7125 = vlaneseq
    %v7126 = vshrl.u32 %v7125, 7
    %v7127 = vsub.s32 0, %v7126
    %v7128 = vrot.slane %v7071, %v7127
    %v7129 = vmul.f32 %v7121, %v7128
    %v7130 = vmul.f32 %v7122, %v7128
    %v7131 = vmul.f32 %v7123, %v7128
    %v7132 = vmul.f32 %v7124, %v7128
    %v7133 = vlaneseq
    %v7134 = vshrl.u32 %v7133, 7
    %v7135 = vsub.s32 0, %v7134
    %v7136 = vrot.slane %v7072, %v7135
    %v7137 = vadd.f32 %v7129, %v7136
    %v7138 = vadd.f32 %v7130, %v7136
    %v7139 = vadd.f32 %v7131, %v7136
    %v7140 = vadd.f32 %v7132, %v7136
    %v7141 = vld [vmem:[%s10] sm:$0xff]
    %v7142 = vld [vmem:[%s10 + $0x8] sm:$0xff]
    %v7143 = vld [vmem:[%s10 + $0x10] sm:$0xff]
    %v7144 = vld [vmem:[%s10 + $0x18] sm:$0xff]
    %v7145 = vld [vmem:[%s11] sm:$0xff]
    %v7146 = vld [vmem:[%s11 + $0x8] sm:$0xff]
    %v7147 = vld [vmem:[%s11 + $0x10] sm:$0xff]
    %v7148 = vld [vmem:[%s11 + $0x18] sm:$0xff]
    %v7149 = vld [vmem:[%s14 + $0x13] sm:$0x1]
    %v7150 = vlaneseq
    %v7151 = vshrl.u32 %v7150, 7
    %v7152 = vsub.s32 0, %v7151
    %v7153 = vrot.slane %v7149, %v7152
    %v7155 = vsel %vm259, %v7137, 0
    %v7158 = vsel %vm259, %v7138, 0
    %7160 = vmatprep.subr.mxu0 0.0
    %7161 = vmatpush1.msra.mxu0 %v7141
    %7162 = vmatprep.subr.mxu0 0.0
    %7163 = vmatpush1.msra.mxu0 %v7142
    %7164 = vmatprep.subr.mxu0 0.0
    %7165 = vmatpush1.msra.mxu0 %v7143
    %7166 = vmatprep.subr.mxu0 0.0
    %7167 = vmatpush1.msra.mxu0 %v7144
    %7168 = vmatprep.subr.mxu0 0.0
    %7169 = vmatpush1.msra.mxu0 0.0
    %7170 = vmatprep.subr.mxu0 0.0
    %7171 = vmatpush1.msra.mxu0 0.0
    %7172 = vmatprep.subr.mxu0 0.0
    %7173 = vmatpush1.msra.mxu0 0.0
    %7174 = vmatprep.subr.mxu0 0.0
    %7175 = vmatpush1.msra.mxu0 0.0
    %7176 = vmatprep.subr.mxu0 0.0
    %7177 = vmatpush1.msra.mxu0 0.0
    %7178 = vmatprep.subr.mxu0 0.0
    %7179 = vmatpush1.msra.mxu0 0.0
    %7180 = vmatprep.subr.mxu0 0.0
    %7181 = vmatpush1.msra.mxu0 0.0
    %7182 = vmatprep.subr.mxu0 0.0
    %7183 = vmatpush1.msra.mxu0 0.0
    %7184 = vmatprep.subr.mxu0 0.0
    %7185 = vmatpush1.msra.mxu0 0.0
    %7186 = vmatprep.subr.mxu0 0.0
    %7187 = vmatpush1.msra.mxu0 0.0
    %7188 = vmatprep.subr.mxu0 0.0
    %7189 = vmatpush1.msra.mxu0 0.0
    %7190 = vmatprep.subr.mxu0 0.0
    %7191 = vmatpush1.msra.mxu0 0.0
    %7192 = vmatprep.subr.mxu0 0.0
    %7193 = vmatpush1.msra.mxu0 0.0
    %7194 = vmatprep.subr.mxu0 0.0
    %7195 = vmatpush1.msra.mxu0 0.0
    %7196 = vmatprep.subr.mxu0 0.0
    %7197 = vmatpush1.msra.mxu0 0.0
    %7198 = vmatprep.subr.mxu0 0.0
    %7199 = vmatpush1.msra.mxu0 0.0
    %7200 = vmatprep.subr.mxu0 0.0
    %7201 = vmatpush1.msra.mxu0 0.0
    %7202 = vmatprep.subr.mxu0 0.0
    %7203 = vmatpush1.msra.mxu0 0.0
    %7204 = vmatprep.subr.mxu0 0.0
    %7205 = vmatpush1.msra.mxu0 0.0
    %7206 = vmatprep.subr.mxu0 0.0
    %7207 = vmatpush1.msra.mxu0 0.0
    %7208 = vmatprep.subr.mxu0 0.0
    %7209 = vmatpush1.msra.mxu0 0.0
    %7210 = vmatprep.subr.mxu0 0.0
    %7211 = vmatpush1.msra.mxu0 0.0
    %7212 = vmatprep.subr.mxu0 0.0
    %7213 = vmatpush1.msra.mxu0 0.0
    %7214 = vmatprep.subr.mxu0 0.0
    %7215 = vmatpush1.msra.mxu0 0.0
    %7216 = vmatprep.subr.mxu0 0.0
    %7217 = vmatpush1.msra.mxu0 0.0
    %7218 = vmatprep.subr.mxu0 0.0
    %7219 = vmatpush1.msra.mxu0 0.0
    %7220 = vmatprep.subr.mxu0 0.0
    %7221 = vmatpush1.msra.mxu0 0.0
    %7222 = vmatprep.subr.mxu0 0.0
    %7223 = vmatpush1.msra.mxu0 0.0
    %7224 = vmatprep.mubr.f32.mxu0 0.0
    %7225 = vmatmul.mubr.f32.gmra.mrb[0].mxu0 %v7155
    %v7226 = vpop.f32.mrb[0].mxu0
    %v7227 = vadd.f32 %v7153, %v7226
    %v7228 = vpop.f32.mrb[0].mxu0
    %7229 = vmatprep.mubr.f32.mxu0 0.0
    %7230 = vmatmul.mubr.f32.gmra.mrb[0].mxu0 %v7158
    %v7231 = vpop.f32.mrb[0].mxu0
    %v7232 = vadd.f32 %v7153, %v7231
    %v7233 = vpop.f32.mrb[0].mxu0
    %7234 = vdwg.mxu0
    %7239 = vrot.lane.b32.xlu0 %v7141, 96
    %v7240 = vpop.permute.xlu0 %7239
    %7241 = vrot.lane.b32.xlu0 %v7142, 96
    %v7242 = vpop.permute.xlu0 %7241
    %7243 = vrot.lane.b32.xlu0 %v7143, 96
    %v7244 = vpop.permute.xlu0 %7243
    %7245 = vrot.lane.b32.xlu0 %v7144, 96
    %v7246 = vpop.permute.xlu0 %7245
    %7252 = vrot.lane.b32.xlu0 %v7153, 96
    %v7253 = vpop.permute.xlu0 %7252
    %v7256 = vsel %vm259, %v7139, 0
    %v7259 = vsel %vm259, %v7140, 0
    %7261 = vmatprep.subr.mxu0 0.0
    %7262 = vmatpush1.msra.mxu0 %v7240
    %7263 = vmatprep.subr.mxu0 0.0
    %7264 = vmatpush1.msra.mxu0 %v7242
    %7265 = vmatprep.subr.mxu0 0.0
    %7266 = vmatpush1.msra.mxu0 %v7244
    %7267 = vmatprep.subr.mxu0 0.0
    %7268 = vmatpush1.msra.mxu0 %v7246
    %7269 = vmatprep.subr.mxu0 0.0
    %7270 = vmatpush1.msra.mxu0 0.0
    %7271 = vmatprep.subr.mxu0 0.0
    %7272 = vmatpush1.msra.mxu0 0.0
    %7273 = vmatprep.subr.mxu0 0.0
    %7274 = vmatpush1.msra.mxu0 0.0
    %7275 = vmatprep.subr.mxu0 0.0
    %7276 = vmatpush1.msra.mxu0 0.0
    %7277 = vmatprep.subr.mxu0 0.0
    %7278 = vmatpush1.msra.mxu0 0.0
    %7279 = vmatprep.subr.mxu0 0.0
    %7280 = vmatpush1.msra.mxu0 0.0
    %7281 = vmatprep.subr.mxu0 0.0
    %7282 = vmatpush1.msra.mxu0 0.0
    %7283 = vmatprep.subr.mxu0 0.0
    %7284 = vmatpush1.msra.mxu0 0.0
    %7285 = vmatprep.subr.mxu0 0.0
    %7286 = vmatpush1.msra.mxu0 0.0
    %7287 = vmatprep.subr.mxu0 0.0
    %7288 = vmatpush1.msra.mxu0 0.0
    %7289 = vmatprep.subr.mxu0 0.0
    %7290 = vmatpush1.msra.mxu0 0.0
    %7291 = vmatprep.subr.mxu0 0.0
    %7292 = vmatpush1.msra.mxu0 0.0
    %7293 = vmatprep.subr.mxu0 0.0
    %7294 = vmatpush1.msra.mxu0 0.0
    %7295 = vmatprep.subr.mxu0 0.0
    %7296 = vmatpush1.msra.mxu0 0.0
    %7297 = vmatprep.subr.mxu0 0.0
    %7298 = vmatpush1.msra.mxu0 0.0
    %7299 = vmatprep.subr.mxu0 0.0
    %7300 = vmatpush1.msra.mxu0 0.0
    %7301 = vmatprep.subr.mxu0 0.0
    %7302 = vmatpush1.msra.mxu0 0.0
    %7303 = vmatprep.subr.mxu0 0.0
    %7304 = vmatpush1.msra.mxu0 0.0
    %7305 = vmatprep.subr.mxu0 0.0
    %7306 = vmatpush1.msra.mxu0 0.0
    %7307 = vmatprep.subr.mxu0 0.0
    %7308 = vmatpush1.msra.mxu0 0.0
    %7309 = vmatprep.subr.mxu0 0.0
    %7310 = vmatpush1.msra.mxu0 0.0
    %7311 = vmatprep.subr.mxu0 0.0
    %7312 = vmatpush1.msra.mxu0 0.0
    %7313 = vmatprep.subr.mxu0 0.0
    %7314 = vmatpush1.msra.mxu0 0.0
    %7315 = vmatprep.subr.mxu0 0.0
    %7316 = vmatpush1.msra.mxu0 0.0
    %7317 = vmatprep.subr.mxu0 0.0
    %7318 = vmatpush1.msra.mxu0 0.0
    %7319 = vmatprep.subr.mxu0 0.0
    %7320 = vmatpush1.msra.mxu0 0.0
    %7321 = vmatprep.subr.mxu0 0.0
    %7322 = vmatpush1.msra.mxu0 0.0
    %7323 = vmatprep.subr.mxu0 0.0
    %7324 = vmatpush1.msra.mxu0 0.0
    %7325 = vmatprep.mubr.f32.mxu0 0.0
    %7326 = vmatmul.mubr.f32.gmra.mrb[0].mxu0 %v7256
    %v7327 = vpop.f32.mrb[0].mxu0
    %v7328 = vadd.f32 %v7253, %v7327
    %v7329 = vpop.f32.mrb[0].mxu0
    %7330 = vmatprep.mubr.f32.mxu0 0.0
    %7331 = vmatmul.mubr.f32.gmra.mrb[0].mxu0 %v7259
    %v7332 = vpop.f32.mrb[0].mxu0
    %v7333 = vadd.f32 %v7253, %v7332
    %v7334 = vpop.f32.mrb[0].mxu0
    %7335 = vdwg.mxu0
    %7338 = vrot.lane.b32.xlu0 %v7227, 120
    %v7339 = vpop.permute.xlu0 %7338
    %7340 = vrot.lane.b32.xlu0 %v7232, 120
    %v7341 = vpop.permute.xlu0 %7340
    %7342 = vrot.lane.b32.xlu0 %v7227, 112
    %v7343 = vpop.permute.xlu0 %7342
    %7344 = vrot.lane.b32.xlu0 %v7232, 112
    %v7345 = vpop.permute.xlu0 %7344
    %7346 = vrot.lane.b32.xlu0 %v7227, 104
    %v7347 = vpop.permute.xlu0 %7346
    %7348 = vrot.lane.b32.xlu0 %v7232, 104
    %v7349 = vpop.permute.xlu0 %7348
    %7352 = vrot.lane.b32.xlu0 %v7328, 120
    %v7353 = vpop.permute.xlu0 %7352
    %7354 = vrot.lane.b32.xlu0 %v7333, 120
    %v7355 = vpop.permute.xlu0 %7354
    %7356 = vrot.lane.b32.xlu0 %v7328, 112
    %v7357 = vpop.permute.xlu0 %7356
    %7358 = vrot.lane.b32.xlu0 %v7333, 112
    %v7359 = vpop.permute.xlu0 %7358
    %7360 = vrot.lane.b32.xlu0 %v7328, 104
    %v7361 = vpop.permute.xlu0 %7360
    %7362 = vrot.lane.b32.xlu0 %v7333, 104
    %v7363 = vpop.permute.xlu0 %7362
    %v7364 = vsel %vm697, %v7227, 0
    %v7366 = vsel %vm697, %v7328, 0
    %7368 = vmatprep.subr.mxu0 0.0
    %7369 = vmatpush1.xpose.msra.mxu0 %v7366
    %7370 = vmatprep.subr.mxu0 0.0
    %7371 = vmatpush1.xpose.msra.mxu0 0.0
    %7372 = vmatprep.subr.mxu0 0.0
    %7373 = vmatpush1.xpose.msra.mxu0 0.0
    %7374 = vmatprep.subr.mxu0 0.0
    %7375 = vmatpush1.xpose.msra.mxu0 0.0
    %7376 = vmatprep.subr.mxu0 0.0
    %7377 = vmatpush1.xpose.msra.mxu0 0.0
    %7378 = vmatprep.subr.mxu0 0.0
    %7379 = vmatpush1.xpose.msra.mxu0 0.0
    %7380 = vmatprep.subr.mxu0 0.0
    %7381 = vmatpush1.xpose.msra.mxu0 0.0
    %7382 = vmatprep.subr.mxu0 0.0
    %7383 = vmatpush1.xpose.msra.mxu0 0.0
    %7384 = vmatprep.subr.mxu0 0.0
    %7385 = vmatpush1.xpose.msra.mxu0 0.0
    %7386 = vmatprep.subr.mxu0 0.0
    %7387 = vmatpush1.xpose.msra.mxu0 0.0
    %7388 = vmatprep.subr.mxu0 0.0
    %7389 = vmatpush1.xpose.msra.mxu0 0.0
    %7390 = vmatprep.subr.mxu0 0.0
    %7391 = vmatpush1.xpose.msra.mxu0 0.0
    %7392 = vmatprep.subr.mxu0 0.0
    %7393 = vmatpush1.xpose.msra.mxu0 0.0
    %7394 = vmatprep.subr.mxu0 0.0
    %7395 = vmatpush1.xpose.msra.mxu0 0.0
    %7396 = vmatprep.subr.mxu0 0.0
    %7397 = vmatpush1.xpose.msra.mxu0 0.0
    %7398 = vmatprep.subr.mxu0 0.0
    %7399 = vmatpush1.xpose.msra.mxu0 0.0
    %7400 = vmatprep.subr.mxu0 0.0
    %7401 = vmatpush1.xpose.msra.mxu0 0.0
    %7402 = vmatprep.subr.mxu0 0.0
    %7403 = vmatpush1.xpose.msra.mxu0 0.0
    %7404 = vmatprep.subr.mxu0 0.0
    %7405 = vmatpush1.xpose.msra.mxu0 0.0
    %7406 = vmatprep.subr.mxu0 0.0
    %7407 = vmatpush1.xpose.msra.mxu0 0.0
    %7408 = vmatprep.subr.mxu0 0.0
    %7409 = vmatpush1.xpose.msra.mxu0 0.0
    %7410 = vmatprep.subr.mxu0 0.0
    %7411 = vmatpush1.xpose.msra.mxu0 0.0
    %7412 = vmatprep.subr.mxu0 0.0
    %7413 = vmatpush1.xpose.msra.mxu0 0.0
    %7414 = vmatprep.subr.mxu0 0.0
    %7415 = vmatpush1.xpose.msra.mxu0 0.0
    %7416 = vmatprep.subr.mxu0 0.0
    %7417 = vmatpush1.xpose.msra.mxu0 0.0
    %7418 = vmatprep.subr.mxu0 0.0
    %7419 = vmatpush1.xpose.msra.mxu0 0.0
    %7420 = vmatprep.subr.mxu0 0.0
    %7421 = vmatpush1.xpose.msra.mxu0 0.0
    %7422 = vmatprep.subr.mxu0 0.0
    %7423 = vmatpush1.xpose.msra.mxu0 0.0
    %7424 = vmatprep.subr.mxu0 0.0
    %7425 = vmatpush1.xpose.msra.mxu0 0.0
    %7426 = vmatprep.subr.mxu0 0.0
    %7427 = vmatpush1.xpose.msra.mxu0 0.0
    %7428 = vmatprep.subr.mxu0 0.0
    %7429 = vmatpush1.xpose.msra.mxu0 0.0
    %7430 = vmatprep.subr.mxu0 0.0
    %7431 = vmatpush1.xpose.msra.mxu0 0.0
    %7432 = vmatprep.mubr.f32.mxu0 0.0
    %7433 = vmatmul.mubr.f32.gmra.mrb[0].mxu0 %v7364
    %v7434 = vpop.f32.mrb[0].mxu0
    %v7435 = vadd.f32 0.0, %v7434
    %v7436 = vpop.f32.mrb[0].mxu0
    %7437 = vdwg.mxu0
    %v7438 = vsel %vm697, %v7232, 0
    %v7440 = vsel %vm697, %v7333, 0
    %7442 = vmatprep.subr.mxu0 0.0
    %7443 = vmatpush1.xpose.msra.mxu0 %v7440
    %7444 = vmatprep.subr.mxu0 0.0
    %7445 = vmatpush1.xpose.msra.mxu0 0.0
    %7446 = vmatprep.subr.mxu0 0.0
    %7447 = vmatpush1.xpose.msra.mxu0 0.0
    %7448 = vmatprep.subr.mxu0 0.0
    %7449 = vmatpush1.xpose.msra.mxu0 0.0
    %7450 = vmatprep.subr.mxu0 0.0
    %7451 = vmatpush1.xpose.msra.mxu0 0.0
    %7452 = vmatprep.subr.mxu0 0.0
    %7453 = vmatpush1.xpose.msra.mxu0 0.0
    %7454 = vmatprep.subr.mxu0 0.0
    %7455 = vmatpush1.xpose.msra.mxu0 0.0
    %7456 = vmatprep.subr.mxu0 0.0
    %7457 = vmatpush1.xpose.msra.mxu0 0.0
    %7458 = vmatprep.subr.mxu0 0.0
    %7459 = vmatpush1.xpose.msra.mxu0 0.0
    %7460 = vmatprep.subr.mxu0 0.0
    %7461 = vmatpush1.xpose.msra.mxu0 0.0
    %7462 = vmatprep.subr.mxu0 0.0
    %7463 = vmatpush1.xpose.msra.mxu0 0.0
    %7464 = vmatprep.subr.mxu0 0.0
    %7465 = vmatpush1.xpose.msra.mxu0 0.0
    %7466 = vmatprep.subr.mxu0 0.0
    %7467 = vmatpush1.xpose.msra.mxu0 0.0
    %7468 = vmatprep.subr.mxu0 0.0
    %7469 = vmatpush1.xpose.msra.mxu0 0.0
    %7470 = vmatprep.subr.mxu0 0.0
    %7471 = vmatpush1.xpose.msra.mxu0 0.0
    %7472 = vmatprep.subr.mxu0 0.0
    %7473 = vmatpush1.xpose.msra.mxu0 0.0
    %7474 = vmatprep.subr.mxu0 0.0
    %7475 = vmatpush1.xpose.msra.mxu0 0.0
    %7476 = vmatprep.subr.mxu0 0.0
    %7477 = vmatpush1.xpose.msra.mxu0 0.0
    %7478 = vmatprep.subr.mxu0 0.0
    %7479 = vmatpush1.xpose.msra.mxu0 0.0
    %7480 = vmatprep.subr.mxu0 0.0
    %7481 = vmatpush1.xpose.msra.mxu0 0.0
    %7482 = vmatprep.subr.mxu0 0.0
    %7483 = vmatpush1.xpose.msra.mxu0 0.0
    %7484 = vmatprep.subr.mxu0 0.0
    %7485 = vmatpush1.xpose.msra.mxu0 0.0
    %7486 = vmatprep.subr.mxu0 0.0
    %7487 = vmatpush1.xpose.msra.mxu0 0.0
    %7488 = vmatprep.subr.mxu0 0.0
    %7489 = vmatpush1.xpose.msra.mxu0 0.0
    %7490 = vmatprep.subr.mxu0 0.0
    %7491 = vmatpush1.xpose.msra.mxu0 0.0
    %7492 = vmatprep.subr.mxu0 0.0
    %7493 = vmatpush1.xpose.msra.mxu0 0.0
    %7494 = vmatprep.subr.mxu0 0.0
    %7495 = vmatpush1.xpose.msra.mxu0 0.0
    %7496 = vmatprep.subr.mxu0 0.0
    %7497 = vmatpush1.xpose.msra.mxu0 0.0
    %7498 = vmatprep.subr.mxu0 0.0
    %7499 = vmatpush1.xpose.msra.mxu0 0.0
    %7500 = vmatprep.subr.mxu0 0.0
    %7501 = vmatpush1.xpose.msra.mxu0 0.0
    %7502 = vmatprep.subr.mxu0 0.0
    %7503 = vmatpush1.xpose.msra.mxu0 0.0
    %7504 = vmatprep.subr.mxu0 0.0
    %7505 = vmatpush1.xpose.msra.mxu0 0.0
    %7506 = vmatprep.mubr.f32.mxu0 0.0
    %7507 = vmatmul.mubr.f32.gmra.mrb[0].mxu0 %v7438
    %v7508 = vpop.f32.mrb[0].mxu0
    %v7509 = vadd.f32 0.0, %v7508
    %v7510 = vpop.f32.mrb[0].mxu0
    %7511 = vdwg.mxu0
    %v7512 = vsel %vm697, %v7339, 0
    %v7514 = vsel %vm697, %v7353, 0
    %7516 = vmatprep.subr.mxu0 0.0
    %7517 = vmatpush1.xpose.msra.mxu0 %v7514
    %7518 = vmatprep.subr.mxu0 0.0
    %7519 = vmatpush1.xpose.msra.mxu0 0.0
    %7520 = vmatprep.subr.mxu0 0.0
    %7521 = vmatpush1.xpose.msra.mxu0 0.0
    %7522 = vmatprep.subr.mxu0 0.0
    %7523 = vmatpush1.xpose.msra.mxu0 0.0
    %7524 = vmatprep.subr.mxu0 0.0
    %7525 = vmatpush1.xpose.msra.mxu0 0.0
    %7526 = vmatprep.subr.mxu0 0.0
    %7527 = vmatpush1.xpose.msra.mxu0 0.0
    %7528 = vmatprep.subr.mxu0 0.0
    %7529 = vmatpush1.xpose.msra.mxu0 0.0
    %7530 = vmatprep.subr.mxu0 0.0
    %7531 = vmatpush1.xpose.msra.mxu0 0.0
    %7532 = vmatprep.subr.mxu0 0.0
    %7533 = vmatpush1.xpose.msra.mxu0 0.0
    %7534 = vmatprep.subr.mxu0 0.0
    %7535 = vmatpush1.xpose.msra.mxu0 0.0
    %7536 = vmatprep.subr.mxu0 0.0
    %7537 = vmatpush1.xpose.msra.mxu0 0.0
    %7538 = vmatprep.subr.mxu0 0.0
    %7539 = vmatpush1.xpose.msra.mxu0 0.0
    %7540 = vmatprep.subr.mxu0 0.0
    %7541 = vmatpush1.xpose.msra.mxu0 0.0
    %7542 = vmatprep.subr.mxu0 0.0
    %7543 = vmatpush1.xpose.msra.mxu0 0.0
    %7544 = vmatprep.subr.mxu0 0.0
    %7545 = vmatpush1.xpose.msra.mxu0 0.0
    %7546 = vmatprep.subr.mxu0 0.0
    %7547 = vmatpush1.xpose.msra.mxu0 0.0
    %7548 = vmatprep.subr.mxu0 0.0
    %7549 = vmatpush1.xpose.msra.mxu0 0.0
    %7550 = vmatprep.subr.mxu0 0.0
    %7551 = vmatpush1.xpose.msra.mxu0 0.0
    %7552 = vmatprep.subr.mxu0 0.0
    %7553 = vmatpush1.xpose.msra.mxu0 0.0
    %7554 = vmatprep.subr.mxu0 0.0
    %7555 = vmatpush1.xpose.msra.mxu0 0.0
    %7556 = vmatprep.subr.mxu0 0.0
    %7557 = vmatpush1.xpose.msra.mxu0 0.0
    %7558 = vmatprep.subr.mxu0 0.0
    %7559 = vmatpush1.xpose.msra.mxu0 0.0
    %7560 = vmatprep.subr.mxu0 0.0
    %7561 = vmatpush1.xpose.msra.mxu0 0.0
    %7562 = vmatprep.subr.mxu0 0.0
    %7563 = vmatpush1.xpose.msra.mxu0 0.0
    %7564 = vmatprep.subr.mxu0 0.0
    %7565 = vmatpush1.xpose.msra.mxu0 0.0
    %7566 = vmatprep.subr.mxu0 0.0
    %7567 = vmatpush1.xpose.msra.mxu0 0.0
    %7568 = vmatprep.subr.mxu0 0.0
    %7569 = vmatpush1.xpose.msra.mxu0 0.0
    %7570 = vmatprep.subr.mxu0 0.0
    %7571 = vmatpush1.xpose.msra.mxu0 0.0
    %7572 = vmatprep.subr.mxu0 0.0
    %7573 = vmatpush1.xpose.msra.mxu0 0.0
    %7574 = vmatprep.subr.mxu0 0.0
    %7575 = vmatpush1.xpose.msra.mxu0 0.0
    %7576 = vmatprep.subr.mxu0 0.0
    %7577 = vmatpush1.xpose.msra.mxu0 0.0
    %7578 = vmatprep.subr.mxu0 0.0
    %7579 = vmatpush1.xpose.msra.mxu0 0.0
    %7580 = vmatprep.mubr.f32.mxu0 0.0
    %7581 = vmatmul.mubr.f32.gmra.mrb[0].mxu0 %v7512
    %v7582 = vpop.f32.mrb[0].mxu0
    %v7583 = vadd.f32 0.0, %v7582
    %v7584 = vpop.f32.mrb[0].mxu0
    %7585 = vdwg.mxu0
    %v7586 = vsel %vm697, %v7341, 0
    %v7588 = vsel %vm697, %v7355, 0
    %7590 = vmatprep.subr.mxu0 0.0
    %7591 = vmatpush1.xpose.msra.mxu0 %v7588
    %7592 = vmatprep.subr.mxu0 0.0
    %7593 = vmatpush1.xpose.msra.mxu0 0.0
    %7594 = vmatprep.subr.mxu0 0.0
    %7595 = vmatpush1.xpose.msra.mxu0 0.0
    %7596 = vmatprep.subr.mxu0 0.0
    %7597 = vmatpush1.xpose.msra.mxu0 0.0
    %7598 = vmatprep.subr.mxu0 0.0
    %7599 = vmatpush1.xpose.msra.mxu0 0.0
    %7600 = vmatprep.subr.mxu0 0.0
    %7601 = vmatpush1.xpose.msra.mxu0 0.0
    %7602 = vmatprep.subr.mxu0 0.0
    %7603 = vmatpush1.xpose.msra.mxu0 0.0
    %7604 = vmatprep.subr.mxu0 0.0
    %7605 = vmatpush1.xpose.msra.mxu0 0.0
    %7606 = vmatprep.subr.mxu0 0.0
    %7607 = vmatpush1.xpose.msra.mxu0 0.0
    %7608 = vmatprep.subr.mxu0 0.0
    %7609 = vmatpush1.xpose.msra.mxu0 0.0
    %7610 = vmatprep.subr.mxu0 0.0
    %7611 = vmatpush1.xpose.msra.mxu0 0.0
    %7612 = vmatprep.subr.mxu0 0.0
    %7613 = vmatpush1.xpose.msra.mxu0 0.0
    %7614 = vmatprep.subr.mxu0 0.0
    %7615 = vmatpush1.xpose.msra.mxu0 0.0
    %7616 = vmatprep.subr.mxu0 0.0
    %7617 = vmatpush1.xpose.msra.mxu0 0.0
    %7618 = vmatprep.subr.mxu0 0.0
    %7619 = vmatpush1.xpose.msra.mxu0 0.0
    %7620 = vmatprep.subr.mxu0 0.0
    %7621 = vmatpush1.xpose.msra.mxu0 0.0
    %7622 = vmatprep.subr.mxu0 0.0
    %7623 = vmatpush1.xpose.msra.mxu0 0.0
    %7624 = vmatprep.subr.mxu0 0.0
    %7625 = vmatpush1.xpose.msra.mxu0 0.0
    %7626 = vmatprep.subr.mxu0 0.0
    %7627 = vmatpush1.xpose.msra.mxu0 0.0
    %7628 = vmatprep.subr.mxu0 0.0
    %7629 = vmatpush1.xpose.msra.mxu0 0.0
    %7630 = vmatprep.subr.mxu0 0.0
    %7631 = vmatpush1.xpose.msra.mxu0 0.0
    %7632 = vmatprep.subr.mxu0 0.0
    %7633 = vmatpush1.xpose.msra.mxu0 0.0
    %7634 = vmatprep.subr.mxu0 0.0
    %7635 = vmatpush1.xpose.msra.mxu0 0.0
    %7636 = vmatprep.subr.mxu0 0.0
    %7637 = vmatpush1.xpose.msra.mxu0 0.0
    %7638 = vmatprep.subr.mxu0 0.0
    %7639 = vmatpush1.xpose.msra.mxu0 0.0
    %7640 = vmatprep.subr.mxu0 0.0
    %7641 = vmatpush1.xpose.msra.mxu0 0.0
    %7642 = vmatprep.subr.mxu0 0.0
    %7643 = vmatpush1.xpose.msra.mxu0 0.0
    %7644 = vmatprep.subr.mxu0 0.0
    %7645 = vmatpush1.xpose.msra.mxu0 0.0
    %7646 = vmatprep.subr.mxu0 0.0
    %7647 = vmatpush1.xpose.msra.mxu0 0.0
    %7648 = vmatprep.subr.mxu0 0.0
    %7649 = vmatpush1.xpose.msra.mxu0 0.0
    %7650 = vmatprep.subr.mxu0 0.0
    %7651 = vmatpush1.xpose.msra.mxu0 0.0
    %7652 = vmatprep.subr.mxu0 0.0
    %7653 = vmatpush1.xpose.msra.mxu0 0.0
    %7654 = vmatprep.mubr.f32.mxu0 0.0
    %7655 = vmatmul.mubr.f32.gmra.mrb[0].mxu0 %v7586
    %v7656 = vpop.f32.mrb[0].mxu0
    %v7657 = vadd.f32 0.0, %v7656
    %v7658 = vpop.f32.mrb[0].mxu0
    %7659 = vdwg.mxu0
    %v7660 = vsel %vm697, %v7343, 0
    %v7662 = vsel %vm697, %v7357, 0
    %7664 = vmatprep.subr.mxu0 0.0
    %7665 = vmatpush1.xpose.msra.mxu0 %v7662
    %7666 = vmatprep.subr.mxu0 0.0
    %7667 = vmatpush1.xpose.msra.mxu0 0.0
    %7668 = vmatprep.subr.mxu0 0.0
    %7669 = vmatpush1.xpose.msra.mxu0 0.0
    %7670 = vmatprep.subr.mxu0 0.0
    %7671 = vmatpush1.xpose.msra.mxu0 0.0
    %7672 = vmatprep.subr.mxu0 0.0
    %7673 = vmatpush1.xpose.msra.mxu0 0.0
    %7674 = vmatprep.subr.mxu0 0.0
    %7675 = vmatpush1.xpose.msra.mxu0 0.0
    %7676 = vmatprep.subr.mxu0 0.0
    %7677 = vmatpush1.xpose.msra.mxu0 0.0
    %7678 = vmatprep.subr.mxu0 0.0
    %7679 = vmatpush1.xpose.msra.mxu0 0.0
    %7680 = vmatprep.subr.mxu0 0.0
    %7681 = vmatpush1.xpose.msra.mxu0 0.0
    %7682 = vmatprep.subr.mxu0 0.0
    %7683 = vmatpush1.xpose.msra.mxu0 0.0
    %7684 = vmatprep.subr.mxu0 0.0
    %7685 = vmatpush1.xpose.msra.mxu0 0.0
    %7686 = vmatprep.subr.mxu0 0.0
    %7687 = vmatpush1.xpose.msra.mxu0 0.0
    %7688 = vmatprep.subr.mxu0 0.0
    %7689 = vmatpush1.xpose.msra.mxu0 0.0
    %7690 = vmatprep.subr.mxu0 0.0
    %7691 = vmatpush1.xpose.msra.mxu0 0.0
    %7692 = vmatprep.subr.mxu0 0.0
    %7693 = vmatpush1.xpose.msra.mxu0 0.0
    %7694 = vmatprep.subr.mxu0 0.0
    %7695 = vmatpush1.xpose.msra.mxu0 0.0
    %7696 = vmatprep.subr.mxu0 0.0
    %7697 = vmatpush1.xpose.msra.mxu0 0.0
    %7698 = vmatprep.subr.mxu0 0.0
    %7699 = vmatpush1.xpose.msra.mxu0 0.0
    %7700 = vmatprep.subr.mxu0 0.0
    %7701 = vmatpush1.xpose.msra.mxu0 0.0
    %7702 = vmatprep.subr.mxu0 0.0
    %7703 = vmatpush1.xpose.msra.mxu0 0.0
    %7704 = vmatprep.subr.mxu0 0.0
    %7705 = vmatpush1.xpose.msra.mxu0 0.0
    %7706 = vmatprep.subr.mxu0 0.0
    %7707 = vmatpush1.xpose.msra.mxu0 0.0
    %7708 = vmatprep.subr.mxu0 0.0
    %7709 = vmatpush1.xpose.msra.mxu0 0.0
    %7710 = vmatprep.subr.mxu0 0.0
    %7711 = vmatpush1.xpose.msra.mxu0 0.0
    %7712 = vmatprep.subr.mxu0 0.0
    %7713 = vmatpush1.xpose.msra.mxu0 0.0
    %7714 = vmatprep.subr.mxu0 0.0
    %7715 = vmatpush1.xpose.msra.mxu0 0.0
    %7716 = vmatprep.subr.mxu0 0.0
    %7717 = vmatpush1.xpose.msra.mxu0 0.0
    %7718 = vmatprep.subr.mxu0 0.0
    %7719 = vmatpush1.xpose.msra.mxu0 0.0
    %7720 = vmatprep.subr.mxu0 0.0
    %7721 = vmatpush1.xpose.msra.mxu0 0.0
    %7722 = vmatprep.subr.mxu0 0.0
    %7723 = vmatpush1.xpose.msra.mxu0 0.0
    %7724 = vmatprep.subr.mxu0 0.0
    %7725 = vmatpush1.xpose.msra.mxu0 0.0
    %7726 = vmatprep.subr.mxu0 0.0
    %7727 = vmatpush1.xpose.msra.mxu0 0.0
    %7728 = vmatprep.mubr.f32.mxu0 0.0
    %7729 = vmatmul.mubr.f32.gmra.mrb[0].mxu0 %v7660
    %v7730 = vpop.f32.mrb[0].mxu0
    %v7731 = vadd.f32 0.0, %v7730
    %v7732 = vpop.f32.mrb[0].mxu0
    %7733 = vdwg.mxu0
    %v7734 = vsel %vm697, %v7345, 0
    %v7736 = vsel %vm697, %v7359, 0
    %7738 = vmatprep.subr.mxu0 0.0
    %7739 = vmatpush1.xpose.msra.mxu0 %v7736
    %7740 = vmatprep.subr.mxu0 0.0
    %7741 = vmatpush1.xpose.msra.mxu0 0.0
    %7742 = vmatprep.subr.mxu0 0.0
    %7743 = vmatpush1.xpose.msra.mxu0 0.0
    %7744 = vmatprep.subr.mxu0 0.0
    %7745 = vmatpush1.xpose.msra.mxu0 0.0
    %7746 = vmatprep.subr.mxu0 0.0
    %7747 = vmatpush1.xpose.msra.mxu0 0.0
    %7748 = vmatprep.subr.mxu0 0.0
    %7749 = vmatpush1.xpose.msra.mxu0 0.0
    %7750 = vmatprep.subr.mxu0 0.0
    %7751 = vmatpush1.xpose.msra.mxu0 0.0
    %7752 = vmatprep.subr.mxu0 0.0
    %7753 = vmatpush1.xpose.msra.mxu0 0.0
    %7754 = vmatprep.subr.mxu0 0.0
    %7755 = vmatpush1.xpose.msra.mxu0 0.0
    %7756 = vmatprep.subr.mxu0 0.0
    %7757 = vmatpush1.xpose.msra.mxu0 0.0
    %7758 = vmatprep.subr.mxu0 0.0
    %7759 = vmatpush1.xpose.msra.mxu0 0.0
    %7760 = vmatprep.subr.mxu0 0.0
    %7761 = vmatpush1.xpose.msra.mxu0 0.0
    %7762 = vmatprep.subr.mxu0 0.0
    %7763 = vmatpush1.xpose.msra.mxu0 0.0
    %7764 = vmatprep.subr.mxu0 0.0
    %7765 = vmatpush1.xpose.msra.mxu0 0.0
    %7766 = vmatprep.subr.mxu0 0.0
    %7767 = vmatpush1.xpose.msra.mxu0 0.0
    %7768 = vmatprep.subr.mxu0 0.0
    %7769 = vmatpush1.xpose.msra.mxu0 0.0
    %7770 = vmatprep.subr.mxu0 0.0
    %7771 = vmatpush1.xpose.msra.mxu0 0.0
    %7772 = vmatprep.subr.mxu0 0.0
    %7773 = vmatpush1.xpose.msra.mxu0 0.0
    %7774 = vmatprep.subr.mxu0 0.0
    %7775 = vmatpush1.xpose.msra.mxu0 0.0
    %7776 = vmatprep.subr.mxu0 0.0
    %7777 = vmatpush1.xpose.msra.mxu0 0.0
    %7778 = vmatprep.subr.mxu0 0.0
    %7779 = vmatpush1.xpose.msra.mxu0 0.0
    %7780 = vmatprep.subr.mxu0 0.0
    %7781 = vmatpush1.xpose.msra.mxu0 0.0
    %7782 = vmatprep.subr.mxu0 0.0
    %7783 = vmatpush1.xpose.msra.mxu0 0.0
    %7784 = vmatprep.subr.mxu0 0.0
    %7785 = vmatpush1.xpose.msra.mxu0 0.0
    %7786 = vmatprep.subr.mxu0 0.0
    %7787 = vmatpush1.xpose.msra.mxu0 0.0
    %7788 = vmatprep.subr.mxu0 0.0
    %7789 = vmatpush1.xpose.msra.mxu0 0.0
    %7790 = vmatprep.subr.mxu0 0.0
    %7791 = vmatpush1.xpose.msra.mxu0 0.0
    %7792 = vmatprep.subr.mxu0 0.0
    %7793 = vmatpush1.xpose.msra.mxu0 0.0
    %7794 = vmatprep.subr.mxu0 0.0
    %7795 = vmatpush1.xpose.msra.mxu0 0.0
    %7796 = vmatprep.subr.mxu0 0.0
    %7797 = vmatpush1.xpose.msra.mxu0 0.0
    %7798 = vmatprep.subr.mxu0 0.0
    %7799 = vmatpush1.xpose.msra.mxu0 0.0
    %7800 = vmatprep.subr.mxu0 0.0
    %7801 = vmatpush1.xpose.msra.mxu0 0.0
    %7802 = vmatprep.mubr.f32.mxu0 0.0
    %7803 = vmatmul.mubr.f32.gmra.mrb[0].mxu0 %v7734
    %v7804 = vpop.f32.mrb[0].mxu0
    %v7805 = vadd.f32 0.0, %v7804
    %v7806 = vpop.f32.mrb[0].mxu0
    %7807 = vdwg.mxu0
    %v7808 = vsel %vm697, %v7347, 0
    %v7810 = vsel %vm697, %v7361, 0
    %7812 = vmatprep.subr.mxu0 0.0
    %7813 = vmatpush1.xpose.msra.mxu0 %v7810
    %7814 = vmatprep.subr.mxu0 0.0
    %7815 = vmatpush1.xpose.msra.mxu0 0.0
    %7816 = vmatprep.subr.mxu0 0.0
    %7817 = vmatpush1.xpose.msra.mxu0 0.0
    %7818 = vmatprep.subr.mxu0 0.0
    %7819 = vmatpush1.xpose.msra.mxu0 0.0
    %7820 = vmatprep.subr.mxu0 0.0
    %7821 = vmatpush1.xpose.msra.mxu0 0.0
    %7822 = vmatprep.subr.mxu0 0.0
    %7823 = vmatpush1.xpose.msra.mxu0 0.0
    %7824 = vmatprep.subr.mxu0 0.0
    %7825 = vmatpush1.xpose.msra.mxu0 0.0
    %7826 = vmatprep.subr.mxu0 0.0
    %7827 = vmatpush1.xpose.msra.mxu0 0.0
    %7828 = vmatprep.subr.mxu0 0.0
    %7829 = vmatpush1.xpose.msra.mxu0 0.0
    %7830 = vmatprep.subr.mxu0 0.0
    %7831 = vmatpush1.xpose.msra.mxu0 0.0
    %7832 = vmatprep.subr.mxu0 0.0
    %7833 = vmatpush1.xpose.msra.mxu0 0.0
    %7834 = vmatprep.subr.mxu0 0.0
    %7835 = vmatpush1.xpose.msra.mxu0 0.0
    %7836 = vmatprep.subr.mxu0 0.0
    %7837 = vmatpush1.xpose.msra.mxu0 0.0
    %7838 = vmatprep.subr.mxu0 0.0
    %7839 = vmatpush1.xpose.msra.mxu0 0.0
    %7840 = vmatprep.subr.mxu0 0.0
    %7841 = vmatpush1.xpose.msra.mxu0 0.0
    %7842 = vmatprep.subr.mxu0 0.0
    %7843 = vmatpush1.xpose.msra.mxu0 0.0
    %7844 = vmatprep.subr.mxu0 0.0
    %7845 = vmatpush1.xpose.msra.mxu0 0.0
    %7846 = vmatprep.subr.mxu0 0.0
    %7847 = vmatpush1.xpose.msra.mxu0 0.0
    %7848 = vmatprep.subr.mxu0 0.0
    %7849 = vmatpush1.xpose.msra.mxu0 0.0
    %7850 = vmatprep.subr.mxu0 0.0
    %7851 = vmatpush1.xpose.msra.mxu0 0.0
    %7852 = vmatprep.subr.mxu0 0.0
    %7853 = vmatpush1.xpose.msra.mxu0 0.0
    %7854 = vmatprep.subr.mxu0 0.0
    %7855 = vmatpush1.xpose.msra.mxu0 0.0
    %7856 = vmatprep.subr.mxu0 0.0
    %7857 = vmatpush1.xpose.msra.mxu0 0.0
    %7858 = vmatprep.subr.mxu0 0.0
    %7859 = vmatpush1.xpose.msra.mxu0 0.0
    %7860 = vmatprep.subr.mxu0 0.0
    %7861 = vmatpush1.xpose.msra.mxu0 0.0
    %7862 = vmatprep.subr.mxu0 0.0
    %7863 = vmatpush1.xpose.msra.mxu0 0.0
    %7864 = vmatprep.subr.mxu0 0.0
    %7865 = vmatpush1.xpose.msra.mxu0 0.0
    %7866 = vmatprep.subr.mxu0 0.0
    %7867 = vmatpush1.xpose.msra.mxu0 0.0
    %7868 = vmatprep.subr.mxu0 0.0
    %7869 = vmatpush1.xpose.msra.mxu0 0.0
    %7870 = vmatprep.subr.mxu0 0.0
    %7871 = vmatpush1.xpose.msra.mxu0 0.0
    %7872 = vmatprep.subr.mxu0 0.0
    %7873 = vmatpush1.xpose.msra.mxu0 0.0
    %7874 = vmatprep.subr.mxu0 0.0
    %7875 = vmatpush1.xpose.msra.mxu0 0.0
    %7876 = vmatprep.mubr.f32.mxu0 0.0
    %7877 = vmatmul.mubr.f32.gmra.mrb[0].mxu0 %v7808
    %v7878 = vpop.f32.mrb[0].mxu0
    %v7879 = vadd.f32 0.0, %v7878
    %v7880 = vpop.f32.mrb[0].mxu0
    %7881 = vdwg.mxu0
    %v7882 = vsel %vm697, %v7349, 0
    %v7884 = vsel %vm697, %v7363, 0
    %7886 = vmatprep.subr.mxu0 0.0
    %7887 = vmatpush1.xpose.msra.mxu0 %v7884
    %7888 = vmatprep.subr.mxu0 0.0
    %7889 = vmatpush1.xpose.msra.mxu0 0.0
    %7890 = vmatprep.subr.mxu0 0.0
    %7891 = vmatpush1.xpose.msra.mxu0 0.0
    %7892 = vmatprep.subr.mxu0 0.0
    %7893 = vmatpush1.xpose.msra.mxu0 0.0
    %7894 = vmatprep.subr.mxu0 0.0
    %7895 = vmatpush1.xpose.msra.mxu0 0.0
    %7896 = vmatprep.subr.mxu0 0.0
    %7897 = vmatpush1.xpose.msra.mxu0 0.0
    %7898 = vmatprep.subr.mxu0 0.0
    %7899 = vmatpush1.xpose.msra.mxu0 0.0
    %7900 = vmatprep.subr.mxu0 0.0
    %7901 = vmatpush1.xpose.msra.mxu0 0.0
    %7902 = vmatprep.subr.mxu0 0.0
    %7903 = vmatpush1.xpose.msra.mxu0 0.0
    %7904 = vmatprep.subr.mxu0 0.0
    %7905 = vmatpush1.xpose.msra.mxu0 0.0
    %7906 = vmatprep.subr.mxu0 0.0
    %7907 = vmatpush1.xpose.msra.mxu0 0.0
    %7908 = vmatprep.subr.mxu0 0.0
    %7909 = vmatpush1.xpose.msra.mxu0 0.0
    %7910 = vmatprep.subr.mxu0 0.0
    %7911 = vmatpush1.xpose.msra.mxu0 0.0
    %7912 = vmatprep.subr.mxu0 0.0
    %7913 = vmatpush1.xpose.msra.mxu0 0.0
    %7914 = vmatprep.subr.mxu0 0.0
    %7915 = vmatpush1.xpose.msra.mxu0 0.0
    %7916 = vmatprep.subr.mxu0 0.0
    %7917 = vmatpush1.xpose.msra.mxu0 0.0
    %7918 = vmatprep.subr.mxu0 0.0
    %7919 = vmatpush1.xpose.msra.mxu0 0.0
    %7920 = vmatprep.subr.mxu0 0.0
    %7921 = vmatpush1.xpose.msra.mxu0 0.0
    %7922 = vmatprep.subr.mxu0 0.0
    %7923 = vmatpush1.xpose.msra.mxu0 0.0
    %7924 = vmatprep.subr.mxu0 0.0
    %7925 = vmatpush1.xpose.msra.mxu0 0.0
    %7926 = vmatprep.subr.mxu0 0.0
    %7927 = vmatpush1.xpose.msra.mxu0 0.0
    %7928 = vmatprep.subr.mxu0 0.0
    %7929 = vmatpush1.xpose.msra.mxu0 0.0
    %7930 = vmatprep.subr.mxu0 0.0
    %7931 = vmatpush1.xpose.msra.mxu0 0.0
    %7932 = vmatprep.subr.mxu0 0.0
    %7933 = vmatpush1.xpose.msra.mxu0 0.0
    %7934 = vmatprep.subr.mxu0 0.0
    %7935 = vmatpush1.xpose.msra.mxu0 0.0
    %7936 = vmatprep.subr.mxu0 0.0
    %7937 = vmatpush1.xpose.msra.mxu0 0.0
    %7938 = vmatprep.subr.mxu0 0.0
    %7939 = vmatpush1.xpose.msra.mxu0 0.0
    %7940 = vmatprep.subr.mxu0 0.0
    %7941 = vmatpush1.xpose.msra.mxu0 0.0
    %7942 = vmatprep.subr.mxu0 0.0
    %7943 = vmatpush1.xpose.msra.mxu0 0.0
    %7944 = vmatprep.subr.mxu0 0.0
    %7945 = vmatpush1.xpose.msra.mxu0 0.0
    %7946 = vmatprep.subr.mxu0 0.0
    %7947 = vmatpush1.xpose.msra.mxu0 0.0
    %7948 = vmatprep.subr.mxu0 0.0
    %7949 = vmatpush1.xpose.msra.mxu0 0.0
    %7950 = vmatprep.mubr.f32.mxu0 0.0
    %7951 = vmatmul.mubr.f32.gmra.mrb[0].mxu0 %v7882
    %v7952 = vpop.f32.mrb[0].mxu0
    %v7953 = vadd.f32 0.0, %v7952
    %v7954 = vpop.f32.mrb[0].mxu0
    %7955 = vdwg.mxu0
    %v7956 = vmul.f32 %v7435, 0.35355338
    %v7957 = vmul.f32 %v7509, 0.35355338
    %v7958 = vmul.f32 %v7583, 0.35355338
    %v7959 = vmul.f32 %v7657, 0.35355338
    %v7960 = vmul.f32 %v7731, 0.35355338
    %v7961 = vmul.f32 %v7805, 0.35355338
    %v7962 = vmul.f32 %v7879, 0.35355338
    %v7963 = vmul.f32 %v7953, 0.35355338
    %v7964 = vsel %vm697, %v7956, -inf
    %7965 = vmax.xlane.f32.xlu0 %v7964
    %v7966 = vpop.xlane.xlu0 %7965
    %v7967 = vsel %vm697, %v7957, -inf
    %7968 = vmax.xlane.f32.xlu0 %v7967
    %v7969 = vpop.xlane.xlu0 %7968
    %v7970 = vsel %vm697, %v7958, -inf
    %7971 = vmax.xlane.f32.xlu0 %v7970
    %v7972 = vpop.xlane.xlu0 %7971
    %v7973 = vsel %vm697, %v7959, -inf
    %7974 = vmax.xlane.f32.xlu0 %v7973
    %v7975 = vpop.xlane.xlu0 %7974
    %v7976 = vsel %vm697, %v7960, -inf
    %7977 = vmax.xlane.f32.xlu0 %v7976
    %v7978 = vpop.xlane.xlu0 %7977
    %v7979 = vsel %vm697, %v7961, -inf
    %7980 = vmax.xlane.f32.xlu0 %v7979
    %v7981 = vpop.xlane.xlu0 %7980
    %v7982 = vsel %vm697, %v7962, -inf
    %7983 = vmax.xlane.f32.xlu0 %v7982
    %v7984 = vpop.xlane.xlu0 %7983
    %v7985 = vsel %vm697, %v7963, -inf
    %7986 = vmax.xlane.f32.xlu0 %v7985
    %v7987 = vpop.xlane.xlu0 %7986
    %v7988 = vsub.f32 %v7956, %v7966
    %v7989 = vsub.f32 %v7957, %v7969
    %v7990 = vsub.f32 %v7958, %v7972
    %v7991 = vsub.f32 %v7959, %v7975
    %v7992 = vsub.f32 %v7960, %v7978
    %v7993 = vsub.f32 %v7961, %v7981
    %v7994 = vsub.f32 %v7962, %v7984
    %v7995 = vsub.f32 %v7963, %v7987
    %v7996 = vmul.f32 %v7988, 1.442695
    %v7997 = vpow.pop %v7996
    %v7998 = vmul.f32 %v7989, 1.442695
    %v7999 = vpow.pop %v7998
    %v8000 = vmul.f32 %v7990, 1.442695
    %v8001 = vpow.pop %v8000
    %v8002 = vmul.f32 %v7991, 1.442695
    %v8003 = vpow.pop %v8002
    %v8004 = vmul.f32 %v7992, 1.442695
    %v8005 = vpow.pop %v8004
    %v8006 = vmul.f32 %v7993, 1.442695
    %v8007 = vpow.pop %v8006
    %v8008 = vmul.f32 %v7994, 1.442695
    %v8009 = vpow.pop %v8008
    %v8010 = vmul.f32 %v7995, 1.442695
    %v8011 = vpow.pop %v8010
    %v8012 = vsel %vm697, %v7997, 0.0
    %8013 = vadd.xlane.f32.xlu0 %v8012
    %v8014 = vpop.xlane.xlu0 %8013
    %v8015 = vsel %vm697, %v7999, 0.0
    %8016 = vadd.xlane.f32.xlu0 %v8015
    %v8017 = vpop.xlane.xlu0 %8016
    %v8018 = vsel %vm697, %v8001, 0.0
    %8019 = vadd.xlane.f32.xlu0 %v8018
    %v8020 = vpop.xlane.xlu0 %8019
    %v8021 = vsel %vm697, %v8003, 0.0
    %8022 = vadd.xlane.f32.xlu0 %v8021
    %v8023 = vpop.xlane.xlu0 %8022
    %v8024 = vsel %vm697, %v8005, 0.0
    %8025 = vadd.xlane.f32.xlu0 %v8024
    %v8026 = vpop.xlane.xlu0 %8025
    %v8027 = vsel %vm697, %v8007, 0.0
    %8028 = vadd.xlane.f32.xlu0 %v8027
    %v8029 = vpop.xlane.xlu0 %8028
    %v8030 = vsel %vm697, %v8009, 0.0
    %8031 = vadd.xlane.f32.xlu0 %v8030
    %v8032 = vpop.xlane.xlu0 %8031
    %v8033 = vsel %vm697, %v8011, 0.0
    %8034 = vadd.xlane.f32.xlu0 %v8033
    %v8035 = vpop.xlane.xlu0 %8034
    %v8036 = vrcp.pop %v8014
    %v8037 = vrcp.pop %v8017
    %v8038 = vrcp.pop %v8020
    %v8039 = vrcp.pop %v8023
    %v8040 = vrcp.pop %v8026
    %v8041 = vrcp.pop %v8029
    %v8042 = vrcp.pop %v8032
    %v8043 = vrcp.pop %v8035
    %v8044 = vmul.f32 %v7997, %v8036
    %v8045 = vmul.f32 %v7999, %v8037
    %v8046 = vmul.f32 %v8001, %v8038
    %v8047 = vmul.f32 %v8003, %v8039
    %v8048 = vmul.f32 %v8005, %v8040
    %v8049 = vmul.f32 %v8007, %v8041
    %v8050 = vmul.f32 %v8009, %v8042
    %v8051 = vmul.f32 %v8011, %v8043
    %8052 = vrot.lane.b32.xlu0 %v7328, 96
    %v8053 = vpop.permute.xlu0 %8052
    %v8056 = vsel %vm697, %v8044, 0
    %8058 = vmatprep.subr.mxu0 0.0
    %8059 = vmatpush1.msra.mxu0 %v8053
    %8060 = vmatprep.subr.mxu0 0.0
    %8061 = vmatpush1.msra.mxu0 0.0
    %8062 = vmatprep.subr.mxu0 0.0
    %8063 = vmatpush1.msra.mxu0 0.0
    %8064 = vmatprep.subr.mxu0 0.0
    %8065 = vmatpush1.msra.mxu0 0.0
    %8066 = vmatprep.subr.mxu0 0.0
    %8067 = vmatpush1.msra.mxu0 0.0
    %8068 = vmatprep.subr.mxu0 0.0
    %8069 = vmatpush1.msra.mxu0 0.0
    %8070 = vmatprep.subr.mxu0 0.0
    %8071 = vmatpush1.msra.mxu0 0.0
    %8072 = vmatprep.subr.mxu0 0.0
    %8073 = vmatpush1.msra.mxu0 0.0
    %8074 = vmatprep.subr.mxu0 0.0
    %8075 = vmatpush1.msra.mxu0 0.0
    %8076 = vmatprep.subr.mxu0 0.0
    %8077 = vmatpush1.msra.mxu0 0.0
    %8078 = vmatprep.subr.mxu0 0.0
    %8079 = vmatpush1.msra.mxu0 0.0
    %8080 = vmatprep.subr.mxu0 0.0
    %8081 = vmatpush1.msra.mxu0 0.0
    %8082 = vmatprep.subr.mxu0 0.0
    %8083 = vmatpush1.msra.mxu0 0.0
    %8084 = vmatprep.subr.mxu0 0.0
    %8085 = vmatpush1.msra.mxu0 0.0
    %8086 = vmatprep.subr.mxu0 0.0
    %8087 = vmatpush1.msra.mxu0 0.0
    %8088 = vmatprep.subr.mxu0 0.0
    %8089 = vmatpush1.msra.mxu0 0.0
    %8090 = vmatprep.subr.mxu0 0.0
    %8091 = vmatpush1.msra.mxu0 0.0
    %8092 = vmatprep.subr.mxu0 0.0
    %8093 = vmatpush1.msra.mxu0 0.0
    %8094 = vmatprep.subr.mxu0 0.0
    %8095 = vmatpush1.msra.mxu0 0.0
    %8096 = vmatprep.subr.mxu0 0.0
    %8097 = vmatpush1.msra.mxu0 0.0
    %8098 = vmatprep.subr.mxu0 0.0
    %8099 = vmatpush1.msra.mxu0 0.0
    %8100 = vmatprep.subr.mxu0 0.0
    %8101 = vmatpush1.msra.mxu0 0.0
    %8102 = vmatprep.subr.mxu0 0.0
    %8103 = vmatpush1.msra.mxu0 0.0
    %8104 = vmatprep.subr.mxu0 0.0
    %8105 = vmatpush1.msra.mxu0 0.0
    %8106 = vmatprep.subr.mxu0 0.0
    %8107 = vmatpush1.msra.mxu0 0.0
    %8108 = vmatprep.subr.mxu0 0.0
    %8109 = vmatpush1.msra.mxu0 0.0
    %8110 = vmatprep.subr.mxu0 0.0
    %8111 = vmatpush1.msra.mxu0 0.0
    %8112 = vmatprep.subr.mxu0 0.0
    %8113 = vmatpush1.msra.mxu0 0.0
    %8114 = vmatprep.subr.mxu0 0.0
    %8115 = vmatpush1.msra.mxu0 0.0
    %8116 = vmatprep.subr.mxu0 0.0
    %8117 = vmatpush1.msra.mxu0 0.0
    %8118 = vmatprep.subr.mxu0 0.0
    %8119 = vmatpush1.msra.mxu0 0.0
    %8120 = vmatprep.subr.mxu0 0.0
    %8121 = vmatpush1.msra.mxu0 0.0
    %8122 = vmatprep.mubr.f32.mxu0 0.0
    %8123 = vmatmul.mubr.f32.gmra.mrb[0].mxu0 %v8056
    %v8124 = vpop.f32.mrb[0].mxu0
    %v8125 = vadd.f32 0.0, %v8124
    %v8126 = vpop.f32.mrb[0].mxu0
    %8127 = vdwg.mxu0
    %8128 = vrot.lane.b32.xlu0 %v7333, 96
    %v8129 = vpop.permute.xlu0 %8128
    %v8132 = vsel %vm697, %v8045, 0
    %8134 = vmatprep.subr.mxu0 0.0
    %8135 = vmatpush1.msra.mxu0 %v8129
    %8136 = vmatprep.subr.mxu0 0.0
    %8137 = vmatpush1.msra.mxu0 0.0
    %8138 = vmatprep.subr.mxu0 0.0
    %8139 = vmatpush1.msra.mxu0 0.0
    %8140 = vmatprep.subr.mxu0 0.0
    %8141 = vmatpush1.msra.mxu0 0.0
    %8142 = vmatprep.subr.mxu0 0.0
    %8143 = vmatpush1.msra.mxu0 0.0
    %8144 = vmatprep.subr.mxu0 0.0
    %8145 = vmatpush1.msra.mxu0 0.0
    %8146 = vmatprep.subr.mxu0 0.0
    %8147 = vmatpush1.msra.mxu0 0.0
    %8148 = vmatprep.subr.mxu0 0.0
    %8149 = vmatpush1.msra.mxu0 0.0
    %8150 = vmatprep.subr.mxu0 0.0
    %8151 = vmatpush1.msra.mxu0 0.0
    %8152 = vmatprep.subr.mxu0 0.0
    %8153 = vmatpush1.msra.mxu0 0.0
    %8154 = vmatprep.subr.mxu0 0.0
    %8155 = vmatpush1.msra.mxu0 0.0
    %8156 = vmatprep.subr.mxu0 0.0
    %8157 = vmatpush1.msra.mxu0 0.0
    %8158 = vmatprep.subr.mxu0 0.0
    %8159 = vmatpush1.msra.mxu0 0.0
    %8160 = vmatprep.subr.mxu0 0.0
    %8161 = vmatpush1.msra.mxu0 0.0
    %8162 = vmatprep.subr.mxu0 0.0
    %8163 = vmatpush1.msra.mxu0 0.0
    %8164 = vmatprep.subr.mxu0 0.0
    %8165 = vmatpush1.msra.mxu0 0.0
    %8166 = vmatprep.subr.mxu0 0.0
    %8167 = vmatpush1.msra.mxu0 0.0
    %8168 = vmatprep.subr.mxu0 0.0
    %8169 = vmatpush1.msra.mxu0 0.0
    %8170 = vmatprep.subr.mxu0 0.0
    %8171 = vmatpush1.msra.mxu0 0.0
    %8172 = vmatprep.subr.mxu0 0.0
    %8173 = vmatpush1.msra.mxu0 0.0
    %8174 = vmatprep.subr.mxu0 0.0
    %8175 = vmatpush1.msra.mxu0 0.0
    %8176 = vmatprep.subr.mxu0 0.0
    %8177 = vmatpush1.msra.mxu0 0.0
    %8178 = vmatprep.subr.mxu0 0.0
    %8179 = vmatpush1.msra.mxu0 0.0
    %8180 = vmatprep.subr.mxu0 0.0
    %8181 = vmatpush1.msra.mxu0 0.0
    %8182 = vmatprep.subr.mxu0 0.0
    %8183 = vmatpush1.msra.mxu0 0.0
    %8184 = vmatprep.subr.mxu0 0.0
    %8185 = vmatpush1.msra.mxu0 0.0
    %8186 = vmatprep.subr.mxu0 0.0
    %8187 = vmatpush1.msra.mxu0 0.0
    %8188 = vmatprep.subr.mxu0 0.0
    %8189 = vmatpush1.msra.mxu0 0.0
    %8190 = vmatprep.subr.mxu0 0.0
    %8191 = vmatpush1.msra.mxu0 0.0
    %8192 = vmatprep.subr.mxu0 0.0
    %8193 = vmatpush1.msra.mxu0 0.0
    %8194 = vmatprep.subr.mxu0 0.0
    %8195 = vmatpush1.msra.mxu0 0.0
    %8196 = vmatprep.subr.mxu0 0.0
    %8197 = vmatpush1.msra.mxu0 0.0
    %8198 = vmatprep.mubr.f32.mxu0 0.0
    %8199 = vmatmul.mubr.f32.gmra.mrb[0].mxu0 %v8132
    %v8200 = vpop.f32.mrb[0].mxu0
    %v8201 = vadd.f32 0.0, %v8200
    %v8202 = vpop.f32.mrb[0].mxu0
    %8203 = vdwg.mxu0
    %8204 = vrot.lane.b32.xlu0 %v7353, 96
    %v8205 = vpop.permute.xlu0 %8204
    %v8208 = vsel %vm697, %v8046, 0
    %8210 = vmatprep.subr.mxu0 0.0
    %8211 = vmatpush1.msra.mxu0 %v8205
    %8212 = vmatprep.subr.mxu0 0.0
    %8213 = vmatpush1.msra.mxu0 0.0
    %8214 = vmatprep.subr.mxu0 0.0
    %8215 = vmatpush1.msra.mxu0 0.0
    %8216 = vmatprep.subr.mxu0 0.0
    %8217 = vmatpush1.msra.mxu0 0.0
    %8218 = vmatprep.subr.mxu0 0.0
    %8219 = vmatpush1.msra.mxu0 0.0
    %8220 = vmatprep.subr.mxu0 0.0
    %8221 = vmatpush1.msra.mxu0 0.0
    %8222 = vmatprep.subr.mxu0 0.0
    %8223 = vmatpush1.msra.mxu0 0.0
    %8224 = vmatprep.subr.mxu0 0.0
    %8225 = vmatpush1.msra.mxu0 0.0
    %8226 = vmatprep.subr.mxu0 0.0
    %8227 = vmatpush1.msra.mxu0 0.0
    %8228 = vmatprep.subr.mxu0 0.0
    %8229 = vmatpush1.msra.mxu0 0.0
    %8230 = vmatprep.subr.mxu0 0.0
    %8231 = vmatpush1.msra.mxu0 0.0
    %8232 = vmatprep.subr.mxu0 0.0
    %8233 = vmatpush1.msra.mxu0 0.0
    %8234 = vmatprep.subr.mxu0 0.0
    %8235 = vmatpush1.msra.mxu0 0.0
    %8236 = vmatprep.subr.mxu0 0.0
    %8237 = vmatpush1.msra.mxu0 0.0
    %8238 = vmatprep.subr.mxu0 0.0
    %8239 = vmatpush1.msra.mxu0 0.0
    %8240 = vmatprep.subr.mxu0 0.0
    %8241 = vmatpush1.msra.mxu0 0.0
    %8242 = vmatprep.subr.mxu0 0.0
    %8243 = vmatpush1.msra.mxu0 0.0
    %8244 = vmatprep.subr.mxu0 0.0
    %8245 = vmatpush1.msra.mxu0 0.0
    %8246 = vmatprep.subr.mxu0 0.0
    %8247 = vmatpush1.msra.mxu0 0.0
    %8248 = vmatprep.subr.mxu0 0.0
    %8249 = vmatpush1.msra.mxu0 0.0
    %8250 = vmatprep.subr.mxu0 0.0
    %8251 = vmatpush1.msra.mxu0 0.0
    %8252 = vmatprep.subr.mxu0 0.0
    %8253 = vmatpush1.msra.mxu0 0.0
    %8254 = vmatprep.subr.mxu0 0.0
    %8255 = vmatpush1.msra.mxu0 0.0
    %8256 = vmatprep.subr.mxu0 0.0
    %8257 = vmatpush1.msra.mxu0 0.0
    %8258 = vmatprep.subr.mxu0 0.0
    %8259 = vmatpush1.msra.mxu0 0.0
    %8260 = vmatprep.subr.mxu0 0.0
    %8261 = vmatpush1.msra.mxu0 0.0
    %8262 = vmatprep.subr.mxu0 0.0
    %8263 = vmatpush1.msra.mxu0 0.0
    %8264 = vmatprep.subr.mxu0 0.0
    %8265 = vmatpush1.msra.mxu0 0.0
    %8266 = vmatprep.subr.mxu0 0.0
    %8267 = vmatpush1.msra.mxu0 0.0
    %8268 = vmatprep.subr.mxu0 0.0
    %8269 = vmatpush1.msra.mxu0 0.0
    %8270 = vmatprep.subr.mxu0 0.0
    %8271 = vmatpush1.msra.mxu0 0.0
    %8272 = vmatprep.subr.mxu0 0.0
    %8273 = vmatpush1.msra.mxu0 0.0
    %8274 = vmatprep.mubr.f32.mxu0 0.0
    %8275 = vmatmul.mubr.f32.gmra.mrb[0].mxu0 %v8208
    %v8276 = vpop.f32.mrb[0].mxu0
    %v8277 = vadd.f32 0.0, %v8276
    %v8278 = vpop.f32.mrb[0].mxu0
    %8279 = vdwg.mxu0
    %8280 = vrot.lane.b32.xlu0 %v7355, 96
    %v8281 = vpop.permute.xlu0 %8280
    %v8284 = vsel %vm697, %v8047, 0
    %8286 = vmatprep.subr.mxu0 0.0
    %8287 = vmatpush1.msra.mxu0 %v8281
    %8288 = vmatprep.subr.mxu0 0.0
    %8289 = vmatpush1.msra.mxu0 0.0
    %8290 = vmatprep.subr.mxu0 0.0
    %8291 = vmatpush1.msra.mxu0 0.0
    %8292 = vmatprep.subr.mxu0 0.0
    %8293 = vmatpush1.msra.mxu0 0.0
    %8294 = vmatprep.subr.mxu0 0.0
    %8295 = vmatpush1.msra.mxu0 0.0
    %8296 = vmatprep.subr.mxu0 0.0
    %8297 = vmatpush1.msra.mxu0 0.0
    %8298 = vmatprep.subr.mxu0 0.0
    %8299 = vmatpush1.msra.mxu0 0.0
    %8300 = vmatprep.subr.mxu0 0.0
    %8301 = vmatpush1.msra.mxu0 0.0
    %8302 = vmatprep.subr.mxu0 0.0
    %8303 = vmatpush1.msra.mxu0 0.0
    %8304 = vmatprep.subr.mxu0 0.0
    %8305 = vmatpush1.msra.mxu0 0.0
    %8306 = vmatprep.subr.mxu0 0.0
    %8307 = vmatpush1.msra.mxu0 0.0
    %8308 = vmatprep.subr.mxu0 0.0
    %8309 = vmatpush1.msra.mxu0 0.0
    %8310 = vmatprep.subr.mxu0 0.0
    %8311 = vmatpush1.msra.mxu0 0.0
    %8312 = vmatprep.subr.mxu0 0.0
    %8313 = vmatpush1.msra.mxu0 0.0
    %8314 = vmatprep.subr.mxu0 0.0
    %8315 = vmatpush1.msra.mxu0 0.0
    %8316 = vmatprep.subr.mxu0 0.0
    %8317 = vmatpush1.msra.mxu0 0.0
    %8318 = vmatprep.subr.mxu0 0.0
    %8319 = vmatpush1.msra.mxu0 0.0
    %8320 = vmatprep.subr.mxu0 0.0
    %8321 = vmatpush1.msra.mxu0 0.0
    %8322 = vmatprep.subr.mxu0 0.0
    %8323 = vmatpush1.msra.mxu0 0.0
    %8324 = vmatprep.subr.mxu0 0.0
    %8325 = vmatpush1.msra.mxu0 0.0
    %8326 = vmatprep.subr.mxu0 0.0
    %8327 = vmatpush1.msra.mxu0 0.0
    %8328 = vmatprep.subr.mxu0 0.0
    %8329 = vmatpush1.msra.mxu0 0.0
    %8330 = vmatprep.subr.mxu0 0.0
    %8331 = vmatpush1.msra.mxu0 0.0
    %8332 = vmatprep.subr.mxu0 0.0
    %8333 = vmatpush1.msra.mxu0 0.0
    %8334 = vmatprep.subr.mxu0 0.0
    %8335 = vmatpush1.msra.mxu0 0.0
    %8336 = vmatprep.subr.mxu0 0.0
    %8337 = vmatpush1.msra.mxu0 0.0
    %8338 = vmatprep.subr.mxu0 0.0
    %8339 = vmatpush1.msra.mxu0 0.0
    %8340 = vmatprep.subr.mxu0 0.0
    %8341 = vmatpush1.msra.mxu0 0.0
    %8342 = vmatprep.subr.mxu0 0.0
    %8343 = vmatpush1.msra.mxu0 0.0
    %8344 = vmatprep.subr.mxu0 0.0
    %8345 = vmatpush1.msra.mxu0 0.0
    %8346 = vmatprep.subr.mxu0 0.0
    %8347 = vmatpush1.msra.mxu0 0.0
    %8348 = vmatprep.subr.mxu0 0.0
    %8349 = vmatpush1.msra.mxu0 0.0
    %8350 = vmatprep.mubr.f32.mxu0 0.0
    %8351 = vmatmul.mubr.f32.gmra.mrb[0].mxu0 %v8284
    %v8352 = vpop.f32.mrb[0].mxu0
    %v8353 = vadd.f32 0.0, %v8352
    %v8354 = vpop.f32.mrb[0].mxu0
    %8355 = vdwg.mxu0
    %8356 = vrot.lane.b32.xlu0 %v7357, 96
    %v8357 = vpop.permute.xlu0 %8356
    %v8360 = vsel %vm697, %v8048, 0
    %8362 = vmatprep.subr.mxu0 0.0
    %8363 = vmatpush1.msra.mxu0 %v8357
    %8364 = vmatprep.subr.mxu0 0.0
    %8365 = vmatpush1.msra.mxu0 0.0
    %8366 = vmatprep.subr.mxu0 0.0
    %8367 = vmatpush1.msra.mxu0 0.0
    %8368 = vmatprep.subr.mxu0 0.0
    %8369 = vmatpush1.msra.mxu0 0.0
    %8370 = vmatprep.subr.mxu0 0.0
    %8371 = vmatpush1.msra.mxu0 0.0
    %8372 = vmatprep.subr.mxu0 0.0
    %8373 = vmatpush1.msra.mxu0 0.0
    %8374 = vmatprep.subr.mxu0 0.0
    %8375 = vmatpush1.msra.mxu0 0.0
    %8376 = vmatprep.subr.mxu0 0.0
    %8377 = vmatpush1.msra.mxu0 0.0
    %8378 = vmatprep.subr.mxu0 0.0
    %8379 = vmatpush1.msra.mxu0 0.0
    %8380 = vmatprep.subr.mxu0 0.0
    %8381 = vmatpush1.msra.mxu0 0.0
    %8382 = vmatprep.subr.mxu0 0.0
    %8383 = vmatpush1.msra.mxu0 0.0
    %8384 = vmatprep.subr.mxu0 0.0
    %8385 = vmatpush1.msra.mxu0 0.0
    %8386 = vmatprep.subr.mxu0 0.0
    %8387 = vmatpush1.msra.mxu0 0.0
    %8388 = vmatprep.subr.mxu0 0.0
    %8389 = vmatpush1.msra.mxu0 0.0
    %8390 = vmatprep.subr.mxu0 0.0
    %8391 = vmatpush1.msra.mxu0 0.0
    %8392 = vmatprep.subr.mxu0 0.0
    %8393 = vmatpush1.msra.mxu0 0.0
    %8394 = vmatprep.subr.mxu0 0.0
    %8395 = vmatpush1.msra.mxu0 0.0
    %8396 = vmatprep.subr.mxu0 0.0
    %8397 = vmatpush1.msra.mxu0 0.0
    %8398 = vmatprep.subr.mxu0 0.0
    %8399 = vmatpush1.msra.mxu0 0.0
    %8400 = vmatprep.subr.mxu0 0.0
    %8401 = vmatpush1.msra.mxu0 0.0
    %8402 = vmatprep.subr.mxu0 0.0
    %8403 = vmatpush1.msra.mxu0 0.0
    %8404 = vmatprep.subr.mxu0 0.0
    %8405 = vmatpush1.msra.mxu0 0.0
    %8406 = vmatprep.subr.mxu0 0.0
    %8407 = vmatpush1.msra.mxu0 0.0
    %8408 = vmatprep.subr.mxu0 0.0
    %8409 = vmatpush1.msra.mxu0 0.0
    %8410 = vmatprep.subr.mxu0 0.0
    %8411 = vmatpush1.msra.mxu0 0.0
    %8412 = vmatprep.subr.mxu0 0.0
    %8413 = vmatpush1.msra.mxu0 0.0
    %8414 = vmatprep.subr.mxu0 0.0
    %8415 = vmatpush1.msra.mxu0 0.0
    %8416 = vmatprep.subr.mxu0 0.0
    %8417 = vmatpush1.msra.mxu0 0.0
    %8418 = vmatprep.subr.mxu0 0.0
    %8419 = vmatpush1.msra.mxu0 0.0
    %8420 = vmatprep.subr.mxu0 0.0
    %8421 = vmatpush1.msra.mxu0 0.0
    %8422 = vmatprep.subr.mxu0 0.0
    %8423 = vmatpush1.msra.mxu0 0.0
    %8424 = vmatprep.subr.mxu0 0.0
    %8425 = vmatpush1.msra.mxu0 0.0
    %8426 = vmatprep.mubr.f32.mxu0 0.0
    %8427 = vmatmul.mubr.f32.gmra.mrb[0].mxu0 %v8360
    %v8428 = vpop.f32.mrb[0].mxu0
    %v8429 = vadd.f32 0.0, %v8428
    %v8430 = vpop.f32.mrb[0].mxu0
    %8431 = vdwg.mxu0
    %8432 = vrot.lane.b32.xlu0 %v7359, 96
    %v8433 = vpop.permute.xlu0 %8432
    %v8436 = vsel %vm697, %v8049, 0
    %8438 = vmatprep.subr.mxu0 0.0
    %8439 = vmatpush1.msra.mxu0 %v8433
    %8440 = vmatprep.subr.mxu0 0.0
    %8441 = vmatpush1.msra.mxu0 0.0
    %8442 = vmatprep.subr.mxu0 0.0
    %8443 = vmatpush1.msra.mxu0 0.0
    %8444 = vmatprep.subr.mxu0 0.0
    %8445 = vmatpush1.msra.mxu0 0.0
    %8446 = vmatprep.subr.mxu0 0.0
    %8447 = vmatpush1.msra.mxu0 0.0
    %8448 = vmatprep.subr.mxu0 0.0
    %8449 = vmatpush1.msra.mxu0 0.0
    %8450 = vmatprep.subr.mxu0 0.0
    %8451 = vmatpush1.msra.mxu0 0.0
    %8452 = vmatprep.subr.mxu0 0.0
    %8453 = vmatpush1.msra.mxu0 0.0
    %8454 = vmatprep.subr.mxu0 0.0
    %8455 = vmatpush1.msra.mxu0 0.0
    %8456 = vmatprep.subr.mxu0 0.0
    %8457 = vmatpush1.msra.mxu0 0.0
    %8458 = vmatprep.subr.mxu0 0.0
    %8459 = vmatpush1.msra.mxu0 0.0
    %8460 = vmatprep.subr.mxu0 0.0
    %8461 = vmatpush1.msra.mxu0 0.0
    %8462 = vmatprep.subr.mxu0 0.0
    %8463 = vmatpush1.msra.mxu0 0.0
    %8464 = vmatprep.subr.mxu0 0.0
    %8465 = vmatpush1.msra.mxu0 0.0
    %8466 = vmatprep.subr.mxu0 0.0
    %8467 = vmatpush1.msra.mxu0 0.0
    %8468 = vmatprep.subr.mxu0 0.0
    %8469 = vmatpush1.msra.mxu0 0.0
    %8470 = vmatprep.subr.mxu0 0.0
    %8471 = vmatpush1.msra.mxu0 0.0
    %8472 = vmatprep.subr.mxu0 0.0
    %8473 = vmatpush1.msra.mxu0 0.0
    %8474 = vmatprep.subr.mxu0 0.0
    %8475 = vmatpush1.msra.mxu0 0.0
    %8476 = vmatprep.subr.mxu0 0.0
    %8477 = vmatpush1.msra.mxu0 0.0
    %8478 = vmatprep.subr.mxu0 0.0
    %8479 = vmatpush1.msra.mxu0 0.0
    %8480 = vmatprep.subr.mxu0 0.0
    %8481 = vmatpush1.msra.mxu0 0.0
    %8482 = vmatprep.subr.mxu0 0.0
    %8483 = vmatpush1.msra.mxu0 0.0
    %8484 = vmatprep.subr.mxu0 0.0
    %8485 = vmatpush1.msra.mxu0 0.0
    %8486 = vmatprep.subr.mxu0 0.0
    %8487 = vmatpush1.msra.mxu0 0.0
    %8488 = vmatprep.subr.mxu0 0.0
    %8489 = vmatpush1.msra.mxu0 0.0
    %8490 = vmatprep.subr.mxu0 0.0
    %8491 = vmatpush1.msra.mxu0 0.0
    %8492 = vmatprep.subr.mxu0 0.0
    %8493 = vmatpush1.msra.mxu0 0.0
    %8494 = vmatprep.subr.mxu0 0.0
    %8495 = vmatpush1.msra.mxu0 0.0
    %8496 = vmatprep.subr.mxu0 0.0
    %8497 = vmatpush1.msra.mxu0 0.0
    %8498 = vmatprep.subr.mxu0 0.0
    %8499 = vmatpush1.msra.mxu0 0.0
    %8500 = vmatprep.subr.mxu0 0.0
    %8501 = vmatpush1.msra.mxu0 0.0
    %8502 = vmatprep.mubr.f32.mxu0 0.0
    %8503 = vmatmul.mubr.f32.gmra.mrb[0].mxu0 %v8436
    %v8504 = vpop.f32.mrb[0].mxu0
    %v8505 = vadd.f32 0.0, %v8504
    %v8506 = vpop.f32.mrb[0].mxu0
    %8507 = vdwg.mxu0
    %8508 = vrot.lane.b32.xlu0 %v7361, 96
    %v8509 = vpop.permute.xlu0 %8508
    %v8512 = vsel %vm697, %v8050, 0
    %8514 = vmatprep.subr.mxu0 0.0
    %8515 = vmatpush1.msra.mxu0 %v8509
    %8516 = vmatprep.subr.mxu0 0.0
    %8517 = vmatpush1.msra.mxu0 0.0
    %8518 = vmatprep.subr.mxu0 0.0
    %8519 = vmatpush1.msra.mxu0 0.0
    %8520 = vmatprep.subr.mxu0 0.0
    %8521 = vmatpush1.msra.mxu0 0.0
    %8522 = vmatprep.subr.mxu0 0.0
    %8523 = vmatpush1.msra.mxu0 0.0
    %8524 = vmatprep.subr.mxu0 0.0
    %8525 = vmatpush1.msra.mxu0 0.0
    %8526 = vmatprep.subr.mxu0 0.0
    %8527 = vmatpush1.msra.mxu0 0.0
    %8528 = vmatprep.subr.mxu0 0.0
    %8529 = vmatpush1.msra.mxu0 0.0
    %8530 = vmatprep.subr.mxu0 0.0
    %8531 = vmatpush1.msra.mxu0 0.0
    %8532 = vmatprep.subr.mxu0 0.0
    %8533 = vmatpush1.msra.mxu0 0.0
    %8534 = vmatprep.subr.mxu0 0.0
    %8535 = vmatpush1.msra.mxu0 0.0
    %8536 = vmatprep.subr.mxu0 0.0
    %8537 = vmatpush1.msra.mxu0 0.0
    %8538 = vmatprep.subr.mxu0 0.0
    %8539 = vmatpush1.msra.mxu0 0.0
    %8540 = vmatprep.subr.mxu0 0.0
    %8541 = vmatpush1.msra.mxu0 0.0
    %8542 = vmatprep.subr.mxu0 0.0
    %8543 = vmatpush1.msra.mxu0 0.0
    %8544 = vmatprep.subr.mxu0 0.0
    %8545 = vmatpush1.msra.mxu0 0.0
    %8546 = vmatprep.subr.mxu0 0.0
    %8547 = vmatpush1.msra.mxu0 0.0
    %8548 = vmatprep.subr.mxu0 0.0
    %8549 = vmatpush1.msra.mxu0 0.0
    %8550 = vmatprep.subr.mxu0 0.0
    %8551 = vmatpush1.msra.mxu0 0.0
    %8552 = vmatprep.subr.mxu0 0.0
    %8553 = vmatpush1.msra.mxu0 0.0
    %8554 = vmatprep.subr.mxu0 0.0
    %8555 = vmatpush1.msra.mxu0 0.0
    %8556 = vmatprep.subr.mxu0 0.0
    %8557 = vmatpush1.msra.mxu0 0.0
    %8558 = vmatprep.subr.mxu0 0.0
    %8559 = vmatpush1.msra.mxu0 0.0
    %8560 = vmatprep.subr.mxu0 0.0
    %8561 = vmatpush1.msra.mxu0 0.0
    %8562 = vmatprep.subr.mxu0 0.0
    %8563 = vmatpush1.msra.mxu0 0.0
    %8564 = vmatprep.subr.mxu0 0.0
    %8565 = vmatpush1.msra.mxu0 0.0
    %8566 = vmatprep.subr.mxu0 0.0
    %8567 = vmatpush1.msra.mxu0 0.0
    %8568 = vmatprep.subr.mxu0 0.0
    %8569 = vmatpush1.msra.mxu0 0.0
    %8570 = vmatprep.subr.mxu0 0.0
    %8571 = vmatpush1.msra.mxu0 0.0
    %8572 = vmatprep.subr.mxu0 0.0
    %8573 = vmatpush1.msra.mxu0 0.0
    %8574 = vmatprep.subr.mxu0 0.0
    %8575 = vmatpush1.msra.mxu0 0.0
    %8576 = vmatprep.subr.mxu0 0.0
    %8577 = vmatpush1.msra.mxu0 0.0
    %8578 = vmatprep.mubr.f32.mxu0 0.0
    %8579 = vmatmul.mubr.f32.gmra.mrb[0].mxu0 %v8512
    %v8580 = vpop.f32.mrb[0].mxu0
    %v8581 = vadd.f32 0.0, %v8580
    %v8582 = vpop.f32.mrb[0].mxu0
    %8583 = vdwg.mxu0
    %8584 = vrot.lane.b32.xlu0 %v7363, 96
    %v8585 = vpop.permute.xlu0 %8584
    %v8588 = vsel %vm697, %v8051, 0
    %8590 = vmatprep.subr.mxu0 0.0
    %8591 = vmatpush1.msra.mxu0 %v8585
    %8592 = vmatprep.subr.mxu0 0.0
    %8593 = vmatpush1.msra.mxu0 0.0
    %8594 = vmatprep.subr.mxu0 0.0
    %8595 = vmatpush1.msra.mxu0 0.0
    %8596 = vmatprep.subr.mxu0 0.0
    %8597 = vmatpush1.msra.mxu0 0.0
    %8598 = vmatprep.subr.mxu0 0.0
    %8599 = vmatpush1.msra.mxu0 0.0
    %8600 = vmatprep.subr.mxu0 0.0
    %8601 = vmatpush1.msra.mxu0 0.0
    %8602 = vmatprep.subr.mxu0 0.0
    %8603 = vmatpush1.msra.mxu0 0.0
    %8604 = vmatprep.subr.mxu0 0.0
    %8605 = vmatpush1.msra.mxu0 0.0
    %8606 = vmatprep.subr.mxu0 0.0
    %8607 = vmatpush1.msra.mxu0 0.0
    %8608 = vmatprep.subr.mxu0 0.0
    %8609 = vmatpush1.msra.mxu0 0.0
    %8610 = vmatprep.subr.mxu0 0.0
    %8611 = vmatpush1.msra.mxu0 0.0
    %8612 = vmatprep.subr.mxu0 0.0
    %8613 = vmatpush1.msra.mxu0 0.0
    %8614 = vmatprep.subr.mxu0 0.0
    %8615 = vmatpush1.msra.mxu0 0.0
    %8616 = vmatprep.subr.mxu0 0.0
    %8617 = vmatpush1.msra.mxu0 0.0
    %8618 = vmatprep.subr.mxu0 0.0
    %8619 = vmatpush1.msra.mxu0 0.0
    %8620 = vmatprep.subr.mxu0 0.0
    %8621 = vmatpush1.msra.mxu0 0.0
    %8622 = vmatprep.subr.mxu0 0.0
    %8623 = vmatpush1.msra.mxu0 0.0
    %8624 = vmatprep.subr.mxu0 0.0
    %8625 = vmatpush1.msra.mxu0 0.0
    %8626 = vmatprep.subr.mxu0 0.0
    %8627 = vmatpush1.msra.mxu0 0.0
    %8628 = vmatprep.subr.mxu0 0.0
    %8629 = vmatpush1.msra.mxu0 0.0
    %8630 = vmatprep.subr.mxu0 0.0
    %8631 = vmatpush1.msra.mxu0 0.0
    %8632 = vmatprep.subr.mxu0 0.0
    %8633 = vmatpush1.msra.mxu0 0.0
    %8634 = vmatprep.subr.mxu0 0.0
    %8635 = vmatpush1.msra.mxu0 0.0
    %8636 = vmatprep.subr.mxu0 0.0
    %8637 = vmatpush1.msra.mxu0 0.0
    %8638 = vmatprep.subr.mxu0 0.0
    %8639 = vmatpush1.msra.mxu0 0.0
    %8640 = vmatprep.subr.mxu0 0.0
    %8641 = vmatpush1.msra.mxu0 0.0
    %8642 = vmatprep.subr.mxu0 0.0
    %8643 = vmatpush1.msra.mxu0 0.0
    %8644 = vmatprep.subr.mxu0 0.0
    %8645 = vmatpush1.msra.mxu0 0.0
    %8646 = vmatprep.subr.mxu0 0.0
    %8647 = vmatpush1.msra.mxu0 0.0
    %8648 = vmatprep.subr.mxu0 0.0
    %8649 = vmatpush1.msra.mxu0 0.0
    %8650 = vmatprep.subr.mxu0 0.0
    %8651 = vmatpush1.msra.mxu0 0.0
    %8652 = vmatprep.subr.mxu0 0.0
    %8653 = vmatpush1.msra.mxu0 0.0
    %8654 = vmatprep.mubr.f32.mxu0 0.0
    %8655 = vmatmul.mubr.f32.gmra.mrb[0].mxu0 %v8588
    %v8656 = vpop.f32.mrb[0].mxu0
    %v8657 = vadd.f32 0.0, %v8656
    %v8658 = vpop.f32.mrb[0].mxu0
    %8659 = vdwg.mxu0
    %8662 = vrot.lane.b32.xlu0 %v8277, 8
    %v8663 = vpop.permute.xlu0 %8662
    %8664 = vrot.lane.b32.xlu0 %v8353, 8
    %v8665 = vpop.permute.xlu0 %8664
    %8670 = vrot.lane.b32.xlu0 %v8429, 16
    %v8671 = vpop.permute.xlu0 %8670
    %8672 = vrot.lane.b32.xlu0 %v8505, 16
    %v8673 = vpop.permute.xlu0 %8672
    %8678 = vrot.lane.b32.xlu0 %v8581, 24
    %v8679 = vpop.permute.xlu0 %8678
    %8680 = vrot.lane.b32.xlu0 %v8657, 24
    %v8681 = vpop.permute.xlu0 %8680
    %v8684 = vsel %vm697, %v8125, %v8663
    %v8685 = vsel %vm697, %v8201, %v8665
    %v8686 = vsel %vm3372, %v8684, %v8671
    %v8687 = vsel %vm3372, %v8685, %v8673
    %v8688 = vsel %vm3377, %v8686, %v8679
    %v8689 = vsel %vm3377, %v8687, %v8681
    %v8690 = vld [vmem:[%s14 + $0x14] sm:$0x1]
    %v8691 = vlaneseq
    %v8692 = vshrl.u32 %v8691, 7
    %v8693 = vsub.s32 0, %v8692
    %v8694 = vrot.slane %v8690, %v8693
    %v8696 = vsel %vm259, %v8688, 0
    %v8699 = vsel %vm259, %v8689, 0
    %8701 = vmatprep.subr.mxu0 0.0
    %8702 = vmatpush1.msra.mxu0 %v7145
    %8703 = vmatprep.subr.mxu0 0.0
    %8704 = vmatpush1.msra.mxu0 %v7146
    %8705 = vmatprep.subr.mxu0 0.0
    %8706 = vmatpush1.msra.mxu0 %v7147
    %8707 = vmatprep.subr.mxu0 0.0
    %8708 = vmatpush1.msra.mxu0 %v7148
    %8709 = vmatprep.subr.mxu0 0.0
    %8710 = vmatpush1.msra.mxu0 0.0
    %8711 = vmatprep.subr.mxu0 0.0
    %8712 = vmatpush1.msra.mxu0 0.0
    %8713 = vmatprep.subr.mxu0 0.0
    %8714 = vmatpush1.msra.mxu0 0.0
    %8715 = vmatprep.subr.mxu0 0.0
    %8716 = vmatpush1.msra.mxu0 0.0
    %8717 = vmatprep.subr.mxu0 0.0
    %8718 = vmatpush1.msra.mxu0 0.0
    %8719 = vmatprep.subr.mxu0 0.0
    %8720 = vmatpush1.msra.mxu0 0.0
    %8721 = vmatprep.subr.mxu0 0.0
    %8722 = vmatpush1.msra.mxu0 0.0
    %8723 = vmatprep.subr.mxu0 0.0
    %8724 = vmatpush1.msra.mxu0 0.0
    %8725 = vmatprep.subr.mxu0 0.0
    %8726 = vmatpush1.msra.mxu0 0.0
    %8727 = vmatprep.subr.mxu0 0.0
    %8728 = vmatpush1.msra.mxu0 0.0
    %8729 = vmatprep.subr.mxu0 0.0
    %8730 = vmatpush1.msra.mxu0 0.0
    %8731 = vmatprep.subr.mxu0 0.0
    %8732 = vmatpush1.msra.mxu0 0.0
    %8733 = vmatprep.subr.mxu0 0.0
    %8734 = vmatpush1.msra.mxu0 0.0
    %8735 = vmatprep.subr.mxu0 0.0
    %8736 = vmatpush1.msra.mxu0 0.0
    %8737 = vmatprep.subr.mxu0 0.0
    %8738 = vmatpush1.msra.mxu0 0.0
    %8739 = vmatprep.subr.mxu0 0.0
    %8740 = vmatpush1.msra.mxu0 0.0
    %8741 = vmatprep.subr.mxu0 0.0
    %8742 = vmatpush1.msra.mxu0 0.0
    %8743 = vmatprep.subr.mxu0 0.0
    %8744 = vmatpush1.msra.mxu0 0.0
    %8745 = vmatprep.subr.mxu0 0.0
    %8746 = vmatpush1.msra.mxu0 0.0
    %8747 = vmatprep.subr.mxu0 0.0
    %8748 = vmatpush1.msra.mxu0 0.0
    %8749 = vmatprep.subr.mxu0 0.0
    %8750 = vmatpush1.msra.mxu0 0.0
    %8751 = vmatprep.subr.mxu0 0.0
    %8752 = vmatpush1.msra.mxu0 0.0
    %8753 = vmatprep.subr.mxu0 0.0
    %8754 = vmatpush1.msra.mxu0 0.0
    %8755 = vmatprep.subr.mxu0 0.0
    %8756 = vmatpush1.msra.mxu0 0.0
    %8757 = vmatprep.subr.mxu0 0.0
    %8758 = vmatpush1.msra.mxu0 0.0
    %8759 = vmatprep.subr.mxu0 0.0
    %8760 = vmatpush1.msra.mxu0 0.0
    %8761 = vmatprep.subr.mxu0 0.0
    %8762 = vmatpush1.msra.mxu0 0.0
    %8763 = vmatprep.subr.mxu0 0.0
    %8764 = vmatpush1.msra.mxu0 0.0
    %8765 = vmatprep.mubr.f32.mxu0 0.0
    %8766 = vmatmul.mubr.f32.gmra.mrb[0].mxu0 %v8696
    %v8767 = vpop.f32.mrb[0].mxu0
    %v8768 = vadd.f32 %v8694, %v8767
    %v8769 = vpop.f32.mrb[0].mxu0
    %8770 = vmatprep.mubr.f32.mxu0 0.0
    %8771 = vmatmul.mubr.f32.gmra.mrb[0].mxu0 %v8699
    %v8772 = vpop.f32.mrb[0].mxu0
    %v8773 = vadd.f32 %v8694, %v8772
    %v8774 = vpop.f32.mrb[0].mxu0
    %8775 = vdwg.mxu0
    %v8776 = vld [vmem:[%s12] sm:$0xff]
    %v8777 = vld [vmem:[%s12 + $0x8] sm:$0xff]
    %v8778 = vld [vmem:[%s12 + $0x10] sm:$0xff]
    %v8779 = vld [vmem:[%s12 + $0x18] sm:$0xff]
    %v8780 = vld [vmem:[%s14 + $0x15] sm:$0x1]
    %v8781 = vlaneseq
    %v8782 = vshrl.u32 %v8781, 7
    %v8783 = vsub.s32 0, %v8782
    %v8784 = vrot.slane %v8780, %v8783
    %v8787 = vrot.slane %v8768, 7
    %v8788 = vrot.slane %v8773, 6
    %vm8789 = vcmask 1041409
    %v8790 = vsel %vm8789, %v8788, %v8787
    %v8791 = vsel %vm259, %v8790, 0
    %8793 = vmatprep.subr.mxu0 0.0
    %8794 = vmatpush1.msra.mxu0 %v8776
    %8795 = vmatprep.subr.mxu0 0.0
    %8796 = vmatpush1.msra.mxu0 %v8777
    %8797 = vmatprep.subr.mxu0 0.0
    %8798 = vmatpush1.msra.mxu0 %v8778
    %8799 = vmatprep.subr.mxu0 0.0
    %8800 = vmatpush1.msra.mxu0 %v8779
    %8801 = vmatprep.subr.mxu0 0.0
    %8802 = vmatpush1.msra.mxu0 0.0
    %8803 = vmatprep.subr.mxu0 0.0
    %8804 = vmatpush1.msra.mxu0 0.0
    %8805 = vmatprep.subr.mxu0 0.0
    %8806 = vmatpush1.msra.mxu0 0.0
    %8807 = vmatprep.subr.mxu0 0.0
    %8808 = vmatpush1.msra.mxu0 0.0
    %8809 = vmatprep.subr.mxu0 0.0
    %8810 = vmatpush1.msra.mxu0 0.0
    %8811 = vmatprep.subr.mxu0 0.0
    %8812 = vmatpush1.msra.mxu0 0.0
    %8813 = vmatprep.subr.mxu0 0.0
    %8814 = vmatpush1.msra.mxu0 0.0
    %8815 = vmatprep.subr.mxu0 0.0
    %8816 = vmatpush1.msra.mxu0 0.0
    %8817 = vmatprep.subr.mxu0 0.0
    %8818 = vmatpush1.msra.mxu0 0.0
    %8819 = vmatprep.subr.mxu0 0.0
    %8820 = vmatpush1.msra.mxu0 0.0
    %8821 = vmatprep.subr.mxu0 0.0
    %8822 = vmatpush1.msra.mxu0 0.0
    %8823 = vmatprep.subr.mxu0 0.0
    %8824 = vmatpush1.msra.mxu0 0.0
    %8825 = vmatprep.subr.mxu0 0.0
    %8826 = vmatpush1.msra.mxu0 0.0
    %8827 = vmatprep.subr.mxu0 0.0
    %8828 = vmatpush1.msra.mxu0 0.0
    %8829 = vmatprep.subr.mxu0 0.0
    %8830 = vmatpush1.msra.mxu0 0.0
    %8831 = vmatprep.subr.mxu0 0.0
    %8832 = vmatpush1.msra.mxu0 0.0
    %8833 = vmatprep.subr.mxu0 0.0
    %8834 = vmatpush1.msra.mxu0 0.0
    %8835 = vmatprep.subr.mxu0 0.0
    %8836 = vmatpush1.msra.mxu0 0.0
    %8837 = vmatprep.subr.mxu0 0.0
    %8838 = vmatpush1.msra.mxu0 0.0
    %8839 = vmatprep.subr.mxu0 0.0
    %8840 = vmatpush1.msra.mxu0 0.0
    %8841 = vmatprep.subr.mxu0 0.0
    %8842 = vmatpush1.msra.mxu0 0.0
    %8843 = vmatprep.subr.mxu0 0.0
    %8844 = vmatpush1.msra.mxu0 0.0
    %8845 = vmatprep.subr.mxu0 0.0
    %8846 = vmatpush1.msra.mxu0 0.0
    %8847 = vmatprep.subr.mxu0 0.0
    %8848 = vmatpush1.msra.mxu0 0.0
    %8849 = vmatprep.subr.mxu0 0.0
    %8850 = vmatpush1.msra.mxu0 0.0
    %8851 = vmatprep.subr.mxu0 0.0
    %8852 = vmatpush1.msra.mxu0 0.0
    %8853 = vmatprep.subr.mxu0 0.0
    %8854 = vmatpush1.msra.mxu0 0.0
    %8855 = vmatprep.subr.mxu0 0.0
    %8856 = vmatpush1.msra.mxu0 0.0
    %8857 = vmatprep.mubr.f32.mxu0 0.0
    %8858 = vmatmul.mubr.f32.gmra.mrb[0].mxu0 %v8791
    %v8859 = vpop.f32.mrb[0].mxu0
    %v8860 = vadd.f32 %v8784, %v8859
    %v8861 = vpop.f32.mrb[0].mxu0
    %8862 = vdwg.mxu0
    %v8863 = vmax.f32 %v8860, 0.0
    %v8864 = vld [vmem:[%s13] sm:$0xff]
    %v8865 = vld [vmem:[%s13 + $0x8] sm:$0xff]
    %v8866 = vld [vmem:[%s14 + $0x16] sm:$0x1]
    %v8867 = vlaneseq
    %v8868 = vshrl.u32 %v8867, 7
    %v8869 = vsub.s32 0, %v8868
    %v8870 = vrot.slane %v8866, %v8869
    %v8872 = vsel %vm3372, %v8863, 0
    %8874 = vmatprep.subr.mxu0 0.0
    %8875 = vmatpush1.msra.mxu0 %v8864
    %8876 = vmatprep.subr.mxu0 0.0
    %8877 = vmatpush1.msra.mxu0 %v8865
    %8878 = vmatprep.subr.mxu0 0.0
    %8879 = vmatpush1.msra.mxu0 0.0
    %8880 = vmatprep.subr.mxu0 0.0
    %8881 = vmatpush1.msra.mxu0 0.0
    %8882 = vmatprep.subr.mxu0 0.0
    %8883 = vmatpush1.msra.mxu0 0.0
    %8884 = vmatprep.subr.mxu0 0.0
    %8885 = vmatpush1.msra.mxu0 0.0
    %8886 = vmatprep.subr.mxu0 0.0
    %8887 = vmatpush1.msra.mxu0 0.0
    %8888 = vmatprep.subr.mxu0 0.0
    %8889 = vmatpush1.msra.mxu0 0.0
    %8890 = vmatprep.subr.mxu0 0.0
    %8891 = vmatpush1.msra.mxu0 0.0
    %8892 = vmatprep.subr.mxu0 0.0
    %8893 = vmatpush1.msra.mxu0 0.0
    %8894 = vmatprep.subr.mxu0 0.0
    %8895 = vmatpush1.msra.mxu0 0.0
    %8896 = vmatprep.subr.mxu0 0.0
    %8897 = vmatpush1.msra.mxu0 0.0
    %8898 = vmatprep.subr.mxu0 0.0
    %8899 = vmatpush1.msra.mxu0 0.0
    %8900 = vmatprep.subr.mxu0 0.0
    %8901 = vmatpush1.msra.mxu0 0.0
    %8902 = vmatprep.subr.mxu0 0.0
    %8903 = vmatpush1.msra.mxu0 0.0
    %8904 = vmatprep.subr.mxu0 0.0
    %8905 = vmatpush1.msra.mxu0 0.0
    %8906 = vmatprep.subr.mxu0 0.0
    %8907 = vmatpush1.msra.mxu0 0.0
    %8908 = vmatprep.subr.mxu0 0.0
    %8909 = vmatpush1.msra.mxu0 0.0
    %8910 = vmatprep.subr.mxu0 0.0
    %8911 = vmatpush1.msra.mxu0 0.0
    %8912 = vmatprep.subr.mxu0 0.0
    %8913 = vmatpush1.msra.mxu0 0.0
    %8914 = vmatprep.subr.mxu0 0.0
    %8915 = vmatpush1.msra.mxu0 0.0
    %8916 = vmatprep.subr.mxu0 0.0
    %8917 = vmatpush1.msra.mxu0 0.0
    %8918 = vmatprep.subr.mxu0 0.0
    %8919 = vmatpush1.msra.mxu0 0.0
    %8920 = vmatprep.subr.mxu0 0.0
    %8921 = vmatpush1.msra.mxu0 0.0
    %8922 = vmatprep.subr.mxu0 0.0
    %8923 = vmatpush1.msra.mxu0 0.0
    %8924 = vmatprep.subr.mxu0 0.0
    %8925 = vmatpush1.msra.mxu0 0.0
    %8926 = vmatprep.subr.mxu0 0.0
    %8927 = vmatpush1.msra.mxu0 0.0
    %8928 = vmatprep.subr.mxu0 0.0
    %8929 = vmatpush1.msra.mxu0 0.0
    %8930 = vmatprep.subr.mxu0 0.0
    %8931 = vmatpush1.msra.mxu0 0.0
    %8932 = vmatprep.subr.mxu0 0.0
    %8933 = vmatpush1.msra.mxu0 0.0
    %8934 = vmatprep.subr.mxu0 0.0
    %8935 = vmatpush1.msra.mxu0 0.0
    %8936 = vmatprep.subr.mxu0 0.0
    %8937 = vmatpush1.msra.mxu0 0.0
    %8938 = vmatprep.mubr.f32.mxu0 0.0
    %8939 = vmatmul.mubr.f32.gmra.mrb[0].mxu0 %v8872
    %v8940 = vpop.f32.mrb[0].mxu0
    %v8941 = vadd.f32 %v8870, %v8940
    %v8942 = vpop.f32.mrb[0].mxu0
    %8943 = vdwg.mxu0
    %vm8944 = vcmask 1024
    %8945 = vst.msk [vmem:[%s15] sm:$0x3] %vm8944, %v8941
    // Predicated region
    $region66: #{forward.1} parent=1 // pred_check
      _
    $region67: #{forward.1} parent=1 // pred_check_branch
      %8947 = sbr.rel (0) target = $region69
    $region68: #{forward.1} parent=1 // pred_region
      _
    $region69: #{forward.1} parent=1 // pred_fallthru
      _
    // Predicated region
    $region70: #{forward.1} parent=1 // pred_check
      _
    $region71: #{forward.1} parent=1 // pred_check_branch
      %8949 = sbr.rel (0) target = $region73
    $region72: #{forward.1} parent=1 // pred_region
      _
    $region73: #{forward.1} parent=1 // pred_fallthru
      _
    %8950 = vsyncpa [#allocation3], 1

</llo_original>
